<compile_context>
chip_gen: v5e
topology: v5e:2x2
jax: 0.10.0
libtpu: 0.0.40
codegen_flags: <defaults>
</compile_context>

<pallas_src>
import numpy as np
import jax
import jax.numpy as jnp
from jax import lax
from jax.experimental import pallas as pl
from jax.experimental.pallas import tpu as pltpu

C = 32  # channel width of every internal layer


# ----------------------------- in-kernel helpers ----------------------------

def _conv_rows(src_ref, im_ref, w, b, store_row, *, K, Ho, Wo, relu):
    """Stride-1 'valid' conv over a zero-padded f32 NHWC source ref.

    For every output row h:
      - scatter the K*K shifted (Wo, C) patches into the bf16 im2col staging
        buffer at 32-lane offsets (start-aligned masked stores),
      - one fat MXU matmul (Wo, K*K*C) x (K*K*C, Cout) with f32 accumulation,
      - bias + optional ReLU in f32,
      - hand the (Wo, Cout) f32 row to `store_row` (which writes it into the
        padded destination buffer / output ref).
    """
    KKC = K * K * C

    def body(h, carry):
        for ki in range(K):
            row = src_ref[h + ki]                                  # (Wp, C) f32
            for kj in range(K):
                t = ki * K + kj
                im_ref[0:Wo, t * C:(t + 1) * C] = (
                    row[kj:kj + Wo, :].astype(im_ref.dtype))
        patch = im_ref[0:Wo, 0:KKC]                                 # (Wo, K*K*C) bf16
        acc = jnp.dot(patch, w, preferred_element_type=jnp.float32) + b
        if relu:
            acc = jnp.maximum(acc, 0.0)
        store_row(h, acc)
        return carry

    lax.fori_loop(0, Ho, body, 0)


def _store_into(dst_ref, row_off, col_off):
    """Store a conv output row into the interior of a zero-padded buffer."""
    def store(h, acc):                                              # acc (Wo, C) f32
        wo = acc.shape[0]
        dst_ref[row_off + h, col_off:col_off + wo, :] = acc.astype(dst_ref.dtype)
    return store


def _store_dilated(dst_ref, sel):
    """Write row h of a (41,41,C) result, stride-2 dilated, into dst rows 2+2h.

    sel is a (81, 41) 0/1 selection matrix (sel[2b, b] = 1) so the column
    dilation is a cheap exact MXU matmul; odd rows / border stay zero from the
    buffer pre-zeroing.
    """
    def store(h, acc):                                              # acc (41, C) f32
        dil = jnp.dot(sel, acc, preferred_element_type=jnp.float32)  # (81, C)
        dst_ref[2 + 2 * h, 2:83, :] = dil.astype(dst_ref.dtype)
    return store


def _store_out(o_ref):
    def store(h, acc):                                              # acc (84, 32) f32
        o_ref[h] = acc.astype(o_ref.dtype)
    return store


# ------------------------------- fused kernel -------------------------------

def _decoder_kernel(x_ref, w0, b0, w1, b1, w2, b2, w3, b3, w4, b4,
                    o_ref, im, p1, p2, p3, p4):
    # Zero the padded intermediates once per image (borders + dilation zeros).
    p1[...] = jnp.zeros_like(p1)
    p2[...] = jnp.zeros_like(p2)
    p3[...] = jnp.zeros_like(p3)
    p4[...] = jnp.zeros_like(p4)

    # deconv1: padded input (39,39) -> 37x37 -> p1 interior [2:39, 2:39]
    _conv_rows(x_ref, im, w0[...], b0[...], _store_into(p1, 2, 2),
               K=3, Ho=37, Wo=37, relu=True)

    # deconv2: p1 (41,41) -> 39x39 -> p2 interior [2:41, 2:41]
    _conv_rows(p1, im, w1[...], b1[...], _store_into(p2, 2, 2),
               K=3, Ho=39, Wo=39, relu=True)

    # deconv3: p2 (43,43) -> 41x41, then stride-2 dilate + pad(2) into p3 (85,85)
    sel = (lax.broadcasted_iota(jnp.int32, (81, 41), 0) ==
           2 * lax.broadcasted_iota(jnp.int32, (81, 41), 1)).astype(jnp.float32)
    _conv_rows(p2, im, w2[...], b2[...], _store_dilated(p3, sel),
               K=3, Ho=41, Wo=41, relu=True)

    # deconv4 (stride 2, rewritten as conv on dilated+padded input):
    # p3 (85,85) -> 83x83 -> p4 interior [1:84, 1:84]  (pad=1 for final conv)
    _conv_rows(p3, im, w3[...], b3[...], _store_into(p4, 1, 1),
               K=3, Ho=83, Wo=83, relu=True)

    # final Conv2d(32, 3->32 padded, k=2, pad=1): p4 (85,85) -> 84x84 -> output
    _conv_rows(p4, im, w4[...], b4[...], _store_out(o_ref),
               K=2, Ho=84, Wo=84, relu=False)


# ------------------------------ wrapper / glue -------------------------------

def _deconv_weight_flat(w):
    """torch ConvTranspose2d weight (Cin,Cout,K,K) -> flattened conv weight
    (K*K*Cin, Cout): spatial flip + HWIO + im2col-order reshape."""
    k = w.shape[-1]
    whwio = jnp.flip(w, axis=(2, 3)).transpose(2, 3, 0, 1)   # (K,K,Cin,Cout)
    return whwio.reshape(k * k * w.shape[0], w.shape[1])


def _conv_weight_flat_padded(w, cout_pad):
    """torch Conv2d weight (Cout,Cin,K,K) -> (K*K*Cin, cout_pad), Cout zero-padded."""
    k = w.shape[-1]
    whwio = w.transpose(2, 3, 1, 0)                          # (K,K,Cin,Cout)
    whwio = jnp.pad(whwio, ((0, 0), (0, 0), (0, 0), (0, cout_pad - w.shape[0])))
    return whwio.reshape(k * k * w.shape[1], cout_pad)


@jax.jit
def decoder_forward(obs, params):
    """obs: (B, 32*35*35) or (B,32,35,35) NCHW.  Returns (B, 3, 84, 84) NCHW."""
    B = obs.shape[0]
    x = obs.reshape(B, 32, 35, 35).transpose(0, 2, 3, 1)     # NCHW -> NHWC
    x = jnp.pad(x, ((0, 0), (2, 2), (2, 2), (0, 0)))         # pad for deconv1 (39,39)
    x = x.astype(jnp.float32)

    ws, bs = [], []
    for i in range(4):
        w, b = params[f"deconv{i}"]
        ws.append(_deconv_weight_flat(w).astype(jnp.bfloat16))          # (288, 32)
        bs.append(b.reshape(1, C).astype(jnp.float32))
    w, b = params["conv"]
    ws.append(_conv_weight_flat_padded(w, C).astype(jnp.bfloat16))      # (128, 32)
    bs.append(jnp.pad(b, (0, C - 3)).reshape(1, C).astype(jnp.float32))

    w_spec3 = pl.BlockSpec((9 * C, C), lambda i: (0, 0))
    w_spec2 = pl.BlockSpec((4 * C, C), lambda i: (0, 0))
    b_spec = pl.BlockSpec((1, C), lambda i: (0, 0))

    out = pl.pallas_call(
        _decoder_kernel,
        out_shape=jax.ShapeDtypeStruct((B, 84, 84, C), jnp.float32),
        grid=(B,),
        in_specs=[
            pl.BlockSpec((None, 39, 39, C), lambda i: (i, 0, 0, 0)),
            w_spec3, b_spec,   # deconv1
            w_spec3, b_spec,   # deconv2
            w_spec3, b_spec,   # deconv3
            w_spec3, b_spec,   # deconv4 (stride 2)
            w_spec2, b_spec,   # final conv (Cout padded to 32)
        ],
        out_specs=pl.BlockSpec((None, 84, 84, C), lambda i: (i, 0, 0, 0)),
        scratch_shapes=[
            pltpu.VMEM((84, 9 * C), jnp.bfloat16),    # im2col staging (max Wo, max K*K*C)
            pltpu.VMEM((41, 41, C), jnp.float32),     # deconv1 out, padded by 2
            pltpu.VMEM((43, 43, C), jnp.float32),     # deconv2 out, padded by 2
            pltpu.VMEM((85, 85, C), jnp.float32),     # deconv3 out, dilated x2 + padded by 2
            pltpu.VMEM((85, 85, C), jnp.float32),     # deconv4 out, padded by 1
        ],
        compiler_params=pltpu.CompilerParams(dimension_semantics=("parallel",)),
    )(x, ws[0], bs[0], ws[1], bs[1], ws[2], bs[2], ws[3], bs[3], ws[4], bs[4])

    return out[..., :3].transpose(0, 3, 1, 2)                # NHWC(32) -> NCHW(3)


# -------------------------- params & pure-XLA reference ----------------------

def init_params(key):
    # Deterministic synthetic init (weight_init in the original is just an init scheme).
    ks = jax.random.split(key, 10)
    params = {}
    for i in range(4):
        w = jax.random.normal(ks[2 * i], (32, 32, 3, 3), jnp.float32) * 0.05
        b = jax.random.normal(ks[2 * i + 1], (32,), jnp.float32) * 0.05
        params[f"deconv{i}"] = (w, b)
    w = jax.random.normal(ks[8], (3, 32, 2, 2), jnp.float32) * 0.05
    b = jax.random.normal(ks[9], (3,), jnp.float32) * 0.05
    params["conv"] = (w, b)
    return params


def decoder_forward_ref(obs, params):
    B = obs.shape[0]
    x = obs.reshape(B, 32, 35, 35).transpose(0, 2, 3, 1)
    dn = ("NHWC", "HWIO", "NHWC")
    strides = (1, 1, 1, 2)
    for i in range(4):
        w, b = params[f"deconv{i}"]
        wc = jnp.flip(w, axis=(2, 3)).transpose(2, 3, 0, 1)
        x = lax.conv_general_dilated(x, wc, (1, 1), [(2, 2), (2, 2)],
                                     lhs_dilation=(strides[i], strides[i]),
                                     dimension_numbers=dn) + b
        x = jnp.maximum(x, 0.0)
    w, b = params["conv"]
    wc = w.transpose(2, 3, 1, 0)
    x = lax.conv_general_dilated(x, wc, (1, 1), [(1, 1), (1, 1)],
                                 dimension_numbers=dn) + b
    return x.transpose(0, 3, 1, 2)


if __name__ == "__main__":
    key = jax.random.PRNGKey(0)
    pkey, okey = jax.random.split(key)
    params = init_params(pkey)

    B = 2
    obs = jax.random.normal(okey, (B, 32 * 35 * 35), jnp.float32)

    out = jax.block_until_ready(decoder_forward(obs, params))
    assert out.shape == (B, 3, 84, 84), out.shape

    ref = jax.block_until_ready(decoder_forward_ref(obs, params))
    # bf16 MXU operands vs f32 reference -> slightly loosened tolerance.
    np.testing.assert_allclose(np.asarray(out), np.asarray(ref), rtol=5e-2, atol=2e-2)

    print("KERNEL_OK")
</pallas_src>

<mosaic_0001>
module attributes {stable_mosaic.version = 11 : i64} {
  func.func @_decoder_kernel(%arg0: i32, %arg1: memref<1x39x39x32xf32, #tpu.memory_space<vmem>>, %arg2: memref<288x32xbf16, #tpu.memory_space<vmem>>, %arg3: memref<1x32xf32, #tpu.memory_space<vmem>>, %arg4: memref<288x32xbf16, #tpu.memory_space<vmem>>, %arg5: memref<1x32xf32, #tpu.memory_space<vmem>>, %arg6: memref<288x32xbf16, #tpu.memory_space<vmem>>, %arg7: memref<1x32xf32, #tpu.memory_space<vmem>>, %arg8: memref<288x32xbf16, #tpu.memory_space<vmem>>, %arg9: memref<1x32xf32, #tpu.memory_space<vmem>>, %arg10: memref<128x32xbf16, #tpu.memory_space<vmem>>, %arg11: memref<1x32xf32, #tpu.memory_space<vmem>>, %arg12: memref<1x84x84x32xf32, #tpu.memory_space<vmem>>, %arg13: memref<84x288xbf16, #tpu.memory_space<vmem>>, %arg14: memref<41x41x32xf32, #tpu.memory_space<vmem>>, %arg15: memref<43x43x32xf32, #tpu.memory_space<vmem>>, %arg16: memref<85x85x32xf32, #tpu.memory_space<vmem>>, %arg17: memref<85x85x32xf32, #tpu.memory_space<vmem>>) attributes {dimension_semantics = [#tpu.dimension_semantics<parallel>], iteration_bounds = array<i64: 2>, scalar_prefetch = 0 : i64, scratch_operands = 5 : i64, tpu.core_type = #tpu.core_type<tc>, window_params = [{transform_indices = @transform_0, window_bounds = array<i64: 1, 39, 39, 32>}, {pipeline_mode = #tpu.pipeline_mode<synchronous>, transform_indices = @transform_1, window_bounds = array<i64: 288, 32>}, {pipeline_mode = #tpu.pipeline_mode<synchronous>, transform_indices = @transform_2, window_bounds = array<i64: 1, 32>}, {pipeline_mode = #tpu.pipeline_mode<synchronous>, transform_indices = @transform_3, window_bounds = array<i64: 288, 32>}, {pipeline_mode = #tpu.pipeline_mode<synchronous>, transform_indices = @transform_4, window_bounds = array<i64: 1, 32>}, {pipeline_mode = #tpu.pipeline_mode<synchronous>, transform_indices = @transform_5, window_bounds = array<i64: 288, 32>}, {pipeline_mode = #tpu.pipeline_mode<synchronous>, transform_indices = @transform_6, window_bounds = array<i64: 1, 32>}, {pipeline_mode = #tpu.pipeline_mode<synchronous>, transform_indices = @transform_7, window_bounds = array<i64: 288, 32>}, {pipeline_mode = #tpu.pipeline_mode<synchronous>, transform_indices = @transform_8, window_bounds = array<i64: 1, 32>}, {pipeline_mode = #tpu.pipeline_mode<synchronous>, transform_indices = @transform_9, window_bounds = array<i64: 128, 32>}, {pipeline_mode = #tpu.pipeline_mode<synchronous>, transform_indices = @transform_10, window_bounds = array<i64: 1, 32>}, {transform_indices = @transform_11, window_bounds = array<i64: 1, 84, 84, 32>}]} {
    %cst = arith.constant 0.000000e+00 : f32
    %0 = vector.broadcast %cst : f32 to vector<41x41x32xf32>
    %c0 = arith.constant 0 : index
    %c0_0 = arith.constant 0 : index
    %c0_1 = arith.constant 0 : index
    %1 = vector.load %arg14[%c0, %c0_0, %c0_1] : memref<41x41x32xf32, #tpu.memory_space<vmem>>, vector<41x41x32xf32>
    tpu.vector_store %arg14[%c0, %c0_0, %c0_1], %0 {strides = array<i32>} : memref<41x41x32xf32, #tpu.memory_space<vmem>>, vector<41x41x32xf32>,
    %cst_2 = arith.constant 0.000000e+00 : f32
    %2 = vector.broadcast %cst_2 : f32 to vector<43x43x32xf32>
    %c0_3 = arith.constant 0 : index
    %c0_4 = arith.constant 0 : index
    %c0_5 = arith.constant 0 : index
    %3 = vector.load %arg15[%c0_3, %c0_4, %c0_5] : memref<43x43x32xf32, #tpu.memory_space<vmem>>, vector<43x43x32xf32>
    tpu.vector_store %arg15[%c0_3, %c0_4, %c0_5], %2 {strides = array<i32>} : memref<43x43x32xf32, #tpu.memory_space<vmem>>, vector<43x43x32xf32>,
    %cst_6 = arith.constant 0.000000e+00 : f32
    %4 = vector.broadcast %cst_6 : f32 to vector<85x85x32xf32>
    %c0_7 = arith.constant 0 : index
    %c0_8 = arith.constant 0 : index
    %c0_9 = arith.constant 0 : index
    %5 = vector.load %arg16[%c0_7, %c0_8, %c0_9] : memref<85x85x32xf32, #tpu.memory_space<vmem>>, vector<85x85x32xf32>
    tpu.vector_store %arg16[%c0_7, %c0_8, %c0_9], %4 {strides = array<i32>} : memref<85x85x32xf32, #tpu.memory_space<vmem>>, vector<85x85x32xf32>,
    %cst_10 = arith.constant 0.000000e+00 : f32
    %6 = vector.broadcast %cst_10 : f32 to vector<85x85x32xf32>
    %c0_11 = arith.constant 0 : index
    %c0_12 = arith.constant 0 : index
    %c0_13 = arith.constant 0 : index
    %7 = vector.load %arg17[%c0_11, %c0_12, %c0_13] : memref<85x85x32xf32, #tpu.memory_space<vmem>>, vector<85x85x32xf32>
    tpu.vector_store %arg17[%c0_11, %c0_12, %c0_13], %6 {strides = array<i32>} : memref<85x85x32xf32, #tpu.memory_space<vmem>>, vector<85x85x32xf32>,
    %c0_14 = arith.constant 0 : index
    %c0_15 = arith.constant 0 : index
    %8 = vector.load %arg2[%c0_14, %c0_15] : memref<288x32xbf16, #tpu.memory_space<vmem>>, vector<288x32xbf16>
    %c0_16 = arith.constant 0 : index
    %c0_17 = arith.constant 0 : index
    %9 = vector.load %arg3[%c0_16, %c0_17] : memref<1x32xf32, #tpu.memory_space<vmem>>, vector<1x32xf32>
    %c0_i32 = arith.constant 0 : i32
    %c37_i32 = arith.constant 37 : i32
    %10 = arith.addi %c0_i32, %c37_i32 : i32
    %c1_i32 = arith.constant 1 : i32
    scf.for %arg18 = %c0_i32 to %10 step %c1_i32  : i32 {
      %c0_i32_47 = arith.constant 0 : i32
      %30 = arith.addi %arg18, %c0_i32_47 : i32
      %c0_48 = arith.constant 0 : index
      %31 = arith.index_cast %30 : i32 to index
      %c0_49 = arith.constant 0 : index
      %c0_50 = arith.constant 0 : index
      %32 = vector.load %arg1[%c0_48, %31, %c0_49, %c0_50] : memref<1x39x39x32xf32, #tpu.memory_space<vmem>>, vector<1x1x39x32xf32>
      %33 = vector.shape_cast %32 : vector<1x1x39x32xf32> to vector<39x32xf32>
      %34 = vector.extract_strided_slice %33 {offsets = [0, 0], sizes = [37, 32], strides = [1, 1]} : vector<39x32xf32> to vector<37x32xf32>
      %35 = arith.truncf %34 : vector<37x32xf32> to vector<37x32xbf16>
      %c0_51 = arith.constant 0 : index
      %c0_52 = arith.constant 0 : index
      %36 = vector.load %arg13[%c0_51, %c0_52] : memref<84x288xbf16, #tpu.memory_space<vmem>>, vector<37x32xbf16>
      tpu.vector_store %arg13[%c0_51, %c0_52], %35 {strides = array<i32>} : memref<84x288xbf16, #tpu.memory_space<vmem>>, vector<37x32xbf16>,
      %37 = vector.extract_strided_slice %33 {offsets = [1, 0], sizes = [37, 32], strides = [1, 1]} : vector<39x32xf32> to vector<37x32xf32>
      %38 = arith.truncf %37 : vector<37x32xf32> to vector<37x32xbf16>
      %c0_53 = arith.constant 0 : index
      %c32 = arith.constant 32 : index
      %39 = vector.load %arg13[%c0_53, %c32] : memref<84x288xbf16, #tpu.memory_space<vmem>>, vector<37x32xbf16>
      tpu.vector_store %arg13[%c0_53, %c32], %38 {strides = array<i32>} : memref<84x288xbf16, #tpu.memory_space<vmem>>, vector<37x32xbf16>,
      %40 = vector.extract_strided_slice %33 {offsets = [2, 0], sizes = [37, 32], strides = [1, 1]} : vector<39x32xf32> to vector<37x32xf32>
      %41 = arith.truncf %40 : vector<37x32xf32> to vector<37x32xbf16>
      %c0_54 = arith.constant 0 : index
      %c64 = arith.constant 64 : index
      %42 = vector.load %arg13[%c0_54, %c64] : memref<84x288xbf16, #tpu.memory_space<vmem>>, vector<37x32xbf16>
      tpu.vector_store %arg13[%c0_54, %c64], %41 {strides = array<i32>} : memref<84x288xbf16, #tpu.memory_space<vmem>>, vector<37x32xbf16>,
      %c1_i32_55 = arith.constant 1 : i32
      %43 = arith.addi %arg18, %c1_i32_55 : i32
      %c0_56 = arith.constant 0 : index
      %44 = arith.index_cast %43 : i32 to index
      %c0_57 = arith.constant 0 : index
      %c0_58 = arith.constant 0 : index
      %45 = vector.load %arg1[%c0_56, %44, %c0_57, %c0_58] : memref<1x39x39x32xf32, #tpu.memory_space<vmem>>, vector<1x1x39x32xf32>
      %46 = vector.shape_cast %45 : vector<1x1x39x32xf32> to vector<39x32xf32>
      %47 = vector.extract_strided_slice %46 {offsets = [0, 0], sizes = [37, 32], strides = [1, 1]} : vector<39x32xf32> to vector<37x32xf32>
      %48 = arith.truncf %47 : vector<37x32xf32> to vector<37x32xbf16>
      %c0_59 = arith.constant 0 : index
      %c96 = arith.constant 96 : index
      %49 = vector.load %arg13[%c0_59, %c96] : memref<84x288xbf16, #tpu.memory_space<vmem>>, vector<37x32xbf16>
      tpu.vector_store %arg13[%c0_59, %c96], %48 {strides = array<i32>} : memref<84x288xbf16, #tpu.memory_space<vmem>>, vector<37x32xbf16>,
      %50 = vector.extract_strided_slice %46 {offsets = [1, 0], sizes = [37, 32], strides = [1, 1]} : vector<39x32xf32> to vector<37x32xf32>
      %51 = arith.truncf %50 : vector<37x32xf32> to vector<37x32xbf16>
      %c0_60 = arith.constant 0 : index
      %c128 = arith.constant 128 : index
      %52 = vector.load %arg13[%c0_60, %c128] : memref<84x288xbf16, #tpu.memory_space<vmem>>, vector<37x32xbf16>
      tpu.vector_store %arg13[%c0_60, %c128], %51 {strides = array<i32>} : memref<84x288xbf16, #tpu.memory_space<vmem>>, vector<37x32xbf16>,
      %53 = vector.extract_strided_slice %46 {offsets = [2, 0], sizes = [37, 32], strides = [1, 1]} : vector<39x32xf32> to vector<37x32xf32>
      %54 = arith.truncf %53 : vector<37x32xf32> to vector<37x32xbf16>
      %c0_61 = arith.constant 0 : index
      %c160 = arith.constant 160 : index
      %55 = vector.load %arg13[%c0_61, %c160] : memref<84x288xbf16, #tpu.memory_space<vmem>>, vector<37x32xbf16>
      tpu.vector_store %arg13[%c0_61, %c160], %54 {strides = array<i32>} : memref<84x288xbf16, #tpu.memory_space<vmem>>, vector<37x32xbf16>,
      %c2_i32_62 = arith.constant 2 : i32
      %56 = arith.addi %arg18, %c2_i32_62 : i32
      %c0_63 = arith.constant 0 : index
      %57 = arith.index_cast %56 : i32 to index
      %c0_64 = arith.constant 0 : index
      %c0_65 = arith.constant 0 : index
      %58 = vector.load %arg1[%c0_63, %57, %c0_64, %c0_65] : memref<1x39x39x32xf32, #tpu.memory_space<vmem>>, vector<1x1x39x32xf32>
      %59 = vector.shape_cast %58 : vector<1x1x39x32xf32> to vector<39x32xf32>
      %60 = vector.extract_strided_slice %59 {offsets = [0, 0], sizes = [37, 32], strides = [1, 1]} : vector<39x32xf32> to vector<37x32xf32>
      %61 = arith.truncf %60 : vector<37x32xf32> to vector<37x32xbf16>
      %c0_66 = arith.constant 0 : index
      %c192 = arith.constant 192 : index
      %62 = vector.load %arg13[%c0_66, %c192] : memref<84x288xbf16, #tpu.memory_space<vmem>>, vector<37x32xbf16>
      tpu.vector_store %arg13[%c0_66, %c192], %61 {strides = array<i32>} : memref<84x288xbf16, #tpu.memory_space<vmem>>, vector<37x32xbf16>,
      %63 = vector.extract_strided_slice %59 {offsets = [1, 0], sizes = [37, 32], strides = [1, 1]} : vector<39x32xf32> to vector<37x32xf32>
      %64 = arith.truncf %63 : vector<37x32xf32> to vector<37x32xbf16>
      %c0_67 = arith.constant 0 : index
      %c224 = arith.constant 224 : index
      %65 = vector.load %arg13[%c0_67, %c224] : memref<84x288xbf16, #tpu.memory_space<vmem>>, vector<37x32xbf16>
      tpu.vector_store %arg13[%c0_67, %c224], %64 {strides = array<i32>} : memref<84x288xbf16, #tpu.memory_space<vmem>>, vector<37x32xbf16>,
      %66 = vector.extract_strided_slice %59 {offsets = [2, 0], sizes = [37, 32], strides = [1, 1]} : vector<39x32xf32> to vector<37x32xf32>
      %67 = arith.truncf %66 : vector<37x32xf32> to vector<37x32xbf16>
      %c0_68 = arith.constant 0 : index
      %c256 = arith.constant 256 : index
      %68 = vector.load %arg13[%c0_68, %c256] : memref<84x288xbf16, #tpu.memory_space<vmem>>, vector<37x32xbf16>
      tpu.vector_store %arg13[%c0_68, %c256], %67 {strides = array<i32>} : memref<84x288xbf16, #tpu.memory_space<vmem>>, vector<37x32xbf16>,
      %c0_69 = arith.constant 0 : index
      %c0_70 = arith.constant 0 : index
      %69 = vector.load %arg13[%c0_69, %c0_70] : memref<84x288xbf16, #tpu.memory_space<vmem>>, vector<37x288xbf16>
      %cst_71 = arith.constant dense<0.000000e+00> : vector<37x32xf32>
      %70 = tpu.matmul %69, %8, %cst_71 {dimension_numbers = #tpu.dot_dimension_numbers<[1], [0], [0], [1], [0, 0, 1, 1], [], []>} : vector<37x288xbf16>, vector<288x32xbf16>, vector<37x32xf32> -> vector<37x32xf32>
      %71 = vector.broadcast %9 : vector<1x32xf32> to vector<37x32xf32>
      %72 = arith.addf %70, %71 : vector<37x32xf32>
      %cst_72 = arith.constant 0.000000e+00 : f32
      %73 = vector.broadcast %cst_72 : f32 to vector<37x32xf32>
      %74 = arith.maximumf %72, %73 : vector<37x32xf32>
      %c2_i32_73 = arith.constant 2 : i32
      %75 = arith.addi %c2_i32_73, %arg18 : i32
      %76 = arith.index_cast %75 : i32 to index
      %c2 = arith.constant 2 : index
      %c0_74 = arith.constant 0 : index
      %77 = vector.load %arg14[%76, %c2, %c0_74] : memref<41x41x32xf32, #tpu.memory_space<vmem>>, vector<1x37x32xf32>
      %78 = vector.shape_cast %77 : vector<1x37x32xf32> to vector<37x32xf32>
      %79 = vector.shape_cast %74 : vector<37x32xf32> to vector<1x37x32xf32>
      tpu.vector_store %arg14[%76, %c2, %c0_74], %79 {strides = array<i32>} : memref<41x41x32xf32, #tpu.memory_space<vmem>>, vector<1x37x32xf32>,
    }
    %c37_i32_18 = arith.constant 37 : i32
    %c0_19 = arith.constant 0 : index
    %c0_20 = arith.constant 0 : index
    %11 = vector.load %arg4[%c0_19, %c0_20] : memref<288x32xbf16, #tpu.memory_space<vmem>>, vector<288x32xbf16>
    %c0_21 = arith.constant 0 : index
    %c0_22 = arith.constant 0 : index
    %12 = vector.load %arg5[%c0_21, %c0_22] : memref<1x32xf32, #tpu.memory_space<vmem>>, vector<1x32xf32>
    %c0_i32_23 = arith.constant 0 : i32
    %c39_i32 = arith.constant 39 : i32
    %13 = arith.addi %c0_i32_23, %c39_i32 : i32
    %c1_i32_24 = arith.constant 1 : i32
    scf.for %arg18 = %c0_i32_23 to %13 step %c1_i32_24  : i32 {
      %c0_i32_47 = arith.constant 0 : i32
      %30 = arith.addi %arg18, %c0_i32_47 : i32
      %31 = arith.index_cast %30 : i32 to index
      %c0_48 = arith.constant 0 : index
      %c0_49 = arith.constant 0 : index
      %32 = vector.load %arg14[%31, %c0_48, %c0_49] : memref<41x41x32xf32, #tpu.memory_space<vmem>>, vector<1x41x32xf32>
      %33 = vector.shape_cast %32 : vector<1x41x32xf32> to vector<41x32xf32>
      %34 = vector.extract_strided_slice %33 {offsets = [0, 0], sizes = [39, 32], strides = [1, 1]} : vector<41x32xf32> to vector<39x32xf32>
      %35 = arith.truncf %34 : vector<39x32xf32> to vector<39x32xbf16>
      %c0_50 = arith.constant 0 : index
      %c0_51 = arith.constant 0 : index
      %36 = vector.load %arg13[%c0_50, %c0_51] : memref<84x288xbf16, #tpu.memory_space<vmem>>, vector<39x32xbf16>
      tpu.vector_store %arg13[%c0_50, %c0_51], %35 {strides = array<i32>} : memref<84x288xbf16, #tpu.memory_space<vmem>>, vector<39x32xbf16>,
      %37 = vector.extract_strided_slice %33 {offsets = [1, 0], sizes = [39, 32], strides = [1, 1]} : vector<41x32xf32> to vector<39x32xf32>
      %38 = arith.truncf %37 : vector<39x32xf32> to vector<39x32xbf16>
      %c0_52 = arith.constant 0 : index
      %c32 = arith.constant 32 : index
      %39 = vector.load %arg13[%c0_52, %c32] : memref<84x288xbf16, #tpu.memory_space<vmem>>, vector<39x32xbf16>
      tpu.vector_store %arg13[%c0_52, %c32], %38 {strides = array<i32>} : memref<84x288xbf16, #tpu.memory_space<vmem>>, vector<39x32xbf16>,
      %40 = vector.extract_strided_slice %33 {offsets = [2, 0], sizes = [39, 32], strides = [1, 1]} : vector<41x32xf32> to vector<39x32xf32>
      %41 = arith.truncf %40 : vector<39x32xf32> to vector<39x32xbf16>
      %c0_53 = arith.constant 0 : index
      %c64 = arith.constant 64 : index
      %42 = vector.load %arg13[%c0_53, %c64] : memref<84x288xbf16, #tpu.memory_space<vmem>>, vector<39x32xbf16>
      tpu.vector_store %arg13[%c0_53, %c64], %41 {strides = array<i32>} : memref<84x288xbf16, #tpu.memory_space<vmem>>, vector<39x32xbf16>,
      %c1_i32_54 = arith.constant 1 : i32
      %43 = arith.addi %arg18, %c1_i32_54 : i32
      %44 = arith.index_cast %43 : i32 to index
      %c0_55 = arith.constant 0 : index
      %c0_56 = arith.constant 0 : index
      %45 = vector.load %arg14[%44, %c0_55, %c0_56] : memref<41x41x32xf32, #tpu.memory_space<vmem>>, vector<1x41x32xf32>
      %46 = vector.shape_cast %45 : vector<1x41x32xf32> to vector<41x32xf32>
      %47 = vector.extract_strided_slice %46 {offsets = [0, 0], sizes = [39, 32], strides = [1, 1]} : vector<41x32xf32> to vector<39x32xf32>
      %48 = arith.truncf %47 : vector<39x32xf32> to vector<39x32xbf16>
      %c0_57 = arith.constant 0 : index
      %c96 = arith.constant 96 : index
      %49 = vector.load %arg13[%c0_57, %c96] : memref<84x288xbf16, #tpu.memory_space<vmem>>, vector<39x32xbf16>
      tpu.vector_store %arg13[%c0_57, %c96], %48 {strides = array<i32>} : memref<84x288xbf16, #tpu.memory_space<vmem>>, vector<39x32xbf16>,
      %50 = vector.extract_strided_slice %46 {offsets = [1, 0], sizes = [39, 32], strides = [1, 1]} : vector<41x32xf32> to vector<39x32xf32>
      %51 = arith.truncf %50 : vector<39x32xf32> to vector<39x32xbf16>
      %c0_58 = arith.constant 0 : index
      %c128 = arith.constant 128 : index
      %52 = vector.load %arg13[%c0_58, %c128] : memref<84x288xbf16, #tpu.memory_space<vmem>>, vector<39x32xbf16>
      tpu.vector_store %arg13[%c0_58, %c128], %51 {strides = array<i32>} : memref<84x288xbf16, #tpu.memory_space<vmem>>, vector<39x32xbf16>,
      %53 = vector.extract_strided_slice %46 {offsets = [2, 0], sizes = [39, 32], strides = [1, 1]} : vector<41x32xf32> to vector<39x32xf32>
      %54 = arith.truncf %53 : vector<39x32xf32> to vector<39x32xbf16>
      %c0_59 = arith.constant 0 : index
      %c160 = arith.constant 160 : index
      %55 = vector.load %arg13[%c0_59, %c160] : memref<84x288xbf16, #tpu.memory_space<vmem>>, vector<39x32xbf16>
      tpu.vector_store %arg13[%c0_59, %c160], %54 {strides = array<i32>} : memref<84x288xbf16, #tpu.memory_space<vmem>>, vector<39x32xbf16>,
      %c2_i32_60 = arith.constant 2 : i32
      %56 = arith.addi %arg18, %c2_i32_60 : i32
      %57 = arith.index_cast %56 : i32 to index
      %c0_61 = arith.constant 0 : index
      %c0_62 = arith.constant 0 : index
      %58 = vector.load %arg14[%57, %c0_61, %c0_62] : memref<41x41x32xf32, #tpu.memory_space<vmem>>, vector<1x41x32xf32>
      %59 = vector.shape_cast %58 : vector<1x41x32xf32> to vector<41x32xf32>
      %60 = vector.extract_strided_slice %59 {offsets = [0, 0], sizes = [39, 32], strides = [1, 1]} : vector<41x32xf32> to vector<39x32xf32>
      %61 = arith.truncf %60 : vector<39x32xf32> to vector<39x32xbf16>
      %c0_63 = arith.constant 0 : index
      %c192 = arith.constant 192 : index
      %62 = vector.load %arg13[%c0_63, %c192] : memref<84x288xbf16, #tpu.memory_space<vmem>>, vector<39x32xbf16>
      tpu.vector_store %arg13[%c0_63, %c192], %61 {strides = array<i32>} : memref<84x288xbf16, #tpu.memory_space<vmem>>, vector<39x32xbf16>,
      %63 = vector.extract_strided_slice %59 {offsets = [1, 0], sizes = [39, 32], strides = [1, 1]} : vector<41x32xf32> to vector<39x32xf32>
      %64 = arith.truncf %63 : vector<39x32xf32> to vector<39x32xbf16>
      %c0_64 = arith.constant 0 : index
      %c224 = arith.constant 224 : index
      %65 = vector.load %arg13[%c0_64, %c224] : memref<84x288xbf16, #tpu.memory_space<vmem>>, vector<39x32xbf16>
      tpu.vector_store %arg13[%c0_64, %c224], %64 {strides = array<i32>} : memref<84x288xbf16, #tpu.memory_space<vmem>>, vector<39x32xbf16>,
      %66 = vector.extract_strided_slice %59 {offsets = [2, 0], sizes = [39, 32], strides = [1, 1]} : vector<41x32xf32> to vector<39x32xf32>
      %67 = arith.truncf %66 : vector<39x32xf32> to vector<39x32xbf16>
      %c0_65 = arith.constant 0 : index
      %c256 = arith.constant 256 : index
      %68 = vector.load %arg13[%c0_65, %c256] : memref<84x288xbf16, #tpu.memory_space<vmem>>, vector<39x32xbf16>
      tpu.vector_store %arg13[%c0_65, %c256], %67 {strides = array<i32>} : memref<84x288xbf16, #tpu.memory_space<vmem>>, vector<39x32xbf16>,
      %c0_66 = arith.constant 0 : index
      %c0_67 = arith.constant 0 : index
      %69 = vector.load %arg13[%c0_66, %c0_67] : memref<84x288xbf16, #tpu.memory_space<vmem>>, vector<39x288xbf16>
      %cst_68 = arith.constant dense<0.000000e+00> : vector<39x32xf32>
      %70 = tpu.matmul %69, %11, %cst_68 {dimension_numbers = #tpu.dot_dimension_numbers<[1], [0], [0], [1], [0, 0, 1, 1], [], []>} : vector<39x288xbf16>, vector<288x32xbf16>, vector<39x32xf32> -> vector<39x32xf32>
      %71 = vector.broadcast %12 : vector<1x32xf32> to vector<39x32xf32>
      %72 = arith.addf %70, %71 : vector<39x32xf32>
      %cst_69 = arith.constant 0.000000e+00 : f32
      %73 = vector.broadcast %cst_69 : f32 to vector<39x32xf32>
      %74 = arith.maximumf %72, %73 : vector<39x32xf32>
      %c2_i32_70 = arith.constant 2 : i32
      %75 = arith.addi %c2_i32_70, %arg18 : i32
      %76 = arith.index_cast %75 : i32 to index
      %c2 = arith.constant 2 : index
      %c0_71 = arith.constant 0 : index
      %77 = vector.load %arg15[%76, %c2, %c0_71] : memref<43x43x32xf32, #tpu.memory_space<vmem>>, vector<1x39x32xf32>
      %78 = vector.shape_cast %77 : vector<1x39x32xf32> to vector<39x32xf32>
      %79 = vector.shape_cast %74 : vector<39x32xf32> to vector<1x39x32xf32>
      tpu.vector_store %arg15[%76, %c2, %c0_71], %79 {strides = array<i32>} : memref<43x43x32xf32, #tpu.memory_space<vmem>>, vector<1x39x32xf32>,
    }
    %c39_i32_25 = arith.constant 39 : i32
    %14 = tpu.iota {dimensions = array<i32: 0>} : vector<81x41xi32>
    %15 = tpu.iota {dimensions = array<i32: 1>} : vector<81x41xi32>
    %c2_i32 = arith.constant 2 : i32
    %16 = vector.broadcast %c2_i32 : i32 to vector<81x41xi32>
    %17 = arith.muli %16, %15 : vector<81x41xi32>
    %18 = arith.cmpi eq, %14, %17 : vector<81x41xi32>
    %19 = arith.extui %18 : vector<81x41xi1> to vector<81x41xi32>
    %20 = arith.sitofp %19 : vector<81x41xi32> to vector<81x41xf32>
    %c0_26 = arith.constant 0 : index
    %c0_27 = arith.constant 0 : index
    %21 = vector.load %arg6[%c0_26, %c0_27] : memref<288x32xbf16, #tpu.memory_space<vmem>>, vector<288x32xbf16>
    %c0_28 = arith.constant 0 : index
    %c0_29 = arith.constant 0 : index
    %22 = vector.load %arg7[%c0_28, %c0_29] : memref<1x32xf32, #tpu.memory_space<vmem>>, vector<1x32xf32>
    %c0_i32_30 = arith.constant 0 : i32
    %c41_i32 = arith.constant 41 : i32
    %23 = arith.addi %c0_i32_30, %c41_i32 : i32
    %c1_i32_31 = arith.constant 1 : i32
    scf.for %arg18 = %c0_i32_30 to %23 step %c1_i32_31  : i32 {
      %c0_i32_47 = arith.constant 0 : i32
      %30 = arith.addi %arg18, %c0_i32_47 : i32
      %31 = arith.index_cast %30 : i32 to index
      %c0_48 = arith.constant 0 : index
      %c0_49 = arith.constant 0 : index
      %32 = vector.load %arg15[%31, %c0_48, %c0_49] : memref<43x43x32xf32, #tpu.memory_space<vmem>>, vector<1x43x32xf32>
      %33 = vector.shape_cast %32 : vector<1x43x32xf32> to vector<43x32xf32>
      %34 = vector.extract_strided_slice %33 {offsets = [0, 0], sizes = [41, 32], strides = [1, 1]} : vector<43x32xf32> to vector<41x32xf32>
      %35 = arith.truncf %34 : vector<41x32xf32> to vector<41x32xbf16>
      %c0_50 = arith.constant 0 : index
      %c0_51 = arith.constant 0 : index
      %36 = vector.load %arg13[%c0_50, %c0_51] : memref<84x288xbf16, #tpu.memory_space<vmem>>, vector<41x32xbf16>
      tpu.vector_store %arg13[%c0_50, %c0_51], %35 {strides = array<i32>} : memref<84x288xbf16, #tpu.memory_space<vmem>>, vector<41x32xbf16>,
      %37 = vector.extract_strided_slice %33 {offsets = [1, 0], sizes = [41, 32], strides = [1, 1]} : vector<43x32xf32> to vector<41x32xf32>
      %38 = arith.truncf %37 : vector<41x32xf32> to vector<41x32xbf16>
      %c0_52 = arith.constant 0 : index
      %c32 = arith.constant 32 : index
      %39 = vector.load %arg13[%c0_52, %c32] : memref<84x288xbf16, #tpu.memory_space<vmem>>, vector<41x32xbf16>
      tpu.vector_store %arg13[%c0_52, %c32], %38 {strides = array<i32>} : memref<84x288xbf16, #tpu.memory_space<vmem>>, vector<41x32xbf16>,
      %40 = vector.extract_strided_slice %33 {offsets = [2, 0], sizes = [41, 32], strides = [1, 1]} : vector<43x32xf32> to vector<41x32xf32>
      %41 = arith.truncf %40 : vector<41x32xf32> to vector<41x32xbf16>
      %c0_53 = arith.constant 0 : index
      %c64 = arith.constant 64 : index
      %42 = vector.load %arg13[%c0_53, %c64] : memref<84x288xbf16, #tpu.memory_space<vmem>>, vector<41x32xbf16>
      tpu.vector_store %arg13[%c0_53, %c64], %41 {strides = array<i32>} : memref<84x288xbf16, #tpu.memory_space<vmem>>, vector<41x32xbf16>,
      %c1_i32_54 = arith.constant 1 : i32
      %43 = arith.addi %arg18, %c1_i32_54 : i32
      %44 = arith.index_cast %43 : i32 to index
      %c0_55 = arith.constant 0 : index
      %c0_56 = arith.constant 0 : index
      %45 = vector.load %arg15[%44, %c0_55, %c0_56] : memref<43x43x32xf32, #tpu.memory_space<vmem>>, vector<1x43x32xf32>
      %46 = vector.shape_cast %45 : vector<1x43x32xf32> to vector<43x32xf32>
      %47 = vector.extract_strided_slice %46 {offsets = [0, 0], sizes = [41, 32], strides = [1, 1]} : vector<43x32xf32> to vector<41x32xf32>
      %48 = arith.truncf %47 : vector<41x32xf32> to vector<41x32xbf16>
      %c0_57 = arith.constant 0 : index
      %c96 = arith.constant 96 : index
      %49 = vector.load %arg13[%c0_57, %c96] : memref<84x288xbf16, #tpu.memory_space<vmem>>, vector<41x32xbf16>
      tpu.vector_store %arg13[%c0_57, %c96], %48 {strides = array<i32>} : memref<84x288xbf16, #tpu.memory_space<vmem>>, vector<41x32xbf16>,
      %50 = vector.extract_strided_slice %46 {offsets = [1, 0], sizes = [41, 32], strides = [1, 1]} : vector<43x32xf32> to vector<41x32xf32>
      %51 = arith.truncf %50 : vector<41x32xf32> to vector<41x32xbf16>
      %c0_58 = arith.constant 0 : index
      %c128 = arith.constant 128 : index
      %52 = vector.load %arg13[%c0_58, %c128] : memref<84x288xbf16, #tpu.memory_space<vmem>>, vector<41x32xbf16>
      tpu.vector_store %arg13[%c0_58, %c128], %51 {strides = array<i32>} : memref<84x288xbf16, #tpu.memory_space<vmem>>, vector<41x32xbf16>,
      %53 = vector.extract_strided_slice %46 {offsets = [2, 0], sizes = [41, 32], strides = [1, 1]} : vector<43x32xf32> to vector<41x32xf32>
      %54 = arith.truncf %53 : vector<41x32xf32> to vector<41x32xbf16>
      %c0_59 = arith.constant 0 : index
      %c160 = arith.constant 160 : index
      %55 = vector.load %arg13[%c0_59, %c160] : memref<84x288xbf16, #tpu.memory_space<vmem>>, vector<41x32xbf16>
      tpu.vector_store %arg13[%c0_59, %c160], %54 {strides = array<i32>} : memref<84x288xbf16, #tpu.memory_space<vmem>>, vector<41x32xbf16>,
      %c2_i32_60 = arith.constant 2 : i32
      %56 = arith.addi %arg18, %c2_i32_60 : i32
      %57 = arith.index_cast %56 : i32 to index
      %c0_61 = arith.constant 0 : index
      %c0_62 = arith.constant 0 : index
      %58 = vector.load %arg15[%57, %c0_61, %c0_62] : memref<43x43x32xf32, #tpu.memory_space<vmem>>, vector<1x43x32xf32>
      %59 = vector.shape_cast %58 : vector<1x43x32xf32> to vector<43x32xf32>
      %60 = vector.extract_strided_slice %59 {offsets = [0, 0], sizes = [41, 32], strides = [1, 1]} : vector<43x32xf32> to vector<41x32xf32>
      %61 = arith.truncf %60 : vector<41x32xf32> to vector<41x32xbf16>
      %c0_63 = arith.constant 0 : index
      %c192 = arith.constant 192 : index
      %62 = vector.load %arg13[%c0_63, %c192] : memref<84x288xbf16, #tpu.memory_space<vmem>>, vector<41x32xbf16>
      tpu.vector_store %arg13[%c0_63, %c192], %61 {strides = array<i32>} : memref<84x288xbf16, #tpu.memory_space<vmem>>, vector<41x32xbf16>,
      %63 = vector.extract_strided_slice %59 {offsets = [1, 0], sizes = [41, 32], strides = [1, 1]} : vector<43x32xf32> to vector<41x32xf32>
      %64 = arith.truncf %63 : vector<41x32xf32> to vector<41x32xbf16>
      %c0_64 = arith.constant 0 : index
      %c224 = arith.constant 224 : index
      %65 = vector.load %arg13[%c0_64, %c224] : memref<84x288xbf16, #tpu.memory_space<vmem>>, vector<41x32xbf16>
      tpu.vector_store %arg13[%c0_64, %c224], %64 {strides = array<i32>} : memref<84x288xbf16, #tpu.memory_space<vmem>>, vector<41x32xbf16>,
      %66 = vector.extract_strided_slice %59 {offsets = [2, 0], sizes = [41, 32], strides = [1, 1]} : vector<43x32xf32> to vector<41x32xf32>
      %67 = arith.truncf %66 : vector<41x32xf32> to vector<41x32xbf16>
      %c0_65 = arith.constant 0 : index
      %c256 = arith.constant 256 : index
      %68 = vector.load %arg13[%c0_65, %c256] : memref<84x288xbf16, #tpu.memory_space<vmem>>, vector<41x32xbf16>
      tpu.vector_store %arg13[%c0_65, %c256], %67 {strides = array<i32>} : memref<84x288xbf16, #tpu.memory_space<vmem>>, vector<41x32xbf16>,
      %c0_66 = arith.constant 0 : index
      %c0_67 = arith.constant 0 : index
      %69 = vector.load %arg13[%c0_66, %c0_67] : memref<84x288xbf16, #tpu.memory_space<vmem>>, vector<41x288xbf16>
      %cst_68 = arith.constant dense<0.000000e+00> : vector<41x32xf32>
      %70 = tpu.matmul %69, %21, %cst_68 {dimension_numbers = #tpu.dot_dimension_numbers<[1], [0], [0], [1], [0, 0, 1, 1], [], []>} : vector<41x288xbf16>, vector<288x32xbf16>, vector<41x32xf32> -> vector<41x32xf32>
      %71 = vector.broadcast %22 : vector<1x32xf32> to vector<41x32xf32>
      %72 = arith.addf %70, %71 : vector<41x32xf32>
      %cst_69 = arith.constant 0.000000e+00 : f32
      %73 = vector.broadcast %cst_69 : f32 to vector<41x32xf32>
      %74 = arith.maximumf %72, %73 : vector<41x32xf32>
      %cst_70 = arith.constant dense<0.000000e+00> : vector<81x32xf32>
      %75 = tpu.matmul %20, %74, %cst_70 {dimension_numbers = #tpu.dot_dimension_numbers<[1], [0], [0], [1], [0, 0, 1, 1], [], []>} : vector<81x41xf32>, vector<41x32xf32>, vector<81x32xf32> -> vector<81x32xf32>
      %c2_i32_71 = arith.constant 2 : i32
      %76 = arith.muli %c2_i32_71, %arg18 : i32
      %c2_i32_72 = arith.constant 2 : i32
      %77 = arith.addi %c2_i32_72, %76 : i32
      %78 = arith.index_cast %77 : i32 to index
      %c2 = arith.constant 2 : index
      %c0_73 = arith.constant 0 : index
      %79 = vector.load %arg16[%78, %c2, %c0_73] : memref<85x85x32xf32, #tpu.memory_space<vmem>>, vector<1x81x32xf32>
      %80 = vector.shape_cast %79 : vector<1x81x32xf32> to vector<81x32xf32>
      %81 = vector.shape_cast %75 : vector<81x32xf32> to vector<1x81x32xf32>
      tpu.vector_store %arg16[%78, %c2, %c0_73], %81 {strides = array<i32>} : memref<85x85x32xf32, #tpu.memory_space<vmem>>, vector<1x81x32xf32>,
    }
    %c41_i32_32 = arith.constant 41 : i32
    %c0_33 = arith.constant 0 : index
    %c0_34 = arith.constant 0 : index
    %24 = vector.load %arg8[%c0_33, %c0_34] : memref<288x32xbf16, #tpu.memory_space<vmem>>, vector<288x32xbf16>
    %c0_35 = arith.constant 0 : index
    %c0_36 = arith.constant 0 : index
    %25 = vector.load %arg9[%c0_35, %c0_36] : memref<1x32xf32, #tpu.memory_space<vmem>>, vector<1x32xf32>
    %c0_i32_37 = arith.constant 0 : i32
    %c83_i32 = arith.constant 83 : i32
    %26 = arith.addi %c0_i32_37, %c83_i32 : i32
    %c1_i32_38 = arith.constant 1 : i32
    scf.for %arg18 = %c0_i32_37 to %26 step %c1_i32_38  : i32 {
      %c0_i32_47 = arith.constant 0 : i32
      %30 = arith.addi %arg18, %c0_i32_47 : i32
      %31 = arith.index_cast %30 : i32 to index
      %c0_48 = arith.constant 0 : index
      %c0_49 = arith.constant 0 : index
      %32 = vector.load %arg16[%31, %c0_48, %c0_49] : memref<85x85x32xf32, #tpu.memory_space<vmem>>, vector<1x85x32xf32>
      %33 = vector.shape_cast %32 : vector<1x85x32xf32> to vector<85x32xf32>
      %34 = vector.extract_strided_slice %33 {offsets = [0, 0], sizes = [83, 32], strides = [1, 1]} : vector<85x32xf32> to vector<83x32xf32>
      %35 = arith.truncf %34 : vector<83x32xf32> to vector<83x32xbf16>
      %c0_50 = arith.constant 0 : index
      %c0_51 = arith.constant 0 : index
      %36 = vector.load %arg13[%c0_50, %c0_51] : memref<84x288xbf16, #tpu.memory_space<vmem>>, vector<83x32xbf16>
      tpu.vector_store %arg13[%c0_50, %c0_51], %35 {strides = array<i32>} : memref<84x288xbf16, #tpu.memory_space<vmem>>, vector<83x32xbf16>,
      %37 = vector.extract_strided_slice %33 {offsets = [1, 0], sizes = [83, 32], strides = [1, 1]} : vector<85x32xf32> to vector<83x32xf32>
      %38 = arith.truncf %37 : vector<83x32xf32> to vector<83x32xbf16>
      %c0_52 = arith.constant 0 : index
      %c32 = arith.constant 32 : index
      %39 = vector.load %arg13[%c0_52, %c32] : memref<84x288xbf16, #tpu.memory_space<vmem>>, vector<83x32xbf16>
      tpu.vector_store %arg13[%c0_52, %c32], %38 {strides = array<i32>} : memref<84x288xbf16, #tpu.memory_space<vmem>>, vector<83x32xbf16>,
      %40 = vector.extract_strided_slice %33 {offsets = [2, 0], sizes = [83, 32], strides = [1, 1]} : vector<85x32xf32> to vector<83x32xf32>
      %41 = arith.truncf %40 : vector<83x32xf32> to vector<83x32xbf16>
      %c0_53 = arith.constant 0 : index
      %c64 = arith.constant 64 : index
      %42 = vector.load %arg13[%c0_53, %c64] : memref<84x288xbf16, #tpu.memory_space<vmem>>, vector<83x32xbf16>
      tpu.vector_store %arg13[%c0_53, %c64], %41 {strides = array<i32>} : memref<84x288xbf16, #tpu.memory_space<vmem>>, vector<83x32xbf16>,
      %c1_i32_54 = arith.constant 1 : i32
      %43 = arith.addi %arg18, %c1_i32_54 : i32
      %44 = arith.index_cast %43 : i32 to index
      %c0_55 = arith.constant 0 : index
      %c0_56 = arith.constant 0 : index
      %45 = vector.load %arg16[%44, %c0_55, %c0_56] : memref<85x85x32xf32, #tpu.memory_space<vmem>>, vector<1x85x32xf32>
      %46 = vector.shape_cast %45 : vector<1x85x32xf32> to vector<85x32xf32>
      %47 = vector.extract_strided_slice %46 {offsets = [0, 0], sizes = [83, 32], strides = [1, 1]} : vector<85x32xf32> to vector<83x32xf32>
      %48 = arith.truncf %47 : vector<83x32xf32> to vector<83x32xbf16>
      %c0_57 = arith.constant 0 : index
      %c96 = arith.constant 96 : index
      %49 = vector.load %arg13[%c0_57, %c96] : memref<84x288xbf16, #tpu.memory_space<vmem>>, vector<83x32xbf16>
      tpu.vector_store %arg13[%c0_57, %c96], %48 {strides = array<i32>} : memref<84x288xbf16, #tpu.memory_space<vmem>>, vector<83x32xbf16>,
      %50 = vector.extract_strided_slice %46 {offsets = [1, 0], sizes = [83, 32], strides = [1, 1]} : vector<85x32xf32> to vector<83x32xf32>
      %51 = arith.truncf %50 : vector<83x32xf32> to vector<83x32xbf16>
      %c0_58 = arith.constant 0 : index
      %c128 = arith.constant 128 : index
      %52 = vector.load %arg13[%c0_58, %c128] : memref<84x288xbf16, #tpu.memory_space<vmem>>, vector<83x32xbf16>
      tpu.vector_store %arg13[%c0_58, %c128], %51 {strides = array<i32>} : memref<84x288xbf16, #tpu.memory_space<vmem>>, vector<83x32xbf16>,
      %53 = vector.extract_strided_slice %46 {offsets = [2, 0], sizes = [83, 32], strides = [1, 1]} : vector<85x32xf32> to vector<83x32xf32>
      %54 = arith.truncf %53 : vector<83x32xf32> to vector<83x32xbf16>
      %c0_59 = arith.constant 0 : index
      %c160 = arith.constant 160 : index
      %55 = vector.load %arg13[%c0_59, %c160] : memref<84x288xbf16, #tpu.memory_space<vmem>>, vector<83x32xbf16>
      tpu.vector_store %arg13[%c0_59, %c160], %54 {strides = array<i32>} : memref<84x288xbf16, #tpu.memory_space<vmem>>, vector<83x32xbf16>,
      %c2_i32_60 = arith.constant 2 : i32
      %56 = arith.addi %arg18, %c2_i32_60 : i32
      %57 = arith.index_cast %56 : i32 to index
      %c0_61 = arith.constant 0 : index
      %c0_62 = arith.constant 0 : index
      %58 = vector.load %arg16[%57, %c0_61, %c0_62] : memref<85x85x32xf32, #tpu.memory_space<vmem>>, vector<1x85x32xf32>
      %59 = vector.shape_cast %58 : vector<1x85x32xf32> to vector<85x32xf32>
      %60 = vector.extract_strided_slice %59 {offsets = [0, 0], sizes = [83, 32], strides = [1, 1]} : vector<85x32xf32> to vector<83x32xf32>
      %61 = arith.truncf %60 : vector<83x32xf32> to vector<83x32xbf16>
      %c0_63 = arith.constant 0 : index
      %c192 = arith.constant 192 : index
      %62 = vector.load %arg13[%c0_63, %c192] : memref<84x288xbf16, #tpu.memory_space<vmem>>, vector<83x32xbf16>
      tpu.vector_store %arg13[%c0_63, %c192], %61 {strides = array<i32>} : memref<84x288xbf16, #tpu.memory_space<vmem>>, vector<83x32xbf16>,
      %63 = vector.extract_strided_slice %59 {offsets = [1, 0], sizes = [83, 32], strides = [1, 1]} : vector<85x32xf32> to vector<83x32xf32>
      %64 = arith.truncf %63 : vector<83x32xf32> to vector<83x32xbf16>
      %c0_64 = arith.constant 0 : index
      %c224 = arith.constant 224 : index
      %65 = vector.load %arg13[%c0_64, %c224] : memref<84x288xbf16, #tpu.memory_space<vmem>>, vector<83x32xbf16>
      tpu.vector_store %arg13[%c0_64, %c224], %64 {strides = array<i32>} : memref<84x288xbf16, #tpu.memory_space<vmem>>, vector<83x32xbf16>,
      %66 = vector.extract_strided_slice %59 {offsets = [2, 0], sizes = [83, 32], strides = [1, 1]} : vector<85x32xf32> to vector<83x32xf32>
      %67 = arith.truncf %66 : vector<83x32xf32> to vector<83x32xbf16>
      %c0_65 = arith.constant 0 : index
      %c256 = arith.constant 256 : index
      %68 = vector.load %arg13[%c0_65, %c256] : memref<84x288xbf16, #tpu.memory_space<vmem>>, vector<83x32xbf16>
      tpu.vector_store %arg13[%c0_65, %c256], %67 {strides = array<i32>} : memref<84x288xbf16, #tpu.memory_space<vmem>>, vector<83x32xbf16>,
      %c0_66 = arith.constant 0 : index
      %c0_67 = arith.constant 0 : index
      %69 = vector.load %arg13[%c0_66, %c0_67] : memref<84x288xbf16, #tpu.memory_space<vmem>>, vector<83x288xbf16>
      %cst_68 = arith.constant dense<0.000000e+00> : vector<83x32xf32>
      %70 = tpu.matmul %69, %24, %cst_68 {dimension_numbers = #tpu.dot_dimension_numbers<[1], [0], [0], [1], [0, 0, 1, 1], [], []>} : vector<83x288xbf16>, vector<288x32xbf16>, vector<83x32xf32> -> vector<83x32xf32>
      %71 = vector.broadcast %25 : vector<1x32xf32> to vector<83x32xf32>
      %72 = arith.addf %70, %71 : vector<83x32xf32>
      %cst_69 = arith.constant 0.000000e+00 : f32
      %73 = vector.broadcast %cst_69 : f32 to vector<83x32xf32>
      %74 = arith.maximumf %72, %73 : vector<83x32xf32>
      %c1_i32_70 = arith.constant 1 : i32
      %75 = arith.addi %c1_i32_70, %arg18 : i32
      %76 = arith.index_cast %75 : i32 to index
      %c1 = arith.constant 1 : index
      %c0_71 = arith.constant 0 : index
      %77 = vector.load %arg17[%76, %c1, %c0_71] : memref<85x85x32xf32, #tpu.memory_space<vmem>>, vector<1x83x32xf32>
      %78 = vector.shape_cast %77 : vector<1x83x32xf32> to vector<83x32xf32>
      %79 = vector.shape_cast %74 : vector<83x32xf32> to vector<1x83x32xf32>
      tpu.vector_store %arg17[%76, %c1, %c0_71], %79 {strides = array<i32>} : memref<85x85x32xf32, #tpu.memory_space<vmem>>, vector<1x83x32xf32>,
    }
    %c83_i32_39 = arith.constant 83 : i32
    %c0_40 = arith.constant 0 : index
    %c0_41 = arith.constant 0 : index
    %27 = vector.load %arg10[%c0_40, %c0_41] : memref<128x32xbf16, #tpu.memory_space<vmem>>, vector<128x32xbf16>
    %c0_42 = arith.constant 0 : index
    %c0_43 = arith.constant 0 : index
    %28 = vector.load %arg11[%c0_42, %c0_43] : memref<1x32xf32, #tpu.memory_space<vmem>>, vector<1x32xf32>
    %c0_i32_44 = arith.constant 0 : i32
    %c84_i32 = arith.constant 84 : i32
    %29 = arith.addi %c0_i32_44, %c84_i32 : i32
    %c1_i32_45 = arith.constant 1 : i32
    scf.for %arg18 = %c0_i32_44 to %29 step %c1_i32_45  : i32 {
      %c0_i32_47 = arith.constant 0 : i32
      %30 = arith.addi %arg18, %c0_i32_47 : i32
      %31 = arith.index_cast %30 : i32 to index
      %c0_48 = arith.constant 0 : index
      %c0_49 = arith.constant 0 : index
      %32 = vector.load %arg17[%31, %c0_48, %c0_49] : memref<85x85x32xf32, #tpu.memory_space<vmem>>, vector<1x85x32xf32>
      %33 = vector.shape_cast %32 : vector<1x85x32xf32> to vector<85x32xf32>
      %34 = vector.extract_strided_slice %33 {offsets = [0, 0], sizes = [84, 32], strides = [1, 1]} : vector<85x32xf32> to vector<84x32xf32>
      %35 = arith.truncf %34 : vector<84x32xf32> to vector<84x32xbf16>
      %c0_50 = arith.constant 0 : index
      %c0_51 = arith.constant 0 : index
      %36 = vector.load %arg13[%c0_50, %c0_51] : memref<84x288xbf16, #tpu.memory_space<vmem>>, vector<84x32xbf16>
      tpu.vector_store %arg13[%c0_50, %c0_51], %35 {strides = array<i32>} : memref<84x288xbf16, #tpu.memory_space<vmem>>, vector<84x32xbf16>,
      %37 = vector.extract_strided_slice %33 {offsets = [1, 0], sizes = [84, 32], strides = [1, 1]} : vector<85x32xf32> to vector<84x32xf32>
      %38 = arith.truncf %37 : vector<84x32xf32> to vector<84x32xbf16>
      %c0_52 = arith.constant 0 : index
      %c32 = arith.constant 32 : index
      %39 = vector.load %arg13[%c0_52, %c32] : memref<84x288xbf16, #tpu.memory_space<vmem>>, vector<84x32xbf16>
      tpu.vector_store %arg13[%c0_52, %c32], %38 {strides = array<i32>} : memref<84x288xbf16, #tpu.memory_space<vmem>>, vector<84x32xbf16>,
      %c1_i32_53 = arith.constant 1 : i32
      %40 = arith.addi %arg18, %c1_i32_53 : i32
      %41 = arith.index_cast %40 : i32 to index
      %c0_54 = arith.constant 0 : index
      %c0_55 = arith.constant 0 : index
      %42 = vector.load %arg17[%41, %c0_54, %c0_55] : memref<85x85x32xf32, #tpu.memory_space<vmem>>, vector<1x85x32xf32>
      %43 = vector.shape_cast %42 : vector<1x85x32xf32> to vector<85x32xf32>
      %44 = vector.extract_strided_slice %43 {offsets = [0, 0], sizes = [84, 32], strides = [1, 1]} : vector<85x32xf32> to vector<84x32xf32>
      %45 = arith.truncf %44 : vector<84x32xf32> to vector<84x32xbf16>
      %c0_56 = arith.constant 0 : index
      %c64 = arith.constant 64 : index
      %46 = vector.load %arg13[%c0_56, %c64] : memref<84x288xbf16, #tpu.memory_space<vmem>>, vector<84x32xbf16>
      tpu.vector_store %arg13[%c0_56, %c64], %45 {strides = array<i32>} : memref<84x288xbf16, #tpu.memory_space<vmem>>, vector<84x32xbf16>,
      %47 = vector.extract_strided_slice %43 {offsets = [1, 0], sizes = [84, 32], strides = [1, 1]} : vector<85x32xf32> to vector<84x32xf32>
      %48 = arith.truncf %47 : vector<84x32xf32> to vector<84x32xbf16>
      %c0_57 = arith.constant 0 : index
      %c96 = arith.constant 96 : index
      %49 = vector.load %arg13[%c0_57, %c96] : memref<84x288xbf16, #tpu.memory_space<vmem>>, vector<84x32xbf16>
      tpu.vector_store %arg13[%c0_57, %c96], %48 {strides = array<i32>} : memref<84x288xbf16, #tpu.memory_space<vmem>>, vector<84x32xbf16>,
      %c0_58 = arith.constant 0 : index
      %c0_59 = arith.constant 0 : index
      %50 = vector.load %arg13[%c0_58, %c0_59] : memref<84x288xbf16, #tpu.memory_space<vmem>>, vector<84x128xbf16>
      %cst_60 = arith.constant dense<0.000000e+00> : vector<84x32xf32>
      %51 = tpu.matmul %50, %27, %cst_60 {dimension_numbers = #tpu.dot_dimension_numbers<[1], [0], [0], [1], [0, 0, 1, 1], [], []>} : vector<84x128xbf16>, vector<128x32xbf16>, vector<84x32xf32> -> vector<84x32xf32>
      %52 = vector.broadcast %28 : vector<1x32xf32> to vector<84x32xf32>
      %53 = arith.addf %51, %52 : vector<84x32xf32>
      %c0_61 = arith.constant 0 : index
      %54 = arith.index_cast %arg18 : i32 to index
      %c0_62 = arith.constant 0 : index
      %c0_63 = arith.constant 0 : index
      %55 = vector.load %arg12[%c0_61, %54, %c0_62, %c0_63] : memref<1x84x84x32xf32, #tpu.memory_space<vmem>>, vector<1x1x84x32xf32>
      %56 = vector.shape_cast %55 : vector<1x1x84x32xf32> to vector<84x32xf32>
      %57 = vector.shape_cast %53 : vector<84x32xf32> to vector<1x1x84x32xf32>
      tpu.vector_store %arg12[%c0_61, %54, %c0_62, %c0_63], %57 {strides = array<i32>} : memref<1x84x84x32xf32, #tpu.memory_space<vmem>>, vector<1x1x84x32xf32>,
    }
    %c84_i32_46 = arith.constant 84 : i32
    return
  }
  func.func @transform_0(%arg0: i32) -> (i32, i32, i32, i32) {
    %c0_i32 = arith.constant 0 : i32
    %c0_i32_0 = arith.constant 0 : i32
    %c0_i32_1 = arith.constant 0 : i32
    %c0_i32_2 = arith.constant 0 : i32
    return %arg0, %c0_i32, %c0_i32_0, %c0_i32_1 : i32, i32, i32, i32
  }
  func.func @transform_1(%arg0: i32) -> (i32, i32) {
    %c0_i32 = arith.constant 0 : i32
    %c0_i32_0 = arith.constant 0 : i32
    %c0_i32_1 = arith.constant 0 : i32
    return %c0_i32, %c0_i32_0 : i32, i32
  }
  func.func @transform_2(%arg0: i32) -> (i32, i32) {
    %c0_i32 = arith.constant 0 : i32
    %c0_i32_0 = arith.constant 0 : i32
    %c0_i32_1 = arith.constant 0 : i32
    return %c0_i32, %c0_i32_0 : i32, i32
  }
  func.func @transform_3(%arg0: i32) -> (i32, i32) {
    %c0_i32 = arith.constant 0 : i32
    %c0_i32_0 = arith.constant 0 : i32
    %c0_i32_1 = arith.constant 0 : i32
    return %c0_i32, %c0_i32_0 : i32, i32
  }
  func.func @transform_4(%arg0: i32) -> (i32, i32) {
    %c0_i32 = arith.constant 0 : i32
    %c0_i32_0 = arith.constant 0 : i32
    %c0_i32_1 = arith.constant 0 : i32
    return %c0_i32, %c0_i32_0 : i32, i32
  }
  func.func @transform_5(%arg0: i32) -> (i32, i32) {
    %c0_i32 = arith.constant 0 : i32
    %c0_i32_0 = arith.constant 0 : i32
    %c0_i32_1 = arith.constant 0 : i32
    return %c0_i32, %c0_i32_0 : i32, i32
  }
  func.func @transform_6(%arg0: i32) -> (i32, i32) {
    %c0_i32 = arith.constant 0 : i32
    %c0_i32_0 = arith.constant 0 : i32
    %c0_i32_1 = arith.constant 0 : i32
    return %c0_i32, %c0_i32_0 : i32, i32
  }
  func.func @transform_7(%arg0: i32) -> (i32, i32) {
    %c0_i32 = arith.constant 0 : i32
    %c0_i32_0 = arith.constant 0 : i32
    %c0_i32_1 = arith.constant 0 : i32
    return %c0_i32, %c0_i32_0 : i32, i32
  }
  func.func @transform_8(%arg0: i32) -> (i32, i32) {
    %c0_i32 = arith.constant 0 : i32
    %c0_i32_0 = arith.constant 0 : i32
    %c0_i32_1 = arith.constant 0 : i32
    return %c0_i32, %c0_i32_0 : i32, i32
  }
  func.func @transform_9(%arg0: i32) -> (i32, i32) {
    %c0_i32 = arith.constant 0 : i32
    %c0_i32_0 = arith.constant 0 : i32
    %c0_i32_1 = arith.constant 0 : i32
    return %c0_i32, %c0_i32_0 : i32, i32
  }
  func.func @transform_10(%arg0: i32) -> (i32, i32) {
    %c0_i32 = arith.constant 0 : i32
    %c0_i32_0 = arith.constant 0 : i32
    %c0_i32_1 = arith.constant 0 : i32
    return %c0_i32, %c0_i32_0 : i32, i32
  }
  func.func @transform_11(%arg0: i32) -> (i32, i32, i32, i32) {
    %c0_i32 = arith.constant 0 : i32
    %c0_i32_0 = arith.constant 0 : i32
    %c0_i32_1 = arith.constant 0 : i32
    %c0_i32_2 = arith.constant 0 : i32
    return %arg0, %c0_i32, %c0_i32_0, %c0_i32_1 : i32, i32, i32, i32
  }
}

</mosaic_0001>

<llo_original>
// kernel: decoder_forward.1
$region0: #{decoder_forward.1}
  #allocation0 [shape = 'u32[]', space=smem, size = 0x4, offset = 0x4, fixed_abs, tag = 'smem constant byte address 0x4 - core index']
  #allocation1 [shape = 'u32[72,128]{1,0:T(1,128)}', space=vmem, size = 0x9000, scoped, tag = 'internal scratch']
  #allocation2 [shape = 'bf16[84,288]{1,0:T(8,128)(2,1)}', space=vmem, size = 0x10800, scoped, tag = 'scratch operand']
  #allocation3 [shape = 'f32[41,41,32]{2,1,0:T(8,128)}', space=vmem, size = 0xf6000, scoped, tag = 'scratch operand']
  #allocation4 [shape = 'f32[43,43,32]{2,1,0:T(8,128)}', space=vmem, size = 0x102000, scoped, tag = 'scratch operand']
  #allocation5 [shape = 'f32[85,85,32]{2,1,0:T(8,128)}', space=vmem, size = 0x3a7000, scoped, tag = 'scratch operand']
  #allocation6 [shape = 'f32[85,85,32]{2,1,0:T(8,128)}', space=vmem, size = 0x3a7000, scoped, tag = 'scratch operand']
  %s0 = inlined_call_operand.vmem [shape: f32[2,39,39,32], index: 0, kind: input, shape index: {}]
  %s1 = inlined_call_operand.vmem [shape: bf16[288,32], index: 1, kind: input, shape index: {}]
  %s2 = inlined_call_operand.vmem [shape: f32[1,32], index: 2, kind: input, shape index: {}]
  %s3 = inlined_call_operand.vmem [shape: bf16[288,32], index: 3, kind: input, shape index: {}]
  %s4 = inlined_call_operand.vmem [shape: f32[1,32], index: 4, kind: input, shape index: {}]
  %s5 = inlined_call_operand.vmem [shape: bf16[288,32], index: 5, kind: input, shape index: {}]
  %s6 = inlined_call_operand.vmem [shape: f32[1,32], index: 6, kind: input, shape index: {}]
  %s7 = inlined_call_operand.vmem [shape: bf16[288,32], index: 7, kind: input, shape index: {}]
  %s8 = inlined_call_operand.vmem [shape: f32[1,32], index: 8, kind: input, shape index: {}]
  %s9 = inlined_call_operand.vmem [shape: bf16[128,32], index: 9, kind: input, shape index: {}]
  %s10 = inlined_call_operand.vmem [shape: f32[1,32], index: 10, kind: input, shape index: {}]
  %s11 = inlined_call_operand.vmem [shape: f32[2,84,84,32], index: 11, kind: output, shape index: {}]
  %s12 = sld [smem:[#allocation0]]
  $region112: #{decoder_forward.1} parent=0
    _
  %s14 = ssub.s32 1, %s12
  %s15 = scalar_select 0, %s14, %s12
  loop: start=0, step=1, limit=4
  $region2: #{decoder_forward.1} parent=0 // loop_pre_header
    _
  $region3: #{decoder_forward.1} parent=0 // loop_header
    %s17 = sphi 0, %s21
    %p18 = scmp.ge.s32.totalorder %s17, 4
    %s27 = sphi 0, %s29
    %s30 = sphi 0, %s27
    %s31 = sphi 0, %s30
    %s47 = sphi 0, %s31
    %s51 = sphi 0, %s51
    %s53 = sphi 0, %s51
    %s54 = sphi 0, %s53
    %s68 = sphi 0, %s54
    %s72 = sphi 0, %s72
    %s74 = sphi 0, %s72
    %s75 = sphi 0, %s74
    %s89 = sphi 0, %s75
    %s93 = sphi 0, %s93
    %s95 = sphi 0, %s93
    %s96 = sphi 0, %s95
    %s110 = sphi 0, %s96
    %s114 = sphi 0, %s114
    %s116 = sphi 0, %s114
    %s117 = sphi 0, %s116
    %s131 = sphi 0, %s117
    %s135 = sphi 0, %s135
    %s137 = sphi 0, %s135
    %s138 = sphi 0, %s137
    %s152 = sphi 0, %s138
    %s156 = sphi 0, %s156
    %s158 = sphi 0, %s156
    %s159 = sphi 0, %s158
    %s173 = sphi 0, %s159
    %s177 = sphi 0, %s177
    %s179 = sphi 0, %s177
    %s180 = sphi 0, %s179
    %s194 = sphi 0, %s180
    %s198 = sphi 0, %s198
    %s200 = sphi 0, %s198
    %s201 = sphi 0, %s200
    %s215 = sphi 0, %s201
    %s219 = sphi 0, %s219
    %s221 = sphi 0, %s219
    %s222 = sphi 0, %s221
    %s236 = sphi 0, %s222
    %s240 = sphi 0, %s240
    %s242 = sphi 0, %s240
    %s243 = sphi 0, %s242
    %s257 = sphi 0, %s243
    %s263 = sphi 0, %s265
    %s266 = sphi 0, %s263
    %s267 = sphi 0, %s266
    %s283 = sphi 0, %s267
  $region4: #{decoder_forward.1} parent=0 // loop_header_branch
    %20 = sbr.rel (%p18) target = $region8
  $region5: #{decoder_forward.1} parent=0 // loop_body
    %s22 = ssub.s32 %s17, 1
    %s23 = ssub.s32 %s17, 2
    %s24 = sadd.s32 %s17, 1
    %s25 = ssub.s32 %s17, %s24
    %p26 = scmp.eq.s32.totalorder %s25, 0
    %s28 = sadd.s32 %s27, 1
    %s29 = scalar_select %p26, %s27, %s28
    %p32 = pneg %p26
    %p33 = scmp.eq.s32.totalorder %s17, 1
    %p34 = por %p32, %p33
    %p35 = scmp.ne.s32.totalorder %s27, %s30
    %p36 = scmp.eq.s32.totalorder %s17, 0
    %p37 = por %p35, %p36
    %p38 = scmp.ne.s32.totalorder %s27, %s30
    %p39 = scmp.eq.s32.totalorder %s22, 1
    %p40 = por %p38, %p39
    %p41 = scmp.ne.s32.totalorder %s30, %s31
    %p42 = scmp.eq.s32.totalorder %s22, 0
    %p43 = por %p41, %p42
    %p44 = scmp.ne.s32.totalorder %s30, %s31
    %p45 = scmp.eq.s32.totalorder %s23, 1
    %p46 = por %p44, %p45
    %p48 = scmp.ne.s32.totalorder %s31, %s47
    %p49 = scmp.eq.s32.totalorder %s23, 0
    %p50 = por %p48, %p49
    %s52 = sadd.s32 %s51, 1
    %p55 = scmp.eq.s32.totalorder %s17, 1
    %p56 = scmp.ne.s32.totalorder %s51, %s53
    %p57 = scmp.eq.s32.totalorder %s17, 0
    %p58 = por %p56, %p57
    %p59 = scmp.ne.s32.totalorder %s51, %s53
    %p60 = scmp.eq.s32.totalorder %s22, 1
    %p61 = por %p59, %p60
    %p62 = scmp.ne.s32.totalorder %s53, %s54
    %p63 = scmp.eq.s32.totalorder %s22, 0
    %p64 = por %p62, %p63
    %p65 = scmp.ne.s32.totalorder %s53, %s54
    %p66 = scmp.eq.s32.totalorder %s23, 1
    %p67 = por %p65, %p66
    %p69 = scmp.ne.s32.totalorder %s54, %s68
    %p70 = scmp.eq.s32.totalorder %s23, 0
    %p71 = por %p69, %p70
    %s73 = sadd.s32 %s72, 1
    %p76 = scmp.eq.s32.totalorder %s17, 1
    %p77 = scmp.ne.s32.totalorder %s72, %s74
    %p78 = scmp.eq.s32.totalorder %s17, 0
    %p79 = por %p77, %p78
    %p80 = scmp.ne.s32.totalorder %s72, %s74
    %p81 = scmp.eq.s32.totalorder %s22, 1
    %p82 = por %p80, %p81
    %p83 = scmp.ne.s32.totalorder %s74, %s75
    %p84 = scmp.eq.s32.totalorder %s22, 0
    %p85 = por %p83, %p84
    %p86 = scmp.ne.s32.totalorder %s74, %s75
    %p87 = scmp.eq.s32.totalorder %s23, 1
    %p88 = por %p86, %p87
    %p90 = scmp.ne.s32.totalorder %s75, %s89
    %p91 = scmp.eq.s32.totalorder %s23, 0
    %p92 = por %p90, %p91
    %s94 = sadd.s32 %s93, 1
    %p97 = scmp.eq.s32.totalorder %s17, 1
    %p98 = scmp.ne.s32.totalorder %s93, %s95
    %p99 = scmp.eq.s32.totalorder %s17, 0
    %p100 = por %p98, %p99
    %p101 = scmp.ne.s32.totalorder %s93, %s95
    %p102 = scmp.eq.s32.totalorder %s22, 1
    %p103 = por %p101, %p102
    %p104 = scmp.ne.s32.totalorder %s95, %s96
    %p105 = scmp.eq.s32.totalorder %s22, 0
    %p106 = por %p104, %p105
    %p107 = scmp.ne.s32.totalorder %s95, %s96
    %p108 = scmp.eq.s32.totalorder %s23, 1
    %p109 = por %p107, %p108
    %p111 = scmp.ne.s32.totalorder %s96, %s110
    %p112 = scmp.eq.s32.totalorder %s23, 0
    %p113 = por %p111, %p112
    %s115 = sadd.s32 %s114, 1
    %p118 = scmp.eq.s32.totalorder %s17, 1
    %p119 = scmp.ne.s32.totalorder %s114, %s116
    %p120 = scmp.eq.s32.totalorder %s17, 0
    %p121 = por %p119, %p120
    %p122 = scmp.ne.s32.totalorder %s114, %s116
    %p123 = scmp.eq.s32.totalorder %s22, 1
    %p124 = por %p122, %p123
    %p125 = scmp.ne.s32.totalorder %s116, %s117
    %p126 = scmp.eq.s32.totalorder %s22, 0
    %p127 = por %p125, %p126
    %p128 = scmp.ne.s32.totalorder %s116, %s117
    %p129 = scmp.eq.s32.totalorder %s23, 1
    %p130 = por %p128, %p129
    %p132 = scmp.ne.s32.totalorder %s117, %s131
    %p133 = scmp.eq.s32.totalorder %s23, 0
    %p134 = por %p132, %p133
    %s136 = sadd.s32 %s135, 1
    %p139 = scmp.eq.s32.totalorder %s17, 1
    %p140 = scmp.ne.s32.totalorder %s135, %s137
    %p141 = scmp.eq.s32.totalorder %s17, 0
    %p142 = por %p140, %p141
    %p143 = scmp.ne.s32.totalorder %s135, %s137
    %p144 = scmp.eq.s32.totalorder %s22, 1
    %p145 = por %p143, %p144
    %p146 = scmp.ne.s32.totalorder %s137, %s138
    %p147 = scmp.eq.s32.totalorder %s22, 0
    %p148 = por %p146, %p147
    %p149 = scmp.ne.s32.totalorder %s137, %s138
    %p150 = scmp.eq.s32.totalorder %s23, 1
    %p151 = por %p149, %p150
    %p153 = scmp.ne.s32.totalorder %s138, %s152
    %p154 = scmp.eq.s32.totalorder %s23, 0
    %p155 = por %p153, %p154
    %s157 = sadd.s32 %s156, 1
    %p160 = scmp.eq.s32.totalorder %s17, 1
    %p161 = scmp.ne.s32.totalorder %s156, %s158
    %p162 = scmp.eq.s32.totalorder %s17, 0
    %p163 = por %p161, %p162
    %p164 = scmp.ne.s32.totalorder %s156, %s158
    %p165 = scmp.eq.s32.totalorder %s22, 1
    %p166 = por %p164, %p165
    %p167 = scmp.ne.s32.totalorder %s158, %s159
    %p168 = scmp.eq.s32.totalorder %s22, 0
    %p169 = por %p167, %p168
    %p170 = scmp.ne.s32.totalorder %s158, %s159
    %p171 = scmp.eq.s32.totalorder %s23, 1
    %p172 = por %p170, %p171
    %p174 = scmp.ne.s32.totalorder %s159, %s173
    %p175 = scmp.eq.s32.totalorder %s23, 0
    %p176 = por %p174, %p175
    %s178 = sadd.s32 %s177, 1
    %p181 = scmp.eq.s32.totalorder %s17, 1
    %p182 = scmp.ne.s32.totalorder %s177, %s179
    %p183 = scmp.eq.s32.totalorder %s17, 0
    %p184 = por %p182, %p183
    %p185 = scmp.ne.s32.totalorder %s177, %s179
    %p186 = scmp.eq.s32.totalorder %s22, 1
    %p187 = por %p185, %p186
    %p188 = scmp.ne.s32.totalorder %s179, %s180
    %p189 = scmp.eq.s32.totalorder %s22, 0
    %p190 = por %p188, %p189
    %p191 = scmp.ne.s32.totalorder %s179, %s180
    %p192 = scmp.eq.s32.totalorder %s23, 1
    %p193 = por %p191, %p192
    %p195 = scmp.ne.s32.totalorder %s180, %s194
    %p196 = scmp.eq.s32.totalorder %s23, 0
    %p197 = por %p195, %p196
    %s199 = sadd.s32 %s198, 1
    %p202 = scmp.eq.s32.totalorder %s17, 1
    %p203 = scmp.ne.s32.totalorder %s198, %s200
    %p204 = scmp.eq.s32.totalorder %s17, 0
    %p205 = por %p203, %p204
    %p206 = scmp.ne.s32.totalorder %s198, %s200
    %p207 = scmp.eq.s32.totalorder %s22, 1
    %p208 = por %p206, %p207
    %p209 = scmp.ne.s32.totalorder %s200, %s201
    %p210 = scmp.eq.s32.totalorder %s22, 0
    %p211 = por %p209, %p210
    %p212 = scmp.ne.s32.totalorder %s200, %s201
    %p213 = scmp.eq.s32.totalorder %s23, 1
    %p214 = por %p212, %p213
    %p216 = scmp.ne.s32.totalorder %s201, %s215
    %p217 = scmp.eq.s32.totalorder %s23, 0
    %p218 = por %p216, %p217
    %s220 = sadd.s32 %s219, 1
    %p223 = scmp.eq.s32.totalorder %s17, 1
    %p224 = scmp.ne.s32.totalorder %s219, %s221
    %p225 = scmp.eq.s32.totalorder %s17, 0
    %p226 = por %p224, %p225
    %p227 = scmp.ne.s32.totalorder %s219, %s221
    %p228 = scmp.eq.s32.totalorder %s22, 1
    %p229 = por %p227, %p228
    %p230 = scmp.ne.s32.totalorder %s221, %s222
    %p231 = scmp.eq.s32.totalorder %s22, 0
    %p232 = por %p230, %p231
    %p233 = scmp.ne.s32.totalorder %s221, %s222
    %p234 = scmp.eq.s32.totalorder %s23, 1
    %p235 = por %p233, %p234
    %p237 = scmp.ne.s32.totalorder %s222, %s236
    %p238 = scmp.eq.s32.totalorder %s23, 0
    %p239 = por %p237, %p238
    %s241 = sadd.s32 %s240, 1
    %p244 = scmp.eq.s32.totalorder %s17, 1
    %p245 = scmp.ne.s32.totalorder %s240, %s242
    %p246 = scmp.eq.s32.totalorder %s17, 0
    %p247 = por %p245, %p246
    %p248 = scmp.ne.s32.totalorder %s240, %s242
    %p249 = scmp.eq.s32.totalorder %s22, 1
    %p250 = por %p248, %p249
    %p251 = scmp.ne.s32.totalorder %s242, %s243
    %p252 = scmp.eq.s32.totalorder %s22, 0
    %p253 = por %p251, %p252
    %p254 = scmp.ne.s32.totalorder %s242, %s243
    %p255 = scmp.eq.s32.totalorder %s23, 1
    %p256 = por %p254, %p255
    %p258 = scmp.ne.s32.totalorder %s243, %s257
    %p259 = scmp.eq.s32.totalorder %s23, 0
    %p260 = por %p258, %p259
    %s261 = ssub.s32 %s17, %s24
    %p262 = scmp.eq.s32.totalorder %s261, 0
    %s264 = sadd.s32 %s263, 1
    %s265 = scalar_select %p262, %s263, %s264
    %p268 = pneg %p262
    %p269 = scmp.eq.s32.totalorder %s17, 1
    %p270 = por %p268, %p269
    %p271 = scmp.ne.s32.totalorder %s263, %s266
    %p272 = scmp.eq.s32.totalorder %s17, 0
    %p273 = por %p271, %p272
    %p274 = scmp.ne.s32.totalorder %s263, %s266
    %p275 = scmp.eq.s32.totalorder %s22, 1
    %p276 = por %p274, %p275
    %p277 = scmp.ne.s32.totalorder %s266, %s267
    %p278 = scmp.eq.s32.totalorder %s22, 0
    %p279 = por %p277, %p278
    %p280 = scmp.ne.s32.totalorder %s266, %s267
    %p281 = scmp.eq.s32.totalorder %s23, 1
    %p282 = por %p280, %p281
    %p284 = scmp.ne.s32.totalorder %s267, %s283
    %p285 = scmp.eq.s32.totalorder %s23, 0
    %p286 = por %p284, %p285
    %p287 = scmp.le.s32.totalorder 1, %s17
    %p288 = scmp.lt.s32.totalorder %s17, 3
    %p289 = pnand %p287, %p288
    %p290 = pneg %p289
    // Predicated region
    $region9: #{decoder_forward.1} parent=5 // pred_check
      _
    $region10: #{decoder_forward.1} parent=5 // pred_check_branch
      %292 = sbr.rel (%p289) target = $region12
    $region11: #{decoder_forward.1} parent=5 // pred_region
      %s293 = ssub.s32 %s17, 1
      // Predicated region
      $region13: #{decoder_forward.1} parent=11 // pred_check
        %p294 = pneg %p64
      $region14: #{decoder_forward.1} parent=11 // pred_check_branch
        %296 = sbr.rel (%p294) target = $region16
      $region15: #{decoder_forward.1} parent=11 // pred_region
        _
      $region16: #{decoder_forward.1} parent=11 // pred_fallthru
        _
      // Predicated region
      $region17: #{decoder_forward.1} parent=11 // pred_check
        %p297 = pneg %p85
      $region18: #{decoder_forward.1} parent=11 // pred_check_branch
        %299 = sbr.rel (%p297) target = $region20
      $region19: #{decoder_forward.1} parent=11 // pred_region
        _
      $region20: #{decoder_forward.1} parent=11 // pred_fallthru
        _
      // Predicated region
      $region21: #{decoder_forward.1} parent=11 // pred_check
        %p300 = pneg %p106
      $region22: #{decoder_forward.1} parent=11 // pred_check_branch
        %302 = sbr.rel (%p300) target = $region24
      $region23: #{decoder_forward.1} parent=11 // pred_region
        _
      $region24: #{decoder_forward.1} parent=11 // pred_fallthru
        _
      // Predicated region
      $region25: #{decoder_forward.1} parent=11 // pred_check
        %p303 = pneg %p127
      $region26: #{decoder_forward.1} parent=11 // pred_check_branch
        %305 = sbr.rel (%p303) target = $region28
      $region27: #{decoder_forward.1} parent=11 // pred_region
        _
      $region28: #{decoder_forward.1} parent=11 // pred_fallthru
        _
      // Predicated region
      $region29: #{decoder_forward.1} parent=11 // pred_check
        %p306 = pneg %p148
      $region30: #{decoder_forward.1} parent=11 // pred_check_branch
        %308 = sbr.rel (%p306) target = $region32
      $region31: #{decoder_forward.1} parent=11 // pred_region
        _
      $region32: #{decoder_forward.1} parent=11 // pred_fallthru
        _
      // Predicated region
      $region33: #{decoder_forward.1} parent=11 // pred_check
        %p309 = pneg %p169
      $region34: #{decoder_forward.1} parent=11 // pred_check_branch
        %311 = sbr.rel (%p309) target = $region36
      $region35: #{decoder_forward.1} parent=11 // pred_region
        _
      $region36: #{decoder_forward.1} parent=11 // pred_fallthru
        _
      // Predicated region
      $region37: #{decoder_forward.1} parent=11 // pred_check
        %p312 = pneg %p190
      $region38: #{decoder_forward.1} parent=11 // pred_check_branch
        %314 = sbr.rel (%p312) target = $region40
      $region39: #{decoder_forward.1} parent=11 // pred_region
        _
      $region40: #{decoder_forward.1} parent=11 // pred_fallthru
        _
      // Predicated region
      $region41: #{decoder_forward.1} parent=11 // pred_check
        %p315 = pneg %p211
      $region42: #{decoder_forward.1} parent=11 // pred_check_branch
        %317 = sbr.rel (%p315) target = $region44
      $region43: #{decoder_forward.1} parent=11 // pred_region
        _
      $region44: #{decoder_forward.1} parent=11 // pred_fallthru
        _
      // Predicated region
      $region45: #{decoder_forward.1} parent=11 // pred_check
        %p318 = pneg %p232
      $region46: #{decoder_forward.1} parent=11 // pred_check_branch
        %320 = sbr.rel (%p318) target = $region48
      $region47: #{decoder_forward.1} parent=11 // pred_region
        _
      $region48: #{decoder_forward.1} parent=11 // pred_fallthru
        _
      // Predicated region
      $region49: #{decoder_forward.1} parent=11 // pred_check
        %p321 = pneg %p253
      $region50: #{decoder_forward.1} parent=11 // pred_check_branch
        %323 = sbr.rel (%p321) target = $region52
      $region51: #{decoder_forward.1} parent=11 // pred_region
        _
      $region52: #{decoder_forward.1} parent=11 // pred_fallthru
        _
    $region12: #{decoder_forward.1} parent=5 // pred_fallthru
      _
    %p324 = scmp.lt.s32.totalorder %s17, 2
    // Predicated region
    $region53: #{decoder_forward.1} parent=5 // pred_check
      %p325 = pneg %p324
    $region54: #{decoder_forward.1} parent=5 // pred_check_branch
      %327 = sbr.rel (%p325) target = $region56
    $region55: #{decoder_forward.1} parent=5 // pred_region
      // Predicated region
      $region57: #{decoder_forward.1} parent=55 // pred_check
        %p328 = pneg %p37
      $region58: #{decoder_forward.1} parent=55 // pred_check_branch
        %330 = sbr.rel (%p328) target = $region60
      $region59: #{decoder_forward.1} parent=55 // pred_region
        %p331 = scmp.lt.s32.totalorder %s17, 1
        %s332 = scalar_select %p331, %s17, 1
        %s333 = smul.addr %s332, 195
        %s334 = smul.addr %s333, 8
        %s335 = scalar_lea.vmem %s0, %s334
      $region60: #{decoder_forward.1} parent=55 // pred_fallthru
        _
    $region56: #{decoder_forward.1} parent=5 // pred_fallthru
      _
    %p336 = scmp.le.s32.totalorder 1, %s17
    %p337 = scmp.lt.s32.totalorder %s17, 3
    %p338 = pnand %p336, %p337
    %p339 = pneg %p338
    // Predicated region
    $region61: #{decoder_forward.1} parent=5 // pred_check
      _
    $region62: #{decoder_forward.1} parent=5 // pred_check_branch
      %341 = sbr.rel (%p338) target = $region64
    $region63: #{decoder_forward.1} parent=5 // pred_region
      %s342 = ssub.s32 %s17, 1
      %p343 = scmp.lt.s32.totalorder %s22, 1
      %s344 = scalar_select %p343, %s22, 1
      %s345 = smul.addr %s344, 195
      %s346 = smul.addr %s345, 8
      %s347 = scalar_lea.vmem %s0, %s346
      %p348 = pneg %p43
      %p349 = pneg %p40
      %p350 = pneg %p64
      %p351 = pneg %p61
      %p352 = pneg %p85
      %p353 = pneg %p82
      %p354 = pneg %p106
      %p355 = pneg %p103
      %p356 = pneg %p127
      %p357 = pneg %p124
      %p358 = pneg %p148
      %p359 = pneg %p145
      %p360 = pneg %p169
      %p361 = pneg %p166
      %p362 = pneg %p190
      %p363 = pneg %p187
      %p364 = pneg %p211
      %p365 = pneg %p208
      %p366 = pneg %p232
      %p367 = pneg %p229
      %p368 = pneg %p253
      %p369 = pneg %p250
      %p370 = pneg %p279
      %p371 = pneg %p276
      %p372 = scmp.lt.s32.totalorder %s22, 1
      %s373 = scalar_select %p372, %s22, 1
      %s374 = smul.addr %s373, 924
      %s375 = smul.addr %s374, 8
      %s376 = scalar_lea.vmem %s11, %s375
      %p377 = scmp.lt.s32.totalorder %s22, 1
      %s378 = scalar_select %p377, %s22, 1
      %s379 = smul.addr %s378, 195
      %s380 = smul.addr %s379, 8
      %s381 = scalar_lea.vmem %s0, %s380
      %p382 = scmp.lt.s32.totalorder %s22, 1
      %s383 = scalar_select %p382, %s22, 1
      %s384 = smul.addr %s383, 924
      %s385 = smul.addr %s384, 8
      %s386 = scalar_lea.vmem %s11, %s385
      %vm388 = vcmask 261120
      %389 = vst.msk [vmem:[#allocation3] sm:$0xff] %vm388, 0.0
      %390 = vst.msk [vmem:[#allocation3 + $0x8] sm:$0xff] %vm388, 0.0
      %391 = vst.msk [vmem:[#allocation3 + $0x10] sm:$0xff] %vm388, 0.0
      %392 = vst.msk [vmem:[#allocation3 + $0x18] sm:$0xff] %vm388, 0.0
      %393 = vst.msk [vmem:[#allocation3 + $0x20] sm:$0xff] %vm388, 0.0
      %vm394 = vcmask 253952
      %395 = vst.msk [vmem:[#allocation3 + $0x28] sm:$0x1] %vm394, 0.0
      %396 = vst.msk [vmem:[#allocation3 + $0x30] sm:$0xff] %vm388, 0.0
      %397 = vst.msk [vmem:[#allocation3 + $0x38] sm:$0xff] %vm388, 0.0
      %398 = vst.msk [vmem:[#allocation3 + $0x40] sm:$0xff] %vm388, 0.0
      %399 = vst.msk [vmem:[#allocation3 + $0x48] sm:$0xff] %vm388, 0.0
      %400 = vst.msk [vmem:[#allocation3 + $0x50] sm:$0xff] %vm388, 0.0
      %401 = vst.msk [vmem:[#allocation3 + $0x58] sm:$0x1] %vm394, 0.0
      %402 = vst.msk [vmem:[#allocation3 + $0x60] sm:$0xff] %vm388, 0.0
      %403 = vst.msk [vmem:[#allocation3 + $0x68] sm:$0xff] %vm388, 0.0
      %404 = vst.msk [vmem:[#allocation3 + $0x70] sm:$0xff] %vm388, 0.0
      %405 = vst.msk [vmem:[#allocation3 + $0x78] sm:$0xff] %vm388, 0.0
      %406 = vst.msk [vmem:[#allocation3 + $0x80] sm:$0xff] %vm388, 0.0
      %407 = vst.msk [vmem:[#allocation3 + $0x88] sm:$0x1] %vm394, 0.0
      %408 = vst.msk [vmem:[#allocation3 + $0x90] sm:$0xff] %vm388, 0.0
      %409 = vst.msk [vmem:[#allocation3 + $0x98] sm:$0xff] %vm388, 0.0
      %410 = vst.msk [vmem:[#allocation3 + $0xa0] sm:$0xff] %vm388, 0.0
      %411 = vst.msk [vmem:[#allocation3 + $0xa8] sm:$0xff] %vm388, 0.0
      %412 = vst.msk [vmem:[#allocation3 + $0xb0] sm:$0xff] %vm388, 0.0
      %413 = vst.msk [vmem:[#allocation3 + $0xb8] sm:$0x1] %vm394, 0.0
      %414 = vst.msk [vmem:[#allocation3 + $0xc0] sm:$0xff] %vm388, 0.0
      %415 = vst.msk [vmem:[#allocation3 + $0xc8] sm:$0xff] %vm388, 0.0
      %416 = vst.msk [vmem:[#allocation3 + $0xd0] sm:$0xff] %vm388, 0.0
      %417 = vst.msk [vmem:[#allocation3 + $0xd8] sm:$0xff] %vm388, 0.0
      %418 = vst.msk [vmem:[#allocation3 + $0xe0] sm:$0xff] %vm388, 0.0
      %419 = vst.msk [vmem:[#allocation3 + $0xe8] sm:$0x1] %vm394, 0.0
      %420 = vst.msk [vmem:[#allocation3 + $0xf0] sm:$0xff] %vm388, 0.0
      %421 = vst.msk [vmem:[#allocation3 + $0xf8] sm:$0xff] %vm388, 0.0
      %422 = vst.msk [vmem:[#allocation3 + $0x100] sm:$0xff] %vm388, 0.0
      %423 = vst.msk [vmem:[#allocation3 + $0x108] sm:$0xff] %vm388, 0.0
      %424 = vst.msk [vmem:[#allocation3 + $0x110] sm:$0xff] %vm388, 0.0
      %425 = vst.msk [vmem:[#allocation3 + $0x118] sm:$0x1] %vm394, 0.0
      %426 = vst.msk [vmem:[#allocation3 + $0x120] sm:$0xff] %vm388, 0.0
      %427 = vst.msk [vmem:[#allocation3 + $0x128] sm:$0xff] %vm388, 0.0
      %428 = vst.msk [vmem:[#allocation3 + $0x130] sm:$0xff] %vm388, 0.0
      %429 = vst.msk [vmem:[#allocation3 + $0x138] sm:$0xff] %vm388, 0.0
      %430 = vst.msk [vmem:[#allocation3 + $0x140] sm:$0xff] %vm388, 0.0
      %431 = vst.msk [vmem:[#allocation3 + $0x148] sm:$0x1] %vm394, 0.0
      %432 = vst.msk [vmem:[#allocation3 + $0x150] sm:$0xff] %vm388, 0.0
      %433 = vst.msk [vmem:[#allocation3 + $0x158] sm:$0xff] %vm388, 0.0
      %434 = vst.msk [vmem:[#allocation3 + $0x160] sm:$0xff] %vm388, 0.0
      %435 = vst.msk [vmem:[#allocation3 + $0x168] sm:$0xff] %vm388, 0.0
      %436 = vst.msk [vmem:[#allocation3 + $0x170] sm:$0xff] %vm388, 0.0
      %437 = vst.msk [vmem:[#allocation3 + $0x178] sm:$0x1] %vm394, 0.0
      %438 = vst.msk [vmem:[#allocation3 + $0x180] sm:$0xff] %vm388, 0.0
      %439 = vst.msk [vmem:[#allocation3 + $0x188] sm:$0xff] %vm388, 0.0
      %440 = vst.msk [vmem:[#allocation3 + $0x190] sm:$0xff] %vm388, 0.0
      %441 = vst.msk [vmem:[#allocation3 + $0x198] sm:$0xff] %vm388, 0.0
      %442 = vst.msk [vmem:[#allocation3 + $0x1a0] sm:$0xff] %vm388, 0.0
      %443 = vst.msk [vmem:[#allocation3 + $0x1a8] sm:$0x1] %vm394, 0.0
      %444 = vst.msk [vmem:[#allocation3 + $0x1b0] sm:$0xff] %vm388, 0.0
      %445 = vst.msk [vmem:[#allocation3 + $0x1b8] sm:$0xff] %vm388, 0.0
      %446 = vst.msk [vmem:[#allocation3 + $0x1c0] sm:$0xff] %vm388, 0.0
      %447 = vst.msk [vmem:[#allocation3 + $0x1c8] sm:$0xff] %vm388, 0.0
      %448 = vst.msk [vmem:[#allocation3 + $0x1d0] sm:$0xff] %vm388, 0.0
      %449 = vst.msk [vmem:[#allocation3 + $0x1d8] sm:$0x1] %vm394, 0.0
      %450 = vst.msk [vmem:[#allocation3 + $0x1e0] sm:$0xff] %vm388, 0.0
      %451 = vst.msk [vmem:[#allocation3 + $0x1e8] sm:$0xff] %vm388, 0.0
      %452 = vst.msk [vmem:[#allocation3 + $0x1f0] sm:$0xff] %vm388, 0.0
      %453 = vst.msk [vmem:[#allocation3 + $0x1f8] sm:$0xff] %vm388, 0.0
      %454 = vst.msk [vmem:[#allocation3 + $0x200] sm:$0xff] %vm388, 0.0
      %455 = vst.msk [vmem:[#allocation3 + $0x208] sm:$0x1] %vm394, 0.0
      %456 = vst.msk [vmem:[#allocation3 + $0x210] sm:$0xff] %vm388, 0.0
      %457 = vst.msk [vmem:[#allocation3 + $0x218] sm:$0xff] %vm388, 0.0
      %458 = vst.msk [vmem:[#allocation3 + $0x220] sm:$0xff] %vm388, 0.0
      %459 = vst.msk [vmem:[#allocation3 + $0x228] sm:$0xff] %vm388, 0.0
      %460 = vst.msk [vmem:[#allocation3 + $0x230] sm:$0xff] %vm388, 0.0
      %461 = vst.msk [vmem:[#allocation3 + $0x238] sm:$0x1] %vm394, 0.0
      %462 = vst.msk [vmem:[#allocation3 + $0x240] sm:$0xff] %vm388, 0.0
      %463 = vst.msk [vmem:[#allocation3 + $0x248] sm:$0xff] %vm388, 0.0
      %464 = vst.msk [vmem:[#allocation3 + $0x250] sm:$0xff] %vm388, 0.0
      %465 = vst.msk [vmem:[#allocation3 + $0x258] sm:$0xff] %vm388, 0.0
      %466 = vst.msk [vmem:[#allocation3 + $0x260] sm:$0xff] %vm388, 0.0
      %467 = vst.msk [vmem:[#allocation3 + $0x268] sm:$0x1] %vm394, 0.0
      %468 = vst.msk [vmem:[#allocation3 + $0x270] sm:$0xff] %vm388, 0.0
      %469 = vst.msk [vmem:[#allocation3 + $0x278] sm:$0xff] %vm388, 0.0
      %470 = vst.msk [vmem:[#allocation3 + $0x280] sm:$0xff] %vm388, 0.0
      %471 = vst.msk [vmem:[#allocation3 + $0x288] sm:$0xff] %vm388, 0.0
      %472 = vst.msk [vmem:[#allocation3 + $0x290] sm:$0xff] %vm388, 0.0
      %473 = vst.msk [vmem:[#allocation3 + $0x298] sm:$0x1] %vm394, 0.0
      %474 = vst.msk [vmem:[#allocation3 + $0x2a0] sm:$0xff] %vm388, 0.0
      %475 = vst.msk [vmem:[#allocation3 + $0x2a8] sm:$0xff] %vm388, 0.0
      %476 = vst.msk [vmem:[#allocation3 + $0x2b0] sm:$0xff] %vm388, 0.0
      %477 = vst.msk [vmem:[#allocation3 + $0x2b8] sm:$0xff] %vm388, 0.0
      %478 = vst.msk [vmem:[#allocation3 + $0x2c0] sm:$0xff] %vm388, 0.0
      %479 = vst.msk [vmem:[#allocation3 + $0x2c8] sm:$0x1] %vm394, 0.0
      %480 = vst.msk [vmem:[#allocation3 + $0x2d0] sm:$0xff] %vm388, 0.0
      %481 = vst.msk [vmem:[#allocation3 + $0x2d8] sm:$0xff] %vm388, 0.0
      %482 = vst.msk [vmem:[#allocation3 + $0x2e0] sm:$0xff] %vm388, 0.0
      %483 = vst.msk [vmem:[#allocation3 + $0x2e8] sm:$0xff] %vm388, 0.0
      %484 = vst.msk [vmem:[#allocation3 + $0x2f0] sm:$0xff] %vm388, 0.0
      %485 = vst.msk [vmem:[#allocation3 + $0x2f8] sm:$0x1] %vm394, 0.0
      %486 = vst.msk [vmem:[#allocation3 + $0x300] sm:$0xff] %vm388, 0.0
      %487 = vst.msk [vmem:[#allocation3 + $0x308] sm:$0xff] %vm388, 0.0
      %488 = vst.msk [vmem:[#allocation3 + $0x310] sm:$0xff] %vm388, 0.0
      %489 = vst.msk [vmem:[#allocation3 + $0x318] sm:$0xff] %vm388, 0.0
      %490 = vst.msk [vmem:[#allocation3 + $0x320] sm:$0xff] %vm388, 0.0
      %491 = vst.msk [vmem:[#allocation3 + $0x328] sm:$0x1] %vm394, 0.0
      %492 = vst.msk [vmem:[#allocation3 + $0x330] sm:$0xff] %vm388, 0.0
      %493 = vst.msk [vmem:[#allocation3 + $0x338] sm:$0xff] %vm388, 0.0
      %494 = vst.msk [vmem:[#allocation3 + $0x340] sm:$0xff] %vm388, 0.0
      %495 = vst.msk [vmem:[#allocation3 + $0x348] sm:$0xff] %vm388, 0.0
      %496 = vst.msk [vmem:[#allocation3 + $0x350] sm:$0xff] %vm388, 0.0
      %497 = vst.msk [vmem:[#allocation3 + $0x358] sm:$0x1] %vm394, 0.0
      %498 = vst.msk [vmem:[#allocation3 + $0x360] sm:$0xff] %vm388, 0.0
      %499 = vst.msk [vmem:[#allocation3 + $0x368] sm:$0xff] %vm388, 0.0
      %500 = vst.msk [vmem:[#allocation3 + $0x370] sm:$0xff] %vm388, 0.0
      %501 = vst.msk [vmem:[#allocation3 + $0x378] sm:$0xff] %vm388, 0.0
      %502 = vst.msk [vmem:[#allocation3 + $0x380] sm:$0xff] %vm388, 0.0
      %503 = vst.msk [vmem:[#allocation3 + $0x388] sm:$0x1] %vm394, 0.0
      %504 = vst.msk [vmem:[#allocation3 + $0x390] sm:$0xff] %vm388, 0.0
      %505 = vst.msk [vmem:[#allocation3 + $0x398] sm:$0xff] %vm388, 0.0
      %506 = vst.msk [vmem:[#allocation3 + $0x3a0] sm:$0xff] %vm388, 0.0
      %507 = vst.msk [vmem:[#allocation3 + $0x3a8] sm:$0xff] %vm388, 0.0
      %508 = vst.msk [vmem:[#allocation3 + $0x3b0] sm:$0xff] %vm388, 0.0
      %509 = vst.msk [vmem:[#allocation3 + $0x3b8] sm:$0x1] %vm394, 0.0
      %510 = vst.msk [vmem:[#allocation3 + $0x3c0] sm:$0xff] %vm388, 0.0
      %511 = vst.msk [vmem:[#allocation3 + $0x3c8] sm:$0xff] %vm388, 0.0
      %512 = vst.msk [vmem:[#allocation3 + $0x3d0] sm:$0xff] %vm388, 0.0
      %513 = vst.msk [vmem:[#allocation3 + $0x3d8] sm:$0xff] %vm388, 0.0
      %514 = vst.msk [vmem:[#allocation3 + $0x3e0] sm:$0xff] %vm388, 0.0
      %515 = vst.msk [vmem:[#allocation3 + $0x3e8] sm:$0x1] %vm394, 0.0
      %516 = vst.msk [vmem:[#allocation3 + $0x3f0] sm:$0xff] %vm388, 0.0
      %517 = vst.msk [vmem:[#allocation3 + $0x3f8] sm:$0xff] %vm388, 0.0
      %518 = vst.msk [vmem:[#allocation3 + $0x400] sm:$0xff] %vm388, 0.0
      %519 = vst.msk [vmem:[#allocation3 + $0x408] sm:$0xff] %vm388, 0.0
      %520 = vst.msk [vmem:[#allocation3 + $0x410] sm:$0xff] %vm388, 0.0
      %521 = vst.msk [vmem:[#allocation3 + $0x418] sm:$0x1] %vm394, 0.0
      %522 = vst.msk [vmem:[#allocation3 + $0x420] sm:$0xff] %vm388, 0.0
      %523 = vst.msk [vmem:[#allocation3 + $0x428] sm:$0xff] %vm388, 0.0
      %524 = vst.msk [vmem:[#allocation3 + $0x430] sm:$0xff] %vm388, 0.0
      %525 = vst.msk [vmem:[#allocation3 + $0x438] sm:$0xff] %vm388, 0.0
      %526 = vst.msk [vmem:[#allocation3 + $0x440] sm:$0xff] %vm388, 0.0
      %527 = vst.msk [vmem:[#allocation3 + $0x448] sm:$0x1] %vm394, 0.0
      %528 = vst.msk [vmem:[#allocation3 + $0x450] sm:$0xff] %vm388, 0.0
      %529 = vst.msk [vmem:[#allocation3 + $0x458] sm:$0xff] %vm388, 0.0
      %530 = vst.msk [vmem:[#allocation3 + $0x460] sm:$0xff] %vm388, 0.0
      %531 = vst.msk [vmem:[#allocation3 + $0x468] sm:$0xff] %vm388, 0.0
      %532 = vst.msk [vmem:[#allocation3 + $0x470] sm:$0xff] %vm388, 0.0
      %533 = vst.msk [vmem:[#allocation3 + $0x478] sm:$0x1] %vm394, 0.0
      %534 = vst.msk [vmem:[#allocation3 + $0x480] sm:$0xff] %vm388, 0.0
      %535 = vst.msk [vmem:[#allocation3 + $0x488] sm:$0xff] %vm388, 0.0
      %536 = vst.msk [vmem:[#allocation3 + $0x490] sm:$0xff] %vm388, 0.0
      %537 = vst.msk [vmem:[#allocation3 + $0x498] sm:$0xff] %vm388, 0.0
      %538 = vst.msk [vmem:[#allocation3 + $0x4a0] sm:$0xff] %vm388, 0.0
      %539 = vst.msk [vmem:[#allocation3 + $0x4a8] sm:$0x1] %vm394, 0.0
      %540 = vst.msk [vmem:[#allocation3 + $0x4b0] sm:$0xff] %vm388, 0.0
      %541 = vst.msk [vmem:[#allocation3 + $0x4b8] sm:$0xff] %vm388, 0.0
      %542 = vst.msk [vmem:[#allocation3 + $0x4c0] sm:$0xff] %vm388, 0.0
      %543 = vst.msk [vmem:[#allocation3 + $0x4c8] sm:$0xff] %vm388, 0.0
      %544 = vst.msk [vmem:[#allocation3 + $0x4d0] sm:$0xff] %vm388, 0.0
      %545 = vst.msk [vmem:[#allocation3 + $0x4d8] sm:$0x1] %vm394, 0.0
      %546 = vst.msk [vmem:[#allocation3 + $0x4e0] sm:$0xff] %vm388, 0.0
      %547 = vst.msk [vmem:[#allocation3 + $0x4e8] sm:$0xff] %vm388, 0.0
      %548 = vst.msk [vmem:[#allocation3 + $0x4f0] sm:$0xff] %vm388, 0.0
      %549 = vst.msk [vmem:[#allocation3 + $0x4f8] sm:$0xff] %vm388, 0.0
      %550 = vst.msk [vmem:[#allocation3 + $0x500] sm:$0xff] %vm388, 0.0
      %551 = vst.msk [vmem:[#allocation3 + $0x508] sm:$0x1] %vm394, 0.0
      %552 = vst.msk [vmem:[#allocation3 + $0x510] sm:$0xff] %vm388, 0.0
      %553 = vst.msk [vmem:[#allocation3 + $0x518] sm:$0xff] %vm388, 0.0
      %554 = vst.msk [vmem:[#allocation3 + $0x520] sm:$0xff] %vm388, 0.0
      %555 = vst.msk [vmem:[#allocation3 + $0x528] sm:$0xff] %vm388, 0.0
      %556 = vst.msk [vmem:[#allocation3 + $0x530] sm:$0xff] %vm388, 0.0
      %557 = vst.msk [vmem:[#allocation3 + $0x538] sm:$0x1] %vm394, 0.0
      %558 = vst.msk [vmem:[#allocation3 + $0x540] sm:$0xff] %vm388, 0.0
      %559 = vst.msk [vmem:[#allocation3 + $0x548] sm:$0xff] %vm388, 0.0
      %560 = vst.msk [vmem:[#allocation3 + $0x550] sm:$0xff] %vm388, 0.0
      %561 = vst.msk [vmem:[#allocation3 + $0x558] sm:$0xff] %vm388, 0.0
      %562 = vst.msk [vmem:[#allocation3 + $0x560] sm:$0xff] %vm388, 0.0
      %563 = vst.msk [vmem:[#allocation3 + $0x568] sm:$0x1] %vm394, 0.0
      %564 = vst.msk [vmem:[#allocation3 + $0x570] sm:$0xff] %vm388, 0.0
      %565 = vst.msk [vmem:[#allocation3 + $0x578] sm:$0xff] %vm388, 0.0
      %566 = vst.msk [vmem:[#allocation3 + $0x580] sm:$0xff] %vm388, 0.0
      %567 = vst.msk [vmem:[#allocation3 + $0x588] sm:$0xff] %vm388, 0.0
      %568 = vst.msk [vmem:[#allocation3 + $0x590] sm:$0xff] %vm388, 0.0
      %569 = vst.msk [vmem:[#allocation3 + $0x598] sm:$0x1] %vm394, 0.0
      %570 = vst.msk [vmem:[#allocation3 + $0x5a0] sm:$0xff] %vm388, 0.0
      %571 = vst.msk [vmem:[#allocation3 + $0x5a8] sm:$0xff] %vm388, 0.0
      %572 = vst.msk [vmem:[#allocation3 + $0x5b0] sm:$0xff] %vm388, 0.0
      %573 = vst.msk [vmem:[#allocation3 + $0x5b8] sm:$0xff] %vm388, 0.0
      %574 = vst.msk [vmem:[#allocation3 + $0x5c0] sm:$0xff] %vm388, 0.0
      %575 = vst.msk [vmem:[#allocation3 + $0x5c8] sm:$0x1] %vm394, 0.0
      %576 = vst.msk [vmem:[#allocation3 + $0x5d0] sm:$0xff] %vm388, 0.0
      %577 = vst.msk [vmem:[#allocation3 + $0x5d8] sm:$0xff] %vm388, 0.0
      %578 = vst.msk [vmem:[#allocation3 + $0x5e0] sm:$0xff] %vm388, 0.0
      %579 = vst.msk [vmem:[#allocation3 + $0x5e8] sm:$0xff] %vm388, 0.0
      %580 = vst.msk [vmem:[#allocation3 + $0x5f0] sm:$0xff] %vm388, 0.0
      %581 = vst.msk [vmem:[#allocation3 + $0x5f8] sm:$0x1] %vm394, 0.0
      %582 = vst.msk [vmem:[#allocation3 + $0x600] sm:$0xff] %vm388, 0.0
      %583 = vst.msk [vmem:[#allocation3 + $0x608] sm:$0xff] %vm388, 0.0
      %584 = vst.msk [vmem:[#allocation3 + $0x610] sm:$0xff] %vm388, 0.0
      %585 = vst.msk [vmem:[#allocation3 + $0x618] sm:$0xff] %vm388, 0.0
      %586 = vst.msk [vmem:[#allocation3 + $0x620] sm:$0xff] %vm388, 0.0
      %587 = vst.msk [vmem:[#allocation3 + $0x628] sm:$0x1] %vm394, 0.0
      %588 = vst.msk [vmem:[#allocation3 + $0x630] sm:$0xff] %vm388, 0.0
      %589 = vst.msk [vmem:[#allocation3 + $0x638] sm:$0xff] %vm388, 0.0
      %590 = vst.msk [vmem:[#allocation3 + $0x640] sm:$0xff] %vm388, 0.0
      %591 = vst.msk [vmem:[#allocation3 + $0x648] sm:$0xff] %vm388, 0.0
      %592 = vst.msk [vmem:[#allocation3 + $0x650] sm:$0xff] %vm388, 0.0
      %593 = vst.msk [vmem:[#allocation3 + $0x658] sm:$0x1] %vm394, 0.0
      %594 = vst.msk [vmem:[#allocation3 + $0x660] sm:$0xff] %vm388, 0.0
      %595 = vst.msk [vmem:[#allocation3 + $0x668] sm:$0xff] %vm388, 0.0
      %596 = vst.msk [vmem:[#allocation3 + $0x670] sm:$0xff] %vm388, 0.0
      %597 = vst.msk [vmem:[#allocation3 + $0x678] sm:$0xff] %vm388, 0.0
      %598 = vst.msk [vmem:[#allocation3 + $0x680] sm:$0xff] %vm388, 0.0
      %599 = vst.msk [vmem:[#allocation3 + $0x688] sm:$0x1] %vm394, 0.0
      %600 = vst.msk [vmem:[#allocation3 + $0x690] sm:$0xff] %vm388, 0.0
      %601 = vst.msk [vmem:[#allocation3 + $0x698] sm:$0xff] %vm388, 0.0
      %602 = vst.msk [vmem:[#allocation3 + $0x6a0] sm:$0xff] %vm388, 0.0
      %603 = vst.msk [vmem:[#allocation3 + $0x6a8] sm:$0xff] %vm388, 0.0
      %604 = vst.msk [vmem:[#allocation3 + $0x6b0] sm:$0xff] %vm388, 0.0
      %605 = vst.msk [vmem:[#allocation3 + $0x6b8] sm:$0x1] %vm394, 0.0
      %606 = vst.msk [vmem:[#allocation3 + $0x6c0] sm:$0xff] %vm388, 0.0
      %607 = vst.msk [vmem:[#allocation3 + $0x6c8] sm:$0xff] %vm388, 0.0
      %608 = vst.msk [vmem:[#allocation3 + $0x6d0] sm:$0xff] %vm388, 0.0
      %609 = vst.msk [vmem:[#allocation3 + $0x6d8] sm:$0xff] %vm388, 0.0
      %610 = vst.msk [vmem:[#allocation3 + $0x6e0] sm:$0xff] %vm388, 0.0
      %611 = vst.msk [vmem:[#allocation3 + $0x6e8] sm:$0x1] %vm394, 0.0
      %612 = vst.msk [vmem:[#allocation3 + $0x6f0] sm:$0xff] %vm388, 0.0
      %613 = vst.msk [vmem:[#allocation3 + $0x6f8] sm:$0xff] %vm388, 0.0
      %614 = vst.msk [vmem:[#allocation3 + $0x700] sm:$0xff] %vm388, 0.0
      %615 = vst.msk [vmem:[#allocation3 + $0x708] sm:$0xff] %vm388, 0.0
      %616 = vst.msk [vmem:[#allocation3 + $0x710] sm:$0xff] %vm388, 0.0
      %617 = vst.msk [vmem:[#allocation3 + $0x718] sm:$0x1] %vm394, 0.0
      %618 = vst.msk [vmem:[#allocation3 + $0x720] sm:$0xff] %vm388, 0.0
      %619 = vst.msk [vmem:[#allocation3 + $0x728] sm:$0xff] %vm388, 0.0
      %620 = vst.msk [vmem:[#allocation3 + $0x730] sm:$0xff] %vm388, 0.0
      %621 = vst.msk [vmem:[#allocation3 + $0x738] sm:$0xff] %vm388, 0.0
      %622 = vst.msk [vmem:[#allocation3 + $0x740] sm:$0xff] %vm388, 0.0
      %623 = vst.msk [vmem:[#allocation3 + $0x748] sm:$0x1] %vm394, 0.0
      %624 = vst.msk [vmem:[#allocation3 + $0x750] sm:$0xff] %vm388, 0.0
      %625 = vst.msk [vmem:[#allocation3 + $0x758] sm:$0xff] %vm388, 0.0
      %626 = vst.msk [vmem:[#allocation3 + $0x760] sm:$0xff] %vm388, 0.0
      %627 = vst.msk [vmem:[#allocation3 + $0x768] sm:$0xff] %vm388, 0.0
      %628 = vst.msk [vmem:[#allocation3 + $0x770] sm:$0xff] %vm388, 0.0
      %629 = vst.msk [vmem:[#allocation3 + $0x778] sm:$0x1] %vm394, 0.0
      %630 = vst.msk [vmem:[#allocation3 + $0x780] sm:$0xff] %vm388, 0.0
      %631 = vst.msk [vmem:[#allocation3 + $0x788] sm:$0xff] %vm388, 0.0
      %632 = vst.msk [vmem:[#allocation3 + $0x790] sm:$0xff] %vm388, 0.0
      %633 = vst.msk [vmem:[#allocation3 + $0x798] sm:$0xff] %vm388, 0.0
      %634 = vst.msk [vmem:[#allocation3 + $0x7a0] sm:$0xff] %vm388, 0.0
      %635 = vst.msk [vmem:[#allocation3 + $0x7a8] sm:$0x1] %vm394, 0.0
      %636 = vst.msk [vmem:[#allocation4] sm:$0xff] %vm388, 0.0
      %637 = vst.msk [vmem:[#allocation4 + $0x8] sm:$0xff] %vm388, 0.0
      %638 = vst.msk [vmem:[#allocation4 + $0x10] sm:$0xff] %vm388, 0.0
      %639 = vst.msk [vmem:[#allocation4 + $0x18] sm:$0xff] %vm388, 0.0
      %640 = vst.msk [vmem:[#allocation4 + $0x20] sm:$0xff] %vm388, 0.0
      %vm641 = vcmask 256000
      %642 = vst.msk [vmem:[#allocation4 + $0x28] sm:$0x7] %vm641, 0.0
      %643 = vst.msk [vmem:[#allocation4 + $0x30] sm:$0xff] %vm388, 0.0
      %644 = vst.msk [vmem:[#allocation4 + $0x38] sm:$0xff] %vm388, 0.0
      %645 = vst.msk [vmem:[#allocation4 + $0x40] sm:$0xff] %vm388, 0.0
      %646 = vst.msk [vmem:[#allocation4 + $0x48] sm:$0xff] %vm388, 0.0
      %647 = vst.msk [vmem:[#allocation4 + $0x50] sm:$0xff] %vm388, 0.0
      %648 = vst.msk [vmem:[#allocation4 + $0x58] sm:$0x7] %vm641, 0.0
      %649 = vst.msk [vmem:[#allocation4 + $0x60] sm:$0xff] %vm388, 0.0
      %650 = vst.msk [vmem:[#allocation4 + $0x68] sm:$0xff] %vm388, 0.0
      %651 = vst.msk [vmem:[#allocation4 + $0x70] sm:$0xff] %vm388, 0.0
      %652 = vst.msk [vmem:[#allocation4 + $0x78] sm:$0xff] %vm388, 0.0
      %653 = vst.msk [vmem:[#allocation4 + $0x80] sm:$0xff] %vm388, 0.0
      %654 = vst.msk [vmem:[#allocation4 + $0x88] sm:$0x7] %vm641, 0.0
      %655 = vst.msk [vmem:[#allocation4 + $0x90] sm:$0xff] %vm388, 0.0
      %656 = vst.msk [vmem:[#allocation4 + $0x98] sm:$0xff] %vm388, 0.0
      %657 = vst.msk [vmem:[#allocation4 + $0xa0] sm:$0xff] %vm388, 0.0
      %658 = vst.msk [vmem:[#allocation4 + $0xa8] sm:$0xff] %vm388, 0.0
      %659 = vst.msk [vmem:[#allocation4 + $0xb0] sm:$0xff] %vm388, 0.0
      %660 = vst.msk [vmem:[#allocation4 + $0xb8] sm:$0x7] %vm641, 0.0
      %661 = vst.msk [vmem:[#allocation4 + $0xc0] sm:$0xff] %vm388, 0.0
      %662 = vst.msk [vmem:[#allocation4 + $0xc8] sm:$0xff] %vm388, 0.0
      %663 = vst.msk [vmem:[#allocation4 + $0xd0] sm:$0xff] %vm388, 0.0
      %664 = vst.msk [vmem:[#allocation4 + $0xd8] sm:$0xff] %vm388, 0.0
      %665 = vst.msk [vmem:[#allocation4 + $0xe0] sm:$0xff] %vm388, 0.0
      %666 = vst.msk [vmem:[#allocation4 + $0xe8] sm:$0x7] %vm641, 0.0
      %667 = vst.msk [vmem:[#allocation4 + $0xf0] sm:$0xff] %vm388, 0.0
      %668 = vst.msk [vmem:[#allocation4 + $0xf8] sm:$0xff] %vm388, 0.0
      %669 = vst.msk [vmem:[#allocation4 + $0x100] sm:$0xff] %vm388, 0.0
      %670 = vst.msk [vmem:[#allocation4 + $0x108] sm:$0xff] %vm388, 0.0
      %671 = vst.msk [vmem:[#allocation4 + $0x110] sm:$0xff] %vm388, 0.0
      %672 = vst.msk [vmem:[#allocation4 + $0x118] sm:$0x7] %vm641, 0.0
      %673 = vst.msk [vmem:[#allocation4 + $0x120] sm:$0xff] %vm388, 0.0
      %674 = vst.msk [vmem:[#allocation4 + $0x128] sm:$0xff] %vm388, 0.0
      %675 = vst.msk [vmem:[#allocation4 + $0x130] sm:$0xff] %vm388, 0.0
      %676 = vst.msk [vmem:[#allocation4 + $0x138] sm:$0xff] %vm388, 0.0
      %677 = vst.msk [vmem:[#allocation4 + $0x140] sm:$0xff] %vm388, 0.0
      %678 = vst.msk [vmem:[#allocation4 + $0x148] sm:$0x7] %vm641, 0.0
      %679 = vst.msk [vmem:[#allocation4 + $0x150] sm:$0xff] %vm388, 0.0
      %680 = vst.msk [vmem:[#allocation4 + $0x158] sm:$0xff] %vm388, 0.0
      %681 = vst.msk [vmem:[#allocation4 + $0x160] sm:$0xff] %vm388, 0.0
      %682 = vst.msk [vmem:[#allocation4 + $0x168] sm:$0xff] %vm388, 0.0
      %683 = vst.msk [vmem:[#allocation4 + $0x170] sm:$0xff] %vm388, 0.0
      %684 = vst.msk [vmem:[#allocation4 + $0x178] sm:$0x7] %vm641, 0.0
      %685 = vst.msk [vmem:[#allocation4 + $0x180] sm:$0xff] %vm388, 0.0
      %686 = vst.msk [vmem:[#allocation4 + $0x188] sm:$0xff] %vm388, 0.0
      %687 = vst.msk [vmem:[#allocation4 + $0x190] sm:$0xff] %vm388, 0.0
      %688 = vst.msk [vmem:[#allocation4 + $0x198] sm:$0xff] %vm388, 0.0
      %689 = vst.msk [vmem:[#allocation4 + $0x1a0] sm:$0xff] %vm388, 0.0
      %690 = vst.msk [vmem:[#allocation4 + $0x1a8] sm:$0x7] %vm641, 0.0
      %691 = vst.msk [vmem:[#allocation4 + $0x1b0] sm:$0xff] %vm388, 0.0
      %692 = vst.msk [vmem:[#allocation4 + $0x1b8] sm:$0xff] %vm388, 0.0
      %693 = vst.msk [vmem:[#allocation4 + $0x1c0] sm:$0xff] %vm388, 0.0
      %694 = vst.msk [vmem:[#allocation4 + $0x1c8] sm:$0xff] %vm388, 0.0
      %695 = vst.msk [vmem:[#allocation4 + $0x1d0] sm:$0xff] %vm388, 0.0
      %696 = vst.msk [vmem:[#allocation4 + $0x1d8] sm:$0x7] %vm641, 0.0
      %697 = vst.msk [vmem:[#allocation4 + $0x1e0] sm:$0xff] %vm388, 0.0
      %698 = vst.msk [vmem:[#allocation4 + $0x1e8] sm:$0xff] %vm388, 0.0
      %699 = vst.msk [vmem:[#allocation4 + $0x1f0] sm:$0xff] %vm388, 0.0
      %700 = vst.msk [vmem:[#allocation4 + $0x1f8] sm:$0xff] %vm388, 0.0
      %701 = vst.msk [vmem:[#allocation4 + $0x200] sm:$0xff] %vm388, 0.0
      %702 = vst.msk [vmem:[#allocation4 + $0x208] sm:$0x7] %vm641, 0.0
      %703 = vst.msk [vmem:[#allocation4 + $0x210] sm:$0xff] %vm388, 0.0
      %704 = vst.msk [vmem:[#allocation4 + $0x218] sm:$0xff] %vm388, 0.0
      %705 = vst.msk [vmem:[#allocation4 + $0x220] sm:$0xff] %vm388, 0.0
      %706 = vst.msk [vmem:[#allocation4 + $0x228] sm:$0xff] %vm388, 0.0
      %707 = vst.msk [vmem:[#allocation4 + $0x230] sm:$0xff] %vm388, 0.0
      %708 = vst.msk [vmem:[#allocation4 + $0x238] sm:$0x7] %vm641, 0.0
      %709 = vst.msk [vmem:[#allocation4 + $0x240] sm:$0xff] %vm388, 0.0
      %710 = vst.msk [vmem:[#allocation4 + $0x248] sm:$0xff] %vm388, 0.0
      %711 = vst.msk [vmem:[#allocation4 + $0x250] sm:$0xff] %vm388, 0.0
      %712 = vst.msk [vmem:[#allocation4 + $0x258] sm:$0xff] %vm388, 0.0
      %713 = vst.msk [vmem:[#allocation4 + $0x260] sm:$0xff] %vm388, 0.0
      %714 = vst.msk [vmem:[#allocation4 + $0x268] sm:$0x7] %vm641, 0.0
      %715 = vst.msk [vmem:[#allocation4 + $0x270] sm:$0xff] %vm388, 0.0
      %716 = vst.msk [vmem:[#allocation4 + $0x278] sm:$0xff] %vm388, 0.0
      %717 = vst.msk [vmem:[#allocation4 + $0x280] sm:$0xff] %vm388, 0.0
      %718 = vst.msk [vmem:[#allocation4 + $0x288] sm:$0xff] %vm388, 0.0
      %719 = vst.msk [vmem:[#allocation4 + $0x290] sm:$0xff] %vm388, 0.0
      %720 = vst.msk [vmem:[#allocation4 + $0x298] sm:$0x7] %vm641, 0.0
      %721 = vst.msk [vmem:[#allocation4 + $0x2a0] sm:$0xff] %vm388, 0.0
      %722 = vst.msk [vmem:[#allocation4 + $0x2a8] sm:$0xff] %vm388, 0.0
      %723 = vst.msk [vmem:[#allocation4 + $0x2b0] sm:$0xff] %vm388, 0.0
      %724 = vst.msk [vmem:[#allocation4 + $0x2b8] sm:$0xff] %vm388, 0.0
      %725 = vst.msk [vmem:[#allocation4 + $0x2c0] sm:$0xff] %vm388, 0.0
      %726 = vst.msk [vmem:[#allocation4 + $0x2c8] sm:$0x7] %vm641, 0.0
      %727 = vst.msk [vmem:[#allocation4 + $0x2d0] sm:$0xff] %vm388, 0.0
      %728 = vst.msk [vmem:[#allocation4 + $0x2d8] sm:$0xff] %vm388, 0.0
      %729 = vst.msk [vmem:[#allocation4 + $0x2e0] sm:$0xff] %vm388, 0.0
      %730 = vst.msk [vmem:[#allocation4 + $0x2e8] sm:$0xff] %vm388, 0.0
      %731 = vst.msk [vmem:[#allocation4 + $0x2f0] sm:$0xff] %vm388, 0.0
      %732 = vst.msk [vmem:[#allocation4 + $0x2f8] sm:$0x7] %vm641, 0.0
      %733 = vst.msk [vmem:[#allocation4 + $0x300] sm:$0xff] %vm388, 0.0
      %734 = vst.msk [vmem:[#allocation4 + $0x308] sm:$0xff] %vm388, 0.0
      %735 = vst.msk [vmem:[#allocation4 + $0x310] sm:$0xff] %vm388, 0.0
      %736 = vst.msk [vmem:[#allocation4 + $0x318] sm:$0xff] %vm388, 0.0
      %737 = vst.msk [vmem:[#allocation4 + $0x320] sm:$0xff] %vm388, 0.0
      %738 = vst.msk [vmem:[#allocation4 + $0x328] sm:$0x7] %vm641, 0.0
      %739 = vst.msk [vmem:[#allocation4 + $0x330] sm:$0xff] %vm388, 0.0
      %740 = vst.msk [vmem:[#allocation4 + $0x338] sm:$0xff] %vm388, 0.0
      %741 = vst.msk [vmem:[#allocation4 + $0x340] sm:$0xff] %vm388, 0.0
      %742 = vst.msk [vmem:[#allocation4 + $0x348] sm:$0xff] %vm388, 0.0
      %743 = vst.msk [vmem:[#allocation4 + $0x350] sm:$0xff] %vm388, 0.0
      %744 = vst.msk [vmem:[#allocation4 + $0x358] sm:$0x7] %vm641, 0.0
      %745 = vst.msk [vmem:[#allocation4 + $0x360] sm:$0xff] %vm388, 0.0
      %746 = vst.msk [vmem:[#allocation4 + $0x368] sm:$0xff] %vm388, 0.0
      %747 = vst.msk [vmem:[#allocation4 + $0x370] sm:$0xff] %vm388, 0.0
      %748 = vst.msk [vmem:[#allocation4 + $0x378] sm:$0xff] %vm388, 0.0
      %749 = vst.msk [vmem:[#allocation4 + $0x380] sm:$0xff] %vm388, 0.0
      %750 = vst.msk [vmem:[#allocation4 + $0x388] sm:$0x7] %vm641, 0.0
      %751 = vst.msk [vmem:[#allocation4 + $0x390] sm:$0xff] %vm388, 0.0
      %752 = vst.msk [vmem:[#allocation4 + $0x398] sm:$0xff] %vm388, 0.0
      %753 = vst.msk [vmem:[#allocation4 + $0x3a0] sm:$0xff] %vm388, 0.0
      %754 = vst.msk [vmem:[#allocation4 + $0x3a8] sm:$0xff] %vm388, 0.0
      %755 = vst.msk [vmem:[#allocation4 + $0x3b0] sm:$0xff] %vm388, 0.0
      %756 = vst.msk [vmem:[#allocation4 + $0x3b8] sm:$0x7] %vm641, 0.0
      %757 = vst.msk [vmem:[#allocation4 + $0x3c0] sm:$0xff] %vm388, 0.0
      %758 = vst.msk [vmem:[#allocation4 + $0x3c8] sm:$0xff] %vm388, 0.0
      %759 = vst.msk [vmem:[#allocation4 + $0x3d0] sm:$0xff] %vm388, 0.0
      %760 = vst.msk [vmem:[#allocation4 + $0x3d8] sm:$0xff] %vm388, 0.0
      %761 = vst.msk [vmem:[#allocation4 + $0x3e0] sm:$0xff] %vm388, 0.0
      %762 = vst.msk [vmem:[#allocation4 + $0x3e8] sm:$0x7] %vm641, 0.0
      %763 = vst.msk [vmem:[#allocation4 + $0x3f0] sm:$0xff] %vm388, 0.0
      %764 = vst.msk [vmem:[#allocation4 + $0x3f8] sm:$0xff] %vm388, 0.0
      %765 = vst.msk [vmem:[#allocation4 + $0x400] sm:$0xff] %vm388, 0.0
      %766 = vst.msk [vmem:[#allocation4 + $0x408] sm:$0xff] %vm388, 0.0
      %767 = vst.msk [vmem:[#allocation4 + $0x410] sm:$0xff] %vm388, 0.0
      %768 = vst.msk [vmem:[#allocation4 + $0x418] sm:$0x7] %vm641, 0.0
      %769 = vst.msk [vmem:[#allocation4 + $0x420] sm:$0xff] %vm388, 0.0
      %770 = vst.msk [vmem:[#allocation4 + $0x428] sm:$0xff] %vm388, 0.0
      %771 = vst.msk [vmem:[#allocation4 + $0x430] sm:$0xff] %vm388, 0.0
      %772 = vst.msk [vmem:[#allocation4 + $0x438] sm:$0xff] %vm388, 0.0
      %773 = vst.msk [vmem:[#allocation4 + $0x440] sm:$0xff] %vm388, 0.0
      %774 = vst.msk [vmem:[#allocation4 + $0x448] sm:$0x7] %vm641, 0.0
      %775 = vst.msk [vmem:[#allocation4 + $0x450] sm:$0xff] %vm388, 0.0
      %776 = vst.msk [vmem:[#allocation4 + $0x458] sm:$0xff] %vm388, 0.0
      %777 = vst.msk [vmem:[#allocation4 + $0x460] sm:$0xff] %vm388, 0.0
      %778 = vst.msk [vmem:[#allocation4 + $0x468] sm:$0xff] %vm388, 0.0
      %779 = vst.msk [vmem:[#allocation4 + $0x470] sm:$0xff] %vm388, 0.0
      %780 = vst.msk [vmem:[#allocation4 + $0x478] sm:$0x7] %vm641, 0.0
      %781 = vst.msk [vmem:[#allocation4 + $0x480] sm:$0xff] %vm388, 0.0
      %782 = vst.msk [vmem:[#allocation4 + $0x488] sm:$0xff] %vm388, 0.0
      %783 = vst.msk [vmem:[#allocation4 + $0x490] sm:$0xff] %vm388, 0.0
      %784 = vst.msk [vmem:[#allocation4 + $0x498] sm:$0xff] %vm388, 0.0
      %785 = vst.msk [vmem:[#allocation4 + $0x4a0] sm:$0xff] %vm388, 0.0
      %786 = vst.msk [vmem:[#allocation4 + $0x4a8] sm:$0x7] %vm641, 0.0
      %787 = vst.msk [vmem:[#allocation4 + $0x4b0] sm:$0xff] %vm388, 0.0
      %788 = vst.msk [vmem:[#allocation4 + $0x4b8] sm:$0xff] %vm388, 0.0
      %789 = vst.msk [vmem:[#allocation4 + $0x4c0] sm:$0xff] %vm388, 0.0
      %790 = vst.msk [vmem:[#allocation4 + $0x4c8] sm:$0xff] %vm388, 0.0
      %791 = vst.msk [vmem:[#allocation4 + $0x4d0] sm:$0xff] %vm388, 0.0
      %792 = vst.msk [vmem:[#allocation4 + $0x4d8] sm:$0x7] %vm641, 0.0
      %793 = vst.msk [vmem:[#allocation4 + $0x4e0] sm:$0xff] %vm388, 0.0
      %794 = vst.msk [vmem:[#allocation4 + $0x4e8] sm:$0xff] %vm388, 0.0
      %795 = vst.msk [vmem:[#allocation4 + $0x4f0] sm:$0xff] %vm388, 0.0
      %796 = vst.msk [vmem:[#allocation4 + $0x4f8] sm:$0xff] %vm388, 0.0
      %797 = vst.msk [vmem:[#allocation4 + $0x500] sm:$0xff] %vm388, 0.0
      %798 = vst.msk [vmem:[#allocation4 + $0x508] sm:$0x7] %vm641, 0.0
      %799 = vst.msk [vmem:[#allocation4 + $0x510] sm:$0xff] %vm388, 0.0
      %800 = vst.msk [vmem:[#allocation4 + $0x518] sm:$0xff] %vm388, 0.0
      %801 = vst.msk [vmem:[#allocation4 + $0x520] sm:$0xff] %vm388, 0.0
      %802 = vst.msk [vmem:[#allocation4 + $0x528] sm:$0xff] %vm388, 0.0
      %803 = vst.msk [vmem:[#allocation4 + $0x530] sm:$0xff] %vm388, 0.0
      %804 = vst.msk [vmem:[#allocation4 + $0x538] sm:$0x7] %vm641, 0.0
      %805 = vst.msk [vmem:[#allocation4 + $0x540] sm:$0xff] %vm388, 0.0
      %806 = vst.msk [vmem:[#allocation4 + $0x548] sm:$0xff] %vm388, 0.0
      %807 = vst.msk [vmem:[#allocation4 + $0x550] sm:$0xff] %vm388, 0.0
      %808 = vst.msk [vmem:[#allocation4 + $0x558] sm:$0xff] %vm388, 0.0
      %809 = vst.msk [vmem:[#allocation4 + $0x560] sm:$0xff] %vm388, 0.0
      %810 = vst.msk [vmem:[#allocation4 + $0x568] sm:$0x7] %vm641, 0.0
      %811 = vst.msk [vmem:[#allocation4 + $0x570] sm:$0xff] %vm388, 0.0
      %812 = vst.msk [vmem:[#allocation4 + $0x578] sm:$0xff] %vm388, 0.0
      %813 = vst.msk [vmem:[#allocation4 + $0x580] sm:$0xff] %vm388, 0.0
      %814 = vst.msk [vmem:[#allocation4 + $0x588] sm:$0xff] %vm388, 0.0
      %815 = vst.msk [vmem:[#allocation4 + $0x590] sm:$0xff] %vm388, 0.0
      %816 = vst.msk [vmem:[#allocation4 + $0x598] sm:$0x7] %vm641, 0.0
      %817 = vst.msk [vmem:[#allocation4 + $0x5a0] sm:$0xff] %vm388, 0.0
      %818 = vst.msk [vmem:[#allocation4 + $0x5a8] sm:$0xff] %vm388, 0.0
      %819 = vst.msk [vmem:[#allocation4 + $0x5b0] sm:$0xff] %vm388, 0.0
      %820 = vst.msk [vmem:[#allocation4 + $0x5b8] sm:$0xff] %vm388, 0.0
      %821 = vst.msk [vmem:[#allocation4 + $0x5c0] sm:$0xff] %vm388, 0.0
      %822 = vst.msk [vmem:[#allocation4 + $0x5c8] sm:$0x7] %vm641, 0.0
      %823 = vst.msk [vmem:[#allocation4 + $0x5d0] sm:$0xff] %vm388, 0.0
      %824 = vst.msk [vmem:[#allocation4 + $0x5d8] sm:$0xff] %vm388, 0.0
      %825 = vst.msk [vmem:[#allocation4 + $0x5e0] sm:$0xff] %vm388, 0.0
      %826 = vst.msk [vmem:[#allocation4 + $0x5e8] sm:$0xff] %vm388, 0.0
      %827 = vst.msk [vmem:[#allocation4 + $0x5f0] sm:$0xff] %vm388, 0.0
      %828 = vst.msk [vmem:[#allocation4 + $0x5f8] sm:$0x7] %vm641, 0.0
      %829 = vst.msk [vmem:[#allocation4 + $0x600] sm:$0xff] %vm388, 0.0
      %830 = vst.msk [vmem:[#allocation4 + $0x608] sm:$0xff] %vm388, 0.0
      %831 = vst.msk [vmem:[#allocation4 + $0x610] sm:$0xff] %vm388, 0.0
      %832 = vst.msk [vmem:[#allocation4 + $0x618] sm:$0xff] %vm388, 0.0
      %833 = vst.msk [vmem:[#allocation4 + $0x620] sm:$0xff] %vm388, 0.0
      %834 = vst.msk [vmem:[#allocation4 + $0x628] sm:$0x7] %vm641, 0.0
      %835 = vst.msk [vmem:[#allocation4 + $0x630] sm:$0xff] %vm388, 0.0
      %836 = vst.msk [vmem:[#allocation4 + $0x638] sm:$0xff] %vm388, 0.0
      %837 = vst.msk [vmem:[#allocation4 + $0x640] sm:$0xff] %vm388, 0.0
      %838 = vst.msk [vmem:[#allocation4 + $0x648] sm:$0xff] %vm388, 0.0
      %839 = vst.msk [vmem:[#allocation4 + $0x650] sm:$0xff] %vm388, 0.0
      %840 = vst.msk [vmem:[#allocation4 + $0x658] sm:$0x7] %vm641, 0.0
      %841 = vst.msk [vmem:[#allocation4 + $0x660] sm:$0xff] %vm388, 0.0
      %842 = vst.msk [vmem:[#allocation4 + $0x668] sm:$0xff] %vm388, 0.0
      %843 = vst.msk [vmem:[#allocation4 + $0x670] sm:$0xff] %vm388, 0.0
      %844 = vst.msk [vmem:[#allocation4 + $0x678] sm:$0xff] %vm388, 0.0
      %845 = vst.msk [vmem:[#allocation4 + $0x680] sm:$0xff] %vm388, 0.0
      %846 = vst.msk [vmem:[#allocation4 + $0x688] sm:$0x7] %vm641, 0.0
      %847 = vst.msk [vmem:[#allocation4 + $0x690] sm:$0xff] %vm388, 0.0
      %848 = vst.msk [vmem:[#allocation4 + $0x698] sm:$0xff] %vm388, 0.0
      %849 = vst.msk [vmem:[#allocation4 + $0x6a0] sm:$0xff] %vm388, 0.0
      %850 = vst.msk [vmem:[#allocation4 + $0x6a8] sm:$0xff] %vm388, 0.0
      %851 = vst.msk [vmem:[#allocation4 + $0x6b0] sm:$0xff] %vm388, 0.0
      %852 = vst.msk [vmem:[#allocation4 + $0x6b8] sm:$0x7] %vm641, 0.0
      %853 = vst.msk [vmem:[#allocation4 + $0x6c0] sm:$0xff] %vm388, 0.0
      %854 = vst.msk [vmem:[#allocation4 + $0x6c8] sm:$0xff] %vm388, 0.0
      %855 = vst.msk [vmem:[#allocation4 + $0x6d0] sm:$0xff] %vm388, 0.0
      %856 = vst.msk [vmem:[#allocation4 + $0x6d8] sm:$0xff] %vm388, 0.0
      %857 = vst.msk [vmem:[#allocation4 + $0x6e0] sm:$0xff] %vm388, 0.0
      %858 = vst.msk [vmem:[#allocation4 + $0x6e8] sm:$0x7] %vm641, 0.0
      %859 = vst.msk [vmem:[#allocation4 + $0x6f0] sm:$0xff] %vm388, 0.0
      %860 = vst.msk [vmem:[#allocation4 + $0x6f8] sm:$0xff] %vm388, 0.0
      %861 = vst.msk [vmem:[#allocation4 + $0x700] sm:$0xff] %vm388, 0.0
      %862 = vst.msk [vmem:[#allocation4 + $0x708] sm:$0xff] %vm388, 0.0
      %863 = vst.msk [vmem:[#allocation4 + $0x710] sm:$0xff] %vm388, 0.0
      %864 = vst.msk [vmem:[#allocation4 + $0x718] sm:$0x7] %vm641, 0.0
      %865 = vst.msk [vmem:[#allocation4 + $0x720] sm:$0xff] %vm388, 0.0
      %866 = vst.msk [vmem:[#allocation4 + $0x728] sm:$0xff] %vm388, 0.0
      %867 = vst.msk [vmem:[#allocation4 + $0x730] sm:$0xff] %vm388, 0.0
      %868 = vst.msk [vmem:[#allocation4 + $0x738] sm:$0xff] %vm388, 0.0
      %869 = vst.msk [vmem:[#allocation4 + $0x740] sm:$0xff] %vm388, 0.0
      %870 = vst.msk [vmem:[#allocation4 + $0x748] sm:$0x7] %vm641, 0.0
      %871 = vst.msk [vmem:[#allocation4 + $0x750] sm:$0xff] %vm388, 0.0
      %872 = vst.msk [vmem:[#allocation4 + $0x758] sm:$0xff] %vm388, 0.0
      %873 = vst.msk [vmem:[#allocation4 + $0x760] sm:$0xff] %vm388, 0.0
      %874 = vst.msk [vmem:[#allocation4 + $0x768] sm:$0xff] %vm388, 0.0
      %875 = vst.msk [vmem:[#allocation4 + $0x770] sm:$0xff] %vm388, 0.0
      %876 = vst.msk [vmem:[#allocation4 + $0x778] sm:$0x7] %vm641, 0.0
      %877 = vst.msk [vmem:[#allocation4 + $0x780] sm:$0xff] %vm388, 0.0
      %878 = vst.msk [vmem:[#allocation4 + $0x788] sm:$0xff] %vm388, 0.0
      %879 = vst.msk [vmem:[#allocation4 + $0x790] sm:$0xff] %vm388, 0.0
      %880 = vst.msk [vmem:[#allocation4 + $0x798] sm:$0xff] %vm388, 0.0
      %881 = vst.msk [vmem:[#allocation4 + $0x7a0] sm:$0xff] %vm388, 0.0
      %882 = vst.msk [vmem:[#allocation4 + $0x7a8] sm:$0x7] %vm641, 0.0
      %883 = vst.msk [vmem:[#allocation4 + $0x7b0] sm:$0xff] %vm388, 0.0
      %884 = vst.msk [vmem:[#allocation4 + $0x7b8] sm:$0xff] %vm388, 0.0
      %885 = vst.msk [vmem:[#allocation4 + $0x7c0] sm:$0xff] %vm388, 0.0
      %886 = vst.msk [vmem:[#allocation4 + $0x7c8] sm:$0xff] %vm388, 0.0
      %887 = vst.msk [vmem:[#allocation4 + $0x7d0] sm:$0xff] %vm388, 0.0
      %888 = vst.msk [vmem:[#allocation4 + $0x7d8] sm:$0x7] %vm641, 0.0
      %889 = vst.msk [vmem:[#allocation4 + $0x7e0] sm:$0xff] %vm388, 0.0
      %890 = vst.msk [vmem:[#allocation4 + $0x7e8] sm:$0xff] %vm388, 0.0
      %891 = vst.msk [vmem:[#allocation4 + $0x7f0] sm:$0xff] %vm388, 0.0
      %892 = vst.msk [vmem:[#allocation4 + $0x7f8] sm:$0xff] %vm388, 0.0
      %893 = vst.msk [vmem:[#allocation4 + $0x800] sm:$0xff] %vm388, 0.0
      %894 = vst.msk [vmem:[#allocation4 + $0x808] sm:$0x7] %vm641, 0.0
      %895 = vst.msk [vmem:[#allocation5] sm:$0xff] %vm388, 0.0
      %896 = vst.msk [vmem:[#allocation5 + $0x8] sm:$0xff] %vm388, 0.0
      %897 = vst.msk [vmem:[#allocation5 + $0x10] sm:$0xff] %vm388, 0.0
      %898 = vst.msk [vmem:[#allocation5 + $0x18] sm:$0xff] %vm388, 0.0
      %899 = vst.msk [vmem:[#allocation5 + $0x20] sm:$0xff] %vm388, 0.0
      %900 = vst.msk [vmem:[#allocation5 + $0x28] sm:$0xff] %vm388, 0.0
      %901 = vst.msk [vmem:[#allocation5 + $0x30] sm:$0xff] %vm388, 0.0
      %902 = vst.msk [vmem:[#allocation5 + $0x38] sm:$0xff] %vm388, 0.0
      %903 = vst.msk [vmem:[#allocation5 + $0x40] sm:$0xff] %vm388, 0.0
      %904 = vst.msk [vmem:[#allocation5 + $0x48] sm:$0xff] %vm388, 0.0
      %vm905 = vcmask 258048
      %906 = vst.msk [vmem:[#allocation5 + $0x50] sm:$0x1f] %vm905, 0.0
      %907 = vst.msk [vmem:[#allocation5 + $0x58] sm:$0xff] %vm388, 0.0
      %908 = vst.msk [vmem:[#allocation5 + $0x60] sm:$0xff] %vm388, 0.0
      %909 = vst.msk [vmem:[#allocation5 + $0x68] sm:$0xff] %vm388, 0.0
      %910 = vst.msk [vmem:[#allocation5 + $0x70] sm:$0xff] %vm388, 0.0
      %911 = vst.msk [vmem:[#allocation5 + $0x78] sm:$0xff] %vm388, 0.0
      %912 = vst.msk [vmem:[#allocation5 + $0x80] sm:$0xff] %vm388, 0.0
      %913 = vst.msk [vmem:[#allocation5 + $0x88] sm:$0xff] %vm388, 0.0
      %914 = vst.msk [vmem:[#allocation5 + $0x90] sm:$0xff] %vm388, 0.0
      %915 = vst.msk [vmem:[#allocation5 + $0x98] sm:$0xff] %vm388, 0.0
      %916 = vst.msk [vmem:[#allocation5 + $0xa0] sm:$0xff] %vm388, 0.0
      %917 = vst.msk [vmem:[#allocation5 + $0xa8] sm:$0x1f] %vm905, 0.0
      %918 = vst.msk [vmem:[#allocation5 + $0xb0] sm:$0xff] %vm388, 0.0
      %919 = vst.msk [vmem:[#allocation5 + $0xb8] sm:$0xff] %vm388, 0.0
      %920 = vst.msk [vmem:[#allocation5 + $0xc0] sm:$0xff] %vm388, 0.0
      %921 = vst.msk [vmem:[#allocation5 + $0xc8] sm:$0xff] %vm388, 0.0
      %922 = vst.msk [vmem:[#allocation5 + $0xd0] sm:$0xff] %vm388, 0.0
      %923 = vst.msk [vmem:[#allocation5 + $0xd8] sm:$0xff] %vm388, 0.0
      %924 = vst.msk [vmem:[#allocation5 + $0xe0] sm:$0xff] %vm388, 0.0
      %925 = vst.msk [vmem:[#allocation5 + $0xe8] sm:$0xff] %vm388, 0.0
      %926 = vst.msk [vmem:[#allocation5 + $0xf0] sm:$0xff] %vm388, 0.0
      %927 = vst.msk [vmem:[#allocation5 + $0xf8] sm:$0xff] %vm388, 0.0
      %928 = vst.msk [vmem:[#allocation5 + $0x100] sm:$0x1f] %vm905, 0.0
      %929 = vst.msk [vmem:[#allocation5 + $0x108] sm:$0xff] %vm388, 0.0
      %930 = vst.msk [vmem:[#allocation5 + $0x110] sm:$0xff] %vm388, 0.0
      %931 = vst.msk [vmem:[#allocation5 + $0x118] sm:$0xff] %vm388, 0.0
      %932 = vst.msk [vmem:[#allocation5 + $0x120] sm:$0xff] %vm388, 0.0
      %933 = vst.msk [vmem:[#allocation5 + $0x128] sm:$0xff] %vm388, 0.0
      %934 = vst.msk [vmem:[#allocation5 + $0x130] sm:$0xff] %vm388, 0.0
      %935 = vst.msk [vmem:[#allocation5 + $0x138] sm:$0xff] %vm388, 0.0
      %936 = vst.msk [vmem:[#allocation5 + $0x140] sm:$0xff] %vm388, 0.0
      %937 = vst.msk [vmem:[#allocation5 + $0x148] sm:$0xff] %vm388, 0.0
      %938 = vst.msk [vmem:[#allocation5 + $0x150] sm:$0xff] %vm388, 0.0
      %939 = vst.msk [vmem:[#allocation5 + $0x158] sm:$0x1f] %vm905, 0.0
      %940 = vst.msk [vmem:[#allocation5 + $0x160] sm:$0xff] %vm388, 0.0
      %941 = vst.msk [vmem:[#allocation5 + $0x168] sm:$0xff] %vm388, 0.0
      %942 = vst.msk [vmem:[#allocation5 + $0x170] sm:$0xff] %vm388, 0.0
      %943 = vst.msk [vmem:[#allocation5 + $0x178] sm:$0xff] %vm388, 0.0
      %944 = vst.msk [vmem:[#allocation5 + $0x180] sm:$0xff] %vm388, 0.0
      %945 = vst.msk [vmem:[#allocation5 + $0x188] sm:$0xff] %vm388, 0.0
      %946 = vst.msk [vmem:[#allocation5 + $0x190] sm:$0xff] %vm388, 0.0
      %947 = vst.msk [vmem:[#allocation5 + $0x198] sm:$0xff] %vm388, 0.0
      %948 = vst.msk [vmem:[#allocation5 + $0x1a0] sm:$0xff] %vm388, 0.0
      %949 = vst.msk [vmem:[#allocation5 + $0x1a8] sm:$0xff] %vm388, 0.0
      %950 = vst.msk [vmem:[#allocation5 + $0x1b0] sm:$0x1f] %vm905, 0.0
      %951 = vst.msk [vmem:[#allocation5 + $0x1b8] sm:$0xff] %vm388, 0.0
      %952 = vst.msk [vmem:[#allocation5 + $0x1c0] sm:$0xff] %vm388, 0.0
      %953 = vst.msk [vmem:[#allocation5 + $0x1c8] sm:$0xff] %vm388, 0.0
      %954 = vst.msk [vmem:[#allocation5 + $0x1d0] sm:$0xff] %vm388, 0.0
      %955 = vst.msk [vmem:[#allocation5 + $0x1d8] sm:$0xff] %vm388, 0.0
      %956 = vst.msk [vmem:[#allocation5 + $0x1e0] sm:$0xff] %vm388, 0.0
      %957 = vst.msk [vmem:[#allocation5 + $0x1e8] sm:$0xff] %vm388, 0.0
      %958 = vst.msk [vmem:[#allocation5 + $0x1f0] sm:$0xff] %vm388, 0.0
      %959 = vst.msk [vmem:[#allocation5 + $0x1f8] sm:$0xff] %vm388, 0.0
      %960 = vst.msk [vmem:[#allocation5 + $0x200] sm:$0xff] %vm388, 0.0
      %961 = vst.msk [vmem:[#allocation5 + $0x208] sm:$0x1f] %vm905, 0.0
      %962 = vst.msk [vmem:[#allocation5 + $0x210] sm:$0xff] %vm388, 0.0
      %963 = vst.msk [vmem:[#allocation5 + $0x218] sm:$0xff] %vm388, 0.0
      %964 = vst.msk [vmem:[#allocation5 + $0x220] sm:$0xff] %vm388, 0.0
      %965 = vst.msk [vmem:[#allocation5 + $0x228] sm:$0xff] %vm388, 0.0
      %966 = vst.msk [vmem:[#allocation5 + $0x230] sm:$0xff] %vm388, 0.0
      %967 = vst.msk [vmem:[#allocation5 + $0x238] sm:$0xff] %vm388, 0.0
      %968 = vst.msk [vmem:[#allocation5 + $0x240] sm:$0xff] %vm388, 0.0
      %969 = vst.msk [vmem:[#allocation5 + $0x248] sm:$0xff] %vm388, 0.0
      %970 = vst.msk [vmem:[#allocation5 + $0x250] sm:$0xff] %vm388, 0.0
      %971 = vst.msk [vmem:[#allocation5 + $0x258] sm:$0xff] %vm388, 0.0
      %972 = vst.msk [vmem:[#allocation5 + $0x260] sm:$0x1f] %vm905, 0.0
      %973 = vst.msk [vmem:[#allocation5 + $0x268] sm:$0xff] %vm388, 0.0
      %974 = vst.msk [vmem:[#allocation5 + $0x270] sm:$0xff] %vm388, 0.0
      %975 = vst.msk [vmem:[#allocation5 + $0x278] sm:$0xff] %vm388, 0.0
      %976 = vst.msk [vmem:[#allocation5 + $0x280] sm:$0xff] %vm388, 0.0
      %977 = vst.msk [vmem:[#allocation5 + $0x288] sm:$0xff] %vm388, 0.0
      %978 = vst.msk [vmem:[#allocation5 + $0x290] sm:$0xff] %vm388, 0.0
      %979 = vst.msk [vmem:[#allocation5 + $0x298] sm:$0xff] %vm388, 0.0
      %980 = vst.msk [vmem:[#allocation5 + $0x2a0] sm:$0xff] %vm388, 0.0
      %981 = vst.msk [vmem:[#allocation5 + $0x2a8] sm:$0xff] %vm388, 0.0
      %982 = vst.msk [vmem:[#allocation5 + $0x2b0] sm:$0xff] %vm388, 0.0
      %983 = vst.msk [vmem:[#allocation5 + $0x2b8] sm:$0x1f] %vm905, 0.0
      %984 = vst.msk [vmem:[#allocation5 + $0x2c0] sm:$0xff] %vm388, 0.0
      %985 = vst.msk [vmem:[#allocation5 + $0x2c8] sm:$0xff] %vm388, 0.0
      %986 = vst.msk [vmem:[#allocation5 + $0x2d0] sm:$0xff] %vm388, 0.0
      %987 = vst.msk [vmem:[#allocation5 + $0x2d8] sm:$0xff] %vm388, 0.0
      %988 = vst.msk [vmem:[#allocation5 + $0x2e0] sm:$0xff] %vm388, 0.0
      %989 = vst.msk [vmem:[#allocation5 + $0x2e8] sm:$0xff] %vm388, 0.0
      %990 = vst.msk [vmem:[#allocation5 + $0x2f0] sm:$0xff] %vm388, 0.0
      %991 = vst.msk [vmem:[#allocation5 + $0x2f8] sm:$0xff] %vm388, 0.0
      %992 = vst.msk [vmem:[#allocation5 + $0x300] sm:$0xff] %vm388, 0.0
      %993 = vst.msk [vmem:[#allocation5 + $0x308] sm:$0xff] %vm388, 0.0
      %994 = vst.msk [vmem:[#allocation5 + $0x310] sm:$0x1f] %vm905, 0.0
      %995 = vst.msk [vmem:[#allocation5 + $0x318] sm:$0xff] %vm388, 0.0
      %996 = vst.msk [vmem:[#allocation5 + $0x320] sm:$0xff] %vm388, 0.0
      %997 = vst.msk [vmem:[#allocation5 + $0x328] sm:$0xff] %vm388, 0.0
      %998 = vst.msk [vmem:[#allocation5 + $0x330] sm:$0xff] %vm388, 0.0
      %999 = vst.msk [vmem:[#allocation5 + $0x338] sm:$0xff] %vm388, 0.0
      %1000 = vst.msk [vmem:[#allocation5 + $0x340] sm:$0xff] %vm388, 0.0
      %1001 = vst.msk [vmem:[#allocation5 + $0x348] sm:$0xff] %vm388, 0.0
      %1002 = vst.msk [vmem:[#allocation5 + $0x350] sm:$0xff] %vm388, 0.0
      %1003 = vst.msk [vmem:[#allocation5 + $0x358] sm:$0xff] %vm388, 0.0
      %1004 = vst.msk [vmem:[#allocation5 + $0x360] sm:$0xff] %vm388, 0.0
      %1005 = vst.msk [vmem:[#allocation5 + $0x368] sm:$0x1f] %vm905, 0.0
      %1006 = vst.msk [vmem:[#allocation5 + $0x370] sm:$0xff] %vm388, 0.0
      %1007 = vst.msk [vmem:[#allocation5 + $0x378] sm:$0xff] %vm388, 0.0
      %1008 = vst.msk [vmem:[#allocation5 + $0x380] sm:$0xff] %vm388, 0.0
      %1009 = vst.msk [vmem:[#allocation5 + $0x388] sm:$0xff] %vm388, 0.0
      %1010 = vst.msk [vmem:[#allocation5 + $0x390] sm:$0xff] %vm388, 0.0
      %1011 = vst.msk [vmem:[#allocation5 + $0x398] sm:$0xff] %vm388, 0.0
      %1012 = vst.msk [vmem:[#allocation5 + $0x3a0] sm:$0xff] %vm388, 0.0
      %1013 = vst.msk [vmem:[#allocation5 + $0x3a8] sm:$0xff] %vm388, 0.0
      %1014 = vst.msk [vmem:[#allocation5 + $0x3b0] sm:$0xff] %vm388, 0.0
      %1015 = vst.msk [vmem:[#allocation5 + $0x3b8] sm:$0xff] %vm388, 0.0
      %1016 = vst.msk [vmem:[#allocation5 + $0x3c0] sm:$0x1f] %vm905, 0.0
      %1017 = vst.msk [vmem:[#allocation5 + $0x3c8] sm:$0xff] %vm388, 0.0
      %1018 = vst.msk [vmem:[#allocation5 + $0x3d0] sm:$0xff] %vm388, 0.0
      %1019 = vst.msk [vmem:[#allocation5 + $0x3d8] sm:$0xff] %vm388, 0.0
      %1020 = vst.msk [vmem:[#allocation5 + $0x3e0] sm:$0xff] %vm388, 0.0
      %1021 = vst.msk [vmem:[#allocation5 + $0x3e8] sm:$0xff] %vm388, 0.0
      %1022 = vst.msk [vmem:[#allocation5 + $0x3f0] sm:$0xff] %vm388, 0.0
      %1023 = vst.msk [vmem:[#allocation5 + $0x3f8] sm:$0xff] %vm388, 0.0
      %1024 = vst.msk [vmem:[#allocation5 + $0x400] sm:$0xff] %vm388, 0.0
      %1025 = vst.msk [vmem:[#allocation5 + $0x408] sm:$0xff] %vm388, 0.0
      %1026 = vst.msk [vmem:[#allocation5 + $0x410] sm:$0xff] %vm388, 0.0
      %1027 = vst.msk [vmem:[#allocation5 + $0x418] sm:$0x1f] %vm905, 0.0
      %1028 = vst.msk [vmem:[#allocation5 + $0x420] sm:$0xff] %vm388, 0.0
      %1029 = vst.msk [vmem:[#allocation5 + $0x428] sm:$0xff] %vm388, 0.0
      %1030 = vst.msk [vmem:[#allocation5 + $0x430] sm:$0xff] %vm388, 0.0
      %1031 = vst.msk [vmem:[#allocation5 + $0x438] sm:$0xff] %vm388, 0.0
      %1032 = vst.msk [vmem:[#allocation5 + $0x440] sm:$0xff] %vm388, 0.0
      %1033 = vst.msk [vmem:[#allocation5 + $0x448] sm:$0xff] %vm388, 0.0
      %1034 = vst.msk [vmem:[#allocation5 + $0x450] sm:$0xff] %vm388, 0.0
      %1035 = vst.msk [vmem:[#allocation5 + $0x458] sm:$0xff] %vm388, 0.0
      %1036 = vst.msk [vmem:[#allocation5 + $0x460] sm:$0xff] %vm388, 0.0
      %1037 = vst.msk [vmem:[#allocation5 + $0x468] sm:$0xff] %vm388, 0.0
      %1038 = vst.msk [vmem:[#allocation5 + $0x470] sm:$0x1f] %vm905, 0.0
      %1039 = vst.msk [vmem:[#allocation5 + $0x478] sm:$0xff] %vm388, 0.0
      %1040 = vst.msk [vmem:[#allocation5 + $0x480] sm:$0xff] %vm388, 0.0
      %1041 = vst.msk [vmem:[#allocation5 + $0x488] sm:$0xff] %vm388, 0.0
      %1042 = vst.msk [vmem:[#allocation5 + $0x490] sm:$0xff] %vm388, 0.0
      %1043 = vst.msk [vmem:[#allocation5 + $0x498] sm:$0xff] %vm388, 0.0
      %1044 = vst.msk [vmem:[#allocation5 + $0x4a0] sm:$0xff] %vm388, 0.0
      %1045 = vst.msk [vmem:[#allocation5 + $0x4a8] sm:$0xff] %vm388, 0.0
      %1046 = vst.msk [vmem:[#allocation5 + $0x4b0] sm:$0xff] %vm388, 0.0
      %1047 = vst.msk [vmem:[#allocation5 + $0x4b8] sm:$0xff] %vm388, 0.0
      %1048 = vst.msk [vmem:[#allocation5 + $0x4c0] sm:$0xff] %vm388, 0.0
      %1049 = vst.msk [vmem:[#allocation5 + $0x4c8] sm:$0x1f] %vm905, 0.0
      %1050 = vst.msk [vmem:[#allocation5 + $0x4d0] sm:$0xff] %vm388, 0.0
      %1051 = vst.msk [vmem:[#allocation5 + $0x4d8] sm:$0xff] %vm388, 0.0
      %1052 = vst.msk [vmem:[#allocation5 + $0x4e0] sm:$0xff] %vm388, 0.0
      %1053 = vst.msk [vmem:[#allocation5 + $0x4e8] sm:$0xff] %vm388, 0.0
      %1054 = vst.msk [vmem:[#allocation5 + $0x4f0] sm:$0xff] %vm388, 0.0
      %1055 = vst.msk [vmem:[#allocation5 + $0x4f8] sm:$0xff] %vm388, 0.0
      %1056 = vst.msk [vmem:[#allocation5 + $0x500] sm:$0xff] %vm388, 0.0
      %1057 = vst.msk [vmem:[#allocation5 + $0x508] sm:$0xff] %vm388, 0.0
      %1058 = vst.msk [vmem:[#allocation5 + $0x510] sm:$0xff] %vm388, 0.0
      %1059 = vst.msk [vmem:[#allocation5 + $0x518] sm:$0xff] %vm388, 0.0
      %1060 = vst.msk [vmem:[#allocation5 + $0x520] sm:$0x1f] %vm905, 0.0
      %1061 = vst.msk [vmem:[#allocation5 + $0x528] sm:$0xff] %vm388, 0.0
      %1062 = vst.msk [vmem:[#allocation5 + $0x530] sm:$0xff] %vm388, 0.0
      %1063 = vst.msk [vmem:[#allocation5 + $0x538] sm:$0xff] %vm388, 0.0
      %1064 = vst.msk [vmem:[#allocation5 + $0x540] sm:$0xff] %vm388, 0.0
      %1065 = vst.msk [vmem:[#allocation5 + $0x548] sm:$0xff] %vm388, 0.0
      %1066 = vst.msk [vmem:[#allocation5 + $0x550] sm:$0xff] %vm388, 0.0
      %1067 = vst.msk [vmem:[#allocation5 + $0x558] sm:$0xff] %vm388, 0.0
      %1068 = vst.msk [vmem:[#allocation5 + $0x560] sm:$0xff] %vm388, 0.0
      %1069 = vst.msk [vmem:[#allocation5 + $0x568] sm:$0xff] %vm388, 0.0
      %1070 = vst.msk [vmem:[#allocation5 + $0x570] sm:$0xff] %vm388, 0.0
      %1071 = vst.msk [vmem:[#allocation5 + $0x578] sm:$0x1f] %vm905, 0.0
      %1072 = vst.msk [vmem:[#allocation5 + $0x580] sm:$0xff] %vm388, 0.0
      %1073 = vst.msk [vmem:[#allocation5 + $0x588] sm:$0xff] %vm388, 0.0
      %1074 = vst.msk [vmem:[#allocation5 + $0x590] sm:$0xff] %vm388, 0.0
      %1075 = vst.msk [vmem:[#allocation5 + $0x598] sm:$0xff] %vm388, 0.0
      %1076 = vst.msk [vmem:[#allocation5 + $0x5a0] sm:$0xff] %vm388, 0.0
      %1077 = vst.msk [vmem:[#allocation5 + $0x5a8] sm:$0xff] %vm388, 0.0
      %1078 = vst.msk [vmem:[#allocation5 + $0x5b0] sm:$0xff] %vm388, 0.0
      %1079 = vst.msk [vmem:[#allocation5 + $0x5b8] sm:$0xff] %vm388, 0.0
      %1080 = vst.msk [vmem:[#allocation5 + $0x5c0] sm:$0xff] %vm388, 0.0
      %1081 = vst.msk [vmem:[#allocation5 + $0x5c8] sm:$0xff] %vm388, 0.0
      %1082 = vst.msk [vmem:[#allocation5 + $0x5d0] sm:$0x1f] %vm905, 0.0
      %1083 = vst.msk [vmem:[#allocation5 + $0x5d8] sm:$0xff] %vm388, 0.0
      %1084 = vst.msk [vmem:[#allocation5 + $0x5e0] sm:$0xff] %vm388, 0.0
      %1085 = vst.msk [vmem:[#allocation5 + $0x5e8] sm:$0xff] %vm388, 0.0
      %1086 = vst.msk [vmem:[#allocation5 + $0x5f0] sm:$0xff] %vm388, 0.0
      %1087 = vst.msk [vmem:[#allocation5 + $0x5f8] sm:$0xff] %vm388, 0.0
      %1088 = vst.msk [vmem:[#allocation5 + $0x600] sm:$0xff] %vm388, 0.0
      %1089 = vst.msk [vmem:[#allocation5 + $0x608] sm:$0xff] %vm388, 0.0
      %1090 = vst.msk [vmem:[#allocation5 + $0x610] sm:$0xff] %vm388, 0.0
      %1091 = vst.msk [vmem:[#allocation5 + $0x618] sm:$0xff] %vm388, 0.0
      %1092 = vst.msk [vmem:[#allocation5 + $0x620] sm:$0xff] %vm388, 0.0
      %1093 = vst.msk [vmem:[#allocation5 + $0x628] sm:$0x1f] %vm905, 0.0
      %1094 = vst.msk [vmem:[#allocation5 + $0x630] sm:$0xff] %vm388, 0.0
      %1095 = vst.msk [vmem:[#allocation5 + $0x638] sm:$0xff] %vm388, 0.0
      %1096 = vst.msk [vmem:[#allocation5 + $0x640] sm:$0xff] %vm388, 0.0
      %1097 = vst.msk [vmem:[#allocation5 + $0x648] sm:$0xff] %vm388, 0.0
      %1098 = vst.msk [vmem:[#allocation5 + $0x650] sm:$0xff] %vm388, 0.0
      %1099 = vst.msk [vmem:[#allocation5 + $0x658] sm:$0xff] %vm388, 0.0
      %1100 = vst.msk [vmem:[#allocation5 + $0x660] sm:$0xff] %vm388, 0.0
      %1101 = vst.msk [vmem:[#allocation5 + $0x668] sm:$0xff] %vm388, 0.0
      %1102 = vst.msk [vmem:[#allocation5 + $0x670] sm:$0xff] %vm388, 0.0
      %1103 = vst.msk [vmem:[#allocation5 + $0x678] sm:$0xff] %vm388, 0.0
      %1104 = vst.msk [vmem:[#allocation5 + $0x680] sm:$0x1f] %vm905, 0.0
      %1105 = vst.msk [vmem:[#allocation5 + $0x688] sm:$0xff] %vm388, 0.0
      %1106 = vst.msk [vmem:[#allocation5 + $0x690] sm:$0xff] %vm388, 0.0
      %1107 = vst.msk [vmem:[#allocation5 + $0x698] sm:$0xff] %vm388, 0.0
      %1108 = vst.msk [vmem:[#allocation5 + $0x6a0] sm:$0xff] %vm388, 0.0
      %1109 = vst.msk [vmem:[#allocation5 + $0x6a8] sm:$0xff] %vm388, 0.0
      %1110 = vst.msk [vmem:[#allocation5 + $0x6b0] sm:$0xff] %vm388, 0.0
      %1111 = vst.msk [vmem:[#allocation5 + $0x6b8] sm:$0xff] %vm388, 0.0
      %1112 = vst.msk [vmem:[#allocation5 + $0x6c0] sm:$0xff] %vm388, 0.0
      %1113 = vst.msk [vmem:[#allocation5 + $0x6c8] sm:$0xff] %vm388, 0.0
      %1114 = vst.msk [vmem:[#allocation5 + $0x6d0] sm:$0xff] %vm388, 0.0
      %1115 = vst.msk [vmem:[#allocation5 + $0x6d8] sm:$0x1f] %vm905, 0.0
      %1116 = vst.msk [vmem:[#allocation5 + $0x6e0] sm:$0xff] %vm388, 0.0
      %1117 = vst.msk [vmem:[#allocation5 + $0x6e8] sm:$0xff] %vm388, 0.0
      %1118 = vst.msk [vmem:[#allocation5 + $0x6f0] sm:$0xff] %vm388, 0.0
      %1119 = vst.msk [vmem:[#allocation5 + $0x6f8] sm:$0xff] %vm388, 0.0
      %1120 = vst.msk [vmem:[#allocation5 + $0x700] sm:$0xff] %vm388, 0.0
      %1121 = vst.msk [vmem:[#allocation5 + $0x708] sm:$0xff] %vm388, 0.0
      %1122 = vst.msk [vmem:[#allocation5 + $0x710] sm:$0xff] %vm388, 0.0
      %1123 = vst.msk [vmem:[#allocation5 + $0x718] sm:$0xff] %vm388, 0.0
      %1124 = vst.msk [vmem:[#allocation5 + $0x720] sm:$0xff] %vm388, 0.0
      %1125 = vst.msk [vmem:[#allocation5 + $0x728] sm:$0xff] %vm388, 0.0
      %1126 = vst.msk [vmem:[#allocation5 + $0x730] sm:$0x1f] %vm905, 0.0
      %1127 = vst.msk [vmem:[#allocation5 + $0x738] sm:$0xff] %vm388, 0.0
      %1128 = vst.msk [vmem:[#allocation5 + $0x740] sm:$0xff] %vm388, 0.0
      %1129 = vst.msk [vmem:[#allocation5 + $0x748] sm:$0xff] %vm388, 0.0
      %1130 = vst.msk [vmem:[#allocation5 + $0x750] sm:$0xff] %vm388, 0.0
      %1131 = vst.msk [vmem:[#allocation5 + $0x758] sm:$0xff] %vm388, 0.0
      %1132 = vst.msk [vmem:[#allocation5 + $0x760] sm:$0xff] %vm388, 0.0
      %1133 = vst.msk [vmem:[#allocation5 + $0x768] sm:$0xff] %vm388, 0.0
      %1134 = vst.msk [vmem:[#allocation5 + $0x770] sm:$0xff] %vm388, 0.0
      %1135 = vst.msk [vmem:[#allocation5 + $0x778] sm:$0xff] %vm388, 0.0
      %1136 = vst.msk [vmem:[#allocation5 + $0x780] sm:$0xff] %vm388, 0.0
      %1137 = vst.msk [vmem:[#allocation5 + $0x788] sm:$0x1f] %vm905, 0.0
      %1138 = vst.msk [vmem:[#allocation5 + $0x790] sm:$0xff] %vm388, 0.0
      %1139 = vst.msk [vmem:[#allocation5 + $0x798] sm:$0xff] %vm388, 0.0
      %1140 = vst.msk [vmem:[#allocation5 + $0x7a0] sm:$0xff] %vm388, 0.0
      %1141 = vst.msk [vmem:[#allocation5 + $0x7a8] sm:$0xff] %vm388, 0.0
      %1142 = vst.msk [vmem:[#allocation5 + $0x7b0] sm:$0xff] %vm388, 0.0
      %1143 = vst.msk [vmem:[#allocation5 + $0x7b8] sm:$0xff] %vm388, 0.0
      %1144 = vst.msk [vmem:[#allocation5 + $0x7c0] sm:$0xff] %vm388, 0.0
      %1145 = vst.msk [vmem:[#allocation5 + $0x7c8] sm:$0xff] %vm388, 0.0
      %1146 = vst.msk [vmem:[#allocation5 + $0x7d0] sm:$0xff] %vm388, 0.0
      %1147 = vst.msk [vmem:[#allocation5 + $0x7d8] sm:$0xff] %vm388, 0.0
      %1148 = vst.msk [vmem:[#allocation5 + $0x7e0] sm:$0x1f] %vm905, 0.0
      %1149 = vst.msk [vmem:[#allocation5 + $0x7e8] sm:$0xff] %vm388, 0.0
      %1150 = vst.msk [vmem:[#allocation5 + $0x7f0] sm:$0xff] %vm388, 0.0
      %1151 = vst.msk [vmem:[#allocation5 + $0x7f8] sm:$0xff] %vm388, 0.0
      %1152 = vst.msk [vmem:[#allocation5 + $0x800] sm:$0xff] %vm388, 0.0
      %1153 = vst.msk [vmem:[#allocation5 + $0x808] sm:$0xff] %vm388, 0.0
      %1154 = vst.msk [vmem:[#allocation5 + $0x810] sm:$0xff] %vm388, 0.0
      %1155 = vst.msk [vmem:[#allocation5 + $0x818] sm:$0xff] %vm388, 0.0
      %1156 = vst.msk [vmem:[#allocation5 + $0x820] sm:$0xff] %vm388, 0.0
      %1157 = vst.msk [vmem:[#allocation5 + $0x828] sm:$0xff] %vm388, 0.0
      %1158 = vst.msk [vmem:[#allocation5 + $0x830] sm:$0xff] %vm388, 0.0
      %1159 = vst.msk [vmem:[#allocation5 + $0x838] sm:$0x1f] %vm905, 0.0
      %1160 = vst.msk [vmem:[#allocation5 + $0x840] sm:$0xff] %vm388, 0.0
      %1161 = vst.msk [vmem:[#allocation5 + $0x848] sm:$0xff] %vm388, 0.0
      %1162 = vst.msk [vmem:[#allocation5 + $0x850] sm:$0xff] %vm388, 0.0
      %1163 = vst.msk [vmem:[#allocation5 + $0x858] sm:$0xff] %vm388, 0.0
      %1164 = vst.msk [vmem:[#allocation5 + $0x860] sm:$0xff] %vm388, 0.0
      %1165 = vst.msk [vmem:[#allocation5 + $0x868] sm:$0xff] %vm388, 0.0
      %1166 = vst.msk [vmem:[#allocation5 + $0x870] sm:$0xff] %vm388, 0.0
      %1167 = vst.msk [vmem:[#allocation5 + $0x878] sm:$0xff] %vm388, 0.0
      %1168 = vst.msk [vmem:[#allocation5 + $0x880] sm:$0xff] %vm388, 0.0
      %1169 = vst.msk [vmem:[#allocation5 + $0x888] sm:$0xff] %vm388, 0.0
      %1170 = vst.msk [vmem:[#allocation5 + $0x890] sm:$0x1f] %vm905, 0.0
      %1171 = vst.msk [vmem:[#allocation5 + $0x898] sm:$0xff] %vm388, 0.0
      %1172 = vst.msk [vmem:[#allocation5 + $0x8a0] sm:$0xff] %vm388, 0.0
      %1173 = vst.msk [vmem:[#allocation5 + $0x8a8] sm:$0xff] %vm388, 0.0
      %1174 = vst.msk [vmem:[#allocation5 + $0x8b0] sm:$0xff] %vm388, 0.0
      %1175 = vst.msk [vmem:[#allocation5 + $0x8b8] sm:$0xff] %vm388, 0.0
      %1176 = vst.msk [vmem:[#allocation5 + $0x8c0] sm:$0xff] %vm388, 0.0
      %1177 = vst.msk [vmem:[#allocation5 + $0x8c8] sm:$0xff] %vm388, 0.0
      %1178 = vst.msk [vmem:[#allocation5 + $0x8d0] sm:$0xff] %vm388, 0.0
      %1179 = vst.msk [vmem:[#allocation5 + $0x8d8] sm:$0xff] %vm388, 0.0
      %1180 = vst.msk [vmem:[#allocation5 + $0x8e0] sm:$0xff] %vm388, 0.0
      %1181 = vst.msk [vmem:[#allocation5 + $0x8e8] sm:$0x1f] %vm905, 0.0
      %1182 = vst.msk [vmem:[#allocation5 + $0x8f0] sm:$0xff] %vm388, 0.0
      %1183 = vst.msk [vmem:[#allocation5 + $0x8f8] sm:$0xff] %vm388, 0.0
      %1184 = vst.msk [vmem:[#allocation5 + $0x900] sm:$0xff] %vm388, 0.0
      %1185 = vst.msk [vmem:[#allocation5 + $0x908] sm:$0xff] %vm388, 0.0
      %1186 = vst.msk [vmem:[#allocation5 + $0x910] sm:$0xff] %vm388, 0.0
      %1187 = vst.msk [vmem:[#allocation5 + $0x918] sm:$0xff] %vm388, 0.0
      %1188 = vst.msk [vmem:[#allocation5 + $0x920] sm:$0xff] %vm388, 0.0
      %1189 = vst.msk [vmem:[#allocation5 + $0x928] sm:$0xff] %vm388, 0.0
      %1190 = vst.msk [vmem:[#allocation5 + $0x930] sm:$0xff] %vm388, 0.0
      %1191 = vst.msk [vmem:[#allocation5 + $0x938] sm:$0xff] %vm388, 0.0
      %1192 = vst.msk [vmem:[#allocation5 + $0x940] sm:$0x1f] %vm905, 0.0
      %1193 = vst.msk [vmem:[#allocation5 + $0x948] sm:$0xff] %vm388, 0.0
      %1194 = vst.msk [vmem:[#allocation5 + $0x950] sm:$0xff] %vm388, 0.0
      %1195 = vst.msk [vmem:[#allocation5 + $0x958] sm:$0xff] %vm388, 0.0
      %1196 = vst.msk [vmem:[#allocation5 + $0x960] sm:$0xff] %vm388, 0.0
      %1197 = vst.msk [vmem:[#allocation5 + $0x968] sm:$0xff] %vm388, 0.0
      %1198 = vst.msk [vmem:[#allocation5 + $0x970] sm:$0xff] %vm388, 0.0
      %1199 = vst.msk [vmem:[#allocation5 + $0x978] sm:$0xff] %vm388, 0.0
      %1200 = vst.msk [vmem:[#allocation5 + $0x980] sm:$0xff] %vm388, 0.0
      %1201 = vst.msk [vmem:[#allocation5 + $0x988] sm:$0xff] %vm388, 0.0
      %1202 = vst.msk [vmem:[#allocation5 + $0x990] sm:$0xff] %vm388, 0.0
      %1203 = vst.msk [vmem:[#allocation5 + $0x998] sm:$0x1f] %vm905, 0.0
      %1204 = vst.msk [vmem:[#allocation5 + $0x9a0] sm:$0xff] %vm388, 0.0
      %1205 = vst.msk [vmem:[#allocation5 + $0x9a8] sm:$0xff] %vm388, 0.0
      %1206 = vst.msk [vmem:[#allocation5 + $0x9b0] sm:$0xff] %vm388, 0.0
      %1207 = vst.msk [vmem:[#allocation5 + $0x9b8] sm:$0xff] %vm388, 0.0
      %1208 = vst.msk [vmem:[#allocation5 + $0x9c0] sm:$0xff] %vm388, 0.0
      %1209 = vst.msk [vmem:[#allocation5 + $0x9c8] sm:$0xff] %vm388, 0.0
      %1210 = vst.msk [vmem:[#allocation5 + $0x9d0] sm:$0xff] %vm388, 0.0
      %1211 = vst.msk [vmem:[#allocation5 + $0x9d8] sm:$0xff] %vm388, 0.0
      %1212 = vst.msk [vmem:[#allocation5 + $0x9e0] sm:$0xff] %vm388, 0.0
      %1213 = vst.msk [vmem:[#allocation5 + $0x9e8] sm:$0xff] %vm388, 0.0
      %1214 = vst.msk [vmem:[#allocation5 + $0x9f0] sm:$0x1f] %vm905, 0.0
      %1215 = vst.msk [vmem:[#allocation5 + $0x9f8] sm:$0xff] %vm388, 0.0
      %1216 = vst.msk [vmem:[#allocation5 + $0xa00] sm:$0xff] %vm388, 0.0
      %1217 = vst.msk [vmem:[#allocation5 + $0xa08] sm:$0xff] %vm388, 0.0
      %1218 = vst.msk [vmem:[#allocation5 + $0xa10] sm:$0xff] %vm388, 0.0
      %1219 = vst.msk [vmem:[#allocation5 + $0xa18] sm:$0xff] %vm388, 0.0
      %1220 = vst.msk [vmem:[#allocation5 + $0xa20] sm:$0xff] %vm388, 0.0
      %1221 = vst.msk [vmem:[#allocation5 + $0xa28] sm:$0xff] %vm388, 0.0
      %1222 = vst.msk [vmem:[#allocation5 + $0xa30] sm:$0xff] %vm388, 0.0
      %1223 = vst.msk [vmem:[#allocation5 + $0xa38] sm:$0xff] %vm388, 0.0
      %1224 = vst.msk [vmem:[#allocation5 + $0xa40] sm:$0xff] %vm388, 0.0
      %1225 = vst.msk [vmem:[#allocation5 + $0xa48] sm:$0x1f] %vm905, 0.0
      %1226 = vst.msk [vmem:[#allocation5 + $0xa50] sm:$0xff] %vm388, 0.0
      %1227 = vst.msk [vmem:[#allocation5 + $0xa58] sm:$0xff] %vm388, 0.0
      %1228 = vst.msk [vmem:[#allocation5 + $0xa60] sm:$0xff] %vm388, 0.0
      %1229 = vst.msk [vmem:[#allocation5 + $0xa68] sm:$0xff] %vm388, 0.0
      %1230 = vst.msk [vmem:[#allocation5 + $0xa70] sm:$0xff] %vm388, 0.0
      %1231 = vst.msk [vmem:[#allocation5 + $0xa78] sm:$0xff] %vm388, 0.0
      %1232 = vst.msk [vmem:[#allocation5 + $0xa80] sm:$0xff] %vm388, 0.0
      %1233 = vst.msk [vmem:[#allocation5 + $0xa88] sm:$0xff] %vm388, 0.0
      %1234 = vst.msk [vmem:[#allocation5 + $0xa90] sm:$0xff] %vm388, 0.0
      %1235 = vst.msk [vmem:[#allocation5 + $0xa98] sm:$0xff] %vm388, 0.0
      %1236 = vst.msk [vmem:[#allocation5 + $0xaa0] sm:$0x1f] %vm905, 0.0
      %1237 = vst.msk [vmem:[#allocation5 + $0xaa8] sm:$0xff] %vm388, 0.0
      %1238 = vst.msk [vmem:[#allocation5 + $0xab0] sm:$0xff] %vm388, 0.0
      %1239 = vst.msk [vmem:[#allocation5 + $0xab8] sm:$0xff] %vm388, 0.0
      %1240 = vst.msk [vmem:[#allocation5 + $0xac0] sm:$0xff] %vm388, 0.0
      %1241 = vst.msk [vmem:[#allocation5 + $0xac8] sm:$0xff] %vm388, 0.0
      %1242 = vst.msk [vmem:[#allocation5 + $0xad0] sm:$0xff] %vm388, 0.0
      %1243 = vst.msk [vmem:[#allocation5 + $0xad8] sm:$0xff] %vm388, 0.0
      %1244 = vst.msk [vmem:[#allocation5 + $0xae0] sm:$0xff] %vm388, 0.0
      %1245 = vst.msk [vmem:[#allocation5 + $0xae8] sm:$0xff] %vm388, 0.0
      %1246 = vst.msk [vmem:[#allocation5 + $0xaf0] sm:$0xff] %vm388, 0.0
      %1247 = vst.msk [vmem:[#allocation5 + $0xaf8] sm:$0x1f] %vm905, 0.0
      %1248 = vst.msk [vmem:[#allocation5 + $0xb00] sm:$0xff] %vm388, 0.0
      %1249 = vst.msk [vmem:[#allocation5 + $0xb08] sm:$0xff] %vm388, 0.0
      %1250 = vst.msk [vmem:[#allocation5 + $0xb10] sm:$0xff] %vm388, 0.0
      %1251 = vst.msk [vmem:[#allocation5 + $0xb18] sm:$0xff] %vm388, 0.0
      %1252 = vst.msk [vmem:[#allocation5 + $0xb20] sm:$0xff] %vm388, 0.0
      %1253 = vst.msk [vmem:[#allocation5 + $0xb28] sm:$0xff] %vm388, 0.0
      %1254 = vst.msk [vmem:[#allocation5 + $0xb30] sm:$0xff] %vm388, 0.0
      %1255 = vst.msk [vmem:[#allocation5 + $0xb38] sm:$0xff] %vm388, 0.0
      %1256 = vst.msk [vmem:[#allocation5 + $0xb40] sm:$0xff] %vm388, 0.0
      %1257 = vst.msk [vmem:[#allocation5 + $0xb48] sm:$0xff] %vm388, 0.0
      %1258 = vst.msk [vmem:[#allocation5 + $0xb50] sm:$0x1f] %vm905, 0.0
      %1259 = vst.msk [vmem:[#allocation5 + $0xb58] sm:$0xff] %vm388, 0.0
      %1260 = vst.msk [vmem:[#allocation5 + $0xb60] sm:$0xff] %vm388, 0.0
      %1261 = vst.msk [vmem:[#allocation5 + $0xb68] sm:$0xff] %vm388, 0.0
      %1262 = vst.msk [vmem:[#allocation5 + $0xb70] sm:$0xff] %vm388, 0.0
      %1263 = vst.msk [vmem:[#allocation5 + $0xb78] sm:$0xff] %vm388, 0.0
      %1264 = vst.msk [vmem:[#allocation5 + $0xb80] sm:$0xff] %vm388, 0.0
      %1265 = vst.msk [vmem:[#allocation5 + $0xb88] sm:$0xff] %vm388, 0.0
      %1266 = vst.msk [vmem:[#allocation5 + $0xb90] sm:$0xff] %vm388, 0.0
      %1267 = vst.msk [vmem:[#allocation5 + $0xb98] sm:$0xff] %vm388, 0.0
      %1268 = vst.msk [vmem:[#allocation5 + $0xba0] sm:$0xff] %vm388, 0.0
      %1269 = vst.msk [vmem:[#allocation5 + $0xba8] sm:$0x1f] %vm905, 0.0
      %1270 = vst.msk [vmem:[#allocation5 + $0xbb0] sm:$0xff] %vm388, 0.0
      %1271 = vst.msk [vmem:[#allocation5 + $0xbb8] sm:$0xff] %vm388, 0.0
      %1272 = vst.msk [vmem:[#allocation5 + $0xbc0] sm:$0xff] %vm388, 0.0
      %1273 = vst.msk [vmem:[#allocation5 + $0xbc8] sm:$0xff] %vm388, 0.0
      %1274 = vst.msk [vmem:[#allocation5 + $0xbd0] sm:$0xff] %vm388, 0.0
      %1275 = vst.msk [vmem:[#allocation5 + $0xbd8] sm:$0xff] %vm388, 0.0
      %1276 = vst.msk [vmem:[#allocation5 + $0xbe0] sm:$0xff] %vm388, 0.0
      %1277 = vst.msk [vmem:[#allocation5 + $0xbe8] sm:$0xff] %vm388, 0.0
      %1278 = vst.msk [vmem:[#allocation5 + $0xbf0] sm:$0xff] %vm388, 0.0
      %1279 = vst.msk [vmem:[#allocation5 + $0xbf8] sm:$0xff] %vm388, 0.0
      %1280 = vst.msk [vmem:[#allocation5 + $0xc00] sm:$0x1f] %vm905, 0.0
      %1281 = vst.msk [vmem:[#allocation5 + $0xc08] sm:$0xff] %vm388, 0.0
      %1282 = vst.msk [vmem:[#allocation5 + $0xc10] sm:$0xff] %vm388, 0.0
      %1283 = vst.msk [vmem:[#allocation5 + $0xc18] sm:$0xff] %vm388, 0.0
      %1284 = vst.msk [vmem:[#allocation5 + $0xc20] sm:$0xff] %vm388, 0.0
      %1285 = vst.msk [vmem:[#allocation5 + $0xc28] sm:$0xff] %vm388, 0.0
      %1286 = vst.msk [vmem:[#allocation5 + $0xc30] sm:$0xff] %vm388, 0.0
      %1287 = vst.msk [vmem:[#allocation5 + $0xc38] sm:$0xff] %vm388, 0.0
      %1288 = vst.msk [vmem:[#allocation5 + $0xc40] sm:$0xff] %vm388, 0.0
      %1289 = vst.msk [vmem:[#allocation5 + $0xc48] sm:$0xff] %vm388, 0.0
      %1290 = vst.msk [vmem:[#allocation5 + $0xc50] sm:$0xff] %vm388, 0.0
      %1291 = vst.msk [vmem:[#allocation5 + $0xc58] sm:$0x1f] %vm905, 0.0
      %1292 = vst.msk [vmem:[#allocation5 + $0xc60] sm:$0xff] %vm388, 0.0
      %1293 = vst.msk [vmem:[#allocation5 + $0xc68] sm:$0xff] %vm388, 0.0
      %1294 = vst.msk [vmem:[#allocation5 + $0xc70] sm:$0xff] %vm388, 0.0
      %1295 = vst.msk [vmem:[#allocation5 + $0xc78] sm:$0xff] %vm388, 0.0
      %1296 = vst.msk [vmem:[#allocation5 + $0xc80] sm:$0xff] %vm388, 0.0
      %1297 = vst.msk [vmem:[#allocation5 + $0xc88] sm:$0xff] %vm388, 0.0
      %1298 = vst.msk [vmem:[#allocation5 + $0xc90] sm:$0xff] %vm388, 0.0
      %1299 = vst.msk [vmem:[#allocation5 + $0xc98] sm:$0xff] %vm388, 0.0
      %1300 = vst.msk [vmem:[#allocation5 + $0xca0] sm:$0xff] %vm388, 0.0
      %1301 = vst.msk [vmem:[#allocation5 + $0xca8] sm:$0xff] %vm388, 0.0
      %1302 = vst.msk [vmem:[#allocation5 + $0xcb0] sm:$0x1f] %vm905, 0.0
      %1303 = vst.msk [vmem:[#allocation5 + $0xcb8] sm:$0xff] %vm388, 0.0
      %1304 = vst.msk [vmem:[#allocation5 + $0xcc0] sm:$0xff] %vm388, 0.0
      %1305 = vst.msk [vmem:[#allocation5 + $0xcc8] sm:$0xff] %vm388, 0.0
      %1306 = vst.msk [vmem:[#allocation5 + $0xcd0] sm:$0xff] %vm388, 0.0
      %1307 = vst.msk [vmem:[#allocation5 + $0xcd8] sm:$0xff] %vm388, 0.0
      %1308 = vst.msk [vmem:[#allocation5 + $0xce0] sm:$0xff] %vm388, 0.0
      %1309 = vst.msk [vmem:[#allocation5 + $0xce8] sm:$0xff] %vm388, 0.0
      %1310 = vst.msk [vmem:[#allocation5 + $0xcf0] sm:$0xff] %vm388, 0.0
      %1311 = vst.msk [vmem:[#allocation5 + $0xcf8] sm:$0xff] %vm388, 0.0
      %1312 = vst.msk [vmem:[#allocation5 + $0xd00] sm:$0xff] %vm388, 0.0
      %1313 = vst.msk [vmem:[#allocation5 + $0xd08] sm:$0x1f] %vm905, 0.0
      %1314 = vst.msk [vmem:[#allocation5 + $0xd10] sm:$0xff] %vm388, 0.0
      %1315 = vst.msk [vmem:[#allocation5 + $0xd18] sm:$0xff] %vm388, 0.0
      %1316 = vst.msk [vmem:[#allocation5 + $0xd20] sm:$0xff] %vm388, 0.0
      %1317 = vst.msk [vmem:[#allocation5 + $0xd28] sm:$0xff] %vm388, 0.0
      %1318 = vst.msk [vmem:[#allocation5 + $0xd30] sm:$0xff] %vm388, 0.0
      %1319 = vst.msk [vmem:[#allocation5 + $0xd38] sm:$0xff] %vm388, 0.0
      %1320 = vst.msk [vmem:[#allocation5 + $0xd40] sm:$0xff] %vm388, 0.0
      %1321 = vst.msk [vmem:[#allocation5 + $0xd48] sm:$0xff] %vm388, 0.0
      %1322 = vst.msk [vmem:[#allocation5 + $0xd50] sm:$0xff] %vm388, 0.0
      %1323 = vst.msk [vmem:[#allocation5 + $0xd58] sm:$0xff] %vm388, 0.0
      %1324 = vst.msk [vmem:[#allocation5 + $0xd60] sm:$0x1f] %vm905, 0.0
      %1325 = vst.msk [vmem:[#allocation5 + $0xd68] sm:$0xff] %vm388, 0.0
      %1326 = vst.msk [vmem:[#allocation5 + $0xd70] sm:$0xff] %vm388, 0.0
      %1327 = vst.msk [vmem:[#allocation5 + $0xd78] sm:$0xff] %vm388, 0.0
      %1328 = vst.msk [vmem:[#allocation5 + $0xd80] sm:$0xff] %vm388, 0.0
      %1329 = vst.msk [vmem:[#allocation5 + $0xd88] sm:$0xff] %vm388, 0.0
      %1330 = vst.msk [vmem:[#allocation5 + $0xd90] sm:$0xff] %vm388, 0.0
      %1331 = vst.msk [vmem:[#allocation5 + $0xd98] sm:$0xff] %vm388, 0.0
      %1332 = vst.msk [vmem:[#allocation5 + $0xda0] sm:$0xff] %vm388, 0.0
      %1333 = vst.msk [vmem:[#allocation5 + $0xda8] sm:$0xff] %vm388, 0.0
      %1334 = vst.msk [vmem:[#allocation5 + $0xdb0] sm:$0xff] %vm388, 0.0
      %1335 = vst.msk [vmem:[#allocation5 + $0xdb8] sm:$0x1f] %vm905, 0.0
      %1336 = vst.msk [vmem:[#allocation5 + $0xdc0] sm:$0xff] %vm388, 0.0
      %1337 = vst.msk [vmem:[#allocation5 + $0xdc8] sm:$0xff] %vm388, 0.0
      %1338 = vst.msk [vmem:[#allocation5 + $0xdd0] sm:$0xff] %vm388, 0.0
      %1339 = vst.msk [vmem:[#allocation5 + $0xdd8] sm:$0xff] %vm388, 0.0
      %1340 = vst.msk [vmem:[#allocation5 + $0xde0] sm:$0xff] %vm388, 0.0
      %1341 = vst.msk [vmem:[#allocation5 + $0xde8] sm:$0xff] %vm388, 0.0
      %1342 = vst.msk [vmem:[#allocation5 + $0xdf0] sm:$0xff] %vm388, 0.0
      %1343 = vst.msk [vmem:[#allocation5 + $0xdf8] sm:$0xff] %vm388, 0.0
      %1344 = vst.msk [vmem:[#allocation5 + $0xe00] sm:$0xff] %vm388, 0.0
      %1345 = vst.msk [vmem:[#allocation5 + $0xe08] sm:$0xff] %vm388, 0.0
      %1346 = vst.msk [vmem:[#allocation5 + $0xe10] sm:$0x1f] %vm905, 0.0
      %1347 = vst.msk [vmem:[#allocation5 + $0xe18] sm:$0xff] %vm388, 0.0
      %1348 = vst.msk [vmem:[#allocation5 + $0xe20] sm:$0xff] %vm388, 0.0
      %1349 = vst.msk [vmem:[#allocation5 + $0xe28] sm:$0xff] %vm388, 0.0
      %1350 = vst.msk [vmem:[#allocation5 + $0xe30] sm:$0xff] %vm388, 0.0
      %1351 = vst.msk [vmem:[#allocation5 + $0xe38] sm:$0xff] %vm388, 0.0
      %1352 = vst.msk [vmem:[#allocation5 + $0xe40] sm:$0xff] %vm388, 0.0
      %1353 = vst.msk [vmem:[#allocation5 + $0xe48] sm:$0xff] %vm388, 0.0
      %1354 = vst.msk [vmem:[#allocation5 + $0xe50] sm:$0xff] %vm388, 0.0
      %1355 = vst.msk [vmem:[#allocation5 + $0xe58] sm:$0xff] %vm388, 0.0
      %1356 = vst.msk [vmem:[#allocation5 + $0xe60] sm:$0xff] %vm388, 0.0
      %1357 = vst.msk [vmem:[#allocation5 + $0xe68] sm:$0x1f] %vm905, 0.0
      %1358 = vst.msk [vmem:[#allocation5 + $0xe70] sm:$0xff] %vm388, 0.0
      %1359 = vst.msk [vmem:[#allocation5 + $0xe78] sm:$0xff] %vm388, 0.0
      %1360 = vst.msk [vmem:[#allocation5 + $0xe80] sm:$0xff] %vm388, 0.0
      %1361 = vst.msk [vmem:[#allocation5 + $0xe88] sm:$0xff] %vm388, 0.0
      %1362 = vst.msk [vmem:[#allocation5 + $0xe90] sm:$0xff] %vm388, 0.0
      %1363 = vst.msk [vmem:[#allocation5 + $0xe98] sm:$0xff] %vm388, 0.0
      %1364 = vst.msk [vmem:[#allocation5 + $0xea0] sm:$0xff] %vm388, 0.0
      %1365 = vst.msk [vmem:[#allocation5 + $0xea8] sm:$0xff] %vm388, 0.0
      %1366 = vst.msk [vmem:[#allocation5 + $0xeb0] sm:$0xff] %vm388, 0.0
      %1367 = vst.msk [vmem:[#allocation5 + $0xeb8] sm:$0xff] %vm388, 0.0
      %1368 = vst.msk [vmem:[#allocation5 + $0xec0] sm:$0x1f] %vm905, 0.0
      %1369 = vst.msk [vmem:[#allocation5 + $0xec8] sm:$0xff] %vm388, 0.0
      %1370 = vst.msk [vmem:[#allocation5 + $0xed0] sm:$0xff] %vm388, 0.0
      %1371 = vst.msk [vmem:[#allocation5 + $0xed8] sm:$0xff] %vm388, 0.0
      %1372 = vst.msk [vmem:[#allocation5 + $0xee0] sm:$0xff] %vm388, 0.0
      %1373 = vst.msk [vmem:[#allocation5 + $0xee8] sm:$0xff] %vm388, 0.0
      %1374 = vst.msk [vmem:[#allocation5 + $0xef0] sm:$0xff] %vm388, 0.0
      %1375 = vst.msk [vmem:[#allocation5 + $0xef8] sm:$0xff] %vm388, 0.0
      %1376 = vst.msk [vmem:[#allocation5 + $0xf00] sm:$0xff] %vm388, 0.0
      %1377 = vst.msk [vmem:[#allocation5 + $0xf08] sm:$0xff] %vm388, 0.0
      %1378 = vst.msk [vmem:[#allocation5 + $0xf10] sm:$0xff] %vm388, 0.0
      %1379 = vst.msk [vmem:[#allocation5 + $0xf18] sm:$0x1f] %vm905, 0.0
      %1380 = vst.msk [vmem:[#allocation5 + $0xf20] sm:$0xff] %vm388, 0.0
      %1381 = vst.msk [vmem:[#allocation5 + $0xf28] sm:$0xff] %vm388, 0.0
      %1382 = vst.msk [vmem:[#allocation5 + $0xf30] sm:$0xff] %vm388, 0.0
      %1383 = vst.msk [vmem:[#allocation5 + $0xf38] sm:$0xff] %vm388, 0.0
      %1384 = vst.msk [vmem:[#allocation5 + $0xf40] sm:$0xff] %vm388, 0.0
      %1385 = vst.msk [vmem:[#allocation5 + $0xf48] sm:$0xff] %vm388, 0.0
      %1386 = vst.msk [vmem:[#allocation5 + $0xf50] sm:$0xff] %vm388, 0.0
      %1387 = vst.msk [vmem:[#allocation5 + $0xf58] sm:$0xff] %vm388, 0.0
      %1388 = vst.msk [vmem:[#allocation5 + $0xf60] sm:$0xff] %vm388, 0.0
      %1389 = vst.msk [vmem:[#allocation5 + $0xf68] sm:$0xff] %vm388, 0.0
      %1390 = vst.msk [vmem:[#allocation5 + $0xf70] sm:$0x1f] %vm905, 0.0
      %1391 = vst.msk [vmem:[#allocation5 + $0xf78] sm:$0xff] %vm388, 0.0
      %1392 = vst.msk [vmem:[#allocation5 + $0xf80] sm:$0xff] %vm388, 0.0
      %1393 = vst.msk [vmem:[#allocation5 + $0xf88] sm:$0xff] %vm388, 0.0
      %1394 = vst.msk [vmem:[#allocation5 + $0xf90] sm:$0xff] %vm388, 0.0
      %1395 = vst.msk [vmem:[#allocation5 + $0xf98] sm:$0xff] %vm388, 0.0
      %1396 = vst.msk [vmem:[#allocation5 + $0xfa0] sm:$0xff] %vm388, 0.0
      %1397 = vst.msk [vmem:[#allocation5 + $0xfa8] sm:$0xff] %vm388, 0.0
      %1398 = vst.msk [vmem:[#allocation5 + $0xfb0] sm:$0xff] %vm388, 0.0
      %1399 = vst.msk [vmem:[#allocation5 + $0xfb8] sm:$0xff] %vm388, 0.0
      %1400 = vst.msk [vmem:[#allocation5 + $0xfc0] sm:$0xff] %vm388, 0.0
      %1401 = vst.msk [vmem:[#allocation5 + $0xfc8] sm:$0x1f] %vm905, 0.0
      %1402 = vst.msk [vmem:[#allocation5 + $0xfd0] sm:$0xff] %vm388, 0.0
      %1403 = vst.msk [vmem:[#allocation5 + $0xfd8] sm:$0xff] %vm388, 0.0
      %1404 = vst.msk [vmem:[#allocation5 + $0xfe0] sm:$0xff] %vm388, 0.0
      %1405 = vst.msk [vmem:[#allocation5 + $0xfe8] sm:$0xff] %vm388, 0.0
      %1406 = vst.msk [vmem:[#allocation5 + $0xff0] sm:$0xff] %vm388, 0.0
      %1407 = vst.msk [vmem:[#allocation5 + $0xff8] sm:$0xff] %vm388, 0.0
      %1408 = vst.msk [vmem:[#allocation5 + $0x1000] sm:$0xff] %vm388, 0.0
      %1409 = vst.msk [vmem:[#allocation5 + $0x1008] sm:$0xff] %vm388, 0.0
      %1410 = vst.msk [vmem:[#allocation5 + $0x1010] sm:$0xff] %vm388, 0.0
      %1411 = vst.msk [vmem:[#allocation5 + $0x1018] sm:$0xff] %vm388, 0.0
      %1412 = vst.msk [vmem:[#allocation5 + $0x1020] sm:$0x1f] %vm905, 0.0
      %1413 = vst.msk [vmem:[#allocation5 + $0x1028] sm:$0xff] %vm388, 0.0
      %1414 = vst.msk [vmem:[#allocation5 + $0x1030] sm:$0xff] %vm388, 0.0
      %1415 = vst.msk [vmem:[#allocation5 + $0x1038] sm:$0xff] %vm388, 0.0
      %1416 = vst.msk [vmem:[#allocation5 + $0x1040] sm:$0xff] %vm388, 0.0
      %1417 = vst.msk [vmem:[#allocation5 + $0x1048] sm:$0xff] %vm388, 0.0
      %1418 = vst.msk [vmem:[#allocation5 + $0x1050] sm:$0xff] %vm388, 0.0
      %1419 = vst.msk [vmem:[#allocation5 + $0x1058] sm:$0xff] %vm388, 0.0
      %1420 = vst.msk [vmem:[#allocation5 + $0x1060] sm:$0xff] %vm388, 0.0
      %1421 = vst.msk [vmem:[#allocation5 + $0x1068] sm:$0xff] %vm388, 0.0
      %1422 = vst.msk [vmem:[#allocation5 + $0x1070] sm:$0xff] %vm388, 0.0
      %1423 = vst.msk [vmem:[#allocation5 + $0x1078] sm:$0x1f] %vm905, 0.0
      %1424 = vst.msk [vmem:[#allocation5 + $0x1080] sm:$0xff] %vm388, 0.0
      %1425 = vst.msk [vmem:[#allocation5 + $0x1088] sm:$0xff] %vm388, 0.0
      %1426 = vst.msk [vmem:[#allocation5 + $0x1090] sm:$0xff] %vm388, 0.0
      %1427 = vst.msk [vmem:[#allocation5 + $0x1098] sm:$0xff] %vm388, 0.0
      %1428 = vst.msk [vmem:[#allocation5 + $0x10a0] sm:$0xff] %vm388, 0.0
      %1429 = vst.msk [vmem:[#allocation5 + $0x10a8] sm:$0xff] %vm388, 0.0
      %1430 = vst.msk [vmem:[#allocation5 + $0x10b0] sm:$0xff] %vm388, 0.0
      %1431 = vst.msk [vmem:[#allocation5 + $0x10b8] sm:$0xff] %vm388, 0.0
      %1432 = vst.msk [vmem:[#allocation5 + $0x10c0] sm:$0xff] %vm388, 0.0
      %1433 = vst.msk [vmem:[#allocation5 + $0x10c8] sm:$0xff] %vm388, 0.0
      %1434 = vst.msk [vmem:[#allocation5 + $0x10d0] sm:$0x1f] %vm905, 0.0
      %1435 = vst.msk [vmem:[#allocation5 + $0x10d8] sm:$0xff] %vm388, 0.0
      %1436 = vst.msk [vmem:[#allocation5 + $0x10e0] sm:$0xff] %vm388, 0.0
      %1437 = vst.msk [vmem:[#allocation5 + $0x10e8] sm:$0xff] %vm388, 0.0
      %1438 = vst.msk [vmem:[#allocation5 + $0x10f0] sm:$0xff] %vm388, 0.0
      %1439 = vst.msk [vmem:[#allocation5 + $0x10f8] sm:$0xff] %vm388, 0.0
      %1440 = vst.msk [vmem:[#allocation5 + $0x1100] sm:$0xff] %vm388, 0.0
      %1441 = vst.msk [vmem:[#allocation5 + $0x1108] sm:$0xff] %vm388, 0.0
      %1442 = vst.msk [vmem:[#allocation5 + $0x1110] sm:$0xff] %vm388, 0.0
      %1443 = vst.msk [vmem:[#allocation5 + $0x1118] sm:$0xff] %vm388, 0.0
      %1444 = vst.msk [vmem:[#allocation5 + $0x1120] sm:$0xff] %vm388, 0.0
      %1445 = vst.msk [vmem:[#allocation5 + $0x1128] sm:$0x1f] %vm905, 0.0
      %1446 = vst.msk [vmem:[#allocation5 + $0x1130] sm:$0xff] %vm388, 0.0
      %1447 = vst.msk [vmem:[#allocation5 + $0x1138] sm:$0xff] %vm388, 0.0
      %1448 = vst.msk [vmem:[#allocation5 + $0x1140] sm:$0xff] %vm388, 0.0
      %1449 = vst.msk [vmem:[#allocation5 + $0x1148] sm:$0xff] %vm388, 0.0
      %1450 = vst.msk [vmem:[#allocation5 + $0x1150] sm:$0xff] %vm388, 0.0
      %1451 = vst.msk [vmem:[#allocation5 + $0x1158] sm:$0xff] %vm388, 0.0
      %1452 = vst.msk [vmem:[#allocation5 + $0x1160] sm:$0xff] %vm388, 0.0
      %1453 = vst.msk [vmem:[#allocation5 + $0x1168] sm:$0xff] %vm388, 0.0
      %1454 = vst.msk [vmem:[#allocation5 + $0x1170] sm:$0xff] %vm388, 0.0
      %1455 = vst.msk [vmem:[#allocation5 + $0x1178] sm:$0xff] %vm388, 0.0
      %1456 = vst.msk [vmem:[#allocation5 + $0x1180] sm:$0x1f] %vm905, 0.0
      %1457 = vst.msk [vmem:[#allocation5 + $0x1188] sm:$0xff] %vm388, 0.0
      %1458 = vst.msk [vmem:[#allocation5 + $0x1190] sm:$0xff] %vm388, 0.0
      %1459 = vst.msk [vmem:[#allocation5 + $0x1198] sm:$0xff] %vm388, 0.0
      %1460 = vst.msk [vmem:[#allocation5 + $0x11a0] sm:$0xff] %vm388, 0.0
      %1461 = vst.msk [vmem:[#allocation5 + $0x11a8] sm:$0xff] %vm388, 0.0
      %1462 = vst.msk [vmem:[#allocation5 + $0x11b0] sm:$0xff] %vm388, 0.0
      %1463 = vst.msk [vmem:[#allocation5 + $0x11b8] sm:$0xff] %vm388, 0.0
      %1464 = vst.msk [vmem:[#allocation5 + $0x11c0] sm:$0xff] %vm388, 0.0
      %1465 = vst.msk [vmem:[#allocation5 + $0x11c8] sm:$0xff] %vm388, 0.0
      %1466 = vst.msk [vmem:[#allocation5 + $0x11d0] sm:$0xff] %vm388, 0.0
      %1467 = vst.msk [vmem:[#allocation5 + $0x11d8] sm:$0x1f] %vm905, 0.0
      %1468 = vst.msk [vmem:[#allocation5 + $0x11e0] sm:$0xff] %vm388, 0.0
      %1469 = vst.msk [vmem:[#allocation5 + $0x11e8] sm:$0xff] %vm388, 0.0
      %1470 = vst.msk [vmem:[#allocation5 + $0x11f0] sm:$0xff] %vm388, 0.0
      %1471 = vst.msk [vmem:[#allocation5 + $0x11f8] sm:$0xff] %vm388, 0.0
      %1472 = vst.msk [vmem:[#allocation5 + $0x1200] sm:$0xff] %vm388, 0.0
      %1473 = vst.msk [vmem:[#allocation5 + $0x1208] sm:$0xff] %vm388, 0.0
      %1474 = vst.msk [vmem:[#allocation5 + $0x1210] sm:$0xff] %vm388, 0.0
      %1475 = vst.msk [vmem:[#allocation5 + $0x1218] sm:$0xff] %vm388, 0.0
      %1476 = vst.msk [vmem:[#allocation5 + $0x1220] sm:$0xff] %vm388, 0.0
      %1477 = vst.msk [vmem:[#allocation5 + $0x1228] sm:$0xff] %vm388, 0.0
      %1478 = vst.msk [vmem:[#allocation5 + $0x1230] sm:$0x1f] %vm905, 0.0
      %1479 = vst.msk [vmem:[#allocation5 + $0x1238] sm:$0xff] %vm388, 0.0
      %1480 = vst.msk [vmem:[#allocation5 + $0x1240] sm:$0xff] %vm388, 0.0
      %1481 = vst.msk [vmem:[#allocation5 + $0x1248] sm:$0xff] %vm388, 0.0
      %1482 = vst.msk [vmem:[#allocation5 + $0x1250] sm:$0xff] %vm388, 0.0
      %1483 = vst.msk [vmem:[#allocation5 + $0x1258] sm:$0xff] %vm388, 0.0
      %1484 = vst.msk [vmem:[#allocation5 + $0x1260] sm:$0xff] %vm388, 0.0
      %1485 = vst.msk [vmem:[#allocation5 + $0x1268] sm:$0xff] %vm388, 0.0
      %1486 = vst.msk [vmem:[#allocation5 + $0x1270] sm:$0xff] %vm388, 0.0
      %1487 = vst.msk [vmem:[#allocation5 + $0x1278] sm:$0xff] %vm388, 0.0
      %1488 = vst.msk [vmem:[#allocation5 + $0x1280] sm:$0xff] %vm388, 0.0
      %1489 = vst.msk [vmem:[#allocation5 + $0x1288] sm:$0x1f] %vm905, 0.0
      %1490 = vst.msk [vmem:[#allocation5 + $0x1290] sm:$0xff] %vm388, 0.0
      %1491 = vst.msk [vmem:[#allocation5 + $0x1298] sm:$0xff] %vm388, 0.0
      %1492 = vst.msk [vmem:[#allocation5 + $0x12a0] sm:$0xff] %vm388, 0.0
      %1493 = vst.msk [vmem:[#allocation5 + $0x12a8] sm:$0xff] %vm388, 0.0
      %1494 = vst.msk [vmem:[#allocation5 + $0x12b0] sm:$0xff] %vm388, 0.0
      %1495 = vst.msk [vmem:[#allocation5 + $0x12b8] sm:$0xff] %vm388, 0.0
      %1496 = vst.msk [vmem:[#allocation5 + $0x12c0] sm:$0xff] %vm388, 0.0
      %1497 = vst.msk [vmem:[#allocation5 + $0x12c8] sm:$0xff] %vm388, 0.0
      %1498 = vst.msk [vmem:[#allocation5 + $0x12d0] sm:$0xff] %vm388, 0.0
      %1499 = vst.msk [vmem:[#allocation5 + $0x12d8] sm:$0xff] %vm388, 0.0
      %1500 = vst.msk [vmem:[#allocation5 + $0x12e0] sm:$0x1f] %vm905, 0.0
      %1501 = vst.msk [vmem:[#allocation5 + $0x12e8] sm:$0xff] %vm388, 0.0
      %1502 = vst.msk [vmem:[#allocation5 + $0x12f0] sm:$0xff] %vm388, 0.0
      %1503 = vst.msk [vmem:[#allocation5 + $0x12f8] sm:$0xff] %vm388, 0.0
      %1504 = vst.msk [vmem:[#allocation5 + $0x1300] sm:$0xff] %vm388, 0.0
      %1505 = vst.msk [vmem:[#allocation5 + $0x1308] sm:$0xff] %vm388, 0.0
      %1506 = vst.msk [vmem:[#allocation5 + $0x1310] sm:$0xff] %vm388, 0.0
      %1507 = vst.msk [vmem:[#allocation5 + $0x1318] sm:$0xff] %vm388, 0.0
      %1508 = vst.msk [vmem:[#allocation5 + $0x1320] sm:$0xff] %vm388, 0.0
      %1509 = vst.msk [vmem:[#allocation5 + $0x1328] sm:$0xff] %vm388, 0.0
      %1510 = vst.msk [vmem:[#allocation5 + $0x1330] sm:$0xff] %vm388, 0.0
      %1511 = vst.msk [vmem:[#allocation5 + $0x1338] sm:$0x1f] %vm905, 0.0
      %1512 = vst.msk [vmem:[#allocation5 + $0x1340] sm:$0xff] %vm388, 0.0
      %1513 = vst.msk [vmem:[#allocation5 + $0x1348] sm:$0xff] %vm388, 0.0
      %1514 = vst.msk [vmem:[#allocation5 + $0x1350] sm:$0xff] %vm388, 0.0
      %1515 = vst.msk [vmem:[#allocation5 + $0x1358] sm:$0xff] %vm388, 0.0
      %1516 = vst.msk [vmem:[#allocation5 + $0x1360] sm:$0xff] %vm388, 0.0
      %1517 = vst.msk [vmem:[#allocation5 + $0x1368] sm:$0xff] %vm388, 0.0
      %1518 = vst.msk [vmem:[#allocation5 + $0x1370] sm:$0xff] %vm388, 0.0
      %1519 = vst.msk [vmem:[#allocation5 + $0x1378] sm:$0xff] %vm388, 0.0
      %1520 = vst.msk [vmem:[#allocation5 + $0x1380] sm:$0xff] %vm388, 0.0
      %1521 = vst.msk [vmem:[#allocation5 + $0x1388] sm:$0xff] %vm388, 0.0
      %1522 = vst.msk [vmem:[#allocation5 + $0x1390] sm:$0x1f] %vm905, 0.0
      %1523 = vst.msk [vmem:[#allocation5 + $0x1398] sm:$0xff] %vm388, 0.0
      %1524 = vst.msk [vmem:[#allocation5 + $0x13a0] sm:$0xff] %vm388, 0.0
      %1525 = vst.msk [vmem:[#allocation5 + $0x13a8] sm:$0xff] %vm388, 0.0
      %1526 = vst.msk [vmem:[#allocation5 + $0x13b0] sm:$0xff] %vm388, 0.0
      %1527 = vst.msk [vmem:[#allocation5 + $0x13b8] sm:$0xff] %vm388, 0.0
      %1528 = vst.msk [vmem:[#allocation5 + $0x13c0] sm:$0xff] %vm388, 0.0
      %1529 = vst.msk [vmem:[#allocation5 + $0x13c8] sm:$0xff] %vm388, 0.0
      %1530 = vst.msk [vmem:[#allocation5 + $0x13d0] sm:$0xff] %vm388, 0.0
      %1531 = vst.msk [vmem:[#allocation5 + $0x13d8] sm:$0xff] %vm388, 0.0
      %1532 = vst.msk [vmem:[#allocation5 + $0x13e0] sm:$0xff] %vm388, 0.0
      %1533 = vst.msk [vmem:[#allocation5 + $0x13e8] sm:$0x1f] %vm905, 0.0
      %1534 = vst.msk [vmem:[#allocation5 + $0x13f0] sm:$0xff] %vm388, 0.0
      %1535 = vst.msk [vmem:[#allocation5 + $0x13f8] sm:$0xff] %vm388, 0.0
      %1536 = vst.msk [vmem:[#allocation5 + $0x1400] sm:$0xff] %vm388, 0.0
      %1537 = vst.msk [vmem:[#allocation5 + $0x1408] sm:$0xff] %vm388, 0.0
      %1538 = vst.msk [vmem:[#allocation5 + $0x1410] sm:$0xff] %vm388, 0.0
      %1539 = vst.msk [vmem:[#allocation5 + $0x1418] sm:$0xff] %vm388, 0.0
      %1540 = vst.msk [vmem:[#allocation5 + $0x1420] sm:$0xff] %vm388, 0.0
      %1541 = vst.msk [vmem:[#allocation5 + $0x1428] sm:$0xff] %vm388, 0.0
      %1542 = vst.msk [vmem:[#allocation5 + $0x1430] sm:$0xff] %vm388, 0.0
      %1543 = vst.msk [vmem:[#allocation5 + $0x1438] sm:$0xff] %vm388, 0.0
      %1544 = vst.msk [vmem:[#allocation5 + $0x1440] sm:$0x1f] %vm905, 0.0
      %1545 = vst.msk [vmem:[#allocation5 + $0x1448] sm:$0xff] %vm388, 0.0
      %1546 = vst.msk [vmem:[#allocation5 + $0x1450] sm:$0xff] %vm388, 0.0
      %1547 = vst.msk [vmem:[#allocation5 + $0x1458] sm:$0xff] %vm388, 0.0
      %1548 = vst.msk [vmem:[#allocation5 + $0x1460] sm:$0xff] %vm388, 0.0
      %1549 = vst.msk [vmem:[#allocation5 + $0x1468] sm:$0xff] %vm388, 0.0
      %1550 = vst.msk [vmem:[#allocation5 + $0x1470] sm:$0xff] %vm388, 0.0
      %1551 = vst.msk [vmem:[#allocation5 + $0x1478] sm:$0xff] %vm388, 0.0
      %1552 = vst.msk [vmem:[#allocation5 + $0x1480] sm:$0xff] %vm388, 0.0
      %1553 = vst.msk [vmem:[#allocation5 + $0x1488] sm:$0xff] %vm388, 0.0
      %1554 = vst.msk [vmem:[#allocation5 + $0x1490] sm:$0xff] %vm388, 0.0
      %1555 = vst.msk [vmem:[#allocation5 + $0x1498] sm:$0x1f] %vm905, 0.0
      %1556 = vst.msk [vmem:[#allocation5 + $0x14a0] sm:$0xff] %vm388, 0.0
      %1557 = vst.msk [vmem:[#allocation5 + $0x14a8] sm:$0xff] %vm388, 0.0
      %1558 = vst.msk [vmem:[#allocation5 + $0x14b0] sm:$0xff] %vm388, 0.0
      %1559 = vst.msk [vmem:[#allocation5 + $0x14b8] sm:$0xff] %vm388, 0.0
      %1560 = vst.msk [vmem:[#allocation5 + $0x14c0] sm:$0xff] %vm388, 0.0
      %1561 = vst.msk [vmem:[#allocation5 + $0x14c8] sm:$0xff] %vm388, 0.0
      %1562 = vst.msk [vmem:[#allocation5 + $0x14d0] sm:$0xff] %vm388, 0.0
      %1563 = vst.msk [vmem:[#allocation5 + $0x14d8] sm:$0xff] %vm388, 0.0
      %1564 = vst.msk [vmem:[#allocation5 + $0x14e0] sm:$0xff] %vm388, 0.0
      %1565 = vst.msk [vmem:[#allocation5 + $0x14e8] sm:$0xff] %vm388, 0.0
      %1566 = vst.msk [vmem:[#allocation5 + $0x14f0] sm:$0x1f] %vm905, 0.0
      %1567 = vst.msk [vmem:[#allocation5 + $0x14f8] sm:$0xff] %vm388, 0.0
      %1568 = vst.msk [vmem:[#allocation5 + $0x1500] sm:$0xff] %vm388, 0.0
      %1569 = vst.msk [vmem:[#allocation5 + $0x1508] sm:$0xff] %vm388, 0.0
      %1570 = vst.msk [vmem:[#allocation5 + $0x1510] sm:$0xff] %vm388, 0.0
      %1571 = vst.msk [vmem:[#allocation5 + $0x1518] sm:$0xff] %vm388, 0.0
      %1572 = vst.msk [vmem:[#allocation5 + $0x1520] sm:$0xff] %vm388, 0.0
      %1573 = vst.msk [vmem:[#allocation5 + $0x1528] sm:$0xff] %vm388, 0.0
      %1574 = vst.msk [vmem:[#allocation5 + $0x1530] sm:$0xff] %vm388, 0.0
      %1575 = vst.msk [vmem:[#allocation5 + $0x1538] sm:$0xff] %vm388, 0.0
      %1576 = vst.msk [vmem:[#allocation5 + $0x1540] sm:$0xff] %vm388, 0.0
      %1577 = vst.msk [vmem:[#allocation5 + $0x1548] sm:$0x1f] %vm905, 0.0
      %1578 = vst.msk [vmem:[#allocation5 + $0x1550] sm:$0xff] %vm388, 0.0
      %1579 = vst.msk [vmem:[#allocation5 + $0x1558] sm:$0xff] %vm388, 0.0
      %1580 = vst.msk [vmem:[#allocation5 + $0x1560] sm:$0xff] %vm388, 0.0
      %1581 = vst.msk [vmem:[#allocation5 + $0x1568] sm:$0xff] %vm388, 0.0
      %1582 = vst.msk [vmem:[#allocation5 + $0x1570] sm:$0xff] %vm388, 0.0
      %1583 = vst.msk [vmem:[#allocation5 + $0x1578] sm:$0xff] %vm388, 0.0
      %1584 = vst.msk [vmem:[#allocation5 + $0x1580] sm:$0xff] %vm388, 0.0
      %1585 = vst.msk [vmem:[#allocation5 + $0x1588] sm:$0xff] %vm388, 0.0
      %1586 = vst.msk [vmem:[#allocation5 + $0x1590] sm:$0xff] %vm388, 0.0
      %1587 = vst.msk [vmem:[#allocation5 + $0x1598] sm:$0xff] %vm388, 0.0
      %1588 = vst.msk [vmem:[#allocation5 + $0x15a0] sm:$0x1f] %vm905, 0.0
      %1589 = vst.msk [vmem:[#allocation5 + $0x15a8] sm:$0xff] %vm388, 0.0
      %1590 = vst.msk [vmem:[#allocation5 + $0x15b0] sm:$0xff] %vm388, 0.0
      %1591 = vst.msk [vmem:[#allocation5 + $0x15b8] sm:$0xff] %vm388, 0.0
      %1592 = vst.msk [vmem:[#allocation5 + $0x15c0] sm:$0xff] %vm388, 0.0
      %1593 = vst.msk [vmem:[#allocation5 + $0x15c8] sm:$0xff] %vm388, 0.0
      %1594 = vst.msk [vmem:[#allocation5 + $0x15d0] sm:$0xff] %vm388, 0.0
      %1595 = vst.msk [vmem:[#allocation5 + $0x15d8] sm:$0xff] %vm388, 0.0
      %1596 = vst.msk [vmem:[#allocation5 + $0x15e0] sm:$0xff] %vm388, 0.0
      %1597 = vst.msk [vmem:[#allocation5 + $0x15e8] sm:$0xff] %vm388, 0.0
      %1598 = vst.msk [vmem:[#allocation5 + $0x15f0] sm:$0xff] %vm388, 0.0
      %1599 = vst.msk [vmem:[#allocation5 + $0x15f8] sm:$0x1f] %vm905, 0.0
      %1600 = vst.msk [vmem:[#allocation5 + $0x1600] sm:$0xff] %vm388, 0.0
      %1601 = vst.msk [vmem:[#allocation5 + $0x1608] sm:$0xff] %vm388, 0.0
      %1602 = vst.msk [vmem:[#allocation5 + $0x1610] sm:$0xff] %vm388, 0.0
      %1603 = vst.msk [vmem:[#allocation5 + $0x1618] sm:$0xff] %vm388, 0.0
      %1604 = vst.msk [vmem:[#allocation5 + $0x1620] sm:$0xff] %vm388, 0.0
      %1605 = vst.msk [vmem:[#allocation5 + $0x1628] sm:$0xff] %vm388, 0.0
      %1606 = vst.msk [vmem:[#allocation5 + $0x1630] sm:$0xff] %vm388, 0.0
      %1607 = vst.msk [vmem:[#allocation5 + $0x1638] sm:$0xff] %vm388, 0.0
      %1608 = vst.msk [vmem:[#allocation5 + $0x1640] sm:$0xff] %vm388, 0.0
      %1609 = vst.msk [vmem:[#allocation5 + $0x1648] sm:$0xff] %vm388, 0.0
      %1610 = vst.msk [vmem:[#allocation5 + $0x1650] sm:$0x1f] %vm905, 0.0
      %1611 = vst.msk [vmem:[#allocation5 + $0x1658] sm:$0xff] %vm388, 0.0
      %1612 = vst.msk [vmem:[#allocation5 + $0x1660] sm:$0xff] %vm388, 0.0
      %1613 = vst.msk [vmem:[#allocation5 + $0x1668] sm:$0xff] %vm388, 0.0
      %1614 = vst.msk [vmem:[#allocation5 + $0x1670] sm:$0xff] %vm388, 0.0
      %1615 = vst.msk [vmem:[#allocation5 + $0x1678] sm:$0xff] %vm388, 0.0
      %1616 = vst.msk [vmem:[#allocation5 + $0x1680] sm:$0xff] %vm388, 0.0
      %1617 = vst.msk [vmem:[#allocation5 + $0x1688] sm:$0xff] %vm388, 0.0
      %1618 = vst.msk [vmem:[#allocation5 + $0x1690] sm:$0xff] %vm388, 0.0
      %1619 = vst.msk [vmem:[#allocation5 + $0x1698] sm:$0xff] %vm388, 0.0
      %1620 = vst.msk [vmem:[#allocation5 + $0x16a0] sm:$0xff] %vm388, 0.0
      %1621 = vst.msk [vmem:[#allocation5 + $0x16a8] sm:$0x1f] %vm905, 0.0
      %1622 = vst.msk [vmem:[#allocation5 + $0x16b0] sm:$0xff] %vm388, 0.0
      %1623 = vst.msk [vmem:[#allocation5 + $0x16b8] sm:$0xff] %vm388, 0.0
      %1624 = vst.msk [vmem:[#allocation5 + $0x16c0] sm:$0xff] %vm388, 0.0
      %1625 = vst.msk [vmem:[#allocation5 + $0x16c8] sm:$0xff] %vm388, 0.0
      %1626 = vst.msk [vmem:[#allocation5 + $0x16d0] sm:$0xff] %vm388, 0.0
      %1627 = vst.msk [vmem:[#allocation5 + $0x16d8] sm:$0xff] %vm388, 0.0
      %1628 = vst.msk [vmem:[#allocation5 + $0x16e0] sm:$0xff] %vm388, 0.0
      %1629 = vst.msk [vmem:[#allocation5 + $0x16e8] sm:$0xff] %vm388, 0.0
      %1630 = vst.msk [vmem:[#allocation5 + $0x16f0] sm:$0xff] %vm388, 0.0
      %1631 = vst.msk [vmem:[#allocation5 + $0x16f8] sm:$0xff] %vm388, 0.0
      %1632 = vst.msk [vmem:[#allocation5 + $0x1700] sm:$0x1f] %vm905, 0.0
      %1633 = vst.msk [vmem:[#allocation5 + $0x1708] sm:$0xff] %vm388, 0.0
      %1634 = vst.msk [vmem:[#allocation5 + $0x1710] sm:$0xff] %vm388, 0.0
      %1635 = vst.msk [vmem:[#allocation5 + $0x1718] sm:$0xff] %vm388, 0.0
      %1636 = vst.msk [vmem:[#allocation5 + $0x1720] sm:$0xff] %vm388, 0.0
      %1637 = vst.msk [vmem:[#allocation5 + $0x1728] sm:$0xff] %vm388, 0.0
      %1638 = vst.msk [vmem:[#allocation5 + $0x1730] sm:$0xff] %vm388, 0.0
      %1639 = vst.msk [vmem:[#allocation5 + $0x1738] sm:$0xff] %vm388, 0.0
      %1640 = vst.msk [vmem:[#allocation5 + $0x1740] sm:$0xff] %vm388, 0.0
      %1641 = vst.msk [vmem:[#allocation5 + $0x1748] sm:$0xff] %vm388, 0.0
      %1642 = vst.msk [vmem:[#allocation5 + $0x1750] sm:$0xff] %vm388, 0.0
      %1643 = vst.msk [vmem:[#allocation5 + $0x1758] sm:$0x1f] %vm905, 0.0
      %1644 = vst.msk [vmem:[#allocation5 + $0x1760] sm:$0xff] %vm388, 0.0
      %1645 = vst.msk [vmem:[#allocation5 + $0x1768] sm:$0xff] %vm388, 0.0
      %1646 = vst.msk [vmem:[#allocation5 + $0x1770] sm:$0xff] %vm388, 0.0
      %1647 = vst.msk [vmem:[#allocation5 + $0x1778] sm:$0xff] %vm388, 0.0
      %1648 = vst.msk [vmem:[#allocation5 + $0x1780] sm:$0xff] %vm388, 0.0
      %1649 = vst.msk [vmem:[#allocation5 + $0x1788] sm:$0xff] %vm388, 0.0
      %1650 = vst.msk [vmem:[#allocation5 + $0x1790] sm:$0xff] %vm388, 0.0
      %1651 = vst.msk [vmem:[#allocation5 + $0x1798] sm:$0xff] %vm388, 0.0
      %1652 = vst.msk [vmem:[#allocation5 + $0x17a0] sm:$0xff] %vm388, 0.0
      %1653 = vst.msk [vmem:[#allocation5 + $0x17a8] sm:$0xff] %vm388, 0.0
      %1654 = vst.msk [vmem:[#allocation5 + $0x17b0] sm:$0x1f] %vm905, 0.0
      %1655 = vst.msk [vmem:[#allocation5 + $0x17b8] sm:$0xff] %vm388, 0.0
      %1656 = vst.msk [vmem:[#allocation5 + $0x17c0] sm:$0xff] %vm388, 0.0
      %1657 = vst.msk [vmem:[#allocation5 + $0x17c8] sm:$0xff] %vm388, 0.0
      %1658 = vst.msk [vmem:[#allocation5 + $0x17d0] sm:$0xff] %vm388, 0.0
      %1659 = vst.msk [vmem:[#allocation5 + $0x17d8] sm:$0xff] %vm388, 0.0
      %1660 = vst.msk [vmem:[#allocation5 + $0x17e0] sm:$0xff] %vm388, 0.0
      %1661 = vst.msk [vmem:[#allocation5 + $0x17e8] sm:$0xff] %vm388, 0.0
      %1662 = vst.msk [vmem:[#allocation5 + $0x17f0] sm:$0xff] %vm388, 0.0
      %1663 = vst.msk [vmem:[#allocation5 + $0x17f8] sm:$0xff] %vm388, 0.0
      %1664 = vst.msk [vmem:[#allocation5 + $0x1800] sm:$0xff] %vm388, 0.0
      %1665 = vst.msk [vmem:[#allocation5 + $0x1808] sm:$0x1f] %vm905, 0.0
      %1666 = vst.msk [vmem:[#allocation5 + $0x1810] sm:$0xff] %vm388, 0.0
      %1667 = vst.msk [vmem:[#allocation5 + $0x1818] sm:$0xff] %vm388, 0.0
      %1668 = vst.msk [vmem:[#allocation5 + $0x1820] sm:$0xff] %vm388, 0.0
      %1669 = vst.msk [vmem:[#allocation5 + $0x1828] sm:$0xff] %vm388, 0.0
      %1670 = vst.msk [vmem:[#allocation5 + $0x1830] sm:$0xff] %vm388, 0.0
      %1671 = vst.msk [vmem:[#allocation5 + $0x1838] sm:$0xff] %vm388, 0.0
      %1672 = vst.msk [vmem:[#allocation5 + $0x1840] sm:$0xff] %vm388, 0.0
      %1673 = vst.msk [vmem:[#allocation5 + $0x1848] sm:$0xff] %vm388, 0.0
      %1674 = vst.msk [vmem:[#allocation5 + $0x1850] sm:$0xff] %vm388, 0.0
      %1675 = vst.msk [vmem:[#allocation5 + $0x1858] sm:$0xff] %vm388, 0.0
      %1676 = vst.msk [vmem:[#allocation5 + $0x1860] sm:$0x1f] %vm905, 0.0
      %1677 = vst.msk [vmem:[#allocation5 + $0x1868] sm:$0xff] %vm388, 0.0
      %1678 = vst.msk [vmem:[#allocation5 + $0x1870] sm:$0xff] %vm388, 0.0
      %1679 = vst.msk [vmem:[#allocation5 + $0x1878] sm:$0xff] %vm388, 0.0
      %1680 = vst.msk [vmem:[#allocation5 + $0x1880] sm:$0xff] %vm388, 0.0
      %1681 = vst.msk [vmem:[#allocation5 + $0x1888] sm:$0xff] %vm388, 0.0
      %1682 = vst.msk [vmem:[#allocation5 + $0x1890] sm:$0xff] %vm388, 0.0
      %1683 = vst.msk [vmem:[#allocation5 + $0x1898] sm:$0xff] %vm388, 0.0
      %1684 = vst.msk [vmem:[#allocation5 + $0x18a0] sm:$0xff] %vm388, 0.0
      %1685 = vst.msk [vmem:[#allocation5 + $0x18a8] sm:$0xff] %vm388, 0.0
      %1686 = vst.msk [vmem:[#allocation5 + $0x18b0] sm:$0xff] %vm388, 0.0
      %1687 = vst.msk [vmem:[#allocation5 + $0x18b8] sm:$0x1f] %vm905, 0.0
      %1688 = vst.msk [vmem:[#allocation5 + $0x18c0] sm:$0xff] %vm388, 0.0
      %1689 = vst.msk [vmem:[#allocation5 + $0x18c8] sm:$0xff] %vm388, 0.0
      %1690 = vst.msk [vmem:[#allocation5 + $0x18d0] sm:$0xff] %vm388, 0.0
      %1691 = vst.msk [vmem:[#allocation5 + $0x18d8] sm:$0xff] %vm388, 0.0
      %1692 = vst.msk [vmem:[#allocation5 + $0x18e0] sm:$0xff] %vm388, 0.0
      %1693 = vst.msk [vmem:[#allocation5 + $0x18e8] sm:$0xff] %vm388, 0.0
      %1694 = vst.msk [vmem:[#allocation5 + $0x18f0] sm:$0xff] %vm388, 0.0
      %1695 = vst.msk [vmem:[#allocation5 + $0x18f8] sm:$0xff] %vm388, 0.0
      %1696 = vst.msk [vmem:[#allocation5 + $0x1900] sm:$0xff] %vm388, 0.0
      %1697 = vst.msk [vmem:[#allocation5 + $0x1908] sm:$0xff] %vm388, 0.0
      %1698 = vst.msk [vmem:[#allocation5 + $0x1910] sm:$0x1f] %vm905, 0.0
      %1699 = vst.msk [vmem:[#allocation5 + $0x1918] sm:$0xff] %vm388, 0.0
      %1700 = vst.msk [vmem:[#allocation5 + $0x1920] sm:$0xff] %vm388, 0.0
      %1701 = vst.msk [vmem:[#allocation5 + $0x1928] sm:$0xff] %vm388, 0.0
      %1702 = vst.msk [vmem:[#allocation5 + $0x1930] sm:$0xff] %vm388, 0.0
      %1703 = vst.msk [vmem:[#allocation5 + $0x1938] sm:$0xff] %vm388, 0.0
      %1704 = vst.msk [vmem:[#allocation5 + $0x1940] sm:$0xff] %vm388, 0.0
      %1705 = vst.msk [vmem:[#allocation5 + $0x1948] sm:$0xff] %vm388, 0.0
      %1706 = vst.msk [vmem:[#allocation5 + $0x1950] sm:$0xff] %vm388, 0.0
      %1707 = vst.msk [vmem:[#allocation5 + $0x1958] sm:$0xff] %vm388, 0.0
      %1708 = vst.msk [vmem:[#allocation5 + $0x1960] sm:$0xff] %vm388, 0.0
      %1709 = vst.msk [vmem:[#allocation5 + $0x1968] sm:$0x1f] %vm905, 0.0
      %1710 = vst.msk [vmem:[#allocation5 + $0x1970] sm:$0xff] %vm388, 0.0
      %1711 = vst.msk [vmem:[#allocation5 + $0x1978] sm:$0xff] %vm388, 0.0
      %1712 = vst.msk [vmem:[#allocation5 + $0x1980] sm:$0xff] %vm388, 0.0
      %1713 = vst.msk [vmem:[#allocation5 + $0x1988] sm:$0xff] %vm388, 0.0
      %1714 = vst.msk [vmem:[#allocation5 + $0x1990] sm:$0xff] %vm388, 0.0
      %1715 = vst.msk [vmem:[#allocation5 + $0x1998] sm:$0xff] %vm388, 0.0
      %1716 = vst.msk [vmem:[#allocation5 + $0x19a0] sm:$0xff] %vm388, 0.0
      %1717 = vst.msk [vmem:[#allocation5 + $0x19a8] sm:$0xff] %vm388, 0.0
      %1718 = vst.msk [vmem:[#allocation5 + $0x19b0] sm:$0xff] %vm388, 0.0
      %1719 = vst.msk [vmem:[#allocation5 + $0x19b8] sm:$0xff] %vm388, 0.0
      %1720 = vst.msk [vmem:[#allocation5 + $0x19c0] sm:$0x1f] %vm905, 0.0
      %1721 = vst.msk [vmem:[#allocation5 + $0x19c8] sm:$0xff] %vm388, 0.0
      %1722 = vst.msk [vmem:[#allocation5 + $0x19d0] sm:$0xff] %vm388, 0.0
      %1723 = vst.msk [vmem:[#allocation5 + $0x19d8] sm:$0xff] %vm388, 0.0
      %1724 = vst.msk [vmem:[#allocation5 + $0x19e0] sm:$0xff] %vm388, 0.0
      %1725 = vst.msk [vmem:[#allocation5 + $0x19e8] sm:$0xff] %vm388, 0.0
      %1726 = vst.msk [vmem:[#allocation5 + $0x19f0] sm:$0xff] %vm388, 0.0
      %1727 = vst.msk [vmem:[#allocation5 + $0x19f8] sm:$0xff] %vm388, 0.0
      %1728 = vst.msk [vmem:[#allocation5 + $0x1a00] sm:$0xff] %vm388, 0.0
      %1729 = vst.msk [vmem:[#allocation5 + $0x1a08] sm:$0xff] %vm388, 0.0
      %1730 = vst.msk [vmem:[#allocation5 + $0x1a10] sm:$0xff] %vm388, 0.0
      %1731 = vst.msk [vmem:[#allocation5 + $0x1a18] sm:$0x1f] %vm905, 0.0
      %1732 = vst.msk [vmem:[#allocation5 + $0x1a20] sm:$0xff] %vm388, 0.0
      %1733 = vst.msk [vmem:[#allocation5 + $0x1a28] sm:$0xff] %vm388, 0.0
      %1734 = vst.msk [vmem:[#allocation5 + $0x1a30] sm:$0xff] %vm388, 0.0
      %1735 = vst.msk [vmem:[#allocation5 + $0x1a38] sm:$0xff] %vm388, 0.0
      %1736 = vst.msk [vmem:[#allocation5 + $0x1a40] sm:$0xff] %vm388, 0.0
      %1737 = vst.msk [vmem:[#allocation5 + $0x1a48] sm:$0xff] %vm388, 0.0
      %1738 = vst.msk [vmem:[#allocation5 + $0x1a50] sm:$0xff] %vm388, 0.0
      %1739 = vst.msk [vmem:[#allocation5 + $0x1a58] sm:$0xff] %vm388, 0.0
      %1740 = vst.msk [vmem:[#allocation5 + $0x1a60] sm:$0xff] %vm388, 0.0
      %1741 = vst.msk [vmem:[#allocation5 + $0x1a68] sm:$0xff] %vm388, 0.0
      %1742 = vst.msk [vmem:[#allocation5 + $0x1a70] sm:$0x1f] %vm905, 0.0
      %1743 = vst.msk [vmem:[#allocation5 + $0x1a78] sm:$0xff] %vm388, 0.0
      %1744 = vst.msk [vmem:[#allocation5 + $0x1a80] sm:$0xff] %vm388, 0.0
      %1745 = vst.msk [vmem:[#allocation5 + $0x1a88] sm:$0xff] %vm388, 0.0
      %1746 = vst.msk [vmem:[#allocation5 + $0x1a90] sm:$0xff] %vm388, 0.0
      %1747 = vst.msk [vmem:[#allocation5 + $0x1a98] sm:$0xff] %vm388, 0.0
      %1748 = vst.msk [vmem:[#allocation5 + $0x1aa0] sm:$0xff] %vm388, 0.0
      %1749 = vst.msk [vmem:[#allocation5 + $0x1aa8] sm:$0xff] %vm388, 0.0
      %1750 = vst.msk [vmem:[#allocation5 + $0x1ab0] sm:$0xff] %vm388, 0.0
      %1751 = vst.msk [vmem:[#allocation5 + $0x1ab8] sm:$0xff] %vm388, 0.0
      %1752 = vst.msk [vmem:[#allocation5 + $0x1ac0] sm:$0xff] %vm388, 0.0
      %1753 = vst.msk [vmem:[#allocation5 + $0x1ac8] sm:$0x1f] %vm905, 0.0
      %1754 = vst.msk [vmem:[#allocation5 + $0x1ad0] sm:$0xff] %vm388, 0.0
      %1755 = vst.msk [vmem:[#allocation5 + $0x1ad8] sm:$0xff] %vm388, 0.0
      %1756 = vst.msk [vmem:[#allocation5 + $0x1ae0] sm:$0xff] %vm388, 0.0
      %1757 = vst.msk [vmem:[#allocation5 + $0x1ae8] sm:$0xff] %vm388, 0.0
      %1758 = vst.msk [vmem:[#allocation5 + $0x1af0] sm:$0xff] %vm388, 0.0
      %1759 = vst.msk [vmem:[#allocation5 + $0x1af8] sm:$0xff] %vm388, 0.0
      %1760 = vst.msk [vmem:[#allocation5 + $0x1b00] sm:$0xff] %vm388, 0.0
      %1761 = vst.msk [vmem:[#allocation5 + $0x1b08] sm:$0xff] %vm388, 0.0
      %1762 = vst.msk [vmem:[#allocation5 + $0x1b10] sm:$0xff] %vm388, 0.0
      %1763 = vst.msk [vmem:[#allocation5 + $0x1b18] sm:$0xff] %vm388, 0.0
      %1764 = vst.msk [vmem:[#allocation5 + $0x1b20] sm:$0x1f] %vm905, 0.0
      %1765 = vst.msk [vmem:[#allocation5 + $0x1b28] sm:$0xff] %vm388, 0.0
      %1766 = vst.msk [vmem:[#allocation5 + $0x1b30] sm:$0xff] %vm388, 0.0
      %1767 = vst.msk [vmem:[#allocation5 + $0x1b38] sm:$0xff] %vm388, 0.0
      %1768 = vst.msk [vmem:[#allocation5 + $0x1b40] sm:$0xff] %vm388, 0.0
      %1769 = vst.msk [vmem:[#allocation5 + $0x1b48] sm:$0xff] %vm388, 0.0
      %1770 = vst.msk [vmem:[#allocation5 + $0x1b50] sm:$0xff] %vm388, 0.0
      %1771 = vst.msk [vmem:[#allocation5 + $0x1b58] sm:$0xff] %vm388, 0.0
      %1772 = vst.msk [vmem:[#allocation5 + $0x1b60] sm:$0xff] %vm388, 0.0
      %1773 = vst.msk [vmem:[#allocation5 + $0x1b68] sm:$0xff] %vm388, 0.0
      %1774 = vst.msk [vmem:[#allocation5 + $0x1b70] sm:$0xff] %vm388, 0.0
      %1775 = vst.msk [vmem:[#allocation5 + $0x1b78] sm:$0x1f] %vm905, 0.0
      %1776 = vst.msk [vmem:[#allocation5 + $0x1b80] sm:$0xff] %vm388, 0.0
      %1777 = vst.msk [vmem:[#allocation5 + $0x1b88] sm:$0xff] %vm388, 0.0
      %1778 = vst.msk [vmem:[#allocation5 + $0x1b90] sm:$0xff] %vm388, 0.0
      %1779 = vst.msk [vmem:[#allocation5 + $0x1b98] sm:$0xff] %vm388, 0.0
      %1780 = vst.msk [vmem:[#allocation5 + $0x1ba0] sm:$0xff] %vm388, 0.0
      %1781 = vst.msk [vmem:[#allocation5 + $0x1ba8] sm:$0xff] %vm388, 0.0
      %1782 = vst.msk [vmem:[#allocation5 + $0x1bb0] sm:$0xff] %vm388, 0.0
      %1783 = vst.msk [vmem:[#allocation5 + $0x1bb8] sm:$0xff] %vm388, 0.0
      %1784 = vst.msk [vmem:[#allocation5 + $0x1bc0] sm:$0xff] %vm388, 0.0
      %1785 = vst.msk [vmem:[#allocation5 + $0x1bc8] sm:$0xff] %vm388, 0.0
      %1786 = vst.msk [vmem:[#allocation5 + $0x1bd0] sm:$0x1f] %vm905, 0.0
      %1787 = vst.msk [vmem:[#allocation5 + $0x1bd8] sm:$0xff] %vm388, 0.0
      %1788 = vst.msk [vmem:[#allocation5 + $0x1be0] sm:$0xff] %vm388, 0.0
      %1789 = vst.msk [vmem:[#allocation5 + $0x1be8] sm:$0xff] %vm388, 0.0
      %1790 = vst.msk [vmem:[#allocation5 + $0x1bf0] sm:$0xff] %vm388, 0.0
      %1791 = vst.msk [vmem:[#allocation5 + $0x1bf8] sm:$0xff] %vm388, 0.0
      %1792 = vst.msk [vmem:[#allocation5 + $0x1c00] sm:$0xff] %vm388, 0.0
      %1793 = vst.msk [vmem:[#allocation5 + $0x1c08] sm:$0xff] %vm388, 0.0
      %1794 = vst.msk [vmem:[#allocation5 + $0x1c10] sm:$0xff] %vm388, 0.0
      %1795 = vst.msk [vmem:[#allocation5 + $0x1c18] sm:$0xff] %vm388, 0.0
      %1796 = vst.msk [vmem:[#allocation5 + $0x1c20] sm:$0xff] %vm388, 0.0
      %1797 = vst.msk [vmem:[#allocation5 + $0x1c28] sm:$0x1f] %vm905, 0.0
      %1798 = vst.msk [vmem:[#allocation5 + $0x1c30] sm:$0xff] %vm388, 0.0
      %1799 = vst.msk [vmem:[#allocation5 + $0x1c38] sm:$0xff] %vm388, 0.0
      %1800 = vst.msk [vmem:[#allocation5 + $0x1c40] sm:$0xff] %vm388, 0.0
      %1801 = vst.msk [vmem:[#allocation5 + $0x1c48] sm:$0xff] %vm388, 0.0
      %1802 = vst.msk [vmem:[#allocation5 + $0x1c50] sm:$0xff] %vm388, 0.0
      %1803 = vst.msk [vmem:[#allocation5 + $0x1c58] sm:$0xff] %vm388, 0.0
      %1804 = vst.msk [vmem:[#allocation5 + $0x1c60] sm:$0xff] %vm388, 0.0
      %1805 = vst.msk [vmem:[#allocation5 + $0x1c68] sm:$0xff] %vm388, 0.0
      %1806 = vst.msk [vmem:[#allocation5 + $0x1c70] sm:$0xff] %vm388, 0.0
      %1807 = vst.msk [vmem:[#allocation5 + $0x1c78] sm:$0xff] %vm388, 0.0
      %1808 = vst.msk [vmem:[#allocation5 + $0x1c80] sm:$0x1f] %vm905, 0.0
      %1809 = vst.msk [vmem:[#allocation5 + $0x1c88] sm:$0xff] %vm388, 0.0
      %1810 = vst.msk [vmem:[#allocation5 + $0x1c90] sm:$0xff] %vm388, 0.0
      %1811 = vst.msk [vmem:[#allocation5 + $0x1c98] sm:$0xff] %vm388, 0.0
      %1812 = vst.msk [vmem:[#allocation5 + $0x1ca0] sm:$0xff] %vm388, 0.0
      %1813 = vst.msk [vmem:[#allocation5 + $0x1ca8] sm:$0xff] %vm388, 0.0
      %1814 = vst.msk [vmem:[#allocation5 + $0x1cb0] sm:$0xff] %vm388, 0.0
      %1815 = vst.msk [vmem:[#allocation5 + $0x1cb8] sm:$0xff] %vm388, 0.0
      %1816 = vst.msk [vmem:[#allocation5 + $0x1cc0] sm:$0xff] %vm388, 0.0
      %1817 = vst.msk [vmem:[#allocation5 + $0x1cc8] sm:$0xff] %vm388, 0.0
      %1818 = vst.msk [vmem:[#allocation5 + $0x1cd0] sm:$0xff] %vm388, 0.0
      %1819 = vst.msk [vmem:[#allocation5 + $0x1cd8] sm:$0x1f] %vm905, 0.0
      %1820 = vst.msk [vmem:[#allocation5 + $0x1ce0] sm:$0xff] %vm388, 0.0
      %1821 = vst.msk [vmem:[#allocation5 + $0x1ce8] sm:$0xff] %vm388, 0.0
      %1822 = vst.msk [vmem:[#allocation5 + $0x1cf0] sm:$0xff] %vm388, 0.0
      %1823 = vst.msk [vmem:[#allocation5 + $0x1cf8] sm:$0xff] %vm388, 0.0
      %1824 = vst.msk [vmem:[#allocation5 + $0x1d00] sm:$0xff] %vm388, 0.0
      %1825 = vst.msk [vmem:[#allocation5 + $0x1d08] sm:$0xff] %vm388, 0.0
      %1826 = vst.msk [vmem:[#allocation5 + $0x1d10] sm:$0xff] %vm388, 0.0
      %1827 = vst.msk [vmem:[#allocation5 + $0x1d18] sm:$0xff] %vm388, 0.0
      %1828 = vst.msk [vmem:[#allocation5 + $0x1d20] sm:$0xff] %vm388, 0.0
      %1829 = vst.msk [vmem:[#allocation5 + $0x1d28] sm:$0xff] %vm388, 0.0
      %1830 = vst.msk [vmem:[#allocation5 + $0x1d30] sm:$0x1f] %vm905, 0.0
      %1831 = vst.msk [vmem:[#allocation6] sm:$0xff] %vm388, 0.0
      %1832 = vst.msk [vmem:[#allocation6 + $0x8] sm:$0xff] %vm388, 0.0
      %1833 = vst.msk [vmem:[#allocation6 + $0x10] sm:$0xff] %vm388, 0.0
      %1834 = vst.msk [vmem:[#allocation6 + $0x18] sm:$0xff] %vm388, 0.0
      %1835 = vst.msk [vmem:[#allocation6 + $0x20] sm:$0xff] %vm388, 0.0
      %1836 = vst.msk [vmem:[#allocation6 + $0x28] sm:$0xff] %vm388, 0.0
      %1837 = vst.msk [vmem:[#allocation6 + $0x30] sm:$0xff] %vm388, 0.0
      %1838 = vst.msk [vmem:[#allocation6 + $0x38] sm:$0xff] %vm388, 0.0
      %1839 = vst.msk [vmem:[#allocation6 + $0x40] sm:$0xff] %vm388, 0.0
      %1840 = vst.msk [vmem:[#allocation6 + $0x48] sm:$0xff] %vm388, 0.0
      %1841 = vst.msk [vmem:[#allocation6 + $0x50] sm:$0x1f] %vm905, 0.0
      %1842 = vst.msk [vmem:[#allocation6 + $0x58] sm:$0xff] %vm388, 0.0
      %1843 = vst.msk [vmem:[#allocation6 + $0x60] sm:$0xff] %vm388, 0.0
      %1844 = vst.msk [vmem:[#allocation6 + $0x68] sm:$0xff] %vm388, 0.0
      %1845 = vst.msk [vmem:[#allocation6 + $0x70] sm:$0xff] %vm388, 0.0
      %1846 = vst.msk [vmem:[#allocation6 + $0x78] sm:$0xff] %vm388, 0.0
      %1847 = vst.msk [vmem:[#allocation6 + $0x80] sm:$0xff] %vm388, 0.0
      %1848 = vst.msk [vmem:[#allocation6 + $0x88] sm:$0xff] %vm388, 0.0
      %1849 = vst.msk [vmem:[#allocation6 + $0x90] sm:$0xff] %vm388, 0.0
      %1850 = vst.msk [vmem:[#allocation6 + $0x98] sm:$0xff] %vm388, 0.0
      %1851 = vst.msk [vmem:[#allocation6 + $0xa0] sm:$0xff] %vm388, 0.0
      %1852 = vst.msk [vmem:[#allocation6 + $0xa8] sm:$0x1f] %vm905, 0.0
      %1853 = vst.msk [vmem:[#allocation6 + $0xb0] sm:$0xff] %vm388, 0.0
      %1854 = vst.msk [vmem:[#allocation6 + $0xb8] sm:$0xff] %vm388, 0.0
      %1855 = vst.msk [vmem:[#allocation6 + $0xc0] sm:$0xff] %vm388, 0.0
      %1856 = vst.msk [vmem:[#allocation6 + $0xc8] sm:$0xff] %vm388, 0.0
      %1857 = vst.msk [vmem:[#allocation6 + $0xd0] sm:$0xff] %vm388, 0.0
      %1858 = vst.msk [vmem:[#allocation6 + $0xd8] sm:$0xff] %vm388, 0.0
      %1859 = vst.msk [vmem:[#allocation6 + $0xe0] sm:$0xff] %vm388, 0.0
      %1860 = vst.msk [vmem:[#allocation6 + $0xe8] sm:$0xff] %vm388, 0.0
      %1861 = vst.msk [vmem:[#allocation6 + $0xf0] sm:$0xff] %vm388, 0.0
      %1862 = vst.msk [vmem:[#allocation6 + $0xf8] sm:$0xff] %vm388, 0.0
      %1863 = vst.msk [vmem:[#allocation6 + $0x100] sm:$0x1f] %vm905, 0.0
      %1864 = vst.msk [vmem:[#allocation6 + $0x108] sm:$0xff] %vm388, 0.0
      %1865 = vst.msk [vmem:[#allocation6 + $0x110] sm:$0xff] %vm388, 0.0
      %1866 = vst.msk [vmem:[#allocation6 + $0x118] sm:$0xff] %vm388, 0.0
      %1867 = vst.msk [vmem:[#allocation6 + $0x120] sm:$0xff] %vm388, 0.0
      %1868 = vst.msk [vmem:[#allocation6 + $0x128] sm:$0xff] %vm388, 0.0
      %1869 = vst.msk [vmem:[#allocation6 + $0x130] sm:$0xff] %vm388, 0.0
      %1870 = vst.msk [vmem:[#allocation6 + $0x138] sm:$0xff] %vm388, 0.0
      %1871 = vst.msk [vmem:[#allocation6 + $0x140] sm:$0xff] %vm388, 0.0
      %1872 = vst.msk [vmem:[#allocation6 + $0x148] sm:$0xff] %vm388, 0.0
      %1873 = vst.msk [vmem:[#allocation6 + $0x150] sm:$0xff] %vm388, 0.0
      %1874 = vst.msk [vmem:[#allocation6 + $0x158] sm:$0x1f] %vm905, 0.0
      %1875 = vst.msk [vmem:[#allocation6 + $0x160] sm:$0xff] %vm388, 0.0
      %1876 = vst.msk [vmem:[#allocation6 + $0x168] sm:$0xff] %vm388, 0.0
      %1877 = vst.msk [vmem:[#allocation6 + $0x170] sm:$0xff] %vm388, 0.0
      %1878 = vst.msk [vmem:[#allocation6 + $0x178] sm:$0xff] %vm388, 0.0
      %1879 = vst.msk [vmem:[#allocation6 + $0x180] sm:$0xff] %vm388, 0.0
      %1880 = vst.msk [vmem:[#allocation6 + $0x188] sm:$0xff] %vm388, 0.0
      %1881 = vst.msk [vmem:[#allocation6 + $0x190] sm:$0xff] %vm388, 0.0
      %1882 = vst.msk [vmem:[#allocation6 + $0x198] sm:$0xff] %vm388, 0.0
      %1883 = vst.msk [vmem:[#allocation6 + $0x1a0] sm:$0xff] %vm388, 0.0
      %1884 = vst.msk [vmem:[#allocation6 + $0x1a8] sm:$0xff] %vm388, 0.0
      %1885 = vst.msk [vmem:[#allocation6 + $0x1b0] sm:$0x1f] %vm905, 0.0
      %1886 = vst.msk [vmem:[#allocation6 + $0x1b8] sm:$0xff] %vm388, 0.0
      %1887 = vst.msk [vmem:[#allocation6 + $0x1c0] sm:$0xff] %vm388, 0.0
      %1888 = vst.msk [vmem:[#allocation6 + $0x1c8] sm:$0xff] %vm388, 0.0
      %1889 = vst.msk [vmem:[#allocation6 + $0x1d0] sm:$0xff] %vm388, 0.0
      %1890 = vst.msk [vmem:[#allocation6 + $0x1d8] sm:$0xff] %vm388, 0.0
      %1891 = vst.msk [vmem:[#allocation6 + $0x1e0] sm:$0xff] %vm388, 0.0
      %1892 = vst.msk [vmem:[#allocation6 + $0x1e8] sm:$0xff] %vm388, 0.0
      %1893 = vst.msk [vmem:[#allocation6 + $0x1f0] sm:$0xff] %vm388, 0.0
      %1894 = vst.msk [vmem:[#allocation6 + $0x1f8] sm:$0xff] %vm388, 0.0
      %1895 = vst.msk [vmem:[#allocation6 + $0x200] sm:$0xff] %vm388, 0.0
      %1896 = vst.msk [vmem:[#allocation6 + $0x208] sm:$0x1f] %vm905, 0.0
      %1897 = vst.msk [vmem:[#allocation6 + $0x210] sm:$0xff] %vm388, 0.0
      %1898 = vst.msk [vmem:[#allocation6 + $0x218] sm:$0xff] %vm388, 0.0
      %1899 = vst.msk [vmem:[#allocation6 + $0x220] sm:$0xff] %vm388, 0.0
      %1900 = vst.msk [vmem:[#allocation6 + $0x228] sm:$0xff] %vm388, 0.0
      %1901 = vst.msk [vmem:[#allocation6 + $0x230] sm:$0xff] %vm388, 0.0
      %1902 = vst.msk [vmem:[#allocation6 + $0x238] sm:$0xff] %vm388, 0.0
      %1903 = vst.msk [vmem:[#allocation6 + $0x240] sm:$0xff] %vm388, 0.0
      %1904 = vst.msk [vmem:[#allocation6 + $0x248] sm:$0xff] %vm388, 0.0
      %1905 = vst.msk [vmem:[#allocation6 + $0x250] sm:$0xff] %vm388, 0.0
      %1906 = vst.msk [vmem:[#allocation6 + $0x258] sm:$0xff] %vm388, 0.0
      %1907 = vst.msk [vmem:[#allocation6 + $0x260] sm:$0x1f] %vm905, 0.0
      %1908 = vst.msk [vmem:[#allocation6 + $0x268] sm:$0xff] %vm388, 0.0
      %1909 = vst.msk [vmem:[#allocation6 + $0x270] sm:$0xff] %vm388, 0.0
      %1910 = vst.msk [vmem:[#allocation6 + $0x278] sm:$0xff] %vm388, 0.0
      %1911 = vst.msk [vmem:[#allocation6 + $0x280] sm:$0xff] %vm388, 0.0
      %1912 = vst.msk [vmem:[#allocation6 + $0x288] sm:$0xff] %vm388, 0.0
      %1913 = vst.msk [vmem:[#allocation6 + $0x290] sm:$0xff] %vm388, 0.0
      %1914 = vst.msk [vmem:[#allocation6 + $0x298] sm:$0xff] %vm388, 0.0
      %1915 = vst.msk [vmem:[#allocation6 + $0x2a0] sm:$0xff] %vm388, 0.0
      %1916 = vst.msk [vmem:[#allocation6 + $0x2a8] sm:$0xff] %vm388, 0.0
      %1917 = vst.msk [vmem:[#allocation6 + $0x2b0] sm:$0xff] %vm388, 0.0
      %1918 = vst.msk [vmem:[#allocation6 + $0x2b8] sm:$0x1f] %vm905, 0.0
      %1919 = vst.msk [vmem:[#allocation6 + $0x2c0] sm:$0xff] %vm388, 0.0
      %1920 = vst.msk [vmem:[#allocation6 + $0x2c8] sm:$0xff] %vm388, 0.0
      %1921 = vst.msk [vmem:[#allocation6 + $0x2d0] sm:$0xff] %vm388, 0.0
      %1922 = vst.msk [vmem:[#allocation6 + $0x2d8] sm:$0xff] %vm388, 0.0
      %1923 = vst.msk [vmem:[#allocation6 + $0x2e0] sm:$0xff] %vm388, 0.0
      %1924 = vst.msk [vmem:[#allocation6 + $0x2e8] sm:$0xff] %vm388, 0.0
      %1925 = vst.msk [vmem:[#allocation6 + $0x2f0] sm:$0xff] %vm388, 0.0
      %1926 = vst.msk [vmem:[#allocation6 + $0x2f8] sm:$0xff] %vm388, 0.0
      %1927 = vst.msk [vmem:[#allocation6 + $0x300] sm:$0xff] %vm388, 0.0
      %1928 = vst.msk [vmem:[#allocation6 + $0x308] sm:$0xff] %vm388, 0.0
      %1929 = vst.msk [vmem:[#allocation6 + $0x310] sm:$0x1f] %vm905, 0.0
      %1930 = vst.msk [vmem:[#allocation6 + $0x318] sm:$0xff] %vm388, 0.0
      %1931 = vst.msk [vmem:[#allocation6 + $0x320] sm:$0xff] %vm388, 0.0
      %1932 = vst.msk [vmem:[#allocation6 + $0x328] sm:$0xff] %vm388, 0.0
      %1933 = vst.msk [vmem:[#allocation6 + $0x330] sm:$0xff] %vm388, 0.0
      %1934 = vst.msk [vmem:[#allocation6 + $0x338] sm:$0xff] %vm388, 0.0
      %1935 = vst.msk [vmem:[#allocation6 + $0x340] sm:$0xff] %vm388, 0.0
      %1936 = vst.msk [vmem:[#allocation6 + $0x348] sm:$0xff] %vm388, 0.0
      %1937 = vst.msk [vmem:[#allocation6 + $0x350] sm:$0xff] %vm388, 0.0
      %1938 = vst.msk [vmem:[#allocation6 + $0x358] sm:$0xff] %vm388, 0.0
      %1939 = vst.msk [vmem:[#allocation6 + $0x360] sm:$0xff] %vm388, 0.0
      %1940 = vst.msk [vmem:[#allocation6 + $0x368] sm:$0x1f] %vm905, 0.0
      %1941 = vst.msk [vmem:[#allocation6 + $0x370] sm:$0xff] %vm388, 0.0
      %1942 = vst.msk [vmem:[#allocation6 + $0x378] sm:$0xff] %vm388, 0.0
      %1943 = vst.msk [vmem:[#allocation6 + $0x380] sm:$0xff] %vm388, 0.0
      %1944 = vst.msk [vmem:[#allocation6 + $0x388] sm:$0xff] %vm388, 0.0
      %1945 = vst.msk [vmem:[#allocation6 + $0x390] sm:$0xff] %vm388, 0.0
      %1946 = vst.msk [vmem:[#allocation6 + $0x398] sm:$0xff] %vm388, 0.0
      %1947 = vst.msk [vmem:[#allocation6 + $0x3a0] sm:$0xff] %vm388, 0.0
      %1948 = vst.msk [vmem:[#allocation6 + $0x3a8] sm:$0xff] %vm388, 0.0
      %1949 = vst.msk [vmem:[#allocation6 + $0x3b0] sm:$0xff] %vm388, 0.0
      %1950 = vst.msk [vmem:[#allocation6 + $0x3b8] sm:$0xff] %vm388, 0.0
      %1951 = vst.msk [vmem:[#allocation6 + $0x3c0] sm:$0x1f] %vm905, 0.0
      %1952 = vst.msk [vmem:[#allocation6 + $0x3c8] sm:$0xff] %vm388, 0.0
      %1953 = vst.msk [vmem:[#allocation6 + $0x3d0] sm:$0xff] %vm388, 0.0
      %1954 = vst.msk [vmem:[#allocation6 + $0x3d8] sm:$0xff] %vm388, 0.0
      %1955 = vst.msk [vmem:[#allocation6 + $0x3e0] sm:$0xff] %vm388, 0.0
      %1956 = vst.msk [vmem:[#allocation6 + $0x3e8] sm:$0xff] %vm388, 0.0
      %1957 = vst.msk [vmem:[#allocation6 + $0x3f0] sm:$0xff] %vm388, 0.0
      %1958 = vst.msk [vmem:[#allocation6 + $0x3f8] sm:$0xff] %vm388, 0.0
      %1959 = vst.msk [vmem:[#allocation6 + $0x400] sm:$0xff] %vm388, 0.0
      %1960 = vst.msk [vmem:[#allocation6 + $0x408] sm:$0xff] %vm388, 0.0
      %1961 = vst.msk [vmem:[#allocation6 + $0x410] sm:$0xff] %vm388, 0.0
      %1962 = vst.msk [vmem:[#allocation6 + $0x418] sm:$0x1f] %vm905, 0.0
      %1963 = vst.msk [vmem:[#allocation6 + $0x420] sm:$0xff] %vm388, 0.0
      %1964 = vst.msk [vmem:[#allocation6 + $0x428] sm:$0xff] %vm388, 0.0
      %1965 = vst.msk [vmem:[#allocation6 + $0x430] sm:$0xff] %vm388, 0.0
      %1966 = vst.msk [vmem:[#allocation6 + $0x438] sm:$0xff] %vm388, 0.0
      %1967 = vst.msk [vmem:[#allocation6 + $0x440] sm:$0xff] %vm388, 0.0
      %1968 = vst.msk [vmem:[#allocation6 + $0x448] sm:$0xff] %vm388, 0.0
      %1969 = vst.msk [vmem:[#allocation6 + $0x450] sm:$0xff] %vm388, 0.0
      %1970 = vst.msk [vmem:[#allocation6 + $0x458] sm:$0xff] %vm388, 0.0
      %1971 = vst.msk [vmem:[#allocation6 + $0x460] sm:$0xff] %vm388, 0.0
      %1972 = vst.msk [vmem:[#allocation6 + $0x468] sm:$0xff] %vm388, 0.0
      %1973 = vst.msk [vmem:[#allocation6 + $0x470] sm:$0x1f] %vm905, 0.0
      %1974 = vst.msk [vmem:[#allocation6 + $0x478] sm:$0xff] %vm388, 0.0
      %1975 = vst.msk [vmem:[#allocation6 + $0x480] sm:$0xff] %vm388, 0.0
      %1976 = vst.msk [vmem:[#allocation6 + $0x488] sm:$0xff] %vm388, 0.0
      %1977 = vst.msk [vmem:[#allocation6 + $0x490] sm:$0xff] %vm388, 0.0
      %1978 = vst.msk [vmem:[#allocation6 + $0x498] sm:$0xff] %vm388, 0.0
      %1979 = vst.msk [vmem:[#allocation6 + $0x4a0] sm:$0xff] %vm388, 0.0
      %1980 = vst.msk [vmem:[#allocation6 + $0x4a8] sm:$0xff] %vm388, 0.0
      %1981 = vst.msk [vmem:[#allocation6 + $0x4b0] sm:$0xff] %vm388, 0.0
      %1982 = vst.msk [vmem:[#allocation6 + $0x4b8] sm:$0xff] %vm388, 0.0
      %1983 = vst.msk [vmem:[#allocation6 + $0x4c0] sm:$0xff] %vm388, 0.0
      %1984 = vst.msk [vmem:[#allocation6 + $0x4c8] sm:$0x1f] %vm905, 0.0
      %1985 = vst.msk [vmem:[#allocation6 + $0x4d0] sm:$0xff] %vm388, 0.0
      %1986 = vst.msk [vmem:[#allocation6 + $0x4d8] sm:$0xff] %vm388, 0.0
      %1987 = vst.msk [vmem:[#allocation6 + $0x4e0] sm:$0xff] %vm388, 0.0
      %1988 = vst.msk [vmem:[#allocation6 + $0x4e8] sm:$0xff] %vm388, 0.0
      %1989 = vst.msk [vmem:[#allocation6 + $0x4f0] sm:$0xff] %vm388, 0.0
      %1990 = vst.msk [vmem:[#allocation6 + $0x4f8] sm:$0xff] %vm388, 0.0
      %1991 = vst.msk [vmem:[#allocation6 + $0x500] sm:$0xff] %vm388, 0.0
      %1992 = vst.msk [vmem:[#allocation6 + $0x508] sm:$0xff] %vm388, 0.0
      %1993 = vst.msk [vmem:[#allocation6 + $0x510] sm:$0xff] %vm388, 0.0
      %1994 = vst.msk [vmem:[#allocation6 + $0x518] sm:$0xff] %vm388, 0.0
      %1995 = vst.msk [vmem:[#allocation6 + $0x520] sm:$0x1f] %vm905, 0.0
      %1996 = vst.msk [vmem:[#allocation6 + $0x528] sm:$0xff] %vm388, 0.0
      %1997 = vst.msk [vmem:[#allocation6 + $0x530] sm:$0xff] %vm388, 0.0
      %1998 = vst.msk [vmem:[#allocation6 + $0x538] sm:$0xff] %vm388, 0.0
      %1999 = vst.msk [vmem:[#allocation6 + $0x540] sm:$0xff] %vm388, 0.0
      %2000 = vst.msk [vmem:[#allocation6 + $0x548] sm:$0xff] %vm388, 0.0
      %2001 = vst.msk [vmem:[#allocation6 + $0x550] sm:$0xff] %vm388, 0.0
      %2002 = vst.msk [vmem:[#allocation6 + $0x558] sm:$0xff] %vm388, 0.0
      %2003 = vst.msk [vmem:[#allocation6 + $0x560] sm:$0xff] %vm388, 0.0
      %2004 = vst.msk [vmem:[#allocation6 + $0x568] sm:$0xff] %vm388, 0.0
      %2005 = vst.msk [vmem:[#allocation6 + $0x570] sm:$0xff] %vm388, 0.0
      %2006 = vst.msk [vmem:[#allocation6 + $0x578] sm:$0x1f] %vm905, 0.0
      %2007 = vst.msk [vmem:[#allocation6 + $0x580] sm:$0xff] %vm388, 0.0
      %2008 = vst.msk [vmem:[#allocation6 + $0x588] sm:$0xff] %vm388, 0.0
      %2009 = vst.msk [vmem:[#allocation6 + $0x590] sm:$0xff] %vm388, 0.0
      %2010 = vst.msk [vmem:[#allocation6 + $0x598] sm:$0xff] %vm388, 0.0
      %2011 = vst.msk [vmem:[#allocation6 + $0x5a0] sm:$0xff] %vm388, 0.0
      %2012 = vst.msk [vmem:[#allocation6 + $0x5a8] sm:$0xff] %vm388, 0.0
      %2013 = vst.msk [vmem:[#allocation6 + $0x5b0] sm:$0xff] %vm388, 0.0
      %2014 = vst.msk [vmem:[#allocation6 + $0x5b8] sm:$0xff] %vm388, 0.0
      %2015 = vst.msk [vmem:[#allocation6 + $0x5c0] sm:$0xff] %vm388, 0.0
      %2016 = vst.msk [vmem:[#allocation6 + $0x5c8] sm:$0xff] %vm388, 0.0
      %2017 = vst.msk [vmem:[#allocation6 + $0x5d0] sm:$0x1f] %vm905, 0.0
      %2018 = vst.msk [vmem:[#allocation6 + $0x5d8] sm:$0xff] %vm388, 0.0
      %2019 = vst.msk [vmem:[#allocation6 + $0x5e0] sm:$0xff] %vm388, 0.0
      %2020 = vst.msk [vmem:[#allocation6 + $0x5e8] sm:$0xff] %vm388, 0.0
      %2021 = vst.msk [vmem:[#allocation6 + $0x5f0] sm:$0xff] %vm388, 0.0
      %2022 = vst.msk [vmem:[#allocation6 + $0x5f8] sm:$0xff] %vm388, 0.0
      %2023 = vst.msk [vmem:[#allocation6 + $0x600] sm:$0xff] %vm388, 0.0
      %2024 = vst.msk [vmem:[#allocation6 + $0x608] sm:$0xff] %vm388, 0.0
      %2025 = vst.msk [vmem:[#allocation6 + $0x610] sm:$0xff] %vm388, 0.0
      %2026 = vst.msk [vmem:[#allocation6 + $0x618] sm:$0xff] %vm388, 0.0
      %2027 = vst.msk [vmem:[#allocation6 + $0x620] sm:$0xff] %vm388, 0.0
      %2028 = vst.msk [vmem:[#allocation6 + $0x628] sm:$0x1f] %vm905, 0.0
      %2029 = vst.msk [vmem:[#allocation6 + $0x630] sm:$0xff] %vm388, 0.0
      %2030 = vst.msk [vmem:[#allocation6 + $0x638] sm:$0xff] %vm388, 0.0
      %2031 = vst.msk [vmem:[#allocation6 + $0x640] sm:$0xff] %vm388, 0.0
      %2032 = vst.msk [vmem:[#allocation6 + $0x648] sm:$0xff] %vm388, 0.0
      %2033 = vst.msk [vmem:[#allocation6 + $0x650] sm:$0xff] %vm388, 0.0
      %2034 = vst.msk [vmem:[#allocation6 + $0x658] sm:$0xff] %vm388, 0.0
      %2035 = vst.msk [vmem:[#allocation6 + $0x660] sm:$0xff] %vm388, 0.0
      %2036 = vst.msk [vmem:[#allocation6 + $0x668] sm:$0xff] %vm388, 0.0
      %2037 = vst.msk [vmem:[#allocation6 + $0x670] sm:$0xff] %vm388, 0.0
      %2038 = vst.msk [vmem:[#allocation6 + $0x678] sm:$0xff] %vm388, 0.0
      %2039 = vst.msk [vmem:[#allocation6 + $0x680] sm:$0x1f] %vm905, 0.0
      %2040 = vst.msk [vmem:[#allocation6 + $0x688] sm:$0xff] %vm388, 0.0
      %2041 = vst.msk [vmem:[#allocation6 + $0x690] sm:$0xff] %vm388, 0.0
      %2042 = vst.msk [vmem:[#allocation6 + $0x698] sm:$0xff] %vm388, 0.0
      %2043 = vst.msk [vmem:[#allocation6 + $0x6a0] sm:$0xff] %vm388, 0.0
      %2044 = vst.msk [vmem:[#allocation6 + $0x6a8] sm:$0xff] %vm388, 0.0
      %2045 = vst.msk [vmem:[#allocation6 + $0x6b0] sm:$0xff] %vm388, 0.0
      %2046 = vst.msk [vmem:[#allocation6 + $0x6b8] sm:$0xff] %vm388, 0.0
      %2047 = vst.msk [vmem:[#allocation6 + $0x6c0] sm:$0xff] %vm388, 0.0
      %2048 = vst.msk [vmem:[#allocation6 + $0x6c8] sm:$0xff] %vm388, 0.0
      %2049 = vst.msk [vmem:[#allocation6 + $0x6d0] sm:$0xff] %vm388, 0.0
      %2050 = vst.msk [vmem:[#allocation6 + $0x6d8] sm:$0x1f] %vm905, 0.0
      %2051 = vst.msk [vmem:[#allocation6 + $0x6e0] sm:$0xff] %vm388, 0.0
      %2052 = vst.msk [vmem:[#allocation6 + $0x6e8] sm:$0xff] %vm388, 0.0
      %2053 = vst.msk [vmem:[#allocation6 + $0x6f0] sm:$0xff] %vm388, 0.0
      %2054 = vst.msk [vmem:[#allocation6 + $0x6f8] sm:$0xff] %vm388, 0.0
      %2055 = vst.msk [vmem:[#allocation6 + $0x700] sm:$0xff] %vm388, 0.0
      %2056 = vst.msk [vmem:[#allocation6 + $0x708] sm:$0xff] %vm388, 0.0
      %2057 = vst.msk [vmem:[#allocation6 + $0x710] sm:$0xff] %vm388, 0.0
      %2058 = vst.msk [vmem:[#allocation6 + $0x718] sm:$0xff] %vm388, 0.0
      %2059 = vst.msk [vmem:[#allocation6 + $0x720] sm:$0xff] %vm388, 0.0
      %2060 = vst.msk [vmem:[#allocation6 + $0x728] sm:$0xff] %vm388, 0.0
      %2061 = vst.msk [vmem:[#allocation6 + $0x730] sm:$0x1f] %vm905, 0.0
      %2062 = vst.msk [vmem:[#allocation6 + $0x738] sm:$0xff] %vm388, 0.0
      %2063 = vst.msk [vmem:[#allocation6 + $0x740] sm:$0xff] %vm388, 0.0
      %2064 = vst.msk [vmem:[#allocation6 + $0x748] sm:$0xff] %vm388, 0.0
      %2065 = vst.msk [vmem:[#allocation6 + $0x750] sm:$0xff] %vm388, 0.0
      %2066 = vst.msk [vmem:[#allocation6 + $0x758] sm:$0xff] %vm388, 0.0
      %2067 = vst.msk [vmem:[#allocation6 + $0x760] sm:$0xff] %vm388, 0.0
      %2068 = vst.msk [vmem:[#allocation6 + $0x768] sm:$0xff] %vm388, 0.0
      %2069 = vst.msk [vmem:[#allocation6 + $0x770] sm:$0xff] %vm388, 0.0
      %2070 = vst.msk [vmem:[#allocation6 + $0x778] sm:$0xff] %vm388, 0.0
      %2071 = vst.msk [vmem:[#allocation6 + $0x780] sm:$0xff] %vm388, 0.0
      %2072 = vst.msk [vmem:[#allocation6 + $0x788] sm:$0x1f] %vm905, 0.0
      %2073 = vst.msk [vmem:[#allocation6 + $0x790] sm:$0xff] %vm388, 0.0
      %2074 = vst.msk [vmem:[#allocation6 + $0x798] sm:$0xff] %vm388, 0.0
      %2075 = vst.msk [vmem:[#allocation6 + $0x7a0] sm:$0xff] %vm388, 0.0
      %2076 = vst.msk [vmem:[#allocation6 + $0x7a8] sm:$0xff] %vm388, 0.0
      %2077 = vst.msk [vmem:[#allocation6 + $0x7b0] sm:$0xff] %vm388, 0.0
      %2078 = vst.msk [vmem:[#allocation6 + $0x7b8] sm:$0xff] %vm388, 0.0
      %2079 = vst.msk [vmem:[#allocation6 + $0x7c0] sm:$0xff] %vm388, 0.0
      %2080 = vst.msk [vmem:[#allocation6 + $0x7c8] sm:$0xff] %vm388, 0.0
      %2081 = vst.msk [vmem:[#allocation6 + $0x7d0] sm:$0xff] %vm388, 0.0
      %2082 = vst.msk [vmem:[#allocation6 + $0x7d8] sm:$0xff] %vm388, 0.0
      %2083 = vst.msk [vmem:[#allocation6 + $0x7e0] sm:$0x1f] %vm905, 0.0
      %2084 = vst.msk [vmem:[#allocation6 + $0x7e8] sm:$0xff] %vm388, 0.0
      %2085 = vst.msk [vmem:[#allocation6 + $0x7f0] sm:$0xff] %vm388, 0.0
      %2086 = vst.msk [vmem:[#allocation6 + $0x7f8] sm:$0xff] %vm388, 0.0
      %2087 = vst.msk [vmem:[#allocation6 + $0x800] sm:$0xff] %vm388, 0.0
      %2088 = vst.msk [vmem:[#allocation6 + $0x808] sm:$0xff] %vm388, 0.0
      %2089 = vst.msk [vmem:[#allocation6 + $0x810] sm:$0xff] %vm388, 0.0
      %2090 = vst.msk [vmem:[#allocation6 + $0x818] sm:$0xff] %vm388, 0.0
      %2091 = vst.msk [vmem:[#allocation6 + $0x820] sm:$0xff] %vm388, 0.0
      %2092 = vst.msk [vmem:[#allocation6 + $0x828] sm:$0xff] %vm388, 0.0
      %2093 = vst.msk [vmem:[#allocation6 + $0x830] sm:$0xff] %vm388, 0.0
      %2094 = vst.msk [vmem:[#allocation6 + $0x838] sm:$0x1f] %vm905, 0.0
      %2095 = vst.msk [vmem:[#allocation6 + $0x840] sm:$0xff] %vm388, 0.0
      %2096 = vst.msk [vmem:[#allocation6 + $0x848] sm:$0xff] %vm388, 0.0
      %2097 = vst.msk [vmem:[#allocation6 + $0x850] sm:$0xff] %vm388, 0.0
      %2098 = vst.msk [vmem:[#allocation6 + $0x858] sm:$0xff] %vm388, 0.0
      %2099 = vst.msk [vmem:[#allocation6 + $0x860] sm:$0xff] %vm388, 0.0
      %2100 = vst.msk [vmem:[#allocation6 + $0x868] sm:$0xff] %vm388, 0.0
      %2101 = vst.msk [vmem:[#allocation6 + $0x870] sm:$0xff] %vm388, 0.0
      %2102 = vst.msk [vmem:[#allocation6 + $0x878] sm:$0xff] %vm388, 0.0
      %2103 = vst.msk [vmem:[#allocation6 + $0x880] sm:$0xff] %vm388, 0.0
      %2104 = vst.msk [vmem:[#allocation6 + $0x888] sm:$0xff] %vm388, 0.0
      %2105 = vst.msk [vmem:[#allocation6 + $0x890] sm:$0x1f] %vm905, 0.0
      %2106 = vst.msk [vmem:[#allocation6 + $0x898] sm:$0xff] %vm388, 0.0
      %2107 = vst.msk [vmem:[#allocation6 + $0x8a0] sm:$0xff] %vm388, 0.0
      %2108 = vst.msk [vmem:[#allocation6 + $0x8a8] sm:$0xff] %vm388, 0.0
      %2109 = vst.msk [vmem:[#allocation6 + $0x8b0] sm:$0xff] %vm388, 0.0
      %2110 = vst.msk [vmem:[#allocation6 + $0x8b8] sm:$0xff] %vm388, 0.0
      %2111 = vst.msk [vmem:[#allocation6 + $0x8c0] sm:$0xff] %vm388, 0.0
      %2112 = vst.msk [vmem:[#allocation6 + $0x8c8] sm:$0xff] %vm388, 0.0
      %2113 = vst.msk [vmem:[#allocation6 + $0x8d0] sm:$0xff] %vm388, 0.0
      %2114 = vst.msk [vmem:[#allocation6 + $0x8d8] sm:$0xff] %vm388, 0.0
      %2115 = vst.msk [vmem:[#allocation6 + $0x8e0] sm:$0xff] %vm388, 0.0
      %2116 = vst.msk [vmem:[#allocation6 + $0x8e8] sm:$0x1f] %vm905, 0.0
      %2117 = vst.msk [vmem:[#allocation6 + $0x8f0] sm:$0xff] %vm388, 0.0
      %2118 = vst.msk [vmem:[#allocation6 + $0x8f8] sm:$0xff] %vm388, 0.0
      %2119 = vst.msk [vmem:[#allocation6 + $0x900] sm:$0xff] %vm388, 0.0
      %2120 = vst.msk [vmem:[#allocation6 + $0x908] sm:$0xff] %vm388, 0.0
      %2121 = vst.msk [vmem:[#allocation6 + $0x910] sm:$0xff] %vm388, 0.0
      %2122 = vst.msk [vmem:[#allocation6 + $0x918] sm:$0xff] %vm388, 0.0
      %2123 = vst.msk [vmem:[#allocation6 + $0x920] sm:$0xff] %vm388, 0.0
      %2124 = vst.msk [vmem:[#allocation6 + $0x928] sm:$0xff] %vm388, 0.0
      %2125 = vst.msk [vmem:[#allocation6 + $0x930] sm:$0xff] %vm388, 0.0
      %2126 = vst.msk [vmem:[#allocation6 + $0x938] sm:$0xff] %vm388, 0.0
      %2127 = vst.msk [vmem:[#allocation6 + $0x940] sm:$0x1f] %vm905, 0.0
      %2128 = vst.msk [vmem:[#allocation6 + $0x948] sm:$0xff] %vm388, 0.0
      %2129 = vst.msk [vmem:[#allocation6 + $0x950] sm:$0xff] %vm388, 0.0
      %2130 = vst.msk [vmem:[#allocation6 + $0x958] sm:$0xff] %vm388, 0.0
      %2131 = vst.msk [vmem:[#allocation6 + $0x960] sm:$0xff] %vm388, 0.0
      %2132 = vst.msk [vmem:[#allocation6 + $0x968] sm:$0xff] %vm388, 0.0
      %2133 = vst.msk [vmem:[#allocation6 + $0x970] sm:$0xff] %vm388, 0.0
      %2134 = vst.msk [vmem:[#allocation6 + $0x978] sm:$0xff] %vm388, 0.0
      %2135 = vst.msk [vmem:[#allocation6 + $0x980] sm:$0xff] %vm388, 0.0
      %2136 = vst.msk [vmem:[#allocation6 + $0x988] sm:$0xff] %vm388, 0.0
      %2137 = vst.msk [vmem:[#allocation6 + $0x990] sm:$0xff] %vm388, 0.0
      %2138 = vst.msk [vmem:[#allocation6 + $0x998] sm:$0x1f] %vm905, 0.0
      %2139 = vst.msk [vmem:[#allocation6 + $0x9a0] sm:$0xff] %vm388, 0.0
      %2140 = vst.msk [vmem:[#allocation6 + $0x9a8] sm:$0xff] %vm388, 0.0
      %2141 = vst.msk [vmem:[#allocation6 + $0x9b0] sm:$0xff] %vm388, 0.0
      %2142 = vst.msk [vmem:[#allocation6 + $0x9b8] sm:$0xff] %vm388, 0.0
      %2143 = vst.msk [vmem:[#allocation6 + $0x9c0] sm:$0xff] %vm388, 0.0
      %2144 = vst.msk [vmem:[#allocation6 + $0x9c8] sm:$0xff] %vm388, 0.0
      %2145 = vst.msk [vmem:[#allocation6 + $0x9d0] sm:$0xff] %vm388, 0.0
      %2146 = vst.msk [vmem:[#allocation6 + $0x9d8] sm:$0xff] %vm388, 0.0
      %2147 = vst.msk [vmem:[#allocation6 + $0x9e0] sm:$0xff] %vm388, 0.0
      %2148 = vst.msk [vmem:[#allocation6 + $0x9e8] sm:$0xff] %vm388, 0.0
      %2149 = vst.msk [vmem:[#allocation6 + $0x9f0] sm:$0x1f] %vm905, 0.0
      %2150 = vst.msk [vmem:[#allocation6 + $0x9f8] sm:$0xff] %vm388, 0.0
      %2151 = vst.msk [vmem:[#allocation6 + $0xa00] sm:$0xff] %vm388, 0.0
      %2152 = vst.msk [vmem:[#allocation6 + $0xa08] sm:$0xff] %vm388, 0.0
      %2153 = vst.msk [vmem:[#allocation6 + $0xa10] sm:$0xff] %vm388, 0.0
      %2154 = vst.msk [vmem:[#allocation6 + $0xa18] sm:$0xff] %vm388, 0.0
      %2155 = vst.msk [vmem:[#allocation6 + $0xa20] sm:$0xff] %vm388, 0.0
      %2156 = vst.msk [vmem:[#allocation6 + $0xa28] sm:$0xff] %vm388, 0.0
      %2157 = vst.msk [vmem:[#allocation6 + $0xa30] sm:$0xff] %vm388, 0.0
      %2158 = vst.msk [vmem:[#allocation6 + $0xa38] sm:$0xff] %vm388, 0.0
      %2159 = vst.msk [vmem:[#allocation6 + $0xa40] sm:$0xff] %vm388, 0.0
      %2160 = vst.msk [vmem:[#allocation6 + $0xa48] sm:$0x1f] %vm905, 0.0
      %2161 = vst.msk [vmem:[#allocation6 + $0xa50] sm:$0xff] %vm388, 0.0
      %2162 = vst.msk [vmem:[#allocation6 + $0xa58] sm:$0xff] %vm388, 0.0
      %2163 = vst.msk [vmem:[#allocation6 + $0xa60] sm:$0xff] %vm388, 0.0
      %2164 = vst.msk [vmem:[#allocation6 + $0xa68] sm:$0xff] %vm388, 0.0
      %2165 = vst.msk [vmem:[#allocation6 + $0xa70] sm:$0xff] %vm388, 0.0
      %2166 = vst.msk [vmem:[#allocation6 + $0xa78] sm:$0xff] %vm388, 0.0
      %2167 = vst.msk [vmem:[#allocation6 + $0xa80] sm:$0xff] %vm388, 0.0
      %2168 = vst.msk [vmem:[#allocation6 + $0xa88] sm:$0xff] %vm388, 0.0
      %2169 = vst.msk [vmem:[#allocation6 + $0xa90] sm:$0xff] %vm388, 0.0
      %2170 = vst.msk [vmem:[#allocation6 + $0xa98] sm:$0xff] %vm388, 0.0
      %2171 = vst.msk [vmem:[#allocation6 + $0xaa0] sm:$0x1f] %vm905, 0.0
      %2172 = vst.msk [vmem:[#allocation6 + $0xaa8] sm:$0xff] %vm388, 0.0
      %2173 = vst.msk [vmem:[#allocation6 + $0xab0] sm:$0xff] %vm388, 0.0
      %2174 = vst.msk [vmem:[#allocation6 + $0xab8] sm:$0xff] %vm388, 0.0
      %2175 = vst.msk [vmem:[#allocation6 + $0xac0] sm:$0xff] %vm388, 0.0
      %2176 = vst.msk [vmem:[#allocation6 + $0xac8] sm:$0xff] %vm388, 0.0
      %2177 = vst.msk [vmem:[#allocation6 + $0xad0] sm:$0xff] %vm388, 0.0
      %2178 = vst.msk [vmem:[#allocation6 + $0xad8] sm:$0xff] %vm388, 0.0
      %2179 = vst.msk [vmem:[#allocation6 + $0xae0] sm:$0xff] %vm388, 0.0
      %2180 = vst.msk [vmem:[#allocation6 + $0xae8] sm:$0xff] %vm388, 0.0
      %2181 = vst.msk [vmem:[#allocation6 + $0xaf0] sm:$0xff] %vm388, 0.0
      %2182 = vst.msk [vmem:[#allocation6 + $0xaf8] sm:$0x1f] %vm905, 0.0
      %2183 = vst.msk [vmem:[#allocation6 + $0xb00] sm:$0xff] %vm388, 0.0
      %2184 = vst.msk [vmem:[#allocation6 + $0xb08] sm:$0xff] %vm388, 0.0
      %2185 = vst.msk [vmem:[#allocation6 + $0xb10] sm:$0xff] %vm388, 0.0
      %2186 = vst.msk [vmem:[#allocation6 + $0xb18] sm:$0xff] %vm388, 0.0
      %2187 = vst.msk [vmem:[#allocation6 + $0xb20] sm:$0xff] %vm388, 0.0
      %2188 = vst.msk [vmem:[#allocation6 + $0xb28] sm:$0xff] %vm388, 0.0
      %2189 = vst.msk [vmem:[#allocation6 + $0xb30] sm:$0xff] %vm388, 0.0
      %2190 = vst.msk [vmem:[#allocation6 + $0xb38] sm:$0xff] %vm388, 0.0
      %2191 = vst.msk [vmem:[#allocation6 + $0xb40] sm:$0xff] %vm388, 0.0
      %2192 = vst.msk [vmem:[#allocation6 + $0xb48] sm:$0xff] %vm388, 0.0
      %2193 = vst.msk [vmem:[#allocation6 + $0xb50] sm:$0x1f] %vm905, 0.0
      %2194 = vst.msk [vmem:[#allocation6 + $0xb58] sm:$0xff] %vm388, 0.0
      %2195 = vst.msk [vmem:[#allocation6 + $0xb60] sm:$0xff] %vm388, 0.0
      %2196 = vst.msk [vmem:[#allocation6 + $0xb68] sm:$0xff] %vm388, 0.0
      %2197 = vst.msk [vmem:[#allocation6 + $0xb70] sm:$0xff] %vm388, 0.0
      %2198 = vst.msk [vmem:[#allocation6 + $0xb78] sm:$0xff] %vm388, 0.0
      %2199 = vst.msk [vmem:[#allocation6 + $0xb80] sm:$0xff] %vm388, 0.0
      %2200 = vst.msk [vmem:[#allocation6 + $0xb88] sm:$0xff] %vm388, 0.0
      %2201 = vst.msk [vmem:[#allocation6 + $0xb90] sm:$0xff] %vm388, 0.0
      %2202 = vst.msk [vmem:[#allocation6 + $0xb98] sm:$0xff] %vm388, 0.0
      %2203 = vst.msk [vmem:[#allocation6 + $0xba0] sm:$0xff] %vm388, 0.0
      %2204 = vst.msk [vmem:[#allocation6 + $0xba8] sm:$0x1f] %vm905, 0.0
      %2205 = vst.msk [vmem:[#allocation6 + $0xbb0] sm:$0xff] %vm388, 0.0
      %2206 = vst.msk [vmem:[#allocation6 + $0xbb8] sm:$0xff] %vm388, 0.0
      %2207 = vst.msk [vmem:[#allocation6 + $0xbc0] sm:$0xff] %vm388, 0.0
      %2208 = vst.msk [vmem:[#allocation6 + $0xbc8] sm:$0xff] %vm388, 0.0
      %2209 = vst.msk [vmem:[#allocation6 + $0xbd0] sm:$0xff] %vm388, 0.0
      %2210 = vst.msk [vmem:[#allocation6 + $0xbd8] sm:$0xff] %vm388, 0.0
      %2211 = vst.msk [vmem:[#allocation6 + $0xbe0] sm:$0xff] %vm388, 0.0
      %2212 = vst.msk [vmem:[#allocation6 + $0xbe8] sm:$0xff] %vm388, 0.0
      %2213 = vst.msk [vmem:[#allocation6 + $0xbf0] sm:$0xff] %vm388, 0.0
      %2214 = vst.msk [vmem:[#allocation6 + $0xbf8] sm:$0xff] %vm388, 0.0
      %2215 = vst.msk [vmem:[#allocation6 + $0xc00] sm:$0x1f] %vm905, 0.0
      %2216 = vst.msk [vmem:[#allocation6 + $0xc08] sm:$0xff] %vm388, 0.0
      %2217 = vst.msk [vmem:[#allocation6 + $0xc10] sm:$0xff] %vm388, 0.0
      %2218 = vst.msk [vmem:[#allocation6 + $0xc18] sm:$0xff] %vm388, 0.0
      %2219 = vst.msk [vmem:[#allocation6 + $0xc20] sm:$0xff] %vm388, 0.0
      %2220 = vst.msk [vmem:[#allocation6 + $0xc28] sm:$0xff] %vm388, 0.0
      %2221 = vst.msk [vmem:[#allocation6 + $0xc30] sm:$0xff] %vm388, 0.0
      %2222 = vst.msk [vmem:[#allocation6 + $0xc38] sm:$0xff] %vm388, 0.0
      %2223 = vst.msk [vmem:[#allocation6 + $0xc40] sm:$0xff] %vm388, 0.0
      %2224 = vst.msk [vmem:[#allocation6 + $0xc48] sm:$0xff] %vm388, 0.0
      %2225 = vst.msk [vmem:[#allocation6 + $0xc50] sm:$0xff] %vm388, 0.0
      %2226 = vst.msk [vmem:[#allocation6 + $0xc58] sm:$0x1f] %vm905, 0.0
      %2227 = vst.msk [vmem:[#allocation6 + $0xc60] sm:$0xff] %vm388, 0.0
      %2228 = vst.msk [vmem:[#allocation6 + $0xc68] sm:$0xff] %vm388, 0.0
      %2229 = vst.msk [vmem:[#allocation6 + $0xc70] sm:$0xff] %vm388, 0.0
      %2230 = vst.msk [vmem:[#allocation6 + $0xc78] sm:$0xff] %vm388, 0.0
      %2231 = vst.msk [vmem:[#allocation6 + $0xc80] sm:$0xff] %vm388, 0.0
      %2232 = vst.msk [vmem:[#allocation6 + $0xc88] sm:$0xff] %vm388, 0.0
      %2233 = vst.msk [vmem:[#allocation6 + $0xc90] sm:$0xff] %vm388, 0.0
      %2234 = vst.msk [vmem:[#allocation6 + $0xc98] sm:$0xff] %vm388, 0.0
      %2235 = vst.msk [vmem:[#allocation6 + $0xca0] sm:$0xff] %vm388, 0.0
      %2236 = vst.msk [vmem:[#allocation6 + $0xca8] sm:$0xff] %vm388, 0.0
      %2237 = vst.msk [vmem:[#allocation6 + $0xcb0] sm:$0x1f] %vm905, 0.0
      %2238 = vst.msk [vmem:[#allocation6 + $0xcb8] sm:$0xff] %vm388, 0.0
      %2239 = vst.msk [vmem:[#allocation6 + $0xcc0] sm:$0xff] %vm388, 0.0
      %2240 = vst.msk [vmem:[#allocation6 + $0xcc8] sm:$0xff] %vm388, 0.0
      %2241 = vst.msk [vmem:[#allocation6 + $0xcd0] sm:$0xff] %vm388, 0.0
      %2242 = vst.msk [vmem:[#allocation6 + $0xcd8] sm:$0xff] %vm388, 0.0
      %2243 = vst.msk [vmem:[#allocation6 + $0xce0] sm:$0xff] %vm388, 0.0
      %2244 = vst.msk [vmem:[#allocation6 + $0xce8] sm:$0xff] %vm388, 0.0
      %2245 = vst.msk [vmem:[#allocation6 + $0xcf0] sm:$0xff] %vm388, 0.0
      %2246 = vst.msk [vmem:[#allocation6 + $0xcf8] sm:$0xff] %vm388, 0.0
      %2247 = vst.msk [vmem:[#allocation6 + $0xd00] sm:$0xff] %vm388, 0.0
      %2248 = vst.msk [vmem:[#allocation6 + $0xd08] sm:$0x1f] %vm905, 0.0
      %2249 = vst.msk [vmem:[#allocation6 + $0xd10] sm:$0xff] %vm388, 0.0
      %2250 = vst.msk [vmem:[#allocation6 + $0xd18] sm:$0xff] %vm388, 0.0
      %2251 = vst.msk [vmem:[#allocation6 + $0xd20] sm:$0xff] %vm388, 0.0
      %2252 = vst.msk [vmem:[#allocation6 + $0xd28] sm:$0xff] %vm388, 0.0
      %2253 = vst.msk [vmem:[#allocation6 + $0xd30] sm:$0xff] %vm388, 0.0
      %2254 = vst.msk [vmem:[#allocation6 + $0xd38] sm:$0xff] %vm388, 0.0
      %2255 = vst.msk [vmem:[#allocation6 + $0xd40] sm:$0xff] %vm388, 0.0
      %2256 = vst.msk [vmem:[#allocation6 + $0xd48] sm:$0xff] %vm388, 0.0
      %2257 = vst.msk [vmem:[#allocation6 + $0xd50] sm:$0xff] %vm388, 0.0
      %2258 = vst.msk [vmem:[#allocation6 + $0xd58] sm:$0xff] %vm388, 0.0
      %2259 = vst.msk [vmem:[#allocation6 + $0xd60] sm:$0x1f] %vm905, 0.0
      %2260 = vst.msk [vmem:[#allocation6 + $0xd68] sm:$0xff] %vm388, 0.0
      %2261 = vst.msk [vmem:[#allocation6 + $0xd70] sm:$0xff] %vm388, 0.0
      %2262 = vst.msk [vmem:[#allocation6 + $0xd78] sm:$0xff] %vm388, 0.0
      %2263 = vst.msk [vmem:[#allocation6 + $0xd80] sm:$0xff] %vm388, 0.0
      %2264 = vst.msk [vmem:[#allocation6 + $0xd88] sm:$0xff] %vm388, 0.0
      %2265 = vst.msk [vmem:[#allocation6 + $0xd90] sm:$0xff] %vm388, 0.0
      %2266 = vst.msk [vmem:[#allocation6 + $0xd98] sm:$0xff] %vm388, 0.0
      %2267 = vst.msk [vmem:[#allocation6 + $0xda0] sm:$0xff] %vm388, 0.0
      %2268 = vst.msk [vmem:[#allocation6 + $0xda8] sm:$0xff] %vm388, 0.0
      %2269 = vst.msk [vmem:[#allocation6 + $0xdb0] sm:$0xff] %vm388, 0.0
      %2270 = vst.msk [vmem:[#allocation6 + $0xdb8] sm:$0x1f] %vm905, 0.0
      %2271 = vst.msk [vmem:[#allocation6 + $0xdc0] sm:$0xff] %vm388, 0.0
      %2272 = vst.msk [vmem:[#allocation6 + $0xdc8] sm:$0xff] %vm388, 0.0
      %2273 = vst.msk [vmem:[#allocation6 + $0xdd0] sm:$0xff] %vm388, 0.0
      %2274 = vst.msk [vmem:[#allocation6 + $0xdd8] sm:$0xff] %vm388, 0.0
      %2275 = vst.msk [vmem:[#allocation6 + $0xde0] sm:$0xff] %vm388, 0.0
      %2276 = vst.msk [vmem:[#allocation6 + $0xde8] sm:$0xff] %vm388, 0.0
      %2277 = vst.msk [vmem:[#allocation6 + $0xdf0] sm:$0xff] %vm388, 0.0
      %2278 = vst.msk [vmem:[#allocation6 + $0xdf8] sm:$0xff] %vm388, 0.0
      %2279 = vst.msk [vmem:[#allocation6 + $0xe00] sm:$0xff] %vm388, 0.0
      %2280 = vst.msk [vmem:[#allocation6 + $0xe08] sm:$0xff] %vm388, 0.0
      %2281 = vst.msk [vmem:[#allocation6 + $0xe10] sm:$0x1f] %vm905, 0.0
      %2282 = vst.msk [vmem:[#allocation6 + $0xe18] sm:$0xff] %vm388, 0.0
      %2283 = vst.msk [vmem:[#allocation6 + $0xe20] sm:$0xff] %vm388, 0.0
      %2284 = vst.msk [vmem:[#allocation6 + $0xe28] sm:$0xff] %vm388, 0.0
      %2285 = vst.msk [vmem:[#allocation6 + $0xe30] sm:$0xff] %vm388, 0.0
      %2286 = vst.msk [vmem:[#allocation6 + $0xe38] sm:$0xff] %vm388, 0.0
      %2287 = vst.msk [vmem:[#allocation6 + $0xe40] sm:$0xff] %vm388, 0.0
      %2288 = vst.msk [vmem:[#allocation6 + $0xe48] sm:$0xff] %vm388, 0.0
      %2289 = vst.msk [vmem:[#allocation6 + $0xe50] sm:$0xff] %vm388, 0.0
      %2290 = vst.msk [vmem:[#allocation6 + $0xe58] sm:$0xff] %vm388, 0.0
      %2291 = vst.msk [vmem:[#allocation6 + $0xe60] sm:$0xff] %vm388, 0.0
      %2292 = vst.msk [vmem:[#allocation6 + $0xe68] sm:$0x1f] %vm905, 0.0
      %2293 = vst.msk [vmem:[#allocation6 + $0xe70] sm:$0xff] %vm388, 0.0
      %2294 = vst.msk [vmem:[#allocation6 + $0xe78] sm:$0xff] %vm388, 0.0
      %2295 = vst.msk [vmem:[#allocation6 + $0xe80] sm:$0xff] %vm388, 0.0
      %2296 = vst.msk [vmem:[#allocation6 + $0xe88] sm:$0xff] %vm388, 0.0
      %2297 = vst.msk [vmem:[#allocation6 + $0xe90] sm:$0xff] %vm388, 0.0
      %2298 = vst.msk [vmem:[#allocation6 + $0xe98] sm:$0xff] %vm388, 0.0
      %2299 = vst.msk [vmem:[#allocation6 + $0xea0] sm:$0xff] %vm388, 0.0
      %2300 = vst.msk [vmem:[#allocation6 + $0xea8] sm:$0xff] %vm388, 0.0
      %2301 = vst.msk [vmem:[#allocation6 + $0xeb0] sm:$0xff] %vm388, 0.0
      %2302 = vst.msk [vmem:[#allocation6 + $0xeb8] sm:$0xff] %vm388, 0.0
      %2303 = vst.msk [vmem:[#allocation6 + $0xec0] sm:$0x1f] %vm905, 0.0
      %2304 = vst.msk [vmem:[#allocation6 + $0xec8] sm:$0xff] %vm388, 0.0
      %2305 = vst.msk [vmem:[#allocation6 + $0xed0] sm:$0xff] %vm388, 0.0
      %2306 = vst.msk [vmem:[#allocation6 + $0xed8] sm:$0xff] %vm388, 0.0
      %2307 = vst.msk [vmem:[#allocation6 + $0xee0] sm:$0xff] %vm388, 0.0
      %2308 = vst.msk [vmem:[#allocation6 + $0xee8] sm:$0xff] %vm388, 0.0
      %2309 = vst.msk [vmem:[#allocation6 + $0xef0] sm:$0xff] %vm388, 0.0
      %2310 = vst.msk [vmem:[#allocation6 + $0xef8] sm:$0xff] %vm388, 0.0
      %2311 = vst.msk [vmem:[#allocation6 + $0xf00] sm:$0xff] %vm388, 0.0
      %2312 = vst.msk [vmem:[#allocation6 + $0xf08] sm:$0xff] %vm388, 0.0
      %2313 = vst.msk [vmem:[#allocation6 + $0xf10] sm:$0xff] %vm388, 0.0
      %2314 = vst.msk [vmem:[#allocation6 + $0xf18] sm:$0x1f] %vm905, 0.0
      %2315 = vst.msk [vmem:[#allocation6 + $0xf20] sm:$0xff] %vm388, 0.0
      %2316 = vst.msk [vmem:[#allocation6 + $0xf28] sm:$0xff] %vm388, 0.0
      %2317 = vst.msk [vmem:[#allocation6 + $0xf30] sm:$0xff] %vm388, 0.0
      %2318 = vst.msk [vmem:[#allocation6 + $0xf38] sm:$0xff] %vm388, 0.0
      %2319 = vst.msk [vmem:[#allocation6 + $0xf40] sm:$0xff] %vm388, 0.0
      %2320 = vst.msk [vmem:[#allocation6 + $0xf48] sm:$0xff] %vm388, 0.0
      %2321 = vst.msk [vmem:[#allocation6 + $0xf50] sm:$0xff] %vm388, 0.0
      %2322 = vst.msk [vmem:[#allocation6 + $0xf58] sm:$0xff] %vm388, 0.0
      %2323 = vst.msk [vmem:[#allocation6 + $0xf60] sm:$0xff] %vm388, 0.0
      %2324 = vst.msk [vmem:[#allocation6 + $0xf68] sm:$0xff] %vm388, 0.0
      %2325 = vst.msk [vmem:[#allocation6 + $0xf70] sm:$0x1f] %vm905, 0.0
      %2326 = vst.msk [vmem:[#allocation6 + $0xf78] sm:$0xff] %vm388, 0.0
      %2327 = vst.msk [vmem:[#allocation6 + $0xf80] sm:$0xff] %vm388, 0.0
      %2328 = vst.msk [vmem:[#allocation6 + $0xf88] sm:$0xff] %vm388, 0.0
      %2329 = vst.msk [vmem:[#allocation6 + $0xf90] sm:$0xff] %vm388, 0.0
      %2330 = vst.msk [vmem:[#allocation6 + $0xf98] sm:$0xff] %vm388, 0.0
      %2331 = vst.msk [vmem:[#allocation6 + $0xfa0] sm:$0xff] %vm388, 0.0
      %2332 = vst.msk [vmem:[#allocation6 + $0xfa8] sm:$0xff] %vm388, 0.0
      %2333 = vst.msk [vmem:[#allocation6 + $0xfb0] sm:$0xff] %vm388, 0.0
      %2334 = vst.msk [vmem:[#allocation6 + $0xfb8] sm:$0xff] %vm388, 0.0
      %2335 = vst.msk [vmem:[#allocation6 + $0xfc0] sm:$0xff] %vm388, 0.0
      %2336 = vst.msk [vmem:[#allocation6 + $0xfc8] sm:$0x1f] %vm905, 0.0
      %2337 = vst.msk [vmem:[#allocation6 + $0xfd0] sm:$0xff] %vm388, 0.0
      %2338 = vst.msk [vmem:[#allocation6 + $0xfd8] sm:$0xff] %vm388, 0.0
      %2339 = vst.msk [vmem:[#allocation6 + $0xfe0] sm:$0xff] %vm388, 0.0
      %2340 = vst.msk [vmem:[#allocation6 + $0xfe8] sm:$0xff] %vm388, 0.0
      %2341 = vst.msk [vmem:[#allocation6 + $0xff0] sm:$0xff] %vm388, 0.0
      %2342 = vst.msk [vmem:[#allocation6 + $0xff8] sm:$0xff] %vm388, 0.0
      %2343 = vst.msk [vmem:[#allocation6 + $0x1000] sm:$0xff] %vm388, 0.0
      %2344 = vst.msk [vmem:[#allocation6 + $0x1008] sm:$0xff] %vm388, 0.0
      %2345 = vst.msk [vmem:[#allocation6 + $0x1010] sm:$0xff] %vm388, 0.0
      %2346 = vst.msk [vmem:[#allocation6 + $0x1018] sm:$0xff] %vm388, 0.0
      %2347 = vst.msk [vmem:[#allocation6 + $0x1020] sm:$0x1f] %vm905, 0.0
      %2348 = vst.msk [vmem:[#allocation6 + $0x1028] sm:$0xff] %vm388, 0.0
      %2349 = vst.msk [vmem:[#allocation6 + $0x1030] sm:$0xff] %vm388, 0.0
      %2350 = vst.msk [vmem:[#allocation6 + $0x1038] sm:$0xff] %vm388, 0.0
      %2351 = vst.msk [vmem:[#allocation6 + $0x1040] sm:$0xff] %vm388, 0.0
      %2352 = vst.msk [vmem:[#allocation6 + $0x1048] sm:$0xff] %vm388, 0.0
      %2353 = vst.msk [vmem:[#allocation6 + $0x1050] sm:$0xff] %vm388, 0.0
      %2354 = vst.msk [vmem:[#allocation6 + $0x1058] sm:$0xff] %vm388, 0.0
      %2355 = vst.msk [vmem:[#allocation6 + $0x1060] sm:$0xff] %vm388, 0.0
      %2356 = vst.msk [vmem:[#allocation6 + $0x1068] sm:$0xff] %vm388, 0.0
      %2357 = vst.msk [vmem:[#allocation6 + $0x1070] sm:$0xff] %vm388, 0.0
      %2358 = vst.msk [vmem:[#allocation6 + $0x1078] sm:$0x1f] %vm905, 0.0
      %2359 = vst.msk [vmem:[#allocation6 + $0x1080] sm:$0xff] %vm388, 0.0
      %2360 = vst.msk [vmem:[#allocation6 + $0x1088] sm:$0xff] %vm388, 0.0
      %2361 = vst.msk [vmem:[#allocation6 + $0x1090] sm:$0xff] %vm388, 0.0
      %2362 = vst.msk [vmem:[#allocation6 + $0x1098] sm:$0xff] %vm388, 0.0
      %2363 = vst.msk [vmem:[#allocation6 + $0x10a0] sm:$0xff] %vm388, 0.0
      %2364 = vst.msk [vmem:[#allocation6 + $0x10a8] sm:$0xff] %vm388, 0.0
      %2365 = vst.msk [vmem:[#allocation6 + $0x10b0] sm:$0xff] %vm388, 0.0
      %2366 = vst.msk [vmem:[#allocation6 + $0x10b8] sm:$0xff] %vm388, 0.0
      %2367 = vst.msk [vmem:[#allocation6 + $0x10c0] sm:$0xff] %vm388, 0.0
      %2368 = vst.msk [vmem:[#allocation6 + $0x10c8] sm:$0xff] %vm388, 0.0
      %2369 = vst.msk [vmem:[#allocation6 + $0x10d0] sm:$0x1f] %vm905, 0.0
      %2370 = vst.msk [vmem:[#allocation6 + $0x10d8] sm:$0xff] %vm388, 0.0
      %2371 = vst.msk [vmem:[#allocation6 + $0x10e0] sm:$0xff] %vm388, 0.0
      %2372 = vst.msk [vmem:[#allocation6 + $0x10e8] sm:$0xff] %vm388, 0.0
      %2373 = vst.msk [vmem:[#allocation6 + $0x10f0] sm:$0xff] %vm388, 0.0
      %2374 = vst.msk [vmem:[#allocation6 + $0x10f8] sm:$0xff] %vm388, 0.0
      %2375 = vst.msk [vmem:[#allocation6 + $0x1100] sm:$0xff] %vm388, 0.0
      %2376 = vst.msk [vmem:[#allocation6 + $0x1108] sm:$0xff] %vm388, 0.0
      %2377 = vst.msk [vmem:[#allocation6 + $0x1110] sm:$0xff] %vm388, 0.0
      %2378 = vst.msk [vmem:[#allocation6 + $0x1118] sm:$0xff] %vm388, 0.0
      %2379 = vst.msk [vmem:[#allocation6 + $0x1120] sm:$0xff] %vm388, 0.0
      %2380 = vst.msk [vmem:[#allocation6 + $0x1128] sm:$0x1f] %vm905, 0.0
      %2381 = vst.msk [vmem:[#allocation6 + $0x1130] sm:$0xff] %vm388, 0.0
      %2382 = vst.msk [vmem:[#allocation6 + $0x1138] sm:$0xff] %vm388, 0.0
      %2383 = vst.msk [vmem:[#allocation6 + $0x1140] sm:$0xff] %vm388, 0.0
      %2384 = vst.msk [vmem:[#allocation6 + $0x1148] sm:$0xff] %vm388, 0.0
      %2385 = vst.msk [vmem:[#allocation6 + $0x1150] sm:$0xff] %vm388, 0.0
      %2386 = vst.msk [vmem:[#allocation6 + $0x1158] sm:$0xff] %vm388, 0.0
      %2387 = vst.msk [vmem:[#allocation6 + $0x1160] sm:$0xff] %vm388, 0.0
      %2388 = vst.msk [vmem:[#allocation6 + $0x1168] sm:$0xff] %vm388, 0.0
      %2389 = vst.msk [vmem:[#allocation6 + $0x1170] sm:$0xff] %vm388, 0.0
      %2390 = vst.msk [vmem:[#allocation6 + $0x1178] sm:$0xff] %vm388, 0.0
      %2391 = vst.msk [vmem:[#allocation6 + $0x1180] sm:$0x1f] %vm905, 0.0
      %2392 = vst.msk [vmem:[#allocation6 + $0x1188] sm:$0xff] %vm388, 0.0
      %2393 = vst.msk [vmem:[#allocation6 + $0x1190] sm:$0xff] %vm388, 0.0
      %2394 = vst.msk [vmem:[#allocation6 + $0x1198] sm:$0xff] %vm388, 0.0
      %2395 = vst.msk [vmem:[#allocation6 + $0x11a0] sm:$0xff] %vm388, 0.0
      %2396 = vst.msk [vmem:[#allocation6 + $0x11a8] sm:$0xff] %vm388, 0.0
      %2397 = vst.msk [vmem:[#allocation6 + $0x11b0] sm:$0xff] %vm388, 0.0
      %2398 = vst.msk [vmem:[#allocation6 + $0x11b8] sm:$0xff] %vm388, 0.0
      %2399 = vst.msk [vmem:[#allocation6 + $0x11c0] sm:$0xff] %vm388, 0.0
      %2400 = vst.msk [vmem:[#allocation6 + $0x11c8] sm:$0xff] %vm388, 0.0
      %2401 = vst.msk [vmem:[#allocation6 + $0x11d0] sm:$0xff] %vm388, 0.0
      %2402 = vst.msk [vmem:[#allocation6 + $0x11d8] sm:$0x1f] %vm905, 0.0
      %2403 = vst.msk [vmem:[#allocation6 + $0x11e0] sm:$0xff] %vm388, 0.0
      %2404 = vst.msk [vmem:[#allocation6 + $0x11e8] sm:$0xff] %vm388, 0.0
      %2405 = vst.msk [vmem:[#allocation6 + $0x11f0] sm:$0xff] %vm388, 0.0
      %2406 = vst.msk [vmem:[#allocation6 + $0x11f8] sm:$0xff] %vm388, 0.0
      %2407 = vst.msk [vmem:[#allocation6 + $0x1200] sm:$0xff] %vm388, 0.0
      %2408 = vst.msk [vmem:[#allocation6 + $0x1208] sm:$0xff] %vm388, 0.0
      %2409 = vst.msk [vmem:[#allocation6 + $0x1210] sm:$0xff] %vm388, 0.0
      %2410 = vst.msk [vmem:[#allocation6 + $0x1218] sm:$0xff] %vm388, 0.0
      %2411 = vst.msk [vmem:[#allocation6 + $0x1220] sm:$0xff] %vm388, 0.0
      %2412 = vst.msk [vmem:[#allocation6 + $0x1228] sm:$0xff] %vm388, 0.0
      %2413 = vst.msk [vmem:[#allocation6 + $0x1230] sm:$0x1f] %vm905, 0.0
      %2414 = vst.msk [vmem:[#allocation6 + $0x1238] sm:$0xff] %vm388, 0.0
      %2415 = vst.msk [vmem:[#allocation6 + $0x1240] sm:$0xff] %vm388, 0.0
      %2416 = vst.msk [vmem:[#allocation6 + $0x1248] sm:$0xff] %vm388, 0.0
      %2417 = vst.msk [vmem:[#allocation6 + $0x1250] sm:$0xff] %vm388, 0.0
      %2418 = vst.msk [vmem:[#allocation6 + $0x1258] sm:$0xff] %vm388, 0.0
      %2419 = vst.msk [vmem:[#allocation6 + $0x1260] sm:$0xff] %vm388, 0.0
      %2420 = vst.msk [vmem:[#allocation6 + $0x1268] sm:$0xff] %vm388, 0.0
      %2421 = vst.msk [vmem:[#allocation6 + $0x1270] sm:$0xff] %vm388, 0.0
      %2422 = vst.msk [vmem:[#allocation6 + $0x1278] sm:$0xff] %vm388, 0.0
      %2423 = vst.msk [vmem:[#allocation6 + $0x1280] sm:$0xff] %vm388, 0.0
      %2424 = vst.msk [vmem:[#allocation6 + $0x1288] sm:$0x1f] %vm905, 0.0
      %2425 = vst.msk [vmem:[#allocation6 + $0x1290] sm:$0xff] %vm388, 0.0
      %2426 = vst.msk [vmem:[#allocation6 + $0x1298] sm:$0xff] %vm388, 0.0
      %2427 = vst.msk [vmem:[#allocation6 + $0x12a0] sm:$0xff] %vm388, 0.0
      %2428 = vst.msk [vmem:[#allocation6 + $0x12a8] sm:$0xff] %vm388, 0.0
      %2429 = vst.msk [vmem:[#allocation6 + $0x12b0] sm:$0xff] %vm388, 0.0
      %2430 = vst.msk [vmem:[#allocation6 + $0x12b8] sm:$0xff] %vm388, 0.0
      %2431 = vst.msk [vmem:[#allocation6 + $0x12c0] sm:$0xff] %vm388, 0.0
      %2432 = vst.msk [vmem:[#allocation6 + $0x12c8] sm:$0xff] %vm388, 0.0
      %2433 = vst.msk [vmem:[#allocation6 + $0x12d0] sm:$0xff] %vm388, 0.0
      %2434 = vst.msk [vmem:[#allocation6 + $0x12d8] sm:$0xff] %vm388, 0.0
      %2435 = vst.msk [vmem:[#allocation6 + $0x12e0] sm:$0x1f] %vm905, 0.0
      %2436 = vst.msk [vmem:[#allocation6 + $0x12e8] sm:$0xff] %vm388, 0.0
      %2437 = vst.msk [vmem:[#allocation6 + $0x12f0] sm:$0xff] %vm388, 0.0
      %2438 = vst.msk [vmem:[#allocation6 + $0x12f8] sm:$0xff] %vm388, 0.0
      %2439 = vst.msk [vmem:[#allocation6 + $0x1300] sm:$0xff] %vm388, 0.0
      %2440 = vst.msk [vmem:[#allocation6 + $0x1308] sm:$0xff] %vm388, 0.0
      %2441 = vst.msk [vmem:[#allocation6 + $0x1310] sm:$0xff] %vm388, 0.0
      %2442 = vst.msk [vmem:[#allocation6 + $0x1318] sm:$0xff] %vm388, 0.0
      %2443 = vst.msk [vmem:[#allocation6 + $0x1320] sm:$0xff] %vm388, 0.0
      %2444 = vst.msk [vmem:[#allocation6 + $0x1328] sm:$0xff] %vm388, 0.0
      %2445 = vst.msk [vmem:[#allocation6 + $0x1330] sm:$0xff] %vm388, 0.0
      %2446 = vst.msk [vmem:[#allocation6 + $0x1338] sm:$0x1f] %vm905, 0.0
      %2447 = vst.msk [vmem:[#allocation6 + $0x1340] sm:$0xff] %vm388, 0.0
      %2448 = vst.msk [vmem:[#allocation6 + $0x1348] sm:$0xff] %vm388, 0.0
      %2449 = vst.msk [vmem:[#allocation6 + $0x1350] sm:$0xff] %vm388, 0.0
      %2450 = vst.msk [vmem:[#allocation6 + $0x1358] sm:$0xff] %vm388, 0.0
      %2451 = vst.msk [vmem:[#allocation6 + $0x1360] sm:$0xff] %vm388, 0.0
      %2452 = vst.msk [vmem:[#allocation6 + $0x1368] sm:$0xff] %vm388, 0.0
      %2453 = vst.msk [vmem:[#allocation6 + $0x1370] sm:$0xff] %vm388, 0.0
      %2454 = vst.msk [vmem:[#allocation6 + $0x1378] sm:$0xff] %vm388, 0.0
      %2455 = vst.msk [vmem:[#allocation6 + $0x1380] sm:$0xff] %vm388, 0.0
      %2456 = vst.msk [vmem:[#allocation6 + $0x1388] sm:$0xff] %vm388, 0.0
      %2457 = vst.msk [vmem:[#allocation6 + $0x1390] sm:$0x1f] %vm905, 0.0
      %2458 = vst.msk [vmem:[#allocation6 + $0x1398] sm:$0xff] %vm388, 0.0
      %2459 = vst.msk [vmem:[#allocation6 + $0x13a0] sm:$0xff] %vm388, 0.0
      %2460 = vst.msk [vmem:[#allocation6 + $0x13a8] sm:$0xff] %vm388, 0.0
      %2461 = vst.msk [vmem:[#allocation6 + $0x13b0] sm:$0xff] %vm388, 0.0
      %2462 = vst.msk [vmem:[#allocation6 + $0x13b8] sm:$0xff] %vm388, 0.0
      %2463 = vst.msk [vmem:[#allocation6 + $0x13c0] sm:$0xff] %vm388, 0.0
      %2464 = vst.msk [vmem:[#allocation6 + $0x13c8] sm:$0xff] %vm388, 0.0
      %2465 = vst.msk [vmem:[#allocation6 + $0x13d0] sm:$0xff] %vm388, 0.0
      %2466 = vst.msk [vmem:[#allocation6 + $0x13d8] sm:$0xff] %vm388, 0.0
      %2467 = vst.msk [vmem:[#allocation6 + $0x13e0] sm:$0xff] %vm388, 0.0
      %2468 = vst.msk [vmem:[#allocation6 + $0x13e8] sm:$0x1f] %vm905, 0.0
      %2469 = vst.msk [vmem:[#allocation6 + $0x13f0] sm:$0xff] %vm388, 0.0
      %2470 = vst.msk [vmem:[#allocation6 + $0x13f8] sm:$0xff] %vm388, 0.0
      %2471 = vst.msk [vmem:[#allocation6 + $0x1400] sm:$0xff] %vm388, 0.0
      %2472 = vst.msk [vmem:[#allocation6 + $0x1408] sm:$0xff] %vm388, 0.0
      %2473 = vst.msk [vmem:[#allocation6 + $0x1410] sm:$0xff] %vm388, 0.0
      %2474 = vst.msk [vmem:[#allocation6 + $0x1418] sm:$0xff] %vm388, 0.0
      %2475 = vst.msk [vmem:[#allocation6 + $0x1420] sm:$0xff] %vm388, 0.0
      %2476 = vst.msk [vmem:[#allocation6 + $0x1428] sm:$0xff] %vm388, 0.0
      %2477 = vst.msk [vmem:[#allocation6 + $0x1430] sm:$0xff] %vm388, 0.0
      %2478 = vst.msk [vmem:[#allocation6 + $0x1438] sm:$0xff] %vm388, 0.0
      %2479 = vst.msk [vmem:[#allocation6 + $0x1440] sm:$0x1f] %vm905, 0.0
      %2480 = vst.msk [vmem:[#allocation6 + $0x1448] sm:$0xff] %vm388, 0.0
      %2481 = vst.msk [vmem:[#allocation6 + $0x1450] sm:$0xff] %vm388, 0.0
      %2482 = vst.msk [vmem:[#allocation6 + $0x1458] sm:$0xff] %vm388, 0.0
      %2483 = vst.msk [vmem:[#allocation6 + $0x1460] sm:$0xff] %vm388, 0.0
      %2484 = vst.msk [vmem:[#allocation6 + $0x1468] sm:$0xff] %vm388, 0.0
      %2485 = vst.msk [vmem:[#allocation6 + $0x1470] sm:$0xff] %vm388, 0.0
      %2486 = vst.msk [vmem:[#allocation6 + $0x1478] sm:$0xff] %vm388, 0.0
      %2487 = vst.msk [vmem:[#allocation6 + $0x1480] sm:$0xff] %vm388, 0.0
      %2488 = vst.msk [vmem:[#allocation6 + $0x1488] sm:$0xff] %vm388, 0.0
      %2489 = vst.msk [vmem:[#allocation6 + $0x1490] sm:$0xff] %vm388, 0.0
      %2490 = vst.msk [vmem:[#allocation6 + $0x1498] sm:$0x1f] %vm905, 0.0
      %2491 = vst.msk [vmem:[#allocation6 + $0x14a0] sm:$0xff] %vm388, 0.0
      %2492 = vst.msk [vmem:[#allocation6 + $0x14a8] sm:$0xff] %vm388, 0.0
      %2493 = vst.msk [vmem:[#allocation6 + $0x14b0] sm:$0xff] %vm388, 0.0
      %2494 = vst.msk [vmem:[#allocation6 + $0x14b8] sm:$0xff] %vm388, 0.0
      %2495 = vst.msk [vmem:[#allocation6 + $0x14c0] sm:$0xff] %vm388, 0.0
      %2496 = vst.msk [vmem:[#allocation6 + $0x14c8] sm:$0xff] %vm388, 0.0
      %2497 = vst.msk [vmem:[#allocation6 + $0x14d0] sm:$0xff] %vm388, 0.0
      %2498 = vst.msk [vmem:[#allocation6 + $0x14d8] sm:$0xff] %vm388, 0.0
      %2499 = vst.msk [vmem:[#allocation6 + $0x14e0] sm:$0xff] %vm388, 0.0
      %2500 = vst.msk [vmem:[#allocation6 + $0x14e8] sm:$0xff] %vm388, 0.0
      %2501 = vst.msk [vmem:[#allocation6 + $0x14f0] sm:$0x1f] %vm905, 0.0
      %2502 = vst.msk [vmem:[#allocation6 + $0x14f8] sm:$0xff] %vm388, 0.0
      %2503 = vst.msk [vmem:[#allocation6 + $0x1500] sm:$0xff] %vm388, 0.0
      %2504 = vst.msk [vmem:[#allocation6 + $0x1508] sm:$0xff] %vm388, 0.0
      %2505 = vst.msk [vmem:[#allocation6 + $0x1510] sm:$0xff] %vm388, 0.0
      %2506 = vst.msk [vmem:[#allocation6 + $0x1518] sm:$0xff] %vm388, 0.0
      %2507 = vst.msk [vmem:[#allocation6 + $0x1520] sm:$0xff] %vm388, 0.0
      %2508 = vst.msk [vmem:[#allocation6 + $0x1528] sm:$0xff] %vm388, 0.0
      %2509 = vst.msk [vmem:[#allocation6 + $0x1530] sm:$0xff] %vm388, 0.0
      %2510 = vst.msk [vmem:[#allocation6 + $0x1538] sm:$0xff] %vm388, 0.0
      %2511 = vst.msk [vmem:[#allocation6 + $0x1540] sm:$0xff] %vm388, 0.0
      %2512 = vst.msk [vmem:[#allocation6 + $0x1548] sm:$0x1f] %vm905, 0.0
      %2513 = vst.msk [vmem:[#allocation6 + $0x1550] sm:$0xff] %vm388, 0.0
      %2514 = vst.msk [vmem:[#allocation6 + $0x1558] sm:$0xff] %vm388, 0.0
      %2515 = vst.msk [vmem:[#allocation6 + $0x1560] sm:$0xff] %vm388, 0.0
      %2516 = vst.msk [vmem:[#allocation6 + $0x1568] sm:$0xff] %vm388, 0.0
      %2517 = vst.msk [vmem:[#allocation6 + $0x1570] sm:$0xff] %vm388, 0.0
      %2518 = vst.msk [vmem:[#allocation6 + $0x1578] sm:$0xff] %vm388, 0.0
      %2519 = vst.msk [vmem:[#allocation6 + $0x1580] sm:$0xff] %vm388, 0.0
      %2520 = vst.msk [vmem:[#allocation6 + $0x1588] sm:$0xff] %vm388, 0.0
      %2521 = vst.msk [vmem:[#allocation6 + $0x1590] sm:$0xff] %vm388, 0.0
      %2522 = vst.msk [vmem:[#allocation6 + $0x1598] sm:$0xff] %vm388, 0.0
      %2523 = vst.msk [vmem:[#allocation6 + $0x15a0] sm:$0x1f] %vm905, 0.0
      %2524 = vst.msk [vmem:[#allocation6 + $0x15a8] sm:$0xff] %vm388, 0.0
      %2525 = vst.msk [vmem:[#allocation6 + $0x15b0] sm:$0xff] %vm388, 0.0
      %2526 = vst.msk [vmem:[#allocation6 + $0x15b8] sm:$0xff] %vm388, 0.0
      %2527 = vst.msk [vmem:[#allocation6 + $0x15c0] sm:$0xff] %vm388, 0.0
      %2528 = vst.msk [vmem:[#allocation6 + $0x15c8] sm:$0xff] %vm388, 0.0
      %2529 = vst.msk [vmem:[#allocation6 + $0x15d0] sm:$0xff] %vm388, 0.0
      %2530 = vst.msk [vmem:[#allocation6 + $0x15d8] sm:$0xff] %vm388, 0.0
      %2531 = vst.msk [vmem:[#allocation6 + $0x15e0] sm:$0xff] %vm388, 0.0
      %2532 = vst.msk [vmem:[#allocation6 + $0x15e8] sm:$0xff] %vm388, 0.0
      %2533 = vst.msk [vmem:[#allocation6 + $0x15f0] sm:$0xff] %vm388, 0.0
      %2534 = vst.msk [vmem:[#allocation6 + $0x15f8] sm:$0x1f] %vm905, 0.0
      %2535 = vst.msk [vmem:[#allocation6 + $0x1600] sm:$0xff] %vm388, 0.0
      %2536 = vst.msk [vmem:[#allocation6 + $0x1608] sm:$0xff] %vm388, 0.0
      %2537 = vst.msk [vmem:[#allocation6 + $0x1610] sm:$0xff] %vm388, 0.0
      %2538 = vst.msk [vmem:[#allocation6 + $0x1618] sm:$0xff] %vm388, 0.0
      %2539 = vst.msk [vmem:[#allocation6 + $0x1620] sm:$0xff] %vm388, 0.0
      %2540 = vst.msk [vmem:[#allocation6 + $0x1628] sm:$0xff] %vm388, 0.0
      %2541 = vst.msk [vmem:[#allocation6 + $0x1630] sm:$0xff] %vm388, 0.0
      %2542 = vst.msk [vmem:[#allocation6 + $0x1638] sm:$0xff] %vm388, 0.0
      %2543 = vst.msk [vmem:[#allocation6 + $0x1640] sm:$0xff] %vm388, 0.0
      %2544 = vst.msk [vmem:[#allocation6 + $0x1648] sm:$0xff] %vm388, 0.0
      %2545 = vst.msk [vmem:[#allocation6 + $0x1650] sm:$0x1f] %vm905, 0.0
      %2546 = vst.msk [vmem:[#allocation6 + $0x1658] sm:$0xff] %vm388, 0.0
      %2547 = vst.msk [vmem:[#allocation6 + $0x1660] sm:$0xff] %vm388, 0.0
      %2548 = vst.msk [vmem:[#allocation6 + $0x1668] sm:$0xff] %vm388, 0.0
      %2549 = vst.msk [vmem:[#allocation6 + $0x1670] sm:$0xff] %vm388, 0.0
      %2550 = vst.msk [vmem:[#allocation6 + $0x1678] sm:$0xff] %vm388, 0.0
      %2551 = vst.msk [vmem:[#allocation6 + $0x1680] sm:$0xff] %vm388, 0.0
      %2552 = vst.msk [vmem:[#allocation6 + $0x1688] sm:$0xff] %vm388, 0.0
      %2553 = vst.msk [vmem:[#allocation6 + $0x1690] sm:$0xff] %vm388, 0.0
      %2554 = vst.msk [vmem:[#allocation6 + $0x1698] sm:$0xff] %vm388, 0.0
      %2555 = vst.msk [vmem:[#allocation6 + $0x16a0] sm:$0xff] %vm388, 0.0
      %2556 = vst.msk [vmem:[#allocation6 + $0x16a8] sm:$0x1f] %vm905, 0.0
      %2557 = vst.msk [vmem:[#allocation6 + $0x16b0] sm:$0xff] %vm388, 0.0
      %2558 = vst.msk [vmem:[#allocation6 + $0x16b8] sm:$0xff] %vm388, 0.0
      %2559 = vst.msk [vmem:[#allocation6 + $0x16c0] sm:$0xff] %vm388, 0.0
      %2560 = vst.msk [vmem:[#allocation6 + $0x16c8] sm:$0xff] %vm388, 0.0
      %2561 = vst.msk [vmem:[#allocation6 + $0x16d0] sm:$0xff] %vm388, 0.0
      %2562 = vst.msk [vmem:[#allocation6 + $0x16d8] sm:$0xff] %vm388, 0.0
      %2563 = vst.msk [vmem:[#allocation6 + $0x16e0] sm:$0xff] %vm388, 0.0
      %2564 = vst.msk [vmem:[#allocation6 + $0x16e8] sm:$0xff] %vm388, 0.0
      %2565 = vst.msk [vmem:[#allocation6 + $0x16f0] sm:$0xff] %vm388, 0.0
      %2566 = vst.msk [vmem:[#allocation6 + $0x16f8] sm:$0xff] %vm388, 0.0
      %2567 = vst.msk [vmem:[#allocation6 + $0x1700] sm:$0x1f] %vm905, 0.0
      %2568 = vst.msk [vmem:[#allocation6 + $0x1708] sm:$0xff] %vm388, 0.0
      %2569 = vst.msk [vmem:[#allocation6 + $0x1710] sm:$0xff] %vm388, 0.0
      %2570 = vst.msk [vmem:[#allocation6 + $0x1718] sm:$0xff] %vm388, 0.0
      %2571 = vst.msk [vmem:[#allocation6 + $0x1720] sm:$0xff] %vm388, 0.0
      %2572 = vst.msk [vmem:[#allocation6 + $0x1728] sm:$0xff] %vm388, 0.0
      %2573 = vst.msk [vmem:[#allocation6 + $0x1730] sm:$0xff] %vm388, 0.0
      %2574 = vst.msk [vmem:[#allocation6 + $0x1738] sm:$0xff] %vm388, 0.0
      %2575 = vst.msk [vmem:[#allocation6 + $0x1740] sm:$0xff] %vm388, 0.0
      %2576 = vst.msk [vmem:[#allocation6 + $0x1748] sm:$0xff] %vm388, 0.0
      %2577 = vst.msk [vmem:[#allocation6 + $0x1750] sm:$0xff] %vm388, 0.0
      %2578 = vst.msk [vmem:[#allocation6 + $0x1758] sm:$0x1f] %vm905, 0.0
      %2579 = vst.msk [vmem:[#allocation6 + $0x1760] sm:$0xff] %vm388, 0.0
      %2580 = vst.msk [vmem:[#allocation6 + $0x1768] sm:$0xff] %vm388, 0.0
      %2581 = vst.msk [vmem:[#allocation6 + $0x1770] sm:$0xff] %vm388, 0.0
      %2582 = vst.msk [vmem:[#allocation6 + $0x1778] sm:$0xff] %vm388, 0.0
      %2583 = vst.msk [vmem:[#allocation6 + $0x1780] sm:$0xff] %vm388, 0.0
      %2584 = vst.msk [vmem:[#allocation6 + $0x1788] sm:$0xff] %vm388, 0.0
      %2585 = vst.msk [vmem:[#allocation6 + $0x1790] sm:$0xff] %vm388, 0.0
      %2586 = vst.msk [vmem:[#allocation6 + $0x1798] sm:$0xff] %vm388, 0.0
      %2587 = vst.msk [vmem:[#allocation6 + $0x17a0] sm:$0xff] %vm388, 0.0
      %2588 = vst.msk [vmem:[#allocation6 + $0x17a8] sm:$0xff] %vm388, 0.0
      %2589 = vst.msk [vmem:[#allocation6 + $0x17b0] sm:$0x1f] %vm905, 0.0
      %2590 = vst.msk [vmem:[#allocation6 + $0x17b8] sm:$0xff] %vm388, 0.0
      %2591 = vst.msk [vmem:[#allocation6 + $0x17c0] sm:$0xff] %vm388, 0.0
      %2592 = vst.msk [vmem:[#allocation6 + $0x17c8] sm:$0xff] %vm388, 0.0
      %2593 = vst.msk [vmem:[#allocation6 + $0x17d0] sm:$0xff] %vm388, 0.0
      %2594 = vst.msk [vmem:[#allocation6 + $0x17d8] sm:$0xff] %vm388, 0.0
      %2595 = vst.msk [vmem:[#allocation6 + $0x17e0] sm:$0xff] %vm388, 0.0
      %2596 = vst.msk [vmem:[#allocation6 + $0x17e8] sm:$0xff] %vm388, 0.0
      %2597 = vst.msk [vmem:[#allocation6 + $0x17f0] sm:$0xff] %vm388, 0.0
      %2598 = vst.msk [vmem:[#allocation6 + $0x17f8] sm:$0xff] %vm388, 0.0
      %2599 = vst.msk [vmem:[#allocation6 + $0x1800] sm:$0xff] %vm388, 0.0
      %2600 = vst.msk [vmem:[#allocation6 + $0x1808] sm:$0x1f] %vm905, 0.0
      %2601 = vst.msk [vmem:[#allocation6 + $0x1810] sm:$0xff] %vm388, 0.0
      %2602 = vst.msk [vmem:[#allocation6 + $0x1818] sm:$0xff] %vm388, 0.0
      %2603 = vst.msk [vmem:[#allocation6 + $0x1820] sm:$0xff] %vm388, 0.0
      %2604 = vst.msk [vmem:[#allocation6 + $0x1828] sm:$0xff] %vm388, 0.0
      %2605 = vst.msk [vmem:[#allocation6 + $0x1830] sm:$0xff] %vm388, 0.0
      %2606 = vst.msk [vmem:[#allocation6 + $0x1838] sm:$0xff] %vm388, 0.0
      %2607 = vst.msk [vmem:[#allocation6 + $0x1840] sm:$0xff] %vm388, 0.0
      %2608 = vst.msk [vmem:[#allocation6 + $0x1848] sm:$0xff] %vm388, 0.0
      %2609 = vst.msk [vmem:[#allocation6 + $0x1850] sm:$0xff] %vm388, 0.0
      %2610 = vst.msk [vmem:[#allocation6 + $0x1858] sm:$0xff] %vm388, 0.0
      %2611 = vst.msk [vmem:[#allocation6 + $0x1860] sm:$0x1f] %vm905, 0.0
      %2612 = vst.msk [vmem:[#allocation6 + $0x1868] sm:$0xff] %vm388, 0.0
      %2613 = vst.msk [vmem:[#allocation6 + $0x1870] sm:$0xff] %vm388, 0.0
      %2614 = vst.msk [vmem:[#allocation6 + $0x1878] sm:$0xff] %vm388, 0.0
      %2615 = vst.msk [vmem:[#allocation6 + $0x1880] sm:$0xff] %vm388, 0.0
      %2616 = vst.msk [vmem:[#allocation6 + $0x1888] sm:$0xff] %vm388, 0.0
      %2617 = vst.msk [vmem:[#allocation6 + $0x1890] sm:$0xff] %vm388, 0.0
      %2618 = vst.msk [vmem:[#allocation6 + $0x1898] sm:$0xff] %vm388, 0.0
      %2619 = vst.msk [vmem:[#allocation6 + $0x18a0] sm:$0xff] %vm388, 0.0
      %2620 = vst.msk [vmem:[#allocation6 + $0x18a8] sm:$0xff] %vm388, 0.0
      %2621 = vst.msk [vmem:[#allocation6 + $0x18b0] sm:$0xff] %vm388, 0.0
      %2622 = vst.msk [vmem:[#allocation6 + $0x18b8] sm:$0x1f] %vm905, 0.0
      %2623 = vst.msk [vmem:[#allocation6 + $0x18c0] sm:$0xff] %vm388, 0.0
      %2624 = vst.msk [vmem:[#allocation6 + $0x18c8] sm:$0xff] %vm388, 0.0
      %2625 = vst.msk [vmem:[#allocation6 + $0x18d0] sm:$0xff] %vm388, 0.0
      %2626 = vst.msk [vmem:[#allocation6 + $0x18d8] sm:$0xff] %vm388, 0.0
      %2627 = vst.msk [vmem:[#allocation6 + $0x18e0] sm:$0xff] %vm388, 0.0
      %2628 = vst.msk [vmem:[#allocation6 + $0x18e8] sm:$0xff] %vm388, 0.0
      %2629 = vst.msk [vmem:[#allocation6 + $0x18f0] sm:$0xff] %vm388, 0.0
      %2630 = vst.msk [vmem:[#allocation6 + $0x18f8] sm:$0xff] %vm388, 0.0
      %2631 = vst.msk [vmem:[#allocation6 + $0x1900] sm:$0xff] %vm388, 0.0
      %2632 = vst.msk [vmem:[#allocation6 + $0x1908] sm:$0xff] %vm388, 0.0
      %2633 = vst.msk [vmem:[#allocation6 + $0x1910] sm:$0x1f] %vm905, 0.0
      %2634 = vst.msk [vmem:[#allocation6 + $0x1918] sm:$0xff] %vm388, 0.0
      %2635 = vst.msk [vmem:[#allocation6 + $0x1920] sm:$0xff] %vm388, 0.0
      %2636 = vst.msk [vmem:[#allocation6 + $0x1928] sm:$0xff] %vm388, 0.0
      %2637 = vst.msk [vmem:[#allocation6 + $0x1930] sm:$0xff] %vm388, 0.0
      %2638 = vst.msk [vmem:[#allocation6 + $0x1938] sm:$0xff] %vm388, 0.0
      %2639 = vst.msk [vmem:[#allocation6 + $0x1940] sm:$0xff] %vm388, 0.0
      %2640 = vst.msk [vmem:[#allocation6 + $0x1948] sm:$0xff] %vm388, 0.0
      %2641 = vst.msk [vmem:[#allocation6 + $0x1950] sm:$0xff] %vm388, 0.0
      %2642 = vst.msk [vmem:[#allocation6 + $0x1958] sm:$0xff] %vm388, 0.0
      %2643 = vst.msk [vmem:[#allocation6 + $0x1960] sm:$0xff] %vm388, 0.0
      %2644 = vst.msk [vmem:[#allocation6 + $0x1968] sm:$0x1f] %vm905, 0.0
      %2645 = vst.msk [vmem:[#allocation6 + $0x1970] sm:$0xff] %vm388, 0.0
      %2646 = vst.msk [vmem:[#allocation6 + $0x1978] sm:$0xff] %vm388, 0.0
      %2647 = vst.msk [vmem:[#allocation6 + $0x1980] sm:$0xff] %vm388, 0.0
      %2648 = vst.msk [vmem:[#allocation6 + $0x1988] sm:$0xff] %vm388, 0.0
      %2649 = vst.msk [vmem:[#allocation6 + $0x1990] sm:$0xff] %vm388, 0.0
      %2650 = vst.msk [vmem:[#allocation6 + $0x1998] sm:$0xff] %vm388, 0.0
      %2651 = vst.msk [vmem:[#allocation6 + $0x19a0] sm:$0xff] %vm388, 0.0
      %2652 = vst.msk [vmem:[#allocation6 + $0x19a8] sm:$0xff] %vm388, 0.0
      %2653 = vst.msk [vmem:[#allocation6 + $0x19b0] sm:$0xff] %vm388, 0.0
      %2654 = vst.msk [vmem:[#allocation6 + $0x19b8] sm:$0xff] %vm388, 0.0
      %2655 = vst.msk [vmem:[#allocation6 + $0x19c0] sm:$0x1f] %vm905, 0.0
      %2656 = vst.msk [vmem:[#allocation6 + $0x19c8] sm:$0xff] %vm388, 0.0
      %2657 = vst.msk [vmem:[#allocation6 + $0x19d0] sm:$0xff] %vm388, 0.0
      %2658 = vst.msk [vmem:[#allocation6 + $0x19d8] sm:$0xff] %vm388, 0.0
      %2659 = vst.msk [vmem:[#allocation6 + $0x19e0] sm:$0xff] %vm388, 0.0
      %2660 = vst.msk [vmem:[#allocation6 + $0x19e8] sm:$0xff] %vm388, 0.0
      %2661 = vst.msk [vmem:[#allocation6 + $0x19f0] sm:$0xff] %vm388, 0.0
      %2662 = vst.msk [vmem:[#allocation6 + $0x19f8] sm:$0xff] %vm388, 0.0
      %2663 = vst.msk [vmem:[#allocation6 + $0x1a00] sm:$0xff] %vm388, 0.0
      %2664 = vst.msk [vmem:[#allocation6 + $0x1a08] sm:$0xff] %vm388, 0.0
      %2665 = vst.msk [vmem:[#allocation6 + $0x1a10] sm:$0xff] %vm388, 0.0
      %2666 = vst.msk [vmem:[#allocation6 + $0x1a18] sm:$0x1f] %vm905, 0.0
      %2667 = vst.msk [vmem:[#allocation6 + $0x1a20] sm:$0xff] %vm388, 0.0
      %2668 = vst.msk [vmem:[#allocation6 + $0x1a28] sm:$0xff] %vm388, 0.0
      %2669 = vst.msk [vmem:[#allocation6 + $0x1a30] sm:$0xff] %vm388, 0.0
      %2670 = vst.msk [vmem:[#allocation6 + $0x1a38] sm:$0xff] %vm388, 0.0
      %2671 = vst.msk [vmem:[#allocation6 + $0x1a40] sm:$0xff] %vm388, 0.0
      %2672 = vst.msk [vmem:[#allocation6 + $0x1a48] sm:$0xff] %vm388, 0.0
      %2673 = vst.msk [vmem:[#allocation6 + $0x1a50] sm:$0xff] %vm388, 0.0
      %2674 = vst.msk [vmem:[#allocation6 + $0x1a58] sm:$0xff] %vm388, 0.0
      %2675 = vst.msk [vmem:[#allocation6 + $0x1a60] sm:$0xff] %vm388, 0.0
      %2676 = vst.msk [vmem:[#allocation6 + $0x1a68] sm:$0xff] %vm388, 0.0
      %2677 = vst.msk [vmem:[#allocation6 + $0x1a70] sm:$0x1f] %vm905, 0.0
      %2678 = vst.msk [vmem:[#allocation6 + $0x1a78] sm:$0xff] %vm388, 0.0
      %2679 = vst.msk [vmem:[#allocation6 + $0x1a80] sm:$0xff] %vm388, 0.0
      %2680 = vst.msk [vmem:[#allocation6 + $0x1a88] sm:$0xff] %vm388, 0.0
      %2681 = vst.msk [vmem:[#allocation6 + $0x1a90] sm:$0xff] %vm388, 0.0
      %2682 = vst.msk [vmem:[#allocation6 + $0x1a98] sm:$0xff] %vm388, 0.0
      %2683 = vst.msk [vmem:[#allocation6 + $0x1aa0] sm:$0xff] %vm388, 0.0
      %2684 = vst.msk [vmem:[#allocation6 + $0x1aa8] sm:$0xff] %vm388, 0.0
      %2685 = vst.msk [vmem:[#allocation6 + $0x1ab0] sm:$0xff] %vm388, 0.0
      %2686 = vst.msk [vmem:[#allocation6 + $0x1ab8] sm:$0xff] %vm388, 0.0
      %2687 = vst.msk [vmem:[#allocation6 + $0x1ac0] sm:$0xff] %vm388, 0.0
      %2688 = vst.msk [vmem:[#allocation6 + $0x1ac8] sm:$0x1f] %vm905, 0.0
      %2689 = vst.msk [vmem:[#allocation6 + $0x1ad0] sm:$0xff] %vm388, 0.0
      %2690 = vst.msk [vmem:[#allocation6 + $0x1ad8] sm:$0xff] %vm388, 0.0
      %2691 = vst.msk [vmem:[#allocation6 + $0x1ae0] sm:$0xff] %vm388, 0.0
      %2692 = vst.msk [vmem:[#allocation6 + $0x1ae8] sm:$0xff] %vm388, 0.0
      %2693 = vst.msk [vmem:[#allocation6 + $0x1af0] sm:$0xff] %vm388, 0.0
      %2694 = vst.msk [vmem:[#allocation6 + $0x1af8] sm:$0xff] %vm388, 0.0
      %2695 = vst.msk [vmem:[#allocation6 + $0x1b00] sm:$0xff] %vm388, 0.0
      %2696 = vst.msk [vmem:[#allocation6 + $0x1b08] sm:$0xff] %vm388, 0.0
      %2697 = vst.msk [vmem:[#allocation6 + $0x1b10] sm:$0xff] %vm388, 0.0
      %2698 = vst.msk [vmem:[#allocation6 + $0x1b18] sm:$0xff] %vm388, 0.0
      %2699 = vst.msk [vmem:[#allocation6 + $0x1b20] sm:$0x1f] %vm905, 0.0
      %2700 = vst.msk [vmem:[#allocation6 + $0x1b28] sm:$0xff] %vm388, 0.0
      %2701 = vst.msk [vmem:[#allocation6 + $0x1b30] sm:$0xff] %vm388, 0.0
      %2702 = vst.msk [vmem:[#allocation6 + $0x1b38] sm:$0xff] %vm388, 0.0
      %2703 = vst.msk [vmem:[#allocation6 + $0x1b40] sm:$0xff] %vm388, 0.0
      %2704 = vst.msk [vmem:[#allocation6 + $0x1b48] sm:$0xff] %vm388, 0.0
      %2705 = vst.msk [vmem:[#allocation6 + $0x1b50] sm:$0xff] %vm388, 0.0
      %2706 = vst.msk [vmem:[#allocation6 + $0x1b58] sm:$0xff] %vm388, 0.0
      %2707 = vst.msk [vmem:[#allocation6 + $0x1b60] sm:$0xff] %vm388, 0.0
      %2708 = vst.msk [vmem:[#allocation6 + $0x1b68] sm:$0xff] %vm388, 0.0
      %2709 = vst.msk [vmem:[#allocation6 + $0x1b70] sm:$0xff] %vm388, 0.0
      %2710 = vst.msk [vmem:[#allocation6 + $0x1b78] sm:$0x1f] %vm905, 0.0
      %2711 = vst.msk [vmem:[#allocation6 + $0x1b80] sm:$0xff] %vm388, 0.0
      %2712 = vst.msk [vmem:[#allocation6 + $0x1b88] sm:$0xff] %vm388, 0.0
      %2713 = vst.msk [vmem:[#allocation6 + $0x1b90] sm:$0xff] %vm388, 0.0
      %2714 = vst.msk [vmem:[#allocation6 + $0x1b98] sm:$0xff] %vm388, 0.0
      %2715 = vst.msk [vmem:[#allocation6 + $0x1ba0] sm:$0xff] %vm388, 0.0
      %2716 = vst.msk [vmem:[#allocation6 + $0x1ba8] sm:$0xff] %vm388, 0.0
      %2717 = vst.msk [vmem:[#allocation6 + $0x1bb0] sm:$0xff] %vm388, 0.0
      %2718 = vst.msk [vmem:[#allocation6 + $0x1bb8] sm:$0xff] %vm388, 0.0
      %2719 = vst.msk [vmem:[#allocation6 + $0x1bc0] sm:$0xff] %vm388, 0.0
      %2720 = vst.msk [vmem:[#allocation6 + $0x1bc8] sm:$0xff] %vm388, 0.0
      %2721 = vst.msk [vmem:[#allocation6 + $0x1bd0] sm:$0x1f] %vm905, 0.0
      %2722 = vst.msk [vmem:[#allocation6 + $0x1bd8] sm:$0xff] %vm388, 0.0
      %2723 = vst.msk [vmem:[#allocation6 + $0x1be0] sm:$0xff] %vm388, 0.0
      %2724 = vst.msk [vmem:[#allocation6 + $0x1be8] sm:$0xff] %vm388, 0.0
      %2725 = vst.msk [vmem:[#allocation6 + $0x1bf0] sm:$0xff] %vm388, 0.0
      %2726 = vst.msk [vmem:[#allocation6 + $0x1bf8] sm:$0xff] %vm388, 0.0
      %2727 = vst.msk [vmem:[#allocation6 + $0x1c00] sm:$0xff] %vm388, 0.0
      %2728 = vst.msk [vmem:[#allocation6 + $0x1c08] sm:$0xff] %vm388, 0.0
      %2729 = vst.msk [vmem:[#allocation6 + $0x1c10] sm:$0xff] %vm388, 0.0
      %2730 = vst.msk [vmem:[#allocation6 + $0x1c18] sm:$0xff] %vm388, 0.0
      %2731 = vst.msk [vmem:[#allocation6 + $0x1c20] sm:$0xff] %vm388, 0.0
      %2732 = vst.msk [vmem:[#allocation6 + $0x1c28] sm:$0x1f] %vm905, 0.0
      %2733 = vst.msk [vmem:[#allocation6 + $0x1c30] sm:$0xff] %vm388, 0.0
      %2734 = vst.msk [vmem:[#allocation6 + $0x1c38] sm:$0xff] %vm388, 0.0
      %2735 = vst.msk [vmem:[#allocation6 + $0x1c40] sm:$0xff] %vm388, 0.0
      %2736 = vst.msk [vmem:[#allocation6 + $0x1c48] sm:$0xff] %vm388, 0.0
      %2737 = vst.msk [vmem:[#allocation6 + $0x1c50] sm:$0xff] %vm388, 0.0
      %2738 = vst.msk [vmem:[#allocation6 + $0x1c58] sm:$0xff] %vm388, 0.0
      %2739 = vst.msk [vmem:[#allocation6 + $0x1c60] sm:$0xff] %vm388, 0.0
      %2740 = vst.msk [vmem:[#allocation6 + $0x1c68] sm:$0xff] %vm388, 0.0
      %2741 = vst.msk [vmem:[#allocation6 + $0x1c70] sm:$0xff] %vm388, 0.0
      %2742 = vst.msk [vmem:[#allocation6 + $0x1c78] sm:$0xff] %vm388, 0.0
      %2743 = vst.msk [vmem:[#allocation6 + $0x1c80] sm:$0x1f] %vm905, 0.0
      %2744 = vst.msk [vmem:[#allocation6 + $0x1c88] sm:$0xff] %vm388, 0.0
      %2745 = vst.msk [vmem:[#allocation6 + $0x1c90] sm:$0xff] %vm388, 0.0
      %2746 = vst.msk [vmem:[#allocation6 + $0x1c98] sm:$0xff] %vm388, 0.0
      %2747 = vst.msk [vmem:[#allocation6 + $0x1ca0] sm:$0xff] %vm388, 0.0
      %2748 = vst.msk [vmem:[#allocation6 + $0x1ca8] sm:$0xff] %vm388, 0.0
      %2749 = vst.msk [vmem:[#allocation6 + $0x1cb0] sm:$0xff] %vm388, 0.0
      %2750 = vst.msk [vmem:[#allocation6 + $0x1cb8] sm:$0xff] %vm388, 0.0
      %2751 = vst.msk [vmem:[#allocation6 + $0x1cc0] sm:$0xff] %vm388, 0.0
      %2752 = vst.msk [vmem:[#allocation6 + $0x1cc8] sm:$0xff] %vm388, 0.0
      %2753 = vst.msk [vmem:[#allocation6 + $0x1cd0] sm:$0xff] %vm388, 0.0
      %2754 = vst.msk [vmem:[#allocation6 + $0x1cd8] sm:$0x1f] %vm905, 0.0
      %2755 = vst.msk [vmem:[#allocation6 + $0x1ce0] sm:$0xff] %vm388, 0.0
      %2756 = vst.msk [vmem:[#allocation6 + $0x1ce8] sm:$0xff] %vm388, 0.0
      %2757 = vst.msk [vmem:[#allocation6 + $0x1cf0] sm:$0xff] %vm388, 0.0
      %2758 = vst.msk [vmem:[#allocation6 + $0x1cf8] sm:$0xff] %vm388, 0.0
      %2759 = vst.msk [vmem:[#allocation6 + $0x1d00] sm:$0xff] %vm388, 0.0
      %2760 = vst.msk [vmem:[#allocation6 + $0x1d08] sm:$0xff] %vm388, 0.0
      %2761 = vst.msk [vmem:[#allocation6 + $0x1d10] sm:$0xff] %vm388, 0.0
      %2762 = vst.msk [vmem:[#allocation6 + $0x1d18] sm:$0xff] %vm388, 0.0
      %2763 = vst.msk [vmem:[#allocation6 + $0x1d20] sm:$0xff] %vm388, 0.0
      %2764 = vst.msk [vmem:[#allocation6 + $0x1d28] sm:$0xff] %vm388, 0.0
      %2765 = vst.msk [vmem:[#allocation6 + $0x1d30] sm:$0x1f] %vm905, 0.0
      %v2766 = vld [vmem:[%s1] sm:$0xf]
      %v2767 = vld [vmem:[%s1 + $0x4] sm:$0xf]
      %v2768 = vld [vmem:[%s1 + $0x8] sm:$0xf]
      %v2769 = vld [vmem:[%s1 + $0xc] sm:$0xf]
      %v2770 = vld [vmem:[%s1 + $0x10] sm:$0xf]
      %v2771 = vld [vmem:[%s1 + $0x14] sm:$0xf]
      %v2772 = vld [vmem:[%s1 + $0x18] sm:$0xf]
      %v2773 = vld [vmem:[%s1 + $0x1c] sm:$0xf]
      %v2774 = vld [vmem:[%s1 + $0x20] sm:$0xf]
      %v2775 = vld [vmem:[%s1 + $0x24] sm:$0xf]
      %v2776 = vld [vmem:[%s1 + $0x28] sm:$0xf]
      %v2777 = vld [vmem:[%s1 + $0x2c] sm:$0xf]
      %v2778 = vld [vmem:[%s1 + $0x30] sm:$0xf]
      %v2779 = vld [vmem:[%s1 + $0x34] sm:$0xf]
      %v2780 = vld [vmem:[%s1 + $0x38] sm:$0xf]
      %v2781 = vld [vmem:[%s1 + $0x3c] sm:$0xf]
      %v2782 = vld [vmem:[%s1 + $0x40] sm:$0xf]
      %v2783 = vld [vmem:[%s1 + $0x44] sm:$0xf]
      %v2784 = vld [vmem:[%s1 + $0x48] sm:$0xf]
      %v2785 = vld [vmem:[%s1 + $0x4c] sm:$0xf]
      %v2786 = vld [vmem:[%s1 + $0x50] sm:$0xf]
      %v2787 = vld [vmem:[%s1 + $0x54] sm:$0xf]
      %v2788 = vld [vmem:[%s1 + $0x58] sm:$0xf]
      %v2789 = vld [vmem:[%s1 + $0x5c] sm:$0xf]
      %v2790 = vld [vmem:[%s1 + $0x60] sm:$0xf]
      %v2791 = vld [vmem:[%s1 + $0x64] sm:$0xf]
      %v2792 = vld [vmem:[%s1 + $0x68] sm:$0xf]
      %v2793 = vld [vmem:[%s1 + $0x6c] sm:$0xf]
      %v2794 = vld [vmem:[%s1 + $0x70] sm:$0xf]
      %v2795 = vld [vmem:[%s1 + $0x74] sm:$0xf]
      %v2796 = vld [vmem:[%s1 + $0x78] sm:$0xf]
      %v2797 = vld [vmem:[%s1 + $0x7c] sm:$0xf]
      %v2798 = vld [vmem:[%s1 + $0x80] sm:$0xf]
      %v2799 = vld [vmem:[%s1 + $0x84] sm:$0xf]
      %v2800 = vld [vmem:[%s1 + $0x88] sm:$0xf]
      %v2801 = vld [vmem:[%s1 + $0x8c] sm:$0xf]
      %v2802 = vld [vmem:[%s2] sm:$0x1]
      loop: start=0, step=1, limit=37
      $region65: #{decoder_forward.1} parent=63 // loop_pre_header
        _
      $region66: #{decoder_forward.1} parent=63 // loop_header
        %s2804 = sphi 0, %s2808
        %p2805 = scmp.ge.s32.totalorder %s2804, 37
      $region67: #{decoder_forward.1} parent=63 // loop_header_branch
        %2807 = sbr.rel (%p2805) target = $region71
      $region68: #{decoder_forward.1} parent=63 // loop_body
        %s2809 = smul.u32 %s2804, 40
        %s2810 = scalar_lea.vmem %s381, %s2809
        %v2811 = vld [vmem:[%s2810] sm:$0xff]
        %v2812 = vld [vmem:[%s2810 + $0x8] sm:$0xff]
        %v2813 = vld [vmem:[%s2810 + $0x10] sm:$0xff]
        %v2814 = vld [vmem:[%s2810 + $0x18] sm:$0xff]
        %v2815 = vld [vmem:[%s2810 + $0x20] sm:$0x7f]
        %v2816 = vpack.c.bf16 %v2811, %v2811
        %v2817 = vpack.c.bf16 %v2812, %v2812
        %v2818 = vpack.c.bf16 %v2813, %v2813
        %v2819 = vpack.c.bf16 %v2814, %v2814
        %v2820 = vpack.c.bf16 %v2815, %v2815
        %vm2821 = vcmask 257024
        %2822 = vst.msk [vmem:[#allocation2] sm:$0xf] %vm2821, %v2816
        %2823 = vst.msk [vmem:[#allocation2 + $0xc] sm:$0xf] %vm2821, %v2817
        %2824 = vst.msk [vmem:[#allocation2 + $0x18] sm:$0xf] %vm2821, %v2818
        %2825 = vst.msk [vmem:[#allocation2 + $0x24] sm:$0xf] %vm2821, %v2819
        %vm2826 = vcmask 256000
        %vm2827 = vsmask.f32 2304
        %vm2828 = vmand %vm2826, %vm2827
        %v2829 = vld [vmem:[#allocation2 + $0x30] sm:$0x7]
        %v2830 = vsel %vm2828, %v2820, %v2829
        %2831 = vst [vmem:[#allocation2 + $0x30] sm:$0x7] %v2830
        %vm2832 = vsmask.f32 3328
        %vm2833 = vsmask.f32 7440
        %vm2834 = vmor %vm2832, %vm2833
        %v2836 = vshrl.u32 %v2816, 16
        %v2838 = vrot.slane %v2836, 4
        %v2839 = vshll.u32 %v2816, 16
        %v2841 = vrot.slane %v2839, 5
        %v2842 = vor.u32 %v2838, %v2841
        %v2843 = vrot.slane %v2842, 4
        %v2845 = vshll.u32 %v2817, 16
        %v2847 = vrot.slane %v2845, 5
        %v2848 = vsel %vm2834, %v2843, %v2847
        %v2849 = vshrl.u32 %v2817, 16
        %v2851 = vrot.slane %v2849, 4
        %v2852 = vor.u32 %v2851, %v2847
        %v2853 = vrot.slane %v2852, 4
        %v2855 = vshll.u32 %v2818, 16
        %v2857 = vrot.slane %v2855, 5
        %v2858 = vsel %vm2834, %v2853, %v2857
        %v2859 = vshrl.u32 %v2818, 16
        %v2861 = vrot.slane %v2859, 4
        %v2862 = vor.u32 %v2861, %v2857
        %v2863 = vrot.slane %v2862, 4
        %v2865 = vshll.u32 %v2819, 16
        %v2867 = vrot.slane %v2865, 5
        %v2868 = vsel %vm2834, %v2863, %v2867
        %v2869 = vshrl.u32 %v2819, 16
        %v2871 = vrot.slane %v2869, 4
        %v2872 = vor.u32 %v2871, %v2867
        %v2873 = vrot.slane %v2872, 4
        %v2875 = vshll.u32 %v2820, 16
        %v2877 = vrot.slane %v2875, 5
        %v2878 = vsel %vm2834, %v2873, %v2877
        %v2879 = vshrl.u32 %v2820, 16
        %v2881 = vrot.slane %v2879, 4
        %v2882 = vor.u32 %v2881, %v2877
        %v2883 = vrot.slane %v2882, 4
        %2884 = vrot.lane.b32.xlu0 %v2848, 32
        %v2885 = vpop.permute.xlu0 %2884
        %2886 = vrot.lane.b32.xlu0 %v2858, 32
        %v2887 = vpop.permute.xlu0 %2886
        %2888 = vrot.lane.b32.xlu0 %v2868, 32
        %v2889 = vpop.permute.xlu0 %2888
        %2890 = vrot.lane.b32.xlu0 %v2878, 32
        %v2891 = vpop.permute.xlu0 %2890
        %2892 = vrot.lane.b32.xlu0 %v2883, 32
        %v2893 = vpop.permute.xlu0 %2892
        %vm2899 = vcmask 519424
        %2900 = vst.msk [vmem:[#allocation2] sm:$0xf] %vm2899, %v2885
        %2901 = vst.msk [vmem:[#allocation2 + $0xc] sm:$0xf] %vm2899, %v2887
        %2902 = vst.msk [vmem:[#allocation2 + $0x18] sm:$0xf] %vm2899, %v2889
        %2903 = vst.msk [vmem:[#allocation2 + $0x24] sm:$0xf] %vm2899, %v2891
        %vm2904 = vcmask 518400
        %vm2905 = vmand %vm2904, %vm2827
        %v2906 = vld [vmem:[#allocation2 + $0x30] sm:$0x7]
        %v2907 = vsel %vm2905, %v2893, %v2906
        %2908 = vst [vmem:[#allocation2 + $0x30] sm:$0x7] %v2907
        %vm2914 = vcmask 1042432
        %vm2915 = vcmask 1046532
        %vm2916 = vmor %vm2914, %vm2915
        %v2917 = vrot.slane %v2816, 5
        %v2918 = vrot.slane %v2917, 4
        %v2919 = vrot.slane %v2817, 5
        %v2920 = vsel %vm2916, %v2918, %v2919
        %v2921 = vrot.slane %v2919, 4
        %v2922 = vrot.slane %v2818, 5
        %v2923 = vsel %vm2916, %v2921, %v2922
        %v2924 = vrot.slane %v2922, 4
        %v2925 = vrot.slane %v2819, 5
        %v2926 = vsel %vm2916, %v2924, %v2925
        %v2927 = vrot.slane %v2925, 4
        %v2928 = vrot.slane %v2820, 5
        %v2929 = vsel %vm2916, %v2927, %v2928
        %v2930 = vrot.slane %v2928, 4
        %2931 = vrot.lane.b32.xlu0 %v2920, 64
        %v2932 = vpop.permute.xlu0 %2931
        %2933 = vrot.lane.b32.xlu0 %v2923, 64
        %v2934 = vpop.permute.xlu0 %2933
        %2935 = vrot.lane.b32.xlu0 %v2926, 64
        %v2936 = vpop.permute.xlu0 %2935
        %2937 = vrot.lane.b32.xlu0 %v2929, 64
        %v2938 = vpop.permute.xlu0 %2937
        %2939 = vrot.lane.b32.xlu0 %v2930, 64
        %v2940 = vpop.permute.xlu0 %2939
        %vm2946 = vcmask 781824
        %2947 = vst.msk [vmem:[#allocation2] sm:$0xf] %vm2946, %v2932
        %2948 = vst.msk [vmem:[#allocation2 + $0xc] sm:$0xf] %vm2946, %v2934
        %2949 = vst.msk [vmem:[#allocation2 + $0x18] sm:$0xf] %vm2946, %v2936
        %2950 = vst.msk [vmem:[#allocation2 + $0x24] sm:$0xf] %vm2946, %v2938
        %vm2951 = vcmask 780800
        %vm2952 = vmand %vm2951, %vm2827
        %v2953 = vld [vmem:[#allocation2 + $0x30] sm:$0x7]
        %v2954 = vsel %vm2952, %v2940, %v2953
        %2955 = vst [vmem:[#allocation2 + $0x30] sm:$0x7] %v2954
        %s2956 = sadd.s32 %s2804, 1
        %s2957 = smul.u32 %s2956, 40
        %s2958 = scalar_lea.vmem %s381, %s2957
        %v2959 = vld [vmem:[%s2958] sm:$0xff]
        %v2960 = vld [vmem:[%s2958 + $0x8] sm:$0xff]
        %v2961 = vld [vmem:[%s2958 + $0x10] sm:$0xff]
        %v2962 = vld [vmem:[%s2958 + $0x18] sm:$0xff]
        %v2963 = vld [vmem:[%s2958 + $0x20] sm:$0x7f]
        %v2964 = vpack.c.bf16 %v2959, %v2959
        %v2965 = vpack.c.bf16 %v2960, %v2960
        %v2966 = vpack.c.bf16 %v2961, %v2961
        %v2967 = vpack.c.bf16 %v2962, %v2962
        %v2968 = vpack.c.bf16 %v2963, %v2963
        %2974 = vrot.lane.b32.xlu0 %v2964, 96
        %v2975 = vpop.permute.xlu0 %2974
        %2976 = vrot.lane.b32.xlu0 %v2965, 96
        %v2977 = vpop.permute.xlu0 %2976
        %2978 = vrot.lane.b32.xlu0 %v2966, 96
        %v2979 = vpop.permute.xlu0 %2978
        %2980 = vrot.lane.b32.xlu0 %v2967, 96
        %v2981 = vpop.permute.xlu0 %2980
        %2982 = vrot.lane.b32.xlu0 %v2968, 96
        %v2983 = vpop.permute.xlu0 %2982
        %vm2989 = vcmask 1044224
        %2990 = vst.msk [vmem:[#allocation2] sm:$0xf] %vm2989, %v2975
        %2991 = vst.msk [vmem:[#allocation2 + $0xc] sm:$0xf] %vm2989, %v2977
        %2992 = vst.msk [vmem:[#allocation2 + $0x18] sm:$0xf] %vm2989, %v2979
        %2993 = vst.msk [vmem:[#allocation2 + $0x24] sm:$0xf] %vm2989, %v2981
        %vm2994 = vcmask 1043200
        %vm2995 = vmand %vm2994, %vm2827
        %v2996 = vld [vmem:[#allocation2 + $0x30] sm:$0x7]
        %v2997 = vsel %vm2995, %v2983, %v2996
        %2998 = vst [vmem:[#allocation2 + $0x30] sm:$0x7] %v2997
        %v3000 = vshrl.u32 %v2964, 16
        %v3002 = vrot.slane %v3000, 4
        %v3003 = vshll.u32 %v2964, 16
        %v3005 = vrot.slane %v3003, 5
        %v3006 = vor.u32 %v3002, %v3005
        %v3007 = vrot.slane %v3006, 4
        %v3009 = vshll.u32 %v2965, 16
        %v3011 = vrot.slane %v3009, 5
        %v3012 = vsel %vm2834, %v3007, %v3011
        %v3013 = vshrl.u32 %v2965, 16
        %v3015 = vrot.slane %v3013, 4
        %v3016 = vor.u32 %v3015, %v3011
        %v3017 = vrot.slane %v3016, 4
        %v3019 = vshll.u32 %v2966, 16
        %v3021 = vrot.slane %v3019, 5
        %v3022 = vsel %vm2834, %v3017, %v3021
        %v3023 = vshrl.u32 %v2966, 16
        %v3025 = vrot.slane %v3023, 4
        %v3026 = vor.u32 %v3025, %v3021
        %v3027 = vrot.slane %v3026, 4
        %v3029 = vshll.u32 %v2967, 16
        %v3031 = vrot.slane %v3029, 5
        %v3032 = vsel %vm2834, %v3027, %v3031
        %v3033 = vshrl.u32 %v2967, 16
        %v3035 = vrot.slane %v3033, 4
        %v3036 = vor.u32 %v3035, %v3031
        %v3037 = vrot.slane %v3036, 4
        %v3039 = vshll.u32 %v2968, 16
        %v3041 = vrot.slane %v3039, 5
        %v3042 = vsel %vm2834, %v3037, %v3041
        %v3043 = vshrl.u32 %v2968, 16
        %v3045 = vrot.slane %v3043, 4
        %v3046 = vor.u32 %v3045, %v3041
        %v3047 = vrot.slane %v3046, 4
        %3053 = vst.msk [vmem:[#allocation2 + $0x4] sm:$0xf] %vm2821, %v3012
        %3054 = vst.msk [vmem:[#allocation2 + $0x10] sm:$0xf] %vm2821, %v3022
        %3055 = vst.msk [vmem:[#allocation2 + $0x1c] sm:$0xf] %vm2821, %v3032
        %3056 = vst.msk [vmem:[#allocation2 + $0x28] sm:$0xf] %vm2821, %v3042
        %v3057 = vld [vmem:[#allocation2 + $0x34] sm:$0x7]
        %v3058 = vsel %vm2828, %v3047, %v3057
        %3059 = vst [vmem:[#allocation2 + $0x34] sm:$0x7] %v3058
        %v3060 = vrot.slane %v2964, 5
        %v3061 = vrot.slane %v3060, 4
        %v3062 = vrot.slane %v2965, 5
        %v3063 = vsel %vm2916, %v3061, %v3062
        %v3064 = vrot.slane %v3062, 4
        %v3065 = vrot.slane %v2966, 5
        %v3066 = vsel %vm2916, %v3064, %v3065
        %v3067 = vrot.slane %v3065, 4
        %v3068 = vrot.slane %v2967, 5
        %v3069 = vsel %vm2916, %v3067, %v3068
        %v3070 = vrot.slane %v3068, 4
        %v3071 = vrot.slane %v2968, 5
        %v3072 = vsel %vm2916, %v3070, %v3071
        %v3073 = vrot.slane %v3071, 4
        %3074 = vrot.lane.b32.xlu0 %v3063, 32
        %v3075 = vpop.permute.xlu0 %3074
        %3076 = vrot.lane.b32.xlu0 %v3066, 32
        %v3077 = vpop.permute.xlu0 %3076
        %3078 = vrot.lane.b32.xlu0 %v3069, 32
        %v3079 = vpop.permute.xlu0 %3078
        %3080 = vrot.lane.b32.xlu0 %v3072, 32
        %v3081 = vpop.permute.xlu0 %3080
        %3082 = vrot.lane.b32.xlu0 %v3073, 32
        %v3083 = vpop.permute.xlu0 %3082
        %3089 = vst.msk [vmem:[#allocation2 + $0x4] sm:$0xf] %vm2899, %v3075
        %3090 = vst.msk [vmem:[#allocation2 + $0x10] sm:$0xf] %vm2899, %v3077
        %3091 = vst.msk [vmem:[#allocation2 + $0x1c] sm:$0xf] %vm2899, %v3079
        %3092 = vst.msk [vmem:[#allocation2 + $0x28] sm:$0xf] %vm2899, %v3081
        %v3093 = vld [vmem:[#allocation2 + $0x34] sm:$0x7]
        %v3094 = vsel %vm2905, %v3083, %v3093
        %3095 = vst [vmem:[#allocation2 + $0x34] sm:$0x7] %v3094
        %s3096 = sadd.s32 %s2804, 2
        %s3097 = smul.u32 %s3096, 40
        %s3098 = scalar_lea.vmem %s381, %s3097
        %v3099 = vld [vmem:[%s3098] sm:$0xff]
        %v3100 = vld [vmem:[%s3098 + $0x8] sm:$0xff]
        %v3101 = vld [vmem:[%s3098 + $0x10] sm:$0xff]
        %v3102 = vld [vmem:[%s3098 + $0x18] sm:$0xff]
        %v3103 = vld [vmem:[%s3098 + $0x20] sm:$0x7f]
        %v3104 = vpack.c.bf16 %v3099, %v3099
        %v3105 = vpack.c.bf16 %v3100, %v3100
        %v3106 = vpack.c.bf16 %v3101, %v3101
        %v3107 = vpack.c.bf16 %v3102, %v3102
        %v3108 = vpack.c.bf16 %v3103, %v3103
        %3114 = vrot.lane.b32.xlu0 %v3104, 64
        %v3115 = vpop.permute.xlu0 %3114
        %3116 = vrot.lane.b32.xlu0 %v3105, 64
        %v3117 = vpop.permute.xlu0 %3116
        %3118 = vrot.lane.b32.xlu0 %v3106, 64
        %v3119 = vpop.permute.xlu0 %3118
        %3120 = vrot.lane.b32.xlu0 %v3107, 64
        %v3121 = vpop.permute.xlu0 %3120
        %3122 = vrot.lane.b32.xlu0 %v3108, 64
        %v3123 = vpop.permute.xlu0 %3122
        %3129 = vst.msk [vmem:[#allocation2 + $0x4] sm:$0xf] %vm2946, %v3115
        %3130 = vst.msk [vmem:[#allocation2 + $0x10] sm:$0xf] %vm2946, %v3117
        %3131 = vst.msk [vmem:[#allocation2 + $0x1c] sm:$0xf] %vm2946, %v3119
        %3132 = vst.msk [vmem:[#allocation2 + $0x28] sm:$0xf] %vm2946, %v3121
        %v3133 = vld [vmem:[#allocation2 + $0x34] sm:$0x7]
        %v3134 = vsel %vm2952, %v3123, %v3133
        %3135 = vst [vmem:[#allocation2 + $0x34] sm:$0x7] %v3134
        %v3137 = vshrl.u32 %v3104, 16
        %v3139 = vrot.slane %v3137, 4
        %v3140 = vshll.u32 %v3104, 16
        %v3142 = vrot.slane %v3140, 5
        %v3143 = vor.u32 %v3139, %v3142
        %v3144 = vrot.slane %v3143, 4
        %v3146 = vshll.u32 %v3105, 16
        %v3148 = vrot.slane %v3146, 5
        %v3149 = vsel %vm2834, %v3144, %v3148
        %v3150 = vshrl.u32 %v3105, 16
        %v3152 = vrot.slane %v3150, 4
        %v3153 = vor.u32 %v3152, %v3148
        %v3154 = vrot.slane %v3153, 4
        %v3156 = vshll.u32 %v3106, 16
        %v3158 = vrot.slane %v3156, 5
        %v3159 = vsel %vm2834, %v3154, %v3158
        %v3160 = vshrl.u32 %v3106, 16
        %v3162 = vrot.slane %v3160, 4
        %v3163 = vor.u32 %v3162, %v3158
        %v3164 = vrot.slane %v3163, 4
        %v3166 = vshll.u32 %v3107, 16
        %v3168 = vrot.slane %v3166, 5
        %v3169 = vsel %vm2834, %v3164, %v3168
        %v3170 = vshrl.u32 %v3107, 16
        %v3172 = vrot.slane %v3170, 4
        %v3173 = vor.u32 %v3172, %v3168
        %v3174 = vrot.slane %v3173, 4
        %v3176 = vshll.u32 %v3108, 16
        %v3178 = vrot.slane %v3176, 5
        %v3179 = vsel %vm2834, %v3174, %v3178
        %v3180 = vshrl.u32 %v3108, 16
        %v3182 = vrot.slane %v3180, 4
        %v3183 = vor.u32 %v3182, %v3178
        %v3184 = vrot.slane %v3183, 4
        %3185 = vrot.lane.b32.xlu0 %v3149, 96
        %v3186 = vpop.permute.xlu0 %3185
        %3187 = vrot.lane.b32.xlu0 %v3159, 96
        %v3188 = vpop.permute.xlu0 %3187
        %3189 = vrot.lane.b32.xlu0 %v3169, 96
        %v3190 = vpop.permute.xlu0 %3189
        %3191 = vrot.lane.b32.xlu0 %v3179, 96
        %v3192 = vpop.permute.xlu0 %3191
        %3193 = vrot.lane.b32.xlu0 %v3184, 96
        %v3194 = vpop.permute.xlu0 %3193
        %3200 = vst.msk [vmem:[#allocation2 + $0x4] sm:$0xf] %vm2989, %v3186
        %3201 = vst.msk [vmem:[#allocation2 + $0x10] sm:$0xf] %vm2989, %v3188
        %3202 = vst.msk [vmem:[#allocation2 + $0x1c] sm:$0xf] %vm2989, %v3190
        %3203 = vst.msk [vmem:[#allocation2 + $0x28] sm:$0xf] %vm2989, %v3192
        %v3204 = vld [vmem:[#allocation2 + $0x34] sm:$0x7]
        %v3205 = vsel %vm2995, %v3194, %v3204
        %3206 = vst [vmem:[#allocation2 + $0x34] sm:$0x7] %v3205
        %v3207 = vrot.slane %v3104, 5
        %v3208 = vrot.slane %v3207, 4
        %v3209 = vrot.slane %v3105, 5
        %v3210 = vsel %vm2916, %v3208, %v3209
        %v3211 = vrot.slane %v3209, 4
        %v3212 = vrot.slane %v3106, 5
        %v3213 = vsel %vm2916, %v3211, %v3212
        %v3214 = vrot.slane %v3212, 4
        %v3215 = vrot.slane %v3107, 5
        %v3216 = vsel %vm2916, %v3214, %v3215
        %v3217 = vrot.slane %v3215, 4
        %v3218 = vrot.slane %v3108, 5
        %v3219 = vsel %vm2916, %v3217, %v3218
        %v3220 = vrot.slane %v3218, 4
        %3226 = vst.msk [vmem:[#allocation2 + $0x8] sm:$0xf] %vm2821, %v3210
        %3227 = vst.msk [vmem:[#allocation2 + $0x14] sm:$0xf] %vm2821, %v3213
        %3228 = vst.msk [vmem:[#allocation2 + $0x20] sm:$0xf] %vm2821, %v3216
        %3229 = vst.msk [vmem:[#allocation2 + $0x2c] sm:$0xf] %vm2821, %v3219
        %v3230 = vld [vmem:[#allocation2 + $0x38] sm:$0x7]
        %v3231 = vsel %vm2828, %v3220, %v3230
        %3232 = vst [vmem:[#allocation2 + $0x38] sm:$0x7] %v3231
        %v3233 = vld [vmem:[#allocation2] sm:$0xff]
        %v3234 = vld [vmem:[#allocation2 + $0x8] sm:$0xf]
        %v3235 = vld [vmem:[#allocation2 + $0xc] sm:$0xff]
        %v3236 = vld [vmem:[#allocation2 + $0x14] sm:$0xf]
        %v3237 = vld [vmem:[#allocation2 + $0x18] sm:$0xff]
        %v3238 = vld [vmem:[#allocation2 + $0x20] sm:$0xf]
        %v3239 = vld [vmem:[#allocation2 + $0x24] sm:$0xff]
        %v3240 = vld [vmem:[#allocation2 + $0x2c] sm:$0xf]
        %v3241 = vld [vmem:[#allocation2 + $0x30] sm:$0x77]
        %v3242 = vld [vmem:[#allocation2 + $0x38] sm:$0x7]
        %v3244 = vperm.slane %v2802, 0
        %v3256 = vunpack.c.l.b16 %v3233
        %v3257 = vunpack.c.h.b16 %v3233
        %v3258 = vunpack.c.l.b16 %v3234
        %v3259 = vunpack.c.l.b16 %v3235
        %v3260 = vunpack.c.h.b16 %v3235
        %v3261 = vunpack.c.l.b16 %v3236
        %v3262 = vunpack.c.l.b16 %v3237
        %v3263 = vunpack.c.h.b16 %v3237
        %v3264 = vunpack.c.l.b16 %v3238
        %v3265 = vunpack.c.l.b16 %v3239
        %v3266 = vunpack.c.h.b16 %v3239
        %v3267 = vunpack.c.l.b16 %v3240
        %v3268 = vunpack.c.l.b16 %v3241
        %v3269 = vunpack.c.h.b16 %v3241
        %v3270 = vunpack.c.l.b16 %v3242
        %v3271 = vpack.c.b16 %v3259, %v3256
        %v3272 = vpack.c.b16 %v3260, %v3257
        %v3273 = vpack.c.b16 %v3261, %v3258
        %v3274 = vpack.c.b16 %v3265, %v3262
        %v3275 = vpack.c.b16 %v3266, %v3263
        %v3276 = vpack.c.b16 %v3267, %v3264
        %v3277 = vpack.c.b16 %v3268, %v3268
        %v3278 = vpack.c.b16 %v3269, %v3269
        %v3279 = vpack.c.b16 %v3270, %v3270
        %v3322 = vunpack.c.l.b16 %v2766
        %v3323 = vunpack.c.l.b16 %v2767
        %v3324 = vunpack.c.l.b16 %v2768
        %v3325 = vunpack.c.l.b16 %v2769
        %v3326 = vunpack.c.l.b16 %v2770
        %v3327 = vunpack.c.l.b16 %v2771
        %v3328 = vunpack.c.l.b16 %v2772
        %v3329 = vunpack.c.l.b16 %v2773
        %v3330 = vunpack.c.l.b16 %v2774
        %v3331 = vunpack.c.l.b16 %v2775
        %v3332 = vunpack.c.l.b16 %v2776
        %v3333 = vunpack.c.l.b16 %v2777
        %v3334 = vunpack.c.l.b16 %v2778
        %v3335 = vunpack.c.l.b16 %v2779
        %v3336 = vunpack.c.l.b16 %v2780
        %v3337 = vunpack.c.l.b16 %v2781
        %v3338 = vunpack.c.l.b16 %v2782
        %v3339 = vunpack.c.l.b16 %v2783
        %v3340 = vunpack.c.l.b16 %v2784
        %v3341 = vunpack.c.l.b16 %v2785
        %v3342 = vunpack.c.l.b16 %v2786
        %v3343 = vunpack.c.l.b16 %v2787
        %v3344 = vunpack.c.l.b16 %v2788
        %v3345 = vunpack.c.l.b16 %v2789
        %v3346 = vunpack.c.l.b16 %v2790
        %v3347 = vunpack.c.l.b16 %v2791
        %v3348 = vunpack.c.l.b16 %v2792
        %v3349 = vunpack.c.l.b16 %v2793
        %v3350 = vunpack.c.l.b16 %v2794
        %v3351 = vunpack.c.l.b16 %v2795
        %v3352 = vunpack.c.l.b16 %v2796
        %v3353 = vunpack.c.l.b16 %v2797
        %v3354 = vunpack.c.l.b16 %v2798
        %v3355 = vunpack.c.l.b16 %v2799
        %v3356 = vunpack.c.l.b16 %v2800
        %v3357 = vunpack.c.l.b16 %v2801
        %v3358 = vpack.c.b16 %v3323, %v3322
        %v3359 = vpack.c.b16 %v3325, %v3324
        %v3360 = vpack.c.b16 %v3327, %v3326
        %v3361 = vpack.c.b16 %v3329, %v3328
        %v3362 = vpack.c.b16 %v3331, %v3330
        %v3363 = vpack.c.b16 %v3333, %v3332
        %v3364 = vpack.c.b16 %v3335, %v3334
        %v3365 = vpack.c.b16 %v3337, %v3336
        %v3366 = vpack.c.b16 %v3339, %v3338
        %v3367 = vpack.c.b16 %v3341, %v3340
        %v3368 = vpack.c.b16 %v3343, %v3342
        %v3369 = vpack.c.b16 %v3345, %v3344
        %v3370 = vpack.c.b16 %v3347, %v3346
        %v3371 = vpack.c.b16 %v3349, %v3348
        %v3372 = vpack.c.b16 %v3351, %v3350
        %v3373 = vpack.c.b16 %v3353, %v3352
        %v3374 = vpack.c.b16 %v3355, %v3354
        %v3375 = vpack.c.b16 %v3357, %v3356
        %v3395 = vsel %vm388, %v3273, 0
        %v3398 = vsel %vm388, %v3276, 0
        %v3401 = vsel %vm388, %v3279, 0
        %3403 = vmatpush.bf16.msra.mxu0 %v3365
        %3404 = vmatpush.bf16.msra.mxu0 %v3364
        %3405 = vmatpush.bf16.msra.mxu0 %v3363
        %3406 = vmatpush.bf16.msra.mxu0 %v3362
        %3407 = vmatpush.bf16.msra.mxu0 %v3361
        %3408 = vmatpush.bf16.msra.mxu0 %v3360
        %3409 = vmatpush.bf16.msra.mxu0 %v3359
        %3410 = vmatpush.bf16.msra.mxu0 %v3358
        %3411 = vmatmul.bf16.gmra.mxu0 %v3271
        %v3412 = vpop.f32.mrf.mxu0
        %v3413 = vadd.f32 %v3244, %v3412
        %v3414 = vpop.f32.mrf.mxu0
        %v3415 = vadd.f32 %v3244, %v3414
        %3416 = vmatmul.bf16.gmra.mxu0 %v3274
        %v3417 = vpop.f32.mrf.mxu0
        %v3418 = vadd.f32 %v3244, %v3417
        %v3419 = vpop.f32.mrf.mxu0
        %v3420 = vadd.f32 %v3244, %v3419
        %3421 = vmatmul.bf16.gmra.mxu0 %v3277
        %v3422 = vpop.f32.mrf.mxu0
        %v3423 = vadd.f32 %v3244, %v3422
        %v3424 = vpop.f32.mrf.mxu0
        %3425 = vdwg.mxu0
        %3426 = vmatpush.bf16.msra.mxu0 %v3373
        %3427 = vmatpush.bf16.msra.mxu0 %v3372
        %3428 = vmatpush.bf16.msra.mxu0 %v3371
        %3429 = vmatpush.bf16.msra.mxu0 %v3370
        %3430 = vmatpush.bf16.msra.mxu0 %v3369
        %3431 = vmatpush.bf16.msra.mxu0 %v3368
        %3432 = vmatpush.bf16.msra.mxu0 %v3367
        %3433 = vmatpush.bf16.msra.mxu0 %v3366
        %3434 = vmatmul.bf16.gmra.mxu0 %v3272
        %v3435 = vpop.f32.mrf.mxu0
        %v3436 = vadd.f32 %v3413, %v3435
        %v3437 = vpop.f32.mrf.mxu0
        %v3438 = vadd.f32 %v3415, %v3437
        %3439 = vmatmul.bf16.gmra.mxu0 %v3275
        %v3440 = vpop.f32.mrf.mxu0
        %v3441 = vadd.f32 %v3418, %v3440
        %v3442 = vpop.f32.mrf.mxu0
        %v3443 = vadd.f32 %v3420, %v3442
        %3444 = vmatmul.bf16.gmra.mxu0 %v3278
        %v3445 = vpop.f32.mrf.mxu0
        %v3446 = vadd.f32 %v3423, %v3445
        %v3447 = vpop.f32.mrf.mxu0
        %3448 = vdwg.mxu0
        %3449 = vmatpush.bf16.msra.mxu0 0
        %3450 = vmatpush.bf16.msra.mxu0 0
        %3451 = vmatpush.bf16.msra.mxu0 0
        %3452 = vmatpush.bf16.msra.mxu0 0
        %3453 = vmatpush.bf16.msra.mxu0 0
        %3454 = vmatpush.bf16.msra.mxu0 0
        %3455 = vmatpush.bf16.msra.mxu0 %v3375
        %3456 = vmatpush.bf16.msra.mxu0 %v3374
        %3457 = vmatmul.bf16.gmra.mxu0 %v3395
        %v3458 = vpop.f32.mrf.mxu0
        %v3459 = vadd.f32 %v3436, %v3458
        %v3460 = vpop.f32.mrf.mxu0
        %v3461 = vadd.f32 %v3438, %v3460
        %3462 = vmatmul.bf16.gmra.mxu0 %v3398
        %v3463 = vpop.f32.mrf.mxu0
        %v3464 = vadd.f32 %v3441, %v3463
        %v3465 = vpop.f32.mrf.mxu0
        %v3466 = vadd.f32 %v3443, %v3465
        %3467 = vmatmul.bf16.gmra.mxu0 %v3401
        %v3468 = vpop.f32.mrf.mxu0
        %v3469 = vadd.f32 %v3446, %v3468
        %v3470 = vpop.f32.mrf.mxu0
        %3471 = vdwg.mxu0
        %v3472 = vmax.f32 %v3459, 0.0
        %v3473 = vmax.f32 %v3461, 0.0
        %v3474 = vmax.f32 %v3464, 0.0
        %v3475 = vmax.f32 %v3466, 0.0
        %v3476 = vmax.f32 %v3469, 0.0
        %s3477 = smul.u32 %s3096, 48
        %s3478 = scalar_lea.vmem [#allocation3], %s3477
        %3479 = vst.msk [vmem:[%s3478 + $0x2] sm:$0xff] %vm388, %v3472
        %3480 = vst.msk [vmem:[%s3478 + $0xa] sm:$0xff] %vm388, %v3473
        %3481 = vst.msk [vmem:[%s3478 + $0x12] sm:$0xff] %vm388, %v3474
        %3482 = vst.msk [vmem:[%s3478 + $0x1a] sm:$0xff] %vm388, %v3475
        %3483 = vst.msk [vmem:[%s3478 + $0x22] sm:$0x1f] %vm905, %v3476
      $region69: #{decoder_forward.1} parent=63 // loop_footer
        %s2808 = sadd.s32 1, %s2804
      $region70: #{decoder_forward.1} parent=63 // loop_footer_branch
        %2803 = sbr.rel target = $region66
      $region71: #{decoder_forward.1} parent=63 // loop_exit
        _
      %v3484 = vld [vmem:[%s3] sm:$0xf]
      %v3485 = vld [vmem:[%s3 + $0x4] sm:$0xf]
      %v3486 = vld [vmem:[%s3 + $0x8] sm:$0xf]
      %v3487 = vld [vmem:[%s3 + $0xc] sm:$0xf]
      %v3488 = vld [vmem:[%s3 + $0x10] sm:$0xf]
      %v3489 = vld [vmem:[%s3 + $0x14] sm:$0xf]
      %v3490 = vld [vmem:[%s3 + $0x18] sm:$0xf]
      %v3491 = vld [vmem:[%s3 + $0x1c] sm:$0xf]
      %v3492 = vld [vmem:[%s3 + $0x20] sm:$0xf]
      %v3493 = vld [vmem:[%s3 + $0x24] sm:$0xf]
      %v3494 = vld [vmem:[%s3 + $0x28] sm:$0xf]
      %v3495 = vld [vmem:[%s3 + $0x2c] sm:$0xf]
      %v3496 = vld [vmem:[%s3 + $0x30] sm:$0xf]
      %v3497 = vld [vmem:[%s3 + $0x34] sm:$0xf]
      %v3498 = vld [vmem:[%s3 + $0x38] sm:$0xf]
      %v3499 = vld [vmem:[%s3 + $0x3c] sm:$0xf]
      %v3500 = vld [vmem:[%s3 + $0x40] sm:$0xf]
      %v3501 = vld [vmem:[%s3 + $0x44] sm:$0xf]
      %v3502 = vld [vmem:[%s3 + $0x48] sm:$0xf]
      %v3503 = vld [vmem:[%s3 + $0x4c] sm:$0xf]
      %v3504 = vld [vmem:[%s3 + $0x50] sm:$0xf]
      %v3505 = vld [vmem:[%s3 + $0x54] sm:$0xf]
      %v3506 = vld [vmem:[%s3 + $0x58] sm:$0xf]
      %v3507 = vld [vmem:[%s3 + $0x5c] sm:$0xf]
      %v3508 = vld [vmem:[%s3 + $0x60] sm:$0xf]
      %v3509 = vld [vmem:[%s3 + $0x64] sm:$0xf]
      %v3510 = vld [vmem:[%s3 + $0x68] sm:$0xf]
      %v3511 = vld [vmem:[%s3 + $0x6c] sm:$0xf]
      %v3512 = vld [vmem:[%s3 + $0x70] sm:$0xf]
      %v3513 = vld [vmem:[%s3 + $0x74] sm:$0xf]
      %v3514 = vld [vmem:[%s3 + $0x78] sm:$0xf]
      %v3515 = vld [vmem:[%s3 + $0x7c] sm:$0xf]
      %v3516 = vld [vmem:[%s3 + $0x80] sm:$0xf]
      %v3517 = vld [vmem:[%s3 + $0x84] sm:$0xf]
      %v3518 = vld [vmem:[%s3 + $0x88] sm:$0xf]
      %v3519 = vld [vmem:[%s3 + $0x8c] sm:$0xf]
      %v3520 = vld [vmem:[%s4] sm:$0x1]
      loop: start=0, step=1, limit=39
      $region72: #{decoder_forward.1} parent=63 // loop_pre_header
        _
      $region73: #{decoder_forward.1} parent=63 // loop_header
        %s3522 = sphi 0, %s3526
        %p3523 = scmp.ge.s32.totalorder %s3522, 39
      $region74: #{decoder_forward.1} parent=63 // loop_header_branch
        %3525 = sbr.rel (%p3523) target = $region78
      $region75: #{decoder_forward.1} parent=63 // loop_body
        %s3527 = smul.u32 %s3522, 48
        %s3528 = scalar_lea.vmem [#allocation3], %s3527
        %v3529 = vld [vmem:[%s3528] sm:$0xff]
        %v3530 = vld [vmem:[%s3528 + $0x8] sm:$0xff]
        %v3531 = vld [vmem:[%s3528 + $0x10] sm:$0xff]
        %v3532 = vld [vmem:[%s3528 + $0x18] sm:$0xff]
        %v3533 = vld [vmem:[%s3528 + $0x20] sm:$0xff]
        %v3534 = vld [vmem:[%s3528 + $0x28] sm:$0x1]
        %v3535 = vpack.c.bf16 %v3529, %v3529
        %v3536 = vpack.c.bf16 %v3530, %v3530
        %v3537 = vpack.c.bf16 %v3531, %v3531
        %v3538 = vpack.c.bf16 %v3532, %v3532
        %v3539 = vpack.c.bf16 %v3533, %v3533
        %vm3540 = vcmask 257024
        %3541 = vst.msk [vmem:[#allocation2] sm:$0xf] %vm3540, %v3535
        %3542 = vst.msk [vmem:[#allocation2 + $0xc] sm:$0xf] %vm3540, %v3536
        %3543 = vst.msk [vmem:[#allocation2 + $0x18] sm:$0xf] %vm3540, %v3537
        %3544 = vst.msk [vmem:[#allocation2 + $0x24] sm:$0xf] %vm3540, %v3538
        %vm3545 = vcmask 257024
        %vm3546 = vsmask.f32 3328
        %vm3547 = vmand %vm3545, %vm3546
        %v3548 = vld [vmem:[#allocation2 + $0x30] sm:$0xf]
        %v3549 = vsel %vm3547, %v3539, %v3548
        %3550 = vst [vmem:[#allocation2 + $0x30] sm:$0xf] %v3549
        %vm3551 = vsmask.f32 7440
        %vm3552 = vmor %vm3546, %vm3551
        %v3554 = vshrl.u32 %v3535, 16
        %v3556 = vrot.slane %v3554, 4
        %v3557 = vshll.u32 %v3535, 16
        %v3559 = vrot.slane %v3557, 5
        %v3560 = vor.u32 %v3556, %v3559
        %v3561 = vrot.slane %v3560, 4
        %v3563 = vshll.u32 %v3536, 16
        %v3565 = vrot.slane %v3563, 5
        %v3566 = vsel %vm3552, %v3561, %v3565
        %v3567 = vshrl.u32 %v3536, 16
        %v3569 = vrot.slane %v3567, 4
        %v3570 = vor.u32 %v3569, %v3565
        %v3571 = vrot.slane %v3570, 4
        %v3573 = vshll.u32 %v3537, 16
        %v3575 = vrot.slane %v3573, 5
        %v3576 = vsel %vm3552, %v3571, %v3575
        %v3577 = vshrl.u32 %v3537, 16
        %v3579 = vrot.slane %v3577, 4
        %v3580 = vor.u32 %v3579, %v3575
        %v3581 = vrot.slane %v3580, 4
        %v3583 = vshll.u32 %v3538, 16
        %v3585 = vrot.slane %v3583, 5
        %v3586 = vsel %vm3552, %v3581, %v3585
        %v3587 = vshrl.u32 %v3538, 16
        %v3589 = vrot.slane %v3587, 4
        %v3590 = vor.u32 %v3589, %v3585
        %v3591 = vrot.slane %v3590, 4
        %v3593 = vshll.u32 %v3539, 16
        %v3595 = vrot.slane %v3593, 5
        %v3596 = vsel %vm3552, %v3591, %v3595
        %v3597 = vshrl.u32 %v3539, 16
        %v3599 = vrot.slane %v3597, 4
        %v3600 = vor.u32 %v3599, %v3595
        %v3601 = vrot.slane %v3600, 4
        %3602 = vrot.lane.b32.xlu0 %v3566, 32
        %v3603 = vpop.permute.xlu0 %3602
        %3604 = vrot.lane.b32.xlu0 %v3576, 32
        %v3605 = vpop.permute.xlu0 %3604
        %3606 = vrot.lane.b32.xlu0 %v3586, 32
        %v3607 = vpop.permute.xlu0 %3606
        %3608 = vrot.lane.b32.xlu0 %v3596, 32
        %v3609 = vpop.permute.xlu0 %3608
        %3610 = vrot.lane.b32.xlu0 %v3601, 32
        %v3611 = vpop.permute.xlu0 %3610
        %vm3617 = vcmask 519424
        %3618 = vst.msk [vmem:[#allocation2] sm:$0xf] %vm3617, %v3603
        %3619 = vst.msk [vmem:[#allocation2 + $0xc] sm:$0xf] %vm3617, %v3605
        %3620 = vst.msk [vmem:[#allocation2 + $0x18] sm:$0xf] %vm3617, %v3607
        %3621 = vst.msk [vmem:[#allocation2 + $0x24] sm:$0xf] %vm3617, %v3609
        %vm3622 = vcmask 519424
        %vm3623 = vmand %vm3622, %vm3546
        %v3624 = vld [vmem:[#allocation2 + $0x30] sm:$0xf]
        %v3625 = vsel %vm3623, %v3611, %v3624
        %3626 = vst [vmem:[#allocation2 + $0x30] sm:$0xf] %v3625
        %v3627 = vpack.c.bf16 %v3534, %v3534
        %vm3634 = vcmask 1042432
        %vm3635 = vcmask 1046532
        %vm3636 = vmor %vm3634, %vm3635
        %v3637 = vrot.slane %v3535, 5
        %v3638 = vrot.slane %v3637, 4
        %v3639 = vrot.slane %v3536, 5
        %v3640 = vsel %vm3636, %v3638, %v3639
        %v3641 = vrot.slane %v3639, 4
        %v3642 = vrot.slane %v3537, 5
        %v3643 = vsel %vm3636, %v3641, %v3642
        %v3644 = vrot.slane %v3642, 4
        %v3645 = vrot.slane %v3538, 5
        %v3646 = vsel %vm3636, %v3644, %v3645
        %v3647 = vrot.slane %v3645, 4
        %v3648 = vrot.slane %v3539, 5
        %v3649 = vsel %vm3636, %v3647, %v3648
        %v3650 = vrot.slane %v3648, 4
        %v3651 = vrot.slane %v3627, 5
        %v3652 = vsel %vm3636, %v3650, %v3651
        %3653 = vrot.lane.b32.xlu0 %v3640, 64
        %v3654 = vpop.permute.xlu0 %3653
        %3655 = vrot.lane.b32.xlu0 %v3643, 64
        %v3656 = vpop.permute.xlu0 %3655
        %3657 = vrot.lane.b32.xlu0 %v3646, 64
        %v3658 = vpop.permute.xlu0 %3657
        %3659 = vrot.lane.b32.xlu0 %v3649, 64
        %v3660 = vpop.permute.xlu0 %3659
        %3661 = vrot.lane.b32.xlu0 %v3652, 64
        %v3662 = vpop.permute.xlu0 %3661
        %vm3668 = vcmask 781824
        %3669 = vst.msk [vmem:[#allocation2] sm:$0xf] %vm3668, %v3654
        %3670 = vst.msk [vmem:[#allocation2 + $0xc] sm:$0xf] %vm3668, %v3656
        %3671 = vst.msk [vmem:[#allocation2 + $0x18] sm:$0xf] %vm3668, %v3658
        %3672 = vst.msk [vmem:[#allocation2 + $0x24] sm:$0xf] %vm3668, %v3660
        %vm3673 = vcmask 781824
        %vm3674 = vmand %vm3673, %vm3546
        %v3675 = vld [vmem:[#allocation2 + $0x30] sm:$0xf]
        %v3676 = vsel %vm3674, %v3662, %v3675
        %3677 = vst [vmem:[#allocation2 + $0x30] sm:$0xf] %v3676
        %s3678 = sadd.s32 %s3522, 1
        %s3679 = smul.u32 %s3678, 48
        %s3680 = scalar_lea.vmem [#allocation3], %s3679
        %v3681 = vld [vmem:[%s3680] sm:$0xff]
        %v3682 = vld [vmem:[%s3680 + $0x8] sm:$0xff]
        %v3683 = vld [vmem:[%s3680 + $0x10] sm:$0xff]
        %v3684 = vld [vmem:[%s3680 + $0x18] sm:$0xff]
        %v3685 = vld [vmem:[%s3680 + $0x20] sm:$0xff]
        %v3686 = vld [vmem:[%s3680 + $0x28] sm:$0x1]
        %v3687 = vpack.c.bf16 %v3681, %v3681
        %v3688 = vpack.c.bf16 %v3682, %v3682
        %v3689 = vpack.c.bf16 %v3683, %v3683
        %v3690 = vpack.c.bf16 %v3684, %v3684
        %v3691 = vpack.c.bf16 %v3685, %v3685
        %3697 = vrot.lane.b32.xlu0 %v3687, 96
        %v3698 = vpop.permute.xlu0 %3697
        %3699 = vrot.lane.b32.xlu0 %v3688, 96
        %v3700 = vpop.permute.xlu0 %3699
        %3701 = vrot.lane.b32.xlu0 %v3689, 96
        %v3702 = vpop.permute.xlu0 %3701
        %3703 = vrot.lane.b32.xlu0 %v3690, 96
        %v3704 = vpop.permute.xlu0 %3703
        %3705 = vrot.lane.b32.xlu0 %v3691, 96
        %v3706 = vpop.permute.xlu0 %3705
        %vm3712 = vcmask 1044224
        %3713 = vst.msk [vmem:[#allocation2] sm:$0xf] %vm3712, %v3698
        %3714 = vst.msk [vmem:[#allocation2 + $0xc] sm:$0xf] %vm3712, %v3700
        %3715 = vst.msk [vmem:[#allocation2 + $0x18] sm:$0xf] %vm3712, %v3702
        %3716 = vst.msk [vmem:[#allocation2 + $0x24] sm:$0xf] %vm3712, %v3704
        %vm3717 = vcmask 1044224
        %vm3718 = vmand %vm3717, %vm3546
        %v3719 = vld [vmem:[#allocation2 + $0x30] sm:$0xf]
        %v3720 = vsel %vm3718, %v3706, %v3719
        %3721 = vst [vmem:[#allocation2 + $0x30] sm:$0xf] %v3720
        %v3723 = vshrl.u32 %v3687, 16
        %v3725 = vrot.slane %v3723, 4
        %v3726 = vshll.u32 %v3687, 16
        %v3728 = vrot.slane %v3726, 5
        %v3729 = vor.u32 %v3725, %v3728
        %v3730 = vrot.slane %v3729, 4
        %v3732 = vshll.u32 %v3688, 16
        %v3734 = vrot.slane %v3732, 5
        %v3735 = vsel %vm3552, %v3730, %v3734
        %v3736 = vshrl.u32 %v3688, 16
        %v3738 = vrot.slane %v3736, 4
        %v3739 = vor.u32 %v3738, %v3734
        %v3740 = vrot.slane %v3739, 4
        %v3742 = vshll.u32 %v3689, 16
        %v3744 = vrot.slane %v3742, 5
        %v3745 = vsel %vm3552, %v3740, %v3744
        %v3746 = vshrl.u32 %v3689, 16
        %v3748 = vrot.slane %v3746, 4
        %v3749 = vor.u32 %v3748, %v3744
        %v3750 = vrot.slane %v3749, 4
        %v3752 = vshll.u32 %v3690, 16
        %v3754 = vrot.slane %v3752, 5
        %v3755 = vsel %vm3552, %v3750, %v3754
        %v3756 = vshrl.u32 %v3690, 16
        %v3758 = vrot.slane %v3756, 4
        %v3759 = vor.u32 %v3758, %v3754
        %v3760 = vrot.slane %v3759, 4
        %v3762 = vshll.u32 %v3691, 16
        %v3764 = vrot.slane %v3762, 5
        %v3765 = vsel %vm3552, %v3760, %v3764
        %v3766 = vshrl.u32 %v3691, 16
        %v3768 = vrot.slane %v3766, 4
        %v3769 = vor.u32 %v3768, %v3764
        %v3770 = vrot.slane %v3769, 4
        %3776 = vst.msk [vmem:[#allocation2 + $0x4] sm:$0xf] %vm3540, %v3735
        %3777 = vst.msk [vmem:[#allocation2 + $0x10] sm:$0xf] %vm3540, %v3745
        %3778 = vst.msk [vmem:[#allocation2 + $0x1c] sm:$0xf] %vm3540, %v3755
        %3779 = vst.msk [vmem:[#allocation2 + $0x28] sm:$0xf] %vm3540, %v3765
        %v3780 = vld [vmem:[#allocation2 + $0x34] sm:$0xf]
        %v3781 = vsel %vm3547, %v3770, %v3780
        %3782 = vst [vmem:[#allocation2 + $0x34] sm:$0xf] %v3781
        %v3783 = vpack.c.bf16 %v3686, %v3686
        %v3785 = vrot.slane %v3687, 5
        %v3786 = vrot.slane %v3785, 4
        %v3787 = vrot.slane %v3688, 5
        %v3788 = vsel %vm3636, %v3786, %v3787
        %v3789 = vrot.slane %v3787, 4
        %v3790 = vrot.slane %v3689, 5
        %v3791 = vsel %vm3636, %v3789, %v3790
        %v3792 = vrot.slane %v3790, 4
        %v3793 = vrot.slane %v3690, 5
        %v3794 = vsel %vm3636, %v3792, %v3793
        %v3795 = vrot.slane %v3793, 4
        %v3796 = vrot.slane %v3691, 5
        %v3797 = vsel %vm3636, %v3795, %v3796
        %v3798 = vrot.slane %v3796, 4
        %v3799 = vrot.slane %v3783, 5
        %v3800 = vsel %vm3636, %v3798, %v3799
        %3801 = vrot.lane.b32.xlu0 %v3788, 32
        %v3802 = vpop.permute.xlu0 %3801
        %3803 = vrot.lane.b32.xlu0 %v3791, 32
        %v3804 = vpop.permute.xlu0 %3803
        %3805 = vrot.lane.b32.xlu0 %v3794, 32
        %v3806 = vpop.permute.xlu0 %3805
        %3807 = vrot.lane.b32.xlu0 %v3797, 32
        %v3808 = vpop.permute.xlu0 %3807
        %3809 = vrot.lane.b32.xlu0 %v3800, 32
        %v3810 = vpop.permute.xlu0 %3809
        %3816 = vst.msk [vmem:[#allocation2 + $0x4] sm:$0xf] %vm3617, %v3802
        %3817 = vst.msk [vmem:[#allocation2 + $0x10] sm:$0xf] %vm3617, %v3804
        %3818 = vst.msk [vmem:[#allocation2 + $0x1c] sm:$0xf] %vm3617, %v3806
        %3819 = vst.msk [vmem:[#allocation2 + $0x28] sm:$0xf] %vm3617, %v3808
        %v3820 = vld [vmem:[#allocation2 + $0x34] sm:$0xf]
        %v3821 = vsel %vm3623, %v3810, %v3820
        %3822 = vst [vmem:[#allocation2 + $0x34] sm:$0xf] %v3821
        %s3823 = sadd.s32 %s3522, 2
        %s3824 = smul.u32 %s3823, 48
        %s3825 = scalar_lea.vmem [#allocation3], %s3824
        %v3826 = vld [vmem:[%s3825] sm:$0xff]
        %v3827 = vld [vmem:[%s3825 + $0x8] sm:$0xff]
        %v3828 = vld [vmem:[%s3825 + $0x10] sm:$0xff]
        %v3829 = vld [vmem:[%s3825 + $0x18] sm:$0xff]
        %v3830 = vld [vmem:[%s3825 + $0x20] sm:$0xff]
        %v3831 = vld [vmem:[%s3825 + $0x28] sm:$0x1]
        %v3832 = vpack.c.bf16 %v3826, %v3826
        %v3833 = vpack.c.bf16 %v3827, %v3827
        %v3834 = vpack.c.bf16 %v3828, %v3828
        %v3835 = vpack.c.bf16 %v3829, %v3829
        %v3836 = vpack.c.bf16 %v3830, %v3830
        %3842 = vrot.lane.b32.xlu0 %v3832, 64
        %v3843 = vpop.permute.xlu0 %3842
        %3844 = vrot.lane.b32.xlu0 %v3833, 64
        %v3845 = vpop.permute.xlu0 %3844
        %3846 = vrot.lane.b32.xlu0 %v3834, 64
        %v3847 = vpop.permute.xlu0 %3846
        %3848 = vrot.lane.b32.xlu0 %v3835, 64
        %v3849 = vpop.permute.xlu0 %3848
        %3850 = vrot.lane.b32.xlu0 %v3836, 64
        %v3851 = vpop.permute.xlu0 %3850
        %3857 = vst.msk [vmem:[#allocation2 + $0x4] sm:$0xf] %vm3668, %v3843
        %3858 = vst.msk [vmem:[#allocation2 + $0x10] sm:$0xf] %vm3668, %v3845
        %3859 = vst.msk [vmem:[#allocation2 + $0x1c] sm:$0xf] %vm3668, %v3847
        %3860 = vst.msk [vmem:[#allocation2 + $0x28] sm:$0xf] %vm3668, %v3849
        %v3861 = vld [vmem:[#allocation2 + $0x34] sm:$0xf]
        %v3862 = vsel %vm3674, %v3851, %v3861
        %3863 = vst [vmem:[#allocation2 + $0x34] sm:$0xf] %v3862
        %v3865 = vshrl.u32 %v3832, 16
        %v3867 = vrot.slane %v3865, 4
        %v3868 = vshll.u32 %v3832, 16
        %v3870 = vrot.slane %v3868, 5
        %v3871 = vor.u32 %v3867, %v3870
        %v3872 = vrot.slane %v3871, 4
        %v3874 = vshll.u32 %v3833, 16
        %v3876 = vrot.slane %v3874, 5
        %v3877 = vsel %vm3552, %v3872, %v3876
        %v3878 = vshrl.u32 %v3833, 16
        %v3880 = vrot.slane %v3878, 4
        %v3881 = vor.u32 %v3880, %v3876
        %v3882 = vrot.slane %v3881, 4
        %v3884 = vshll.u32 %v3834, 16
        %v3886 = vrot.slane %v3884, 5
        %v3887 = vsel %vm3552, %v3882, %v3886
        %v3888 = vshrl.u32 %v3834, 16
        %v3890 = vrot.slane %v3888, 4
        %v3891 = vor.u32 %v3890, %v3886
        %v3892 = vrot.slane %v3891, 4
        %v3894 = vshll.u32 %v3835, 16
        %v3896 = vrot.slane %v3894, 5
        %v3897 = vsel %vm3552, %v3892, %v3896
        %v3898 = vshrl.u32 %v3835, 16
        %v3900 = vrot.slane %v3898, 4
        %v3901 = vor.u32 %v3900, %v3896
        %v3902 = vrot.slane %v3901, 4
        %v3904 = vshll.u32 %v3836, 16
        %v3906 = vrot.slane %v3904, 5
        %v3907 = vsel %vm3552, %v3902, %v3906
        %v3908 = vshrl.u32 %v3836, 16
        %v3910 = vrot.slane %v3908, 4
        %v3911 = vor.u32 %v3910, %v3906
        %v3912 = vrot.slane %v3911, 4
        %3913 = vrot.lane.b32.xlu0 %v3877, 96
        %v3914 = vpop.permute.xlu0 %3913
        %3915 = vrot.lane.b32.xlu0 %v3887, 96
        %v3916 = vpop.permute.xlu0 %3915
        %3917 = vrot.lane.b32.xlu0 %v3897, 96
        %v3918 = vpop.permute.xlu0 %3917
        %3919 = vrot.lane.b32.xlu0 %v3907, 96
        %v3920 = vpop.permute.xlu0 %3919
        %3921 = vrot.lane.b32.xlu0 %v3912, 96
        %v3922 = vpop.permute.xlu0 %3921
        %3928 = vst.msk [vmem:[#allocation2 + $0x4] sm:$0xf] %vm3712, %v3914
        %3929 = vst.msk [vmem:[#allocation2 + $0x10] sm:$0xf] %vm3712, %v3916
        %3930 = vst.msk [vmem:[#allocation2 + $0x1c] sm:$0xf] %vm3712, %v3918
        %3931 = vst.msk [vmem:[#allocation2 + $0x28] sm:$0xf] %vm3712, %v3920
        %v3932 = vld [vmem:[#allocation2 + $0x34] sm:$0xf]
        %v3933 = vsel %vm3718, %v3922, %v3932
        %3934 = vst [vmem:[#allocation2 + $0x34] sm:$0xf] %v3933
        %v3935 = vpack.c.bf16 %v3831, %v3831
        %v3937 = vrot.slane %v3832, 5
        %v3938 = vrot.slane %v3937, 4
        %v3939 = vrot.slane %v3833, 5
        %v3940 = vsel %vm3636, %v3938, %v3939
        %v3941 = vrot.slane %v3939, 4
        %v3942 = vrot.slane %v3834, 5
        %v3943 = vsel %vm3636, %v3941, %v3942
        %v3944 = vrot.slane %v3942, 4
        %v3945 = vrot.slane %v3835, 5
        %v3946 = vsel %vm3636, %v3944, %v3945
        %v3947 = vrot.slane %v3945, 4
        %v3948 = vrot.slane %v3836, 5
        %v3949 = vsel %vm3636, %v3947, %v3948
        %v3950 = vrot.slane %v3948, 4
        %v3951 = vrot.slane %v3935, 5
        %v3952 = vsel %vm3636, %v3950, %v3951
        %3958 = vst.msk [vmem:[#allocation2 + $0x8] sm:$0xf] %vm3540, %v3940
        %3959 = vst.msk [vmem:[#allocation2 + $0x14] sm:$0xf] %vm3540, %v3943
        %3960 = vst.msk [vmem:[#allocation2 + $0x20] sm:$0xf] %vm3540, %v3946
        %3961 = vst.msk [vmem:[#allocation2 + $0x2c] sm:$0xf] %vm3540, %v3949
        %v3962 = vld [vmem:[#allocation2 + $0x38] sm:$0xf]
        %v3963 = vsel %vm3547, %v3952, %v3962
        %3964 = vst [vmem:[#allocation2 + $0x38] sm:$0xf] %v3963
        %v3965 = vld [vmem:[#allocation2] sm:$0xff]
        %v3966 = vld [vmem:[#allocation2 + $0x8] sm:$0xf]
        %v3967 = vld [vmem:[#allocation2 + $0xc] sm:$0xff]
        %v3968 = vld [vmem:[#allocation2 + $0x14] sm:$0xf]
        %v3969 = vld [vmem:[#allocation2 + $0x18] sm:$0xff]
        %v3970 = vld [vmem:[#allocation2 + $0x20] sm:$0xf]
        %v3971 = vld [vmem:[#allocation2 + $0x24] sm:$0xff]
        %v3972 = vld [vmem:[#allocation2 + $0x2c] sm:$0xf]
        %v3973 = vld [vmem:[#allocation2 + $0x30] sm:$0xff]
        %v3974 = vld [vmem:[#allocation2 + $0x38] sm:$0xf]
        %v3976 = vperm.slane %v3520, 0
        %v3988 = vunpack.c.l.b16 %v3965
        %v3989 = vunpack.c.h.b16 %v3965
        %v3990 = vunpack.c.l.b16 %v3966
        %v3991 = vunpack.c.l.b16 %v3967
        %v3992 = vunpack.c.h.b16 %v3967
        %v3993 = vunpack.c.l.b16 %v3968
        %v3994 = vunpack.c.l.b16 %v3969
        %v3995 = vunpack.c.h.b16 %v3969
        %v3996 = vunpack.c.l.b16 %v3970
        %v3997 = vunpack.c.l.b16 %v3971
        %v3998 = vunpack.c.h.b16 %v3971
        %v3999 = vunpack.c.l.b16 %v3972
        %v4000 = vunpack.c.l.b16 %v3973
        %v4001 = vunpack.c.h.b16 %v3973
        %v4002 = vunpack.c.l.b16 %v3974
        %v4003 = vpack.c.b16 %v3991, %v3988
        %v4004 = vpack.c.b16 %v3992, %v3989
        %v4005 = vpack.c.b16 %v3993, %v3990
        %v4006 = vpack.c.b16 %v3997, %v3994
        %v4007 = vpack.c.b16 %v3998, %v3995
        %v4008 = vpack.c.b16 %v3999, %v3996
        %v4009 = vpack.c.b16 %v4000, %v4000
        %v4010 = vpack.c.b16 %v4001, %v4001
        %v4011 = vpack.c.b16 %v4002, %v4002
        %v4054 = vunpack.c.l.b16 %v3484
        %v4055 = vunpack.c.l.b16 %v3485
        %v4056 = vunpack.c.l.b16 %v3486
        %v4057 = vunpack.c.l.b16 %v3487
        %v4058 = vunpack.c.l.b16 %v3488
        %v4059 = vunpack.c.l.b16 %v3489
        %v4060 = vunpack.c.l.b16 %v3490
        %v4061 = vunpack.c.l.b16 %v3491
        %v4062 = vunpack.c.l.b16 %v3492
        %v4063 = vunpack.c.l.b16 %v3493
        %v4064 = vunpack.c.l.b16 %v3494
        %v4065 = vunpack.c.l.b16 %v3495
        %v4066 = vunpack.c.l.b16 %v3496
        %v4067 = vunpack.c.l.b16 %v3497
        %v4068 = vunpack.c.l.b16 %v3498
        %v4069 = vunpack.c.l.b16 %v3499
        %v4070 = vunpack.c.l.b16 %v3500
        %v4071 = vunpack.c.l.b16 %v3501
        %v4072 = vunpack.c.l.b16 %v3502
        %v4073 = vunpack.c.l.b16 %v3503
        %v4074 = vunpack.c.l.b16 %v3504
        %v4075 = vunpack.c.l.b16 %v3505
        %v4076 = vunpack.c.l.b16 %v3506
        %v4077 = vunpack.c.l.b16 %v3507
        %v4078 = vunpack.c.l.b16 %v3508
        %v4079 = vunpack.c.l.b16 %v3509
        %v4080 = vunpack.c.l.b16 %v3510
        %v4081 = vunpack.c.l.b16 %v3511
        %v4082 = vunpack.c.l.b16 %v3512
        %v4083 = vunpack.c.l.b16 %v3513
        %v4084 = vunpack.c.l.b16 %v3514
        %v4085 = vunpack.c.l.b16 %v3515
        %v4086 = vunpack.c.l.b16 %v3516
        %v4087 = vunpack.c.l.b16 %v3517
        %v4088 = vunpack.c.l.b16 %v3518
        %v4089 = vunpack.c.l.b16 %v3519
        %v4090 = vpack.c.b16 %v4055, %v4054
        %v4091 = vpack.c.b16 %v4057, %v4056
        %v4092 = vpack.c.b16 %v4059, %v4058
        %v4093 = vpack.c.b16 %v4061, %v4060
        %v4094 = vpack.c.b16 %v4063, %v4062
        %v4095 = vpack.c.b16 %v4065, %v4064
        %v4096 = vpack.c.b16 %v4067, %v4066
        %v4097 = vpack.c.b16 %v4069, %v4068
        %v4098 = vpack.c.b16 %v4071, %v4070
        %v4099 = vpack.c.b16 %v4073, %v4072
        %v4100 = vpack.c.b16 %v4075, %v4074
        %v4101 = vpack.c.b16 %v4077, %v4076
        %v4102 = vpack.c.b16 %v4079, %v4078
        %v4103 = vpack.c.b16 %v4081, %v4080
        %v4104 = vpack.c.b16 %v4083, %v4082
        %v4105 = vpack.c.b16 %v4085, %v4084
        %v4106 = vpack.c.b16 %v4087, %v4086
        %v4107 = vpack.c.b16 %v4089, %v4088
        %v4127 = vsel %vm388, %v4005, 0
        %v4130 = vsel %vm388, %v4008, 0
        %v4133 = vsel %vm388, %v4011, 0
        %4135 = vmatpush.bf16.msra.mxu0 %v4097
        %4136 = vmatpush.bf16.msra.mxu0 %v4096
        %4137 = vmatpush.bf16.msra.mxu0 %v4095
        %4138 = vmatpush.bf16.msra.mxu0 %v4094
        %4139 = vmatpush.bf16.msra.mxu0 %v4093
        %4140 = vmatpush.bf16.msra.mxu0 %v4092
        %4141 = vmatpush.bf16.msra.mxu0 %v4091
        %4142 = vmatpush.bf16.msra.mxu0 %v4090
        %4143 = vmatmul.bf16.gmra.mxu0 %v4003
        %v4144 = vpop.f32.mrf.mxu0
        %v4145 = vadd.f32 %v3976, %v4144
        %v4146 = vpop.f32.mrf.mxu0
        %v4147 = vadd.f32 %v3976, %v4146
        %4148 = vmatmul.bf16.gmra.mxu0 %v4006
        %v4149 = vpop.f32.mrf.mxu0
        %v4150 = vadd.f32 %v3976, %v4149
        %v4151 = vpop.f32.mrf.mxu0
        %v4152 = vadd.f32 %v3976, %v4151
        %4153 = vmatmul.bf16.gmra.mxu0 %v4009
        %v4154 = vpop.f32.mrf.mxu0
        %v4155 = vadd.f32 %v3976, %v4154
        %v4156 = vpop.f32.mrf.mxu0
        %4157 = vdwg.mxu0
        %4158 = vmatpush.bf16.msra.mxu0 %v4105
        %4159 = vmatpush.bf16.msra.mxu0 %v4104
        %4160 = vmatpush.bf16.msra.mxu0 %v4103
        %4161 = vmatpush.bf16.msra.mxu0 %v4102
        %4162 = vmatpush.bf16.msra.mxu0 %v4101
        %4163 = vmatpush.bf16.msra.mxu0 %v4100
        %4164 = vmatpush.bf16.msra.mxu0 %v4099
        %4165 = vmatpush.bf16.msra.mxu0 %v4098
        %4166 = vmatmul.bf16.gmra.mxu0 %v4004
        %v4167 = vpop.f32.mrf.mxu0
        %v4168 = vadd.f32 %v4145, %v4167
        %v4169 = vpop.f32.mrf.mxu0
        %v4170 = vadd.f32 %v4147, %v4169
        %4171 = vmatmul.bf16.gmra.mxu0 %v4007
        %v4172 = vpop.f32.mrf.mxu0
        %v4173 = vadd.f32 %v4150, %v4172
        %v4174 = vpop.f32.mrf.mxu0
        %v4175 = vadd.f32 %v4152, %v4174
        %4176 = vmatmul.bf16.gmra.mxu0 %v4010
        %v4177 = vpop.f32.mrf.mxu0
        %v4178 = vadd.f32 %v4155, %v4177
        %v4179 = vpop.f32.mrf.mxu0
        %4180 = vdwg.mxu0
        %4181 = vmatpush.bf16.msra.mxu0 0
        %4182 = vmatpush.bf16.msra.mxu0 0
        %4183 = vmatpush.bf16.msra.mxu0 0
        %4184 = vmatpush.bf16.msra.mxu0 0
        %4185 = vmatpush.bf16.msra.mxu0 0
        %4186 = vmatpush.bf16.msra.mxu0 0
        %4187 = vmatpush.bf16.msra.mxu0 %v4107
        %4188 = vmatpush.bf16.msra.mxu0 %v4106
        %4189 = vmatmul.bf16.gmra.mxu0 %v4127
        %v4190 = vpop.f32.mrf.mxu0
        %v4191 = vadd.f32 %v4168, %v4190
        %v4192 = vpop.f32.mrf.mxu0
        %v4193 = vadd.f32 %v4170, %v4192
        %4194 = vmatmul.bf16.gmra.mxu0 %v4130
        %v4195 = vpop.f32.mrf.mxu0
        %v4196 = vadd.f32 %v4173, %v4195
        %v4197 = vpop.f32.mrf.mxu0
        %v4198 = vadd.f32 %v4175, %v4197
        %4199 = vmatmul.bf16.gmra.mxu0 %v4133
        %v4200 = vpop.f32.mrf.mxu0
        %v4201 = vadd.f32 %v4178, %v4200
        %v4202 = vpop.f32.mrf.mxu0
        %4203 = vdwg.mxu0
        %v4204 = vmax.f32 %v4191, 0.0
        %v4205 = vmax.f32 %v4193, 0.0
        %v4206 = vmax.f32 %v4196, 0.0
        %v4207 = vmax.f32 %v4198, 0.0
        %v4208 = vmax.f32 %v4201, 0.0
        %s4209 = scalar_lea.vmem [#allocation4], %s3824
        %4210 = vst.msk [vmem:[%s4209 + $0x2] sm:$0xff] %vm388, %v4204
        %4211 = vst.msk [vmem:[%s4209 + $0xa] sm:$0xff] %vm388, %v4205
        %4212 = vst.msk [vmem:[%s4209 + $0x12] sm:$0xff] %vm388, %v4206
        %4213 = vst.msk [vmem:[%s4209 + $0x1a] sm:$0xff] %vm388, %v4207
        %vm4214 = vcmask 260096
        %4215 = vst.msk [vmem:[%s4209 + $0x22] sm:$0x7f] %vm4214, %v4208
      $region76: #{decoder_forward.1} parent=63 // loop_footer
        %s3526 = sadd.s32 1, %s3522
      $region77: #{decoder_forward.1} parent=63 // loop_footer_branch
        %3521 = sbr.rel target = $region73
      $region78: #{decoder_forward.1} parent=63 // loop_exit
        _
      %v4216 = vlaneseq
      %v4217 = vshrl.u32 %v4216, 7
      %v4218 = vadd.s32 %v4217, 8
      %v4219 = vadd.s32 %v4217, 16
      %v4220 = vadd.s32 %v4217, 24
      %v4221 = vadd.s32 %v4217, 32
      %v4222 = vadd.s32 %v4217, 40
      %v4223 = vadd.s32 %v4217, 48
      %v4224 = vadd.s32 %v4217, 56
      %v4225 = vadd.s32 %v4217, 64
      %v4226 = vadd.s32 %v4217, 72
      %v4227 = vadd.s32 %v4217, 80
      %v4228 = vlaneseq
      %v4229 = vand.u32 %v4228, 127
      %v4230 = vmul.u32 %v4229, 2
      %vm4231 = vcmp.eq.s32.totalorder %v4217, %v4230
      %vm4232 = vcmp.eq.s32.totalorder %v4218, %v4230
      %vm4233 = vcmp.eq.s32.totalorder %v4219, %v4230
      %vm4234 = vcmp.eq.s32.totalorder %v4220, %v4230
      %vm4235 = vcmp.eq.s32.totalorder %v4221, %v4230
      %vm4236 = vcmp.eq.s32.totalorder %v4222, %v4230
      %vm4237 = vcmp.eq.s32.totalorder %v4223, %v4230
      %vm4238 = vcmp.eq.s32.totalorder %v4224, %v4230
      %vm4239 = vcmp.eq.s32.totalorder %v4225, %v4230
      %vm4240 = vcmp.eq.s32.totalorder %v4226, %v4230
      %vm4241 = vcmp.eq.s32.totalorder %v4227, %v4230
      %v4242 = vsel %vm4231, 1, 0
      %v4243 = vsel %vm4232, 1, 0
      %v4244 = vsel %vm4233, 1, 0
      %v4245 = vsel %vm4234, 1, 0
      %v4246 = vsel %vm4235, 1, 0
      %v4247 = vsel %vm4236, 1, 0
      %v4248 = vsel %vm4237, 1, 0
      %v4249 = vsel %vm4238, 1, 0
      %v4250 = vsel %vm4239, 1, 0
      %v4251 = vsel %vm4240, 1, 0
      %v4252 = vsel %vm4241, 1, 0
      %v4253 = vcvt.s32.f32 %v4242
      %v4254 = vcvt.s32.f32 %v4243
      %v4255 = vcvt.s32.f32 %v4244
      %v4256 = vcvt.s32.f32 %v4245
      %v4257 = vcvt.s32.f32 %v4246
      %v4258 = vcvt.s32.f32 %v4247
      %v4259 = vcvt.s32.f32 %v4248
      %v4260 = vcvt.s32.f32 %v4249
      %v4261 = vcvt.s32.f32 %v4250
      %v4262 = vcvt.s32.f32 %v4251
      %v4263 = vcvt.s32.f32 %v4252
      %v4264 = vld [vmem:[%s5] sm:$0xf]
      %v4265 = vld [vmem:[%s5 + $0x4] sm:$0xf]
      %v4266 = vld [vmem:[%s5 + $0x8] sm:$0xf]
      %v4267 = vld [vmem:[%s5 + $0xc] sm:$0xf]
      %v4268 = vld [vmem:[%s5 + $0x10] sm:$0xf]
      %v4269 = vld [vmem:[%s5 + $0x14] sm:$0xf]
      %v4270 = vld [vmem:[%s5 + $0x18] sm:$0xf]
      %v4271 = vld [vmem:[%s5 + $0x1c] sm:$0xf]
      %v4272 = vld [vmem:[%s5 + $0x20] sm:$0xf]
      %v4273 = vld [vmem:[%s5 + $0x24] sm:$0xf]
      %v4274 = vld [vmem:[%s5 + $0x28] sm:$0xf]
      %v4275 = vld [vmem:[%s5 + $0x2c] sm:$0xf]
      %v4276 = vld [vmem:[%s5 + $0x30] sm:$0xf]
      %v4277 = vld [vmem:[%s5 + $0x34] sm:$0xf]
      %v4278 = vld [vmem:[%s5 + $0x38] sm:$0xf]
      %v4279 = vld [vmem:[%s5 + $0x3c] sm:$0xf]
      %v4280 = vld [vmem:[%s5 + $0x40] sm:$0xf]
      %v4281 = vld [vmem:[%s5 + $0x44] sm:$0xf]
      %v4282 = vld [vmem:[%s5 + $0x48] sm:$0xf]
      %v4283 = vld [vmem:[%s5 + $0x4c] sm:$0xf]
      %v4284 = vld [vmem:[%s5 + $0x50] sm:$0xf]
      %v4285 = vld [vmem:[%s5 + $0x54] sm:$0xf]
      %v4286 = vld [vmem:[%s5 + $0x58] sm:$0xf]
      %v4287 = vld [vmem:[%s5 + $0x5c] sm:$0xf]
      %v4288 = vld [vmem:[%s5 + $0x60] sm:$0xf]
      %v4289 = vld [vmem:[%s5 + $0x64] sm:$0xf]
      %v4290 = vld [vmem:[%s5 + $0x68] sm:$0xf]
      %v4291 = vld [vmem:[%s5 + $0x6c] sm:$0xf]
      %v4292 = vld [vmem:[%s5 + $0x70] sm:$0xf]
      %v4293 = vld [vmem:[%s5 + $0x74] sm:$0xf]
      %v4294 = vld [vmem:[%s5 + $0x78] sm:$0xf]
      %v4295 = vld [vmem:[%s5 + $0x7c] sm:$0xf]
      %v4296 = vld [vmem:[%s5 + $0x80] sm:$0xf]
      %v4297 = vld [vmem:[%s5 + $0x84] sm:$0xf]
      %v4298 = vld [vmem:[%s5 + $0x88] sm:$0xf]
      %v4299 = vld [vmem:[%s5 + $0x8c] sm:$0xf]
      %v4300 = vld [vmem:[%s6] sm:$0x1]
      loop: start=0, step=1, limit=41
      $region79: #{decoder_forward.1} parent=63 // loop_pre_header
        _
      $region80: #{decoder_forward.1} parent=63 // loop_header
        %s4302 = sphi 0, %s4306
        %p4303 = scmp.ge.s32.totalorder %s4302, 41
      $region81: #{decoder_forward.1} parent=63 // loop_header_branch
        %4305 = sbr.rel (%p4303) target = $region85
      $region82: #{decoder_forward.1} parent=63 // loop_body
        %s4307 = smul.u32 %s4302, 48
        %s4308 = scalar_lea.vmem [#allocation4], %s4307
        %v4309 = vld [vmem:[%s4308] sm:$0xff]
        %v4310 = vld [vmem:[%s4308 + $0x8] sm:$0xff]
        %v4311 = vld [vmem:[%s4308 + $0x10] sm:$0xff]
        %v4312 = vld [vmem:[%s4308 + $0x18] sm:$0xff]
        %v4313 = vld [vmem:[%s4308 + $0x20] sm:$0xff]
        %v4314 = vld [vmem:[%s4308 + $0x28] sm:$0x7]
        %v4315 = vpack.c.bf16 %v4309, %v4309
        %v4316 = vpack.c.bf16 %v4310, %v4310
        %v4317 = vpack.c.bf16 %v4311, %v4311
        %v4318 = vpack.c.bf16 %v4312, %v4312
        %v4319 = vpack.c.bf16 %v4313, %v4313
        %v4320 = vpack.c.bf16 %v4314, %v4314
        %vm4321 = vcmask 257024
        %4322 = vst.msk [vmem:[#allocation2] sm:$0xf] %vm4321, %v4315
        %4323 = vst.msk [vmem:[#allocation2 + $0xc] sm:$0xf] %vm4321, %v4316
        %4324 = vst.msk [vmem:[#allocation2 + $0x18] sm:$0xf] %vm4321, %v4317
        %4325 = vst.msk [vmem:[#allocation2 + $0x24] sm:$0xf] %vm4321, %v4318
        %4326 = vst.msk [vmem:[#allocation2 + $0x30] sm:$0xf] %vm4321, %v4319
        %vm4327 = vcmask 253952
        %vm4328 = vsmask.f32 256
        %vm4329 = vmand %vm4327, %vm4328
        %v4330 = vld [vmem:[#allocation2 + $0x3c] sm:$0x1]
        %v4331 = vsel %vm4329, %v4320, %v4330
        %4332 = vst [vmem:[#allocation2 + $0x3c] sm:$0x1] %v4331
        %vm4333 = vsmask.f32 3328
        %vm4334 = vsmask.f32 7440
        %vm4335 = vmor %vm4333, %vm4334
        %v4337 = vshrl.u32 %v4315, 16
        %v4339 = vrot.slane %v4337, 4
        %v4340 = vshll.u32 %v4315, 16
        %v4342 = vrot.slane %v4340, 5
        %v4343 = vor.u32 %v4339, %v4342
        %v4344 = vrot.slane %v4343, 4
        %v4346 = vshll.u32 %v4316, 16
        %v4348 = vrot.slane %v4346, 5
        %v4349 = vsel %vm4335, %v4344, %v4348
        %v4350 = vshrl.u32 %v4316, 16
        %v4352 = vrot.slane %v4350, 4
        %v4353 = vor.u32 %v4352, %v4348
        %v4354 = vrot.slane %v4353, 4
        %v4356 = vshll.u32 %v4317, 16
        %v4358 = vrot.slane %v4356, 5
        %v4359 = vsel %vm4335, %v4354, %v4358
        %v4360 = vshrl.u32 %v4317, 16
        %v4362 = vrot.slane %v4360, 4
        %v4363 = vor.u32 %v4362, %v4358
        %v4364 = vrot.slane %v4363, 4
        %v4366 = vshll.u32 %v4318, 16
        %v4368 = vrot.slane %v4366, 5
        %v4369 = vsel %vm4335, %v4364, %v4368
        %v4370 = vshrl.u32 %v4318, 16
        %v4372 = vrot.slane %v4370, 4
        %v4373 = vor.u32 %v4372, %v4368
        %v4374 = vrot.slane %v4373, 4
        %v4376 = vshll.u32 %v4319, 16
        %v4378 = vrot.slane %v4376, 5
        %v4379 = vsel %vm4335, %v4374, %v4378
        %v4380 = vshrl.u32 %v4319, 16
        %v4382 = vrot.slane %v4380, 4
        %v4383 = vor.u32 %v4382, %v4378
        %v4384 = vrot.slane %v4383, 4
        %v4386 = vshll.u32 %v4320, 16
        %v4388 = vrot.slane %v4386, 5
        %v4389 = vsel %vm4335, %v4384, %v4388
        %v4390 = vshrl.u32 %v4320, 16
        %v4392 = vrot.slane %v4390, 4
        %v4393 = vrot.slane %v4392, 4
        %4394 = vrot.lane.b32.xlu0 %v4349, 32
        %v4395 = vpop.permute.xlu0 %4394
        %4396 = vrot.lane.b32.xlu0 %v4359, 32
        %v4397 = vpop.permute.xlu0 %4396
        %4398 = vrot.lane.b32.xlu0 %v4369, 32
        %v4399 = vpop.permute.xlu0 %4398
        %4400 = vrot.lane.b32.xlu0 %v4379, 32
        %v4401 = vpop.permute.xlu0 %4400
        %4402 = vrot.lane.b32.xlu0 %v4389, 32
        %v4403 = vpop.permute.xlu0 %4402
        %4404 = vrot.lane.b32.xlu0 %v4393, 32
        %v4405 = vpop.permute.xlu0 %4404
        %vm4412 = vcmask 519424
        %4413 = vst.msk [vmem:[#allocation2] sm:$0xf] %vm4412, %v4395
        %4414 = vst.msk [vmem:[#allocation2 + $0xc] sm:$0xf] %vm4412, %v4397
        %4415 = vst.msk [vmem:[#allocation2 + $0x18] sm:$0xf] %vm4412, %v4399
        %4416 = vst.msk [vmem:[#allocation2 + $0x24] sm:$0xf] %vm4412, %v4401
        %4417 = vst.msk [vmem:[#allocation2 + $0x30] sm:$0xf] %vm4412, %v4403
        %vm4418 = vcmask 516352
        %vm4419 = vmand %vm4418, %vm4328
        %v4420 = vld [vmem:[#allocation2 + $0x3c] sm:$0x1]
        %v4421 = vsel %vm4419, %v4405, %v4420
        %4422 = vst [vmem:[#allocation2 + $0x3c] sm:$0x1] %v4421
        %vm4429 = vcmask 1042432
        %vm4430 = vcmask 1046532
        %vm4431 = vmor %vm4429, %vm4430
        %v4432 = vrot.slane %v4315, 5
        %v4433 = vrot.slane %v4432, 4
        %v4434 = vrot.slane %v4316, 5
        %v4435 = vsel %vm4431, %v4433, %v4434
        %v4436 = vrot.slane %v4434, 4
        %v4437 = vrot.slane %v4317, 5
        %v4438 = vsel %vm4431, %v4436, %v4437
        %v4439 = vrot.slane %v4437, 4
        %v4440 = vrot.slane %v4318, 5
        %v4441 = vsel %vm4431, %v4439, %v4440
        %v4442 = vrot.slane %v4440, 4
        %v4443 = vrot.slane %v4319, 5
        %v4444 = vsel %vm4431, %v4442, %v4443
        %v4445 = vrot.slane %v4443, 4
        %v4446 = vrot.slane %v4320, 5
        %v4447 = vsel %vm4431, %v4445, %v4446
        %v4448 = vrot.slane %v4446, 4
        %4449 = vrot.lane.b32.xlu0 %v4435, 64
        %v4450 = vpop.permute.xlu0 %4449
        %4451 = vrot.lane.b32.xlu0 %v4438, 64
        %v4452 = vpop.permute.xlu0 %4451
        %4453 = vrot.lane.b32.xlu0 %v4441, 64
        %v4454 = vpop.permute.xlu0 %4453
        %4455 = vrot.lane.b32.xlu0 %v4444, 64
        %v4456 = vpop.permute.xlu0 %4455
        %4457 = vrot.lane.b32.xlu0 %v4447, 64
        %v4458 = vpop.permute.xlu0 %4457
        %4459 = vrot.lane.b32.xlu0 %v4448, 64
        %v4460 = vpop.permute.xlu0 %4459
        %vm4467 = vcmask 781824
        %4468 = vst.msk [vmem:[#allocation2] sm:$0xf] %vm4467, %v4450
        %4469 = vst.msk [vmem:[#allocation2 + $0xc] sm:$0xf] %vm4467, %v4452
        %4470 = vst.msk [vmem:[#allocation2 + $0x18] sm:$0xf] %vm4467, %v4454
        %4471 = vst.msk [vmem:[#allocation2 + $0x24] sm:$0xf] %vm4467, %v4456
        %4472 = vst.msk [vmem:[#allocation2 + $0x30] sm:$0xf] %vm4467, %v4458
        %vm4473 = vcmask 778752
        %vm4474 = vmand %vm4473, %vm4328
        %v4475 = vld [vmem:[#allocation2 + $0x3c] sm:$0x1]
        %v4476 = vsel %vm4474, %v4460, %v4475
        %4477 = vst [vmem:[#allocation2 + $0x3c] sm:$0x1] %v4476
        %s4478 = sadd.s32 %s4302, 1
        %s4479 = smul.u32 %s4478, 48
        %s4480 = scalar_lea.vmem [#allocation4], %s4479
        %v4481 = vld [vmem:[%s4480] sm:$0xff]
        %v4482 = vld [vmem:[%s4480 + $0x8] sm:$0xff]
        %v4483 = vld [vmem:[%s4480 + $0x10] sm:$0xff]
        %v4484 = vld [vmem:[%s4480 + $0x18] sm:$0xff]
        %v4485 = vld [vmem:[%s4480 + $0x20] sm:$0xff]
        %v4486 = vld [vmem:[%s4480 + $0x28] sm:$0x7]
        %v4487 = vpack.c.bf16 %v4481, %v4481
        %v4488 = vpack.c.bf16 %v4482, %v4482
        %v4489 = vpack.c.bf16 %v4483, %v4483
        %v4490 = vpack.c.bf16 %v4484, %v4484
        %v4491 = vpack.c.bf16 %v4485, %v4485
        %v4492 = vpack.c.bf16 %v4486, %v4486
        %4499 = vrot.lane.b32.xlu0 %v4487, 96
        %v4500 = vpop.permute.xlu0 %4499
        %4501 = vrot.lane.b32.xlu0 %v4488, 96
        %v4502 = vpop.permute.xlu0 %4501
        %4503 = vrot.lane.b32.xlu0 %v4489, 96
        %v4504 = vpop.permute.xlu0 %4503
        %4505 = vrot.lane.b32.xlu0 %v4490, 96
        %v4506 = vpop.permute.xlu0 %4505
        %4507 = vrot.lane.b32.xlu0 %v4491, 96
        %v4508 = vpop.permute.xlu0 %4507
        %4509 = vrot.lane.b32.xlu0 %v4492, 96
        %v4510 = vpop.permute.xlu0 %4509
        %vm4517 = vcmask 1044224
        %4518 = vst.msk [vmem:[#allocation2] sm:$0xf] %vm4517, %v4500
        %4519 = vst.msk [vmem:[#allocation2 + $0xc] sm:$0xf] %vm4517, %v4502
        %4520 = vst.msk [vmem:[#allocation2 + $0x18] sm:$0xf] %vm4517, %v4504
        %4521 = vst.msk [vmem:[#allocation2 + $0x24] sm:$0xf] %vm4517, %v4506
        %4522 = vst.msk [vmem:[#allocation2 + $0x30] sm:$0xf] %vm4517, %v4508
        %vm4523 = vcmask 1041152
        %vm4524 = vmand %vm4523, %vm4328
        %v4525 = vld [vmem:[#allocation2 + $0x3c] sm:$0x1]
        %v4526 = vsel %vm4524, %v4510, %v4525
        %4527 = vst [vmem:[#allocation2 + $0x3c] sm:$0x1] %v4526
        %v4529 = vshrl.u32 %v4487, 16
        %v4531 = vrot.slane %v4529, 4
        %v4532 = vshll.u32 %v4487, 16
        %v4534 = vrot.slane %v4532, 5
        %v4535 = vor.u32 %v4531, %v4534
        %v4536 = vrot.slane %v4535, 4
        %v4538 = vshll.u32 %v4488, 16
        %v4540 = vrot.slane %v4538, 5
        %v4541 = vsel %vm4335, %v4536, %v4540
        %v4542 = vshrl.u32 %v4488, 16
        %v4544 = vrot.slane %v4542, 4
        %v4545 = vor.u32 %v4544, %v4540
        %v4546 = vrot.slane %v4545, 4
        %v4548 = vshll.u32 %v4489, 16
        %v4550 = vrot.slane %v4548, 5
        %v4551 = vsel %vm4335, %v4546, %v4550
        %v4552 = vshrl.u32 %v4489, 16
        %v4554 = vrot.slane %v4552, 4
        %v4555 = vor.u32 %v4554, %v4550
        %v4556 = vrot.slane %v4555, 4
        %v4558 = vshll.u32 %v4490, 16
        %v4560 = vrot.slane %v4558, 5
        %v4561 = vsel %vm4335, %v4556, %v4560
        %v4562 = vshrl.u32 %v4490, 16
        %v4564 = vrot.slane %v4562, 4
        %v4565 = vor.u32 %v4564, %v4560
        %v4566 = vrot.slane %v4565, 4
        %v4568 = vshll.u32 %v4491, 16
        %v4570 = vrot.slane %v4568, 5
        %v4571 = vsel %vm4335, %v4566, %v4570
        %v4572 = vshrl.u32 %v4491, 16
        %v4574 = vrot.slane %v4572, 4
        %v4575 = vor.u32 %v4574, %v4570
        %v4576 = vrot.slane %v4575, 4
        %v4578 = vshll.u32 %v4492, 16
        %v4580 = vrot.slane %v4578, 5
        %v4581 = vsel %vm4335, %v4576, %v4580
        %v4582 = vshrl.u32 %v4492, 16
        %v4584 = vrot.slane %v4582, 4
        %v4585 = vrot.slane %v4584, 4
        %4592 = vst.msk [vmem:[#allocation2 + $0x4] sm:$0xf] %vm4321, %v4541
        %4593 = vst.msk [vmem:[#allocation2 + $0x10] sm:$0xf] %vm4321, %v4551
        %4594 = vst.msk [vmem:[#allocation2 + $0x1c] sm:$0xf] %vm4321, %v4561
        %4595 = vst.msk [vmem:[#allocation2 + $0x28] sm:$0xf] %vm4321, %v4571
        %4596 = vst.msk [vmem:[#allocation2 + $0x34] sm:$0xf] %vm4321, %v4581
        %v4597 = vld [vmem:[#allocation2 + $0x40] sm:$0x1]
        %v4598 = vsel %vm4329, %v4585, %v4597
        %4599 = vst [vmem:[#allocation2 + $0x40] sm:$0x1] %v4598
        %v4600 = vrot.slane %v4487, 5
        %v4601 = vrot.slane %v4600, 4
        %v4602 = vrot.slane %v4488, 5
        %v4603 = vsel %vm4431, %v4601, %v4602
        %v4604 = vrot.slane %v4602, 4
        %v4605 = vrot.slane %v4489, 5
        %v4606 = vsel %vm4431, %v4604, %v4605
        %v4607 = vrot.slane %v4605, 4
        %v4608 = vrot.slane %v4490, 5
        %v4609 = vsel %vm4431, %v4607, %v4608
        %v4610 = vrot.slane %v4608, 4
        %v4611 = vrot.slane %v4491, 5
        %v4612 = vsel %vm4431, %v4610, %v4611
        %v4613 = vrot.slane %v4611, 4
        %v4614 = vrot.slane %v4492, 5
        %v4615 = vsel %vm4431, %v4613, %v4614
        %v4616 = vrot.slane %v4614, 4
        %4617 = vrot.lane.b32.xlu0 %v4603, 32
        %v4618 = vpop.permute.xlu0 %4617
        %4619 = vrot.lane.b32.xlu0 %v4606, 32
        %v4620 = vpop.permute.xlu0 %4619
        %4621 = vrot.lane.b32.xlu0 %v4609, 32
        %v4622 = vpop.permute.xlu0 %4621
        %4623 = vrot.lane.b32.xlu0 %v4612, 32
        %v4624 = vpop.permute.xlu0 %4623
        %4625 = vrot.lane.b32.xlu0 %v4615, 32
        %v4626 = vpop.permute.xlu0 %4625
        %4627 = vrot.lane.b32.xlu0 %v4616, 32
        %v4628 = vpop.permute.xlu0 %4627
        %4635 = vst.msk [vmem:[#allocation2 + $0x4] sm:$0xf] %vm4412, %v4618
        %4636 = vst.msk [vmem:[#allocation2 + $0x10] sm:$0xf] %vm4412, %v4620
        %4637 = vst.msk [vmem:[#allocation2 + $0x1c] sm:$0xf] %vm4412, %v4622
        %4638 = vst.msk [vmem:[#allocation2 + $0x28] sm:$0xf] %vm4412, %v4624
        %4639 = vst.msk [vmem:[#allocation2 + $0x34] sm:$0xf] %vm4412, %v4626
        %v4640 = vld [vmem:[#allocation2 + $0x40] sm:$0x1]
        %v4641 = vsel %vm4419, %v4628, %v4640
        %4642 = vst [vmem:[#allocation2 + $0x40] sm:$0x1] %v4641
        %s4643 = sadd.s32 %s4302, 2
        %s4644 = smul.u32 %s4643, 48
        %s4645 = scalar_lea.vmem [#allocation4], %s4644
        %v4646 = vld [vmem:[%s4645] sm:$0xff]
        %v4647 = vld [vmem:[%s4645 + $0x8] sm:$0xff]
        %v4648 = vld [vmem:[%s4645 + $0x10] sm:$0xff]
        %v4649 = vld [vmem:[%s4645 + $0x18] sm:$0xff]
        %v4650 = vld [vmem:[%s4645 + $0x20] sm:$0xff]
        %v4651 = vld [vmem:[%s4645 + $0x28] sm:$0x7]
        %v4652 = vpack.c.bf16 %v4646, %v4646
        %v4653 = vpack.c.bf16 %v4647, %v4647
        %v4654 = vpack.c.bf16 %v4648, %v4648
        %v4655 = vpack.c.bf16 %v4649, %v4649
        %v4656 = vpack.c.bf16 %v4650, %v4650
        %v4657 = vpack.c.bf16 %v4651, %v4651
        %4664 = vrot.lane.b32.xlu0 %v4652, 64
        %v4665 = vpop.permute.xlu0 %4664
        %4666 = vrot.lane.b32.xlu0 %v4653, 64
        %v4667 = vpop.permute.xlu0 %4666
        %4668 = vrot.lane.b32.xlu0 %v4654, 64
        %v4669 = vpop.permute.xlu0 %4668
        %4670 = vrot.lane.b32.xlu0 %v4655, 64
        %v4671 = vpop.permute.xlu0 %4670
        %4672 = vrot.lane.b32.xlu0 %v4656, 64
        %v4673 = vpop.permute.xlu0 %4672
        %4674 = vrot.lane.b32.xlu0 %v4657, 64
        %v4675 = vpop.permute.xlu0 %4674
        %4682 = vst.msk [vmem:[#allocation2 + $0x4] sm:$0xf] %vm4467, %v4665
        %4683 = vst.msk [vmem:[#allocation2 + $0x10] sm:$0xf] %vm4467, %v4667
        %4684 = vst.msk [vmem:[#allocation2 + $0x1c] sm:$0xf] %vm4467, %v4669
        %4685 = vst.msk [vmem:[#allocation2 + $0x28] sm:$0xf] %vm4467, %v4671
        %4686 = vst.msk [vmem:[#allocation2 + $0x34] sm:$0xf] %vm4467, %v4673
        %v4687 = vld [vmem:[#allocation2 + $0x40] sm:$0x1]
        %v4688 = vsel %vm4474, %v4675, %v4687
        %4689 = vst [vmem:[#allocation2 + $0x40] sm:$0x1] %v4688
        %v4691 = vshrl.u32 %v4652, 16
        %v4693 = vrot.slane %v4691, 4
        %v4694 = vshll.u32 %v4652, 16
        %v4696 = vrot.slane %v4694, 5
        %v4697 = vor.u32 %v4693, %v4696
        %v4698 = vrot.slane %v4697, 4
        %v4700 = vshll.u32 %v4653, 16
        %v4702 = vrot.slane %v4700, 5
        %v4703 = vsel %vm4335, %v4698, %v4702
        %v4704 = vshrl.u32 %v4653, 16
        %v4706 = vrot.slane %v4704, 4
        %v4707 = vor.u32 %v4706, %v4702
        %v4708 = vrot.slane %v4707, 4
        %v4710 = vshll.u32 %v4654, 16
        %v4712 = vrot.slane %v4710, 5
        %v4713 = vsel %vm4335, %v4708, %v4712
        %v4714 = vshrl.u32 %v4654, 16
        %v4716 = vrot.slane %v4714, 4
        %v4717 = vor.u32 %v4716, %v4712
        %v4718 = vrot.slane %v4717, 4
        %v4720 = vshll.u32 %v4655, 16
        %v4722 = vrot.slane %v4720, 5
        %v4723 = vsel %vm4335, %v4718, %v4722
        %v4724 = vshrl.u32 %v4655, 16
        %v4726 = vrot.slane %v4724, 4
        %v4727 = vor.u32 %v4726, %v4722
        %v4728 = vrot.slane %v4727, 4
        %v4730 = vshll.u32 %v4656, 16
        %v4732 = vrot.slane %v4730, 5
        %v4733 = vsel %vm4335, %v4728, %v4732
        %v4734 = vshrl.u32 %v4656, 16
        %v4736 = vrot.slane %v4734, 4
        %v4737 = vor.u32 %v4736, %v4732
        %v4738 = vrot.slane %v4737, 4
        %v4740 = vshll.u32 %v4657, 16
        %v4742 = vrot.slane %v4740, 5
        %v4743 = vsel %vm4335, %v4738, %v4742
        %v4744 = vshrl.u32 %v4657, 16
        %v4746 = vrot.slane %v4744, 4
        %v4747 = vrot.slane %v4746, 4
        %4748 = vrot.lane.b32.xlu0 %v4703, 96
        %v4749 = vpop.permute.xlu0 %4748
        %4750 = vrot.lane.b32.xlu0 %v4713, 96
        %v4751 = vpop.permute.xlu0 %4750
        %4752 = vrot.lane.b32.xlu0 %v4723, 96
        %v4753 = vpop.permute.xlu0 %4752
        %4754 = vrot.lane.b32.xlu0 %v4733, 96
        %v4755 = vpop.permute.xlu0 %4754
        %4756 = vrot.lane.b32.xlu0 %v4743, 96
        %v4757 = vpop.permute.xlu0 %4756
        %4758 = vrot.lane.b32.xlu0 %v4747, 96
        %v4759 = vpop.permute.xlu0 %4758
        %4766 = vst.msk [vmem:[#allocation2 + $0x4] sm:$0xf] %vm4517, %v4749
        %4767 = vst.msk [vmem:[#allocation2 + $0x10] sm:$0xf] %vm4517, %v4751
        %4768 = vst.msk [vmem:[#allocation2 + $0x1c] sm:$0xf] %vm4517, %v4753
        %4769 = vst.msk [vmem:[#allocation2 + $0x28] sm:$0xf] %vm4517, %v4755
        %4770 = vst.msk [vmem:[#allocation2 + $0x34] sm:$0xf] %vm4517, %v4757
        %v4771 = vld [vmem:[#allocation2 + $0x40] sm:$0x1]
        %v4772 = vsel %vm4524, %v4759, %v4771
        %4773 = vst [vmem:[#allocation2 + $0x40] sm:$0x1] %v4772
        %v4774 = vrot.slane %v4652, 5
        %v4775 = vrot.slane %v4774, 4
        %v4776 = vrot.slane %v4653, 5
        %v4777 = vsel %vm4431, %v4775, %v4776
        %v4778 = vrot.slane %v4776, 4
        %v4779 = vrot.slane %v4654, 5
        %v4780 = vsel %vm4431, %v4778, %v4779
        %v4781 = vrot.slane %v4779, 4
        %v4782 = vrot.slane %v4655, 5
        %v4783 = vsel %vm4431, %v4781, %v4782
        %v4784 = vrot.slane %v4782, 4
        %v4785 = vrot.slane %v4656, 5
        %v4786 = vsel %vm4431, %v4784, %v4785
        %v4787 = vrot.slane %v4785, 4
        %v4788 = vrot.slane %v4657, 5
        %v4789 = vsel %vm4431, %v4787, %v4788
        %v4790 = vrot.slane %v4788, 4
        %4797 = vst.msk [vmem:[#allocation2 + $0x8] sm:$0xf] %vm4321, %v4777
        %4798 = vst.msk [vmem:[#allocation2 + $0x14] sm:$0xf] %vm4321, %v4780
        %4799 = vst.msk [vmem:[#allocation2 + $0x20] sm:$0xf] %vm4321, %v4783
        %4800 = vst.msk [vmem:[#allocation2 + $0x2c] sm:$0xf] %vm4321, %v4786
        %4801 = vst.msk [vmem:[#allocation2 + $0x38] sm:$0xf] %vm4321, %v4789
        %v4802 = vld [vmem:[#allocation2 + $0x44] sm:$0x1]
        %v4803 = vsel %vm4329, %v4790, %v4802
        %4804 = vst [vmem:[#allocation2 + $0x44] sm:$0x1] %v4803
        %v4805 = vld [vmem:[#allocation2] sm:$0xff]
        %v4806 = vld [vmem:[#allocation2 + $0x8] sm:$0xf]
        %v4807 = vld [vmem:[#allocation2 + $0xc] sm:$0xff]
        %v4808 = vld [vmem:[#allocation2 + $0x14] sm:$0xf]
        %v4809 = vld [vmem:[#allocation2 + $0x18] sm:$0xff]
        %v4810 = vld [vmem:[#allocation2 + $0x20] sm:$0xf]
        %v4811 = vld [vmem:[#allocation2 + $0x24] sm:$0xff]
        %v4812 = vld [vmem:[#allocation2 + $0x2c] sm:$0xf]
        %v4813 = vld [vmem:[#allocation2 + $0x30] sm:$0xff]
        %v4814 = vld [vmem:[#allocation2 + $0x38] sm:$0xf]
        %v4815 = vld [vmem:[#allocation2 + $0x3c] sm:$0x11]
        %v4816 = vld [vmem:[#allocation2 + $0x44] sm:$0x1]
        %v4818 = vperm.slane %v4300, 0
        %v4832 = vunpack.c.l.b16 %v4805
        %v4833 = vunpack.c.h.b16 %v4805
        %v4834 = vunpack.c.l.b16 %v4806
        %v4835 = vunpack.c.l.b16 %v4807
        %v4836 = vunpack.c.h.b16 %v4807
        %v4837 = vunpack.c.l.b16 %v4808
        %v4838 = vunpack.c.l.b16 %v4809
        %v4839 = vunpack.c.h.b16 %v4809
        %v4840 = vunpack.c.l.b16 %v4810
        %v4841 = vunpack.c.l.b16 %v4811
        %v4842 = vunpack.c.h.b16 %v4811
        %v4843 = vunpack.c.l.b16 %v4812
        %v4844 = vunpack.c.l.b16 %v4813
        %v4845 = vunpack.c.h.b16 %v4813
        %v4846 = vunpack.c.l.b16 %v4814
        %v4847 = vunpack.c.l.b16 %v4815
        %v4848 = vunpack.c.h.b16 %v4815
        %v4849 = vunpack.c.l.b16 %v4816
        %v4850 = vpack.c.b16 %v4835, %v4832
        %v4851 = vpack.c.b16 %v4836, %v4833
        %v4852 = vpack.c.b16 %v4837, %v4834
        %v4853 = vpack.c.b16 %v4841, %v4838
        %v4854 = vpack.c.b16 %v4842, %v4839
        %v4855 = vpack.c.b16 %v4843, %v4840
        %v4856 = vpack.c.b16 %v4847, %v4844
        %v4857 = vpack.c.b16 %v4848, %v4845
        %v4858 = vpack.c.b16 %v4849, %v4846
        %v4901 = vunpack.c.l.b16 %v4264
        %v4902 = vunpack.c.l.b16 %v4265
        %v4903 = vunpack.c.l.b16 %v4266
        %v4904 = vunpack.c.l.b16 %v4267
        %v4905 = vunpack.c.l.b16 %v4268
        %v4906 = vunpack.c.l.b16 %v4269
        %v4907 = vunpack.c.l.b16 %v4270
        %v4908 = vunpack.c.l.b16 %v4271
        %v4909 = vunpack.c.l.b16 %v4272
        %v4910 = vunpack.c.l.b16 %v4273
        %v4911 = vunpack.c.l.b16 %v4274
        %v4912 = vunpack.c.l.b16 %v4275
        %v4913 = vunpack.c.l.b16 %v4276
        %v4914 = vunpack.c.l.b16 %v4277
        %v4915 = vunpack.c.l.b16 %v4278
        %v4916 = vunpack.c.l.b16 %v4279
        %v4917 = vunpack.c.l.b16 %v4280
        %v4918 = vunpack.c.l.b16 %v4281
        %v4919 = vunpack.c.l.b16 %v4282
        %v4920 = vunpack.c.l.b16 %v4283
        %v4921 = vunpack.c.l.b16 %v4284
        %v4922 = vunpack.c.l.b16 %v4285
        %v4923 = vunpack.c.l.b16 %v4286
        %v4924 = vunpack.c.l.b16 %v4287
        %v4925 = vunpack.c.l.b16 %v4288
        %v4926 = vunpack.c.l.b16 %v4289
        %v4927 = vunpack.c.l.b16 %v4290
        %v4928 = vunpack.c.l.b16 %v4291
        %v4929 = vunpack.c.l.b16 %v4292
        %v4930 = vunpack.c.l.b16 %v4293
        %v4931 = vunpack.c.l.b16 %v4294
        %v4932 = vunpack.c.l.b16 %v4295
        %v4933 = vunpack.c.l.b16 %v4296
        %v4934 = vunpack.c.l.b16 %v4297
        %v4935 = vunpack.c.l.b16 %v4298
        %v4936 = vunpack.c.l.b16 %v4299
        %v4937 = vpack.c.b16 %v4902, %v4901
        %v4938 = vpack.c.b16 %v4904, %v4903
        %v4939 = vpack.c.b16 %v4906, %v4905
        %v4940 = vpack.c.b16 %v4908, %v4907
        %v4941 = vpack.c.b16 %v4910, %v4909
        %v4942 = vpack.c.b16 %v4912, %v4911
        %v4943 = vpack.c.b16 %v4914, %v4913
        %v4944 = vpack.c.b16 %v4916, %v4915
        %v4945 = vpack.c.b16 %v4918, %v4917
        %v4946 = vpack.c.b16 %v4920, %v4919
        %v4947 = vpack.c.b16 %v4922, %v4921
        %v4948 = vpack.c.b16 %v4924, %v4923
        %v4949 = vpack.c.b16 %v4926, %v4925
        %v4950 = vpack.c.b16 %v4928, %v4927
        %v4951 = vpack.c.b16 %v4930, %v4929
        %v4952 = vpack.c.b16 %v4932, %v4931
        %v4953 = vpack.c.b16 %v4934, %v4933
        %v4954 = vpack.c.b16 %v4936, %v4935
        %v4974 = vsel %vm388, %v4852, 0
        %v4977 = vsel %vm388, %v4855, 0
        %v4980 = vsel %vm388, %v4858, 0
        %4982 = vmatpush.bf16.msra.mxu0 %v4944
        %4983 = vmatpush.bf16.msra.mxu0 %v4943
        %4984 = vmatpush.bf16.msra.mxu0 %v4942
        %4985 = vmatpush.bf16.msra.mxu0 %v4941
        %4986 = vmatpush.bf16.msra.mxu0 %v4940
        %4987 = vmatpush.bf16.msra.mxu0 %v4939
        %4988 = vmatpush.bf16.msra.mxu0 %v4938
        %4989 = vmatpush.bf16.msra.mxu0 %v4937
        %4990 = vmatmul.bf16.gmra.mxu0 %v4850
        %v4991 = vpop.f32.mrf.mxu0
        %v4992 = vadd.f32 %v4818, %v4991
        %v4993 = vpop.f32.mrf.mxu0
        %v4994 = vadd.f32 %v4818, %v4993
        %4995 = vmatmul.bf16.gmra.mxu0 %v4853
        %v4996 = vpop.f32.mrf.mxu0
        %v4997 = vadd.f32 %v4818, %v4996
        %v4998 = vpop.f32.mrf.mxu0
        %v4999 = vadd.f32 %v4818, %v4998
        %5000 = vmatmul.bf16.gmra.mxu0 %v4856
        %v5001 = vpop.f32.mrf.mxu0
        %v5002 = vadd.f32 %v4818, %v5001
        %v5003 = vpop.f32.mrf.mxu0
        %v5004 = vadd.f32 %v4818, %v5003
        %5005 = vdwg.mxu0
        %5006 = vmatpush.bf16.msra.mxu0 %v4952
        %5007 = vmatpush.bf16.msra.mxu0 %v4951
        %5008 = vmatpush.bf16.msra.mxu0 %v4950
        %5009 = vmatpush.bf16.msra.mxu0 %v4949
        %5010 = vmatpush.bf16.msra.mxu0 %v4948
        %5011 = vmatpush.bf16.msra.mxu0 %v4947
        %5012 = vmatpush.bf16.msra.mxu0 %v4946
        %5013 = vmatpush.bf16.msra.mxu0 %v4945
        %5014 = vmatmul.bf16.gmra.mxu0 %v4851
        %v5015 = vpop.f32.mrf.mxu0
        %v5016 = vadd.f32 %v4992, %v5015
        %v5017 = vpop.f32.mrf.mxu0
        %v5018 = vadd.f32 %v4994, %v5017
        %5019 = vmatmul.bf16.gmra.mxu0 %v4854
        %v5020 = vpop.f32.mrf.mxu0
        %v5021 = vadd.f32 %v4997, %v5020
        %v5022 = vpop.f32.mrf.mxu0
        %v5023 = vadd.f32 %v4999, %v5022
        %5024 = vmatmul.bf16.gmra.mxu0 %v4857
        %v5025 = vpop.f32.mrf.mxu0
        %v5026 = vadd.f32 %v5002, %v5025
        %v5027 = vpop.f32.mrf.mxu0
        %v5028 = vadd.f32 %v5004, %v5027
        %5029 = vdwg.mxu0
        %5030 = vmatpush.bf16.msra.mxu0 0
        %5031 = vmatpush.bf16.msra.mxu0 0
        %5032 = vmatpush.bf16.msra.mxu0 0
        %5033 = vmatpush.bf16.msra.mxu0 0
        %5034 = vmatpush.bf16.msra.mxu0 0
        %5035 = vmatpush.bf16.msra.mxu0 0
        %5036 = vmatpush.bf16.msra.mxu0 %v4954
        %5037 = vmatpush.bf16.msra.mxu0 %v4953
        %5038 = vmatmul.bf16.gmra.mxu0 %v4974
        %v5039 = vpop.f32.mrf.mxu0
        %v5040 = vadd.f32 %v5016, %v5039
        %v5041 = vpop.f32.mrf.mxu0
        %v5042 = vadd.f32 %v5018, %v5041
        %5043 = vmatmul.bf16.gmra.mxu0 %v4977
        %v5044 = vpop.f32.mrf.mxu0
        %v5045 = vadd.f32 %v5021, %v5044
        %v5046 = vpop.f32.mrf.mxu0
        %v5047 = vadd.f32 %v5023, %v5046
        %5048 = vmatmul.bf16.gmra.mxu0 %v4980
        %v5049 = vpop.f32.mrf.mxu0
        %v5050 = vadd.f32 %v5026, %v5049
        %v5051 = vpop.f32.mrf.mxu0
        %v5052 = vadd.f32 %v5028, %v5051
        %5053 = vdwg.mxu0
        %v5054 = vmax.f32 %v5040, 0.0
        %v5055 = vmax.f32 %v5042, 0.0
        %v5056 = vmax.f32 %v5045, 0.0
        %v5057 = vmax.f32 %v5047, 0.0
        %v5058 = vmax.f32 %v5050, 0.0
        %v5059 = vmax.f32 %v5052, 0.0
        %vm5060 = vcmask 334848
        %v5062 = vsel %vm5060, %v4253, 0
        %v5065 = vsel %vm5060, %v4254, 0
        %v5068 = vsel %vm5060, %v4255, 0
        %v5071 = vsel %vm5060, %v4256, 0
        %v5074 = vsel %vm5060, %v4257, 0
        %v5077 = vsel %vm5060, %v4258, 0
        %v5080 = vsel %vm5060, %v4259, 0
        %v5083 = vsel %vm5060, %v4260, 0
        %v5086 = vsel %vm5060, %v4261, 0
        %v5089 = vsel %vm5060, %v4262, 0
        %v5092 = vsel %vm5060, %v4263, 0
        %vm5094 = vcmask 1040384
        %v5096 = vsel %vm5094, %v5059, 0
        %5098 = vmatpush.msra.mxu0 0.0
        %5099 = vmatpush.msra.mxu0 0.0
        %5100 = vmatpush.msra.mxu0 0.0
        %5101 = vmatpush.msra.mxu0 0.0
        %5102 = vmatpush.msra.mxu0 0.0
        %5103 = vmatpush.msra.mxu0 0.0
        %5104 = vmatpush.msra.mxu0 0.0
        %5105 = vmatpush.msra.mxu0 0.0
        %5106 = vmatpush.msra.mxu0 0.0
        %5107 = vmatpush.msra.mxu0 0.0
        %5108 = vmatpush.msra.mxu0 %v5096
        %5109 = vmatpush.msra.mxu0 %v5058
        %5110 = vmatpush.msra.mxu0 %v5057
        %5111 = vmatpush.msra.mxu0 %v5056
        %5112 = vmatpush.msra.mxu0 %v5055
        %5113 = vmatpush.msra.mxu0 %v5054
        %5114 = vmatmul.f32.gmra.mxu0 %v5062
        %v5115 = vpop.f32.mrf.mxu0
        %v5116 = vadd.f32 0.0, %v5115
        %5117 = vmatmul.f32.gmra.mxu0 %v5065
        %v5118 = vpop.f32.mrf.mxu0
        %v5119 = vadd.f32 0.0, %v5118
        %5120 = vmatmul.f32.gmra.mxu0 %v5068
        %v5121 = vpop.f32.mrf.mxu0
        %v5122 = vadd.f32 0.0, %v5121
        %5123 = vmatmul.f32.gmra.mxu0 %v5071
        %v5124 = vpop.f32.mrf.mxu0
        %v5125 = vadd.f32 0.0, %v5124
        %5126 = vmatmul.f32.gmra.mxu0 %v5074
        %v5127 = vpop.f32.mrf.mxu0
        %v5128 = vadd.f32 0.0, %v5127
        %5129 = vmatmul.f32.gmra.mxu0 %v5077
        %v5130 = vpop.f32.mrf.mxu0
        %v5131 = vadd.f32 0.0, %v5130
        %5132 = vmatmul.f32.gmra.mxu0 %v5080
        %v5133 = vpop.f32.mrf.mxu0
        %v5134 = vadd.f32 0.0, %v5133
        %5135 = vmatmul.f32.gmra.mxu0 %v5083
        %v5136 = vpop.f32.mrf.mxu0
        %v5137 = vadd.f32 0.0, %v5136
        %5138 = vmatmul.f32.gmra.mxu0 %v5086
        %v5139 = vpop.f32.mrf.mxu0
        %v5140 = vadd.f32 0.0, %v5139
        %5141 = vmatmul.f32.gmra.mxu0 %v5089
        %v5142 = vpop.f32.mrf.mxu0
        %v5143 = vadd.f32 0.0, %v5142
        %5144 = vmatmul.f32.gmra.mxu0 %v5092
        %v5145 = vpop.f32.mrf.mxu0
        %v5146 = vadd.f32 0.0, %v5145
        %5147 = vdwg.mxu0
        %s5148 = smul.u32 %s4302, 2
        %s5149 = sadd.s32 %s5148, 2
        %s5150 = smul.u32 %s5149, 88
        %s5151 = scalar_lea.vmem [#allocation5], %s5150
        %5152 = vst.msk [vmem:[%s5151 + $0x2] sm:$0xff] %vm388, %v5116
        %5153 = vst.msk [vmem:[%s5151 + $0xa] sm:$0xff] %vm388, %v5119
        %5154 = vst.msk [vmem:[%s5151 + $0x12] sm:$0xff] %vm388, %v5122
        %5155 = vst.msk [vmem:[%s5151 + $0x1a] sm:$0xff] %vm388, %v5125
        %5156 = vst.msk [vmem:[%s5151 + $0x22] sm:$0xff] %vm388, %v5128
        %5157 = vst.msk [vmem:[%s5151 + $0x2a] sm:$0xff] %vm388, %v5131
        %5158 = vst.msk [vmem:[%s5151 + $0x32] sm:$0xff] %vm388, %v5134
        %5159 = vst.msk [vmem:[%s5151 + $0x3a] sm:$0xff] %vm388, %v5137
        %5160 = vst.msk [vmem:[%s5151 + $0x42] sm:$0xff] %vm388, %v5140
        %5161 = vst.msk [vmem:[%s5151 + $0x4a] sm:$0xff] %vm388, %v5143
        %5162 = vst.msk [vmem:[%s5151 + $0x52] sm:$0x1] %vm394, %v5146
      $region83: #{decoder_forward.1} parent=63 // loop_footer
        %s4306 = sadd.s32 1, %s4302
      $region84: #{decoder_forward.1} parent=63 // loop_footer_branch
        %4301 = sbr.rel target = $region80
      $region85: #{decoder_forward.1} parent=63 // loop_exit
        _
      %v5163 = vld [vmem:[%s7] sm:$0xf]
      %v5164 = vld [vmem:[%s7 + $0x4] sm:$0xf]
      %v5165 = vld [vmem:[%s7 + $0x8] sm:$0xf]
      %v5166 = vld [vmem:[%s7 + $0xc] sm:$0xf]
      %v5167 = vld [vmem:[%s7 + $0x10] sm:$0xf]
      %v5168 = vld [vmem:[%s7 + $0x14] sm:$0xf]
      %v5169 = vld [vmem:[%s7 + $0x18] sm:$0xf]
      %v5170 = vld [vmem:[%s7 + $0x1c] sm:$0xf]
      %v5171 = vld [vmem:[%s7 + $0x20] sm:$0xf]
      %v5172 = vld [vmem:[%s7 + $0x24] sm:$0xf]
      %v5173 = vld [vmem:[%s7 + $0x28] sm:$0xf]
      %v5174 = vld [vmem:[%s7 + $0x2c] sm:$0xf]
      %v5175 = vld [vmem:[%s7 + $0x30] sm:$0xf]
      %v5176 = vld [vmem:[%s7 + $0x34] sm:$0xf]
      %v5177 = vld [vmem:[%s7 + $0x38] sm:$0xf]
      %v5178 = vld [vmem:[%s7 + $0x3c] sm:$0xf]
      %v5179 = vld [vmem:[%s7 + $0x40] sm:$0xf]
      %v5180 = vld [vmem:[%s7 + $0x44] sm:$0xf]
      %v5181 = vld [vmem:[%s7 + $0x48] sm:$0xf]
      %v5182 = vld [vmem:[%s7 + $0x4c] sm:$0xf]
      %v5183 = vld [vmem:[%s7 + $0x50] sm:$0xf]
      %v5184 = vld [vmem:[%s7 + $0x54] sm:$0xf]
      %v5185 = vld [vmem:[%s7 + $0x58] sm:$0xf]
      %v5186 = vld [vmem:[%s7 + $0x5c] sm:$0xf]
      %v5187 = vld [vmem:[%s7 + $0x60] sm:$0xf]
      %v5188 = vld [vmem:[%s7 + $0x64] sm:$0xf]
      %v5189 = vld [vmem:[%s7 + $0x68] sm:$0xf]
      %v5190 = vld [vmem:[%s7 + $0x6c] sm:$0xf]
      %v5191 = vld [vmem:[%s7 + $0x70] sm:$0xf]
      %v5192 = vld [vmem:[%s7 + $0x74] sm:$0xf]
      %v5193 = vld [vmem:[%s7 + $0x78] sm:$0xf]
      %v5194 = vld [vmem:[%s7 + $0x7c] sm:$0xf]
      %v5195 = vld [vmem:[%s7 + $0x80] sm:$0xf]
      %v5196 = vld [vmem:[%s7 + $0x84] sm:$0xf]
      %v5197 = vld [vmem:[%s7 + $0x88] sm:$0xf]
      %v5198 = vld [vmem:[%s7 + $0x8c] sm:$0xf]
      %v5199 = vld [vmem:[%s8] sm:$0x1]
      loop: start=0, step=1, limit=83
      $region86: #{decoder_forward.1} parent=63 // loop_pre_header
        _
      $region87: #{decoder_forward.1} parent=63 // loop_header
        %s5201 = sphi 0, %s5205
        %p5202 = scmp.ge.s32.totalorder %s5201, 83
      $region88: #{decoder_forward.1} parent=63 // loop_header_branch
        %5204 = sbr.rel (%p5202) target = $region92
      $region89: #{decoder_forward.1} parent=63 // loop_body
        %s5206 = smul.u32 %s5201, 88
        %s5207 = scalar_lea.vmem [#allocation5], %s5206
        %v5208 = vld [vmem:[%s5207] sm:$0xff]
        %v5209 = vld [vmem:[%s5207 + $0x8] sm:$0xff]
        %v5210 = vld [vmem:[%s5207 + $0x10] sm:$0xff]
        %v5211 = vld [vmem:[%s5207 + $0x18] sm:$0xff]
        %v5212 = vld [vmem:[%s5207 + $0x20] sm:$0xff]
        %v5213 = vld [vmem:[%s5207 + $0x28] sm:$0xff]
        %v5214 = vld [vmem:[%s5207 + $0x30] sm:$0xff]
        %v5215 = vld [vmem:[%s5207 + $0x38] sm:$0xff]
        %v5216 = vld [vmem:[%s5207 + $0x40] sm:$0xff]
        %v5217 = vld [vmem:[%s5207 + $0x48] sm:$0xff]
        %v5218 = vld [vmem:[%s5207 + $0x50] sm:$0x1f]
        %v5219 = vpack.c.bf16 %v5208, %v5208
        %v5220 = vpack.c.bf16 %v5209, %v5209
        %v5221 = vpack.c.bf16 %v5210, %v5210
        %v5222 = vpack.c.bf16 %v5211, %v5211
        %v5223 = vpack.c.bf16 %v5212, %v5212
        %v5224 = vpack.c.bf16 %v5213, %v5213
        %v5225 = vpack.c.bf16 %v5214, %v5214
        %v5226 = vpack.c.bf16 %v5215, %v5215
        %v5227 = vpack.c.bf16 %v5216, %v5216
        %v5228 = vpack.c.bf16 %v5217, %v5217
        %v5229 = vpack.c.bf16 %v5218, %v5218
        %vm5230 = vcmask 257024
        %5231 = vst.msk [vmem:[#allocation2] sm:$0xf] %vm5230, %v5219
        %5232 = vst.msk [vmem:[#allocation2 + $0xc] sm:$0xf] %vm5230, %v5220
        %5233 = vst.msk [vmem:[#allocation2 + $0x18] sm:$0xf] %vm5230, %v5221
        %5234 = vst.msk [vmem:[#allocation2 + $0x24] sm:$0xf] %vm5230, %v5222
        %5235 = vst.msk [vmem:[#allocation2 + $0x30] sm:$0xf] %vm5230, %v5223
        %5236 = vst.msk [vmem:[#allocation2 + $0x3c] sm:$0xf] %vm5230, %v5224
        %5237 = vst.msk [vmem:[#allocation2 + $0x48] sm:$0xf] %vm5230, %v5225
        %5238 = vst.msk [vmem:[#allocation2 + $0x54] sm:$0xf] %vm5230, %v5226
        %5239 = vst.msk [vmem:[#allocation2 + $0x60] sm:$0xf] %vm5230, %v5227
        %5240 = vst.msk [vmem:[#allocation2 + $0x6c] sm:$0xf] %vm5230, %v5228
        %vm5241 = vcmask 254976
        %vm5242 = vsmask.f32 1280
        %vm5243 = vmand %vm5241, %vm5242
        %v5244 = vld [vmem:[#allocation2 + $0x78] sm:$0x3]
        %v5245 = vsel %vm5243, %v5229, %v5244
        %5246 = vst [vmem:[#allocation2 + $0x78] sm:$0x3] %v5245
        %vm5247 = vsmask.f32 3328
        %vm5248 = vsmask.f32 7440
        %vm5249 = vmor %vm5247, %vm5248
        %v5251 = vshrl.u32 %v5219, 16
        %v5253 = vrot.slane %v5251, 4
        %v5254 = vshll.u32 %v5219, 16
        %v5256 = vrot.slane %v5254, 5
        %v5257 = vor.u32 %v5253, %v5256
        %v5258 = vrot.slane %v5257, 4
        %v5260 = vshll.u32 %v5220, 16
        %v5262 = vrot.slane %v5260, 5
        %v5263 = vsel %vm5249, %v5258, %v5262
        %v5264 = vshrl.u32 %v5220, 16
        %v5266 = vrot.slane %v5264, 4
        %v5267 = vor.u32 %v5266, %v5262
        %v5268 = vrot.slane %v5267, 4
        %v5270 = vshll.u32 %v5221, 16
        %v5272 = vrot.slane %v5270, 5
        %v5273 = vsel %vm5249, %v5268, %v5272
        %v5274 = vshrl.u32 %v5221, 16
        %v5276 = vrot.slane %v5274, 4
        %v5277 = vor.u32 %v5276, %v5272
        %v5278 = vrot.slane %v5277, 4
        %v5280 = vshll.u32 %v5222, 16
        %v5282 = vrot.slane %v5280, 5
        %v5283 = vsel %vm5249, %v5278, %v5282
        %v5284 = vshrl.u32 %v5222, 16
        %v5286 = vrot.slane %v5284, 4
        %v5287 = vor.u32 %v5286, %v5282
        %v5288 = vrot.slane %v5287, 4
        %v5290 = vshll.u32 %v5223, 16
        %v5292 = vrot.slane %v5290, 5
        %v5293 = vsel %vm5249, %v5288, %v5292
        %v5294 = vshrl.u32 %v5223, 16
        %v5296 = vrot.slane %v5294, 4
        %v5297 = vor.u32 %v5296, %v5292
        %v5298 = vrot.slane %v5297, 4
        %v5300 = vshll.u32 %v5224, 16
        %v5302 = vrot.slane %v5300, 5
        %v5303 = vsel %vm5249, %v5298, %v5302
        %v5304 = vshrl.u32 %v5224, 16
        %v5306 = vrot.slane %v5304, 4
        %v5307 = vor.u32 %v5306, %v5302
        %v5308 = vrot.slane %v5307, 4
        %v5310 = vshll.u32 %v5225, 16
        %v5312 = vrot.slane %v5310, 5
        %v5313 = vsel %vm5249, %v5308, %v5312
        %v5314 = vshrl.u32 %v5225, 16
        %v5316 = vrot.slane %v5314, 4
        %v5317 = vor.u32 %v5316, %v5312
        %v5318 = vrot.slane %v5317, 4
        %v5320 = vshll.u32 %v5226, 16
        %v5322 = vrot.slane %v5320, 5
        %v5323 = vsel %vm5249, %v5318, %v5322
        %v5324 = vshrl.u32 %v5226, 16
        %v5326 = vrot.slane %v5324, 4
        %v5327 = vor.u32 %v5326, %v5322
        %v5328 = vrot.slane %v5327, 4
        %v5330 = vshll.u32 %v5227, 16
        %v5332 = vrot.slane %v5330, 5
        %v5333 = vsel %vm5249, %v5328, %v5332
        %v5334 = vshrl.u32 %v5227, 16
        %v5336 = vrot.slane %v5334, 4
        %v5337 = vor.u32 %v5336, %v5332
        %v5338 = vrot.slane %v5337, 4
        %v5340 = vshll.u32 %v5228, 16
        %v5342 = vrot.slane %v5340, 5
        %v5343 = vsel %vm5249, %v5338, %v5342
        %v5344 = vshrl.u32 %v5228, 16
        %v5346 = vrot.slane %v5344, 4
        %v5347 = vor.u32 %v5346, %v5342
        %v5348 = vrot.slane %v5347, 4
        %v5350 = vshll.u32 %v5229, 16
        %v5352 = vrot.slane %v5350, 5
        %v5353 = vsel %vm5249, %v5348, %v5352
        %v5354 = vshrl.u32 %v5229, 16
        %v5356 = vrot.slane %v5354, 4
        %v5357 = vor.u32 %v5356, %v5352
        %v5358 = vrot.slane %v5357, 4
        %5359 = vrot.lane.b32.xlu0 %v5263, 32
        %v5360 = vpop.permute.xlu0 %5359
        %5361 = vrot.lane.b32.xlu0 %v5273, 32
        %v5362 = vpop.permute.xlu0 %5361
        %5363 = vrot.lane.b32.xlu0 %v5283, 32
        %v5364 = vpop.permute.xlu0 %5363
        %5365 = vrot.lane.b32.xlu0 %v5293, 32
        %v5366 = vpop.permute.xlu0 %5365
        %5367 = vrot.lane.b32.xlu0 %v5303, 32
        %v5368 = vpop.permute.xlu0 %5367
        %5369 = vrot.lane.b32.xlu0 %v5313, 32
        %v5370 = vpop.permute.xlu0 %5369
        %5371 = vrot.lane.b32.xlu0 %v5323, 32
        %v5372 = vpop.permute.xlu0 %5371
        %5373 = vrot.lane.b32.xlu0 %v5333, 32
        %v5374 = vpop.permute.xlu0 %5373
        %5375 = vrot.lane.b32.xlu0 %v5343, 32
        %v5376 = vpop.permute.xlu0 %5375
        %5377 = vrot.lane.b32.xlu0 %v5353, 32
        %v5378 = vpop.permute.xlu0 %5377
        %5379 = vrot.lane.b32.xlu0 %v5358, 32
        %v5380 = vpop.permute.xlu0 %5379
        %vm5392 = vcmask 519424
        %5393 = vst.msk [vmem:[#allocation2] sm:$0xf] %vm5392, %v5360
        %5394 = vst.msk [vmem:[#allocation2 + $0xc] sm:$0xf] %vm5392, %v5362
        %5395 = vst.msk [vmem:[#allocation2 + $0x18] sm:$0xf] %vm5392, %v5364
        %5396 = vst.msk [vmem:[#allocation2 + $0x24] sm:$0xf] %vm5392, %v5366
        %5397 = vst.msk [vmem:[#allocation2 + $0x30] sm:$0xf] %vm5392, %v5368
        %5398 = vst.msk [vmem:[#allocation2 + $0x3c] sm:$0xf] %vm5392, %v5370
        %5399 = vst.msk [vmem:[#allocation2 + $0x48] sm:$0xf] %vm5392, %v5372
        %5400 = vst.msk [vmem:[#allocation2 + $0x54] sm:$0xf] %vm5392, %v5374
        %5401 = vst.msk [vmem:[#allocation2 + $0x60] sm:$0xf] %vm5392, %v5376
        %5402 = vst.msk [vmem:[#allocation2 + $0x6c] sm:$0xf] %vm5392, %v5378
        %vm5403 = vcmask 517376
        %vm5404 = vmand %vm5403, %vm5242
        %v5405 = vld [vmem:[#allocation2 + $0x78] sm:$0x3]
        %v5406 = vsel %vm5404, %v5380, %v5405
        %5407 = vst [vmem:[#allocation2 + $0x78] sm:$0x3] %v5406
        %vm5419 = vcmask 1042432
        %vm5420 = vcmask 1046532
        %vm5421 = vmor %vm5419, %vm5420
        %v5422 = vrot.slane %v5219, 5
        %v5423 = vrot.slane %v5422, 4
        %v5424 = vrot.slane %v5220, 5
        %v5425 = vsel %vm5421, %v5423, %v5424
        %v5426 = vrot.slane %v5424, 4
        %v5427 = vrot.slane %v5221, 5
        %v5428 = vsel %vm5421, %v5426, %v5427
        %v5429 = vrot.slane %v5427, 4
        %v5430 = vrot.slane %v5222, 5
        %v5431 = vsel %vm5421, %v5429, %v5430
        %v5432 = vrot.slane %v5430, 4
        %v5433 = vrot.slane %v5223, 5
        %v5434 = vsel %vm5421, %v5432, %v5433
        %v5435 = vrot.slane %v5433, 4
        %v5436 = vrot.slane %v5224, 5
        %v5437 = vsel %vm5421, %v5435, %v5436
        %v5438 = vrot.slane %v5436, 4
        %v5439 = vrot.slane %v5225, 5
        %v5440 = vsel %vm5421, %v5438, %v5439
        %v5441 = vrot.slane %v5439, 4
        %v5442 = vrot.slane %v5226, 5
        %v5443 = vsel %vm5421, %v5441, %v5442
        %v5444 = vrot.slane %v5442, 4
        %v5445 = vrot.slane %v5227, 5
        %v5446 = vsel %vm5421, %v5444, %v5445
        %v5447 = vrot.slane %v5445, 4
        %v5448 = vrot.slane %v5228, 5
        %v5449 = vsel %vm5421, %v5447, %v5448
        %v5450 = vrot.slane %v5448, 4
        %v5451 = vrot.slane %v5229, 5
        %v5452 = vsel %vm5421, %v5450, %v5451
        %v5453 = vrot.slane %v5451, 4
        %5454 = vrot.lane.b32.xlu0 %v5425, 64
        %v5455 = vpop.permute.xlu0 %5454
        %5456 = vrot.lane.b32.xlu0 %v5428, 64
        %v5457 = vpop.permute.xlu0 %5456
        %5458 = vrot.lane.b32.xlu0 %v5431, 64
        %v5459 = vpop.permute.xlu0 %5458
        %5460 = vrot.lane.b32.xlu0 %v5434, 64
        %v5461 = vpop.permute.xlu0 %5460
        %5462 = vrot.lane.b32.xlu0 %v5437, 64
        %v5463 = vpop.permute.xlu0 %5462
        %5464 = vrot.lane.b32.xlu0 %v5440, 64
        %v5465 = vpop.permute.xlu0 %5464
        %5466 = vrot.lane.b32.xlu0 %v5443, 64
        %v5467 = vpop.permute.xlu0 %5466
        %5468 = vrot.lane.b32.xlu0 %v5446, 64
        %v5469 = vpop.permute.xlu0 %5468
        %5470 = vrot.lane.b32.xlu0 %v5449, 64
        %v5471 = vpop.permute.xlu0 %5470
        %5472 = vrot.lane.b32.xlu0 %v5452, 64
        %v5473 = vpop.permute.xlu0 %5472
        %5474 = vrot.lane.b32.xlu0 %v5453, 64
        %v5475 = vpop.permute.xlu0 %5474
        %vm5487 = vcmask 781824
        %5488 = vst.msk [vmem:[#allocation2] sm:$0xf] %vm5487, %v5455
        %5489 = vst.msk [vmem:[#allocation2 + $0xc] sm:$0xf] %vm5487, %v5457
        %5490 = vst.msk [vmem:[#allocation2 + $0x18] sm:$0xf] %vm5487, %v5459
        %5491 = vst.msk [vmem:[#allocation2 + $0x24] sm:$0xf] %vm5487, %v5461
        %5492 = vst.msk [vmem:[#allocation2 + $0x30] sm:$0xf] %vm5487, %v5463
        %5493 = vst.msk [vmem:[#allocation2 + $0x3c] sm:$0xf] %vm5487, %v5465
        %5494 = vst.msk [vmem:[#allocation2 + $0x48] sm:$0xf] %vm5487, %v5467
        %5495 = vst.msk [vmem:[#allocation2 + $0x54] sm:$0xf] %vm5487, %v5469
        %5496 = vst.msk [vmem:[#allocation2 + $0x60] sm:$0xf] %vm5487, %v5471
        %5497 = vst.msk [vmem:[#allocation2 + $0x6c] sm:$0xf] %vm5487, %v5473
        %vm5498 = vcmask 779776
        %vm5499 = vmand %vm5498, %vm5242
        %v5500 = vld [vmem:[#allocation2 + $0x78] sm:$0x3]
        %v5501 = vsel %vm5499, %v5475, %v5500
        %5502 = vst [vmem:[#allocation2 + $0x78] sm:$0x3] %v5501
        %s5503 = sadd.s32 %s5201, 1
        %s5504 = smul.u32 %s5503, 88
        %s5505 = scalar_lea.vmem [#allocation5], %s5504
        %v5506 = vld [vmem:[%s5505] sm:$0xff]
        %v5507 = vld [vmem:[%s5505 + $0x8] sm:$0xff]
        %v5508 = vld [vmem:[%s5505 + $0x10] sm:$0xff]
        %v5509 = vld [vmem:[%s5505 + $0x18] sm:$0xff]
        %v5510 = vld [vmem:[%s5505 + $0x20] sm:$0xff]
        %v5511 = vld [vmem:[%s5505 + $0x28] sm:$0xff]
        %v5512 = vld [vmem:[%s5505 + $0x30] sm:$0xff]
        %v5513 = vld [vmem:[%s5505 + $0x38] sm:$0xff]
        %v5514 = vld [vmem:[%s5505 + $0x40] sm:$0xff]
        %v5515 = vld [vmem:[%s5505 + $0x48] sm:$0xff]
        %v5516 = vld [vmem:[%s5505 + $0x50] sm:$0x1f]
        %v5517 = vpack.c.bf16 %v5506, %v5506
        %v5518 = vpack.c.bf16 %v5507, %v5507
        %v5519 = vpack.c.bf16 %v5508, %v5508
        %v5520 = vpack.c.bf16 %v5509, %v5509
        %v5521 = vpack.c.bf16 %v5510, %v5510
        %v5522 = vpack.c.bf16 %v5511, %v5511
        %v5523 = vpack.c.bf16 %v5512, %v5512
        %v5524 = vpack.c.bf16 %v5513, %v5513
        %v5525 = vpack.c.bf16 %v5514, %v5514
        %v5526 = vpack.c.bf16 %v5515, %v5515
        %v5527 = vpack.c.bf16 %v5516, %v5516
        %5539 = vrot.lane.b32.xlu0 %v5517, 96
        %v5540 = vpop.permute.xlu0 %5539
        %5541 = vrot.lane.b32.xlu0 %v5518, 96
        %v5542 = vpop.permute.xlu0 %5541
        %5543 = vrot.lane.b32.xlu0 %v5519, 96
        %v5544 = vpop.permute.xlu0 %5543
        %5545 = vrot.lane.b32.xlu0 %v5520, 96
        %v5546 = vpop.permute.xlu0 %5545
        %5547 = vrot.lane.b32.xlu0 %v5521, 96
        %v5548 = vpop.permute.xlu0 %5547
        %5549 = vrot.lane.b32.xlu0 %v5522, 96
        %v5550 = vpop.permute.xlu0 %5549
        %5551 = vrot.lane.b32.xlu0 %v5523, 96
        %v5552 = vpop.permute.xlu0 %5551
        %5553 = vrot.lane.b32.xlu0 %v5524, 96
        %v5554 = vpop.permute.xlu0 %5553
        %5555 = vrot.lane.b32.xlu0 %v5525, 96
        %v5556 = vpop.permute.xlu0 %5555
        %5557 = vrot.lane.b32.xlu0 %v5526, 96
        %v5558 = vpop.permute.xlu0 %5557
        %5559 = vrot.lane.b32.xlu0 %v5527, 96
        %v5560 = vpop.permute.xlu0 %5559
        %vm5572 = vcmask 1044224
        %5573 = vst.msk [vmem:[#allocation2] sm:$0xf] %vm5572, %v5540
        %5574 = vst.msk [vmem:[#allocation2 + $0xc] sm:$0xf] %vm5572, %v5542
        %5575 = vst.msk [vmem:[#allocation2 + $0x18] sm:$0xf] %vm5572, %v5544
        %5576 = vst.msk [vmem:[#allocation2 + $0x24] sm:$0xf] %vm5572, %v5546
        %5577 = vst.msk [vmem:[#allocation2 + $0x30] sm:$0xf] %vm5572, %v5548
        %5578 = vst.msk [vmem:[#allocation2 + $0x3c] sm:$0xf] %vm5572, %v5550
        %5579 = vst.msk [vmem:[#allocation2 + $0x48] sm:$0xf] %vm5572, %v5552
        %5580 = vst.msk [vmem:[#allocation2 + $0x54] sm:$0xf] %vm5572, %v5554
        %5581 = vst.msk [vmem:[#allocation2 + $0x60] sm:$0xf] %vm5572, %v5556
        %5582 = vst.msk [vmem:[#allocation2 + $0x6c] sm:$0xf] %vm5572, %v5558
        %vm5583 = vcmask 1042176
        %vm5584 = vmand %vm5583, %vm5242
        %v5585 = vld [vmem:[#allocation2 + $0x78] sm:$0x3]
        %v5586 = vsel %vm5584, %v5560, %v5585
        %5587 = vst [vmem:[#allocation2 + $0x78] sm:$0x3] %v5586
        %v5589 = vshrl.u32 %v5517, 16
        %v5591 = vrot.slane %v5589, 4
        %v5592 = vshll.u32 %v5517, 16
        %v5594 = vrot.slane %v5592, 5
        %v5595 = vor.u32 %v5591, %v5594
        %v5596 = vrot.slane %v5595, 4
        %v5598 = vshll.u32 %v5518, 16
        %v5600 = vrot.slane %v5598, 5
        %v5601 = vsel %vm5249, %v5596, %v5600
        %v5602 = vshrl.u32 %v5518, 16
        %v5604 = vrot.slane %v5602, 4
        %v5605 = vor.u32 %v5604, %v5600
        %v5606 = vrot.slane %v5605, 4
        %v5608 = vshll.u32 %v5519, 16
        %v5610 = vrot.slane %v5608, 5
        %v5611 = vsel %vm5249, %v5606, %v5610
        %v5612 = vshrl.u32 %v5519, 16
        %v5614 = vrot.slane %v5612, 4
        %v5615 = vor.u32 %v5614, %v5610
        %v5616 = vrot.slane %v5615, 4
        %v5618 = vshll.u32 %v5520, 16
        %v5620 = vrot.slane %v5618, 5
        %v5621 = vsel %vm5249, %v5616, %v5620
        %v5622 = vshrl.u32 %v5520, 16
        %v5624 = vrot.slane %v5622, 4
        %v5625 = vor.u32 %v5624, %v5620
        %v5626 = vrot.slane %v5625, 4
        %v5628 = vshll.u32 %v5521, 16
        %v5630 = vrot.slane %v5628, 5
        %v5631 = vsel %vm5249, %v5626, %v5630
        %v5632 = vshrl.u32 %v5521, 16
        %v5634 = vrot.slane %v5632, 4
        %v5635 = vor.u32 %v5634, %v5630
        %v5636 = vrot.slane %v5635, 4
        %v5638 = vshll.u32 %v5522, 16
        %v5640 = vrot.slane %v5638, 5
        %v5641 = vsel %vm5249, %v5636, %v5640
        %v5642 = vshrl.u32 %v5522, 16
        %v5644 = vrot.slane %v5642, 4
        %v5645 = vor.u32 %v5644, %v5640
        %v5646 = vrot.slane %v5645, 4
        %v5648 = vshll.u32 %v5523, 16
        %v5650 = vrot.slane %v5648, 5
        %v5651 = vsel %vm5249, %v5646, %v5650
        %v5652 = vshrl.u32 %v5523, 16
        %v5654 = vrot.slane %v5652, 4
        %v5655 = vor.u32 %v5654, %v5650
        %v5656 = vrot.slane %v5655, 4
        %v5658 = vshll.u32 %v5524, 16
        %v5660 = vrot.slane %v5658, 5
        %v5661 = vsel %vm5249, %v5656, %v5660
        %v5662 = vshrl.u32 %v5524, 16
        %v5664 = vrot.slane %v5662, 4
        %v5665 = vor.u32 %v5664, %v5660
        %v5666 = vrot.slane %v5665, 4
        %v5668 = vshll.u32 %v5525, 16
        %v5670 = vrot.slane %v5668, 5
        %v5671 = vsel %vm5249, %v5666, %v5670
        %v5672 = vshrl.u32 %v5525, 16
        %v5674 = vrot.slane %v5672, 4
        %v5675 = vor.u32 %v5674, %v5670
        %v5676 = vrot.slane %v5675, 4
        %v5678 = vshll.u32 %v5526, 16
        %v5680 = vrot.slane %v5678, 5
        %v5681 = vsel %vm5249, %v5676, %v5680
        %v5682 = vshrl.u32 %v5526, 16
        %v5684 = vrot.slane %v5682, 4
        %v5685 = vor.u32 %v5684, %v5680
        %v5686 = vrot.slane %v5685, 4
        %v5688 = vshll.u32 %v5527, 16
        %v5690 = vrot.slane %v5688, 5
        %v5691 = vsel %vm5249, %v5686, %v5690
        %v5692 = vshrl.u32 %v5527, 16
        %v5694 = vrot.slane %v5692, 4
        %v5695 = vor.u32 %v5694, %v5690
        %v5696 = vrot.slane %v5695, 4
        %5708 = vst.msk [vmem:[#allocation2 + $0x4] sm:$0xf] %vm5230, %v5601
        %5709 = vst.msk [vmem:[#allocation2 + $0x10] sm:$0xf] %vm5230, %v5611
        %5710 = vst.msk [vmem:[#allocation2 + $0x1c] sm:$0xf] %vm5230, %v5621
        %5711 = vst.msk [vmem:[#allocation2 + $0x28] sm:$0xf] %vm5230, %v5631
        %5712 = vst.msk [vmem:[#allocation2 + $0x34] sm:$0xf] %vm5230, %v5641
        %5713 = vst.msk [vmem:[#allocation2 + $0x40] sm:$0xf] %vm5230, %v5651
        %5714 = vst.msk [vmem:[#allocation2 + $0x4c] sm:$0xf] %vm5230, %v5661
        %5715 = vst.msk [vmem:[#allocation2 + $0x58] sm:$0xf] %vm5230, %v5671
        %5716 = vst.msk [vmem:[#allocation2 + $0x64] sm:$0xf] %vm5230, %v5681
        %5717 = vst.msk [vmem:[#allocation2 + $0x70] sm:$0xf] %vm5230, %v5691
        %v5718 = vld [vmem:[#allocation2 + $0x7c] sm:$0x3]
        %v5719 = vsel %vm5243, %v5696, %v5718
        %5720 = vst [vmem:[#allocation2 + $0x7c] sm:$0x3] %v5719
        %v5721 = vrot.slane %v5517, 5
        %v5722 = vrot.slane %v5721, 4
        %v5723 = vrot.slane %v5518, 5
        %v5724 = vsel %vm5421, %v5722, %v5723
        %v5725 = vrot.slane %v5723, 4
        %v5726 = vrot.slane %v5519, 5
        %v5727 = vsel %vm5421, %v5725, %v5726
        %v5728 = vrot.slane %v5726, 4
        %v5729 = vrot.slane %v5520, 5
        %v5730 = vsel %vm5421, %v5728, %v5729
        %v5731 = vrot.slane %v5729, 4
        %v5732 = vrot.slane %v5521, 5
        %v5733 = vsel %vm5421, %v5731, %v5732
        %v5734 = vrot.slane %v5732, 4
        %v5735 = vrot.slane %v5522, 5
        %v5736 = vsel %vm5421, %v5734, %v5735
        %v5737 = vrot.slane %v5735, 4
        %v5738 = vrot.slane %v5523, 5
        %v5739 = vsel %vm5421, %v5737, %v5738
        %v5740 = vrot.slane %v5738, 4
        %v5741 = vrot.slane %v5524, 5
        %v5742 = vsel %vm5421, %v5740, %v5741
        %v5743 = vrot.slane %v5741, 4
        %v5744 = vrot.slane %v5525, 5
        %v5745 = vsel %vm5421, %v5743, %v5744
        %v5746 = vrot.slane %v5744, 4
        %v5747 = vrot.slane %v5526, 5
        %v5748 = vsel %vm5421, %v5746, %v5747
        %v5749 = vrot.slane %v5747, 4
        %v5750 = vrot.slane %v5527, 5
        %v5751 = vsel %vm5421, %v5749, %v5750
        %v5752 = vrot.slane %v5750, 4
        %5753 = vrot.lane.b32.xlu0 %v5724, 32
        %v5754 = vpop.permute.xlu0 %5753
        %5755 = vrot.lane.b32.xlu0 %v5727, 32
        %v5756 = vpop.permute.xlu0 %5755
        %5757 = vrot.lane.b32.xlu0 %v5730, 32
        %v5758 = vpop.permute.xlu0 %5757
        %5759 = vrot.lane.b32.xlu0 %v5733, 32
        %v5760 = vpop.permute.xlu0 %5759
        %5761 = vrot.lane.b32.xlu0 %v5736, 32
        %v5762 = vpop.permute.xlu0 %5761
        %5763 = vrot.lane.b32.xlu0 %v5739, 32
        %v5764 = vpop.permute.xlu0 %5763
        %5765 = vrot.lane.b32.xlu0 %v5742, 32
        %v5766 = vpop.permute.xlu0 %5765
        %5767 = vrot.lane.b32.xlu0 %v5745, 32
        %v5768 = vpop.permute.xlu0 %5767
        %5769 = vrot.lane.b32.xlu0 %v5748, 32
        %v5770 = vpop.permute.xlu0 %5769
        %5771 = vrot.lane.b32.xlu0 %v5751, 32
        %v5772 = vpop.permute.xlu0 %5771
        %5773 = vrot.lane.b32.xlu0 %v5752, 32
        %v5774 = vpop.permute.xlu0 %5773
        %5786 = vst.msk [vmem:[#allocation2 + $0x4] sm:$0xf] %vm5392, %v5754
        %5787 = vst.msk [vmem:[#allocation2 + $0x10] sm:$0xf] %vm5392, %v5756
        %5788 = vst.msk [vmem:[#allocation2 + $0x1c] sm:$0xf] %vm5392, %v5758
        %5789 = vst.msk [vmem:[#allocation2 + $0x28] sm:$0xf] %vm5392, %v5760
        %5790 = vst.msk [vmem:[#allocation2 + $0x34] sm:$0xf] %vm5392, %v5762
        %5791 = vst.msk [vmem:[#allocation2 + $0x40] sm:$0xf] %vm5392, %v5764
        %5792 = vst.msk [vmem:[#allocation2 + $0x4c] sm:$0xf] %vm5392, %v5766
        %5793 = vst.msk [vmem:[#allocation2 + $0x58] sm:$0xf] %vm5392, %v5768
        %5794 = vst.msk [vmem:[#allocation2 + $0x64] sm:$0xf] %vm5392, %v5770
        %5795 = vst.msk [vmem:[#allocation2 + $0x70] sm:$0xf] %vm5392, %v5772
        %v5796 = vld [vmem:[#allocation2 + $0x7c] sm:$0x3]
        %v5797 = vsel %vm5404, %v5774, %v5796
        %5798 = vst [vmem:[#allocation2 + $0x7c] sm:$0x3] %v5797
        %s5799 = sadd.s32 %s5201, 2
        %s5800 = smul.u32 %s5799, 88
        %s5801 = scalar_lea.vmem [#allocation5], %s5800
        %v5802 = vld [vmem:[%s5801] sm:$0xff]
        %v5803 = vld [vmem:[%s5801 + $0x8] sm:$0xff]
        %v5804 = vld [vmem:[%s5801 + $0x10] sm:$0xff]
        %v5805 = vld [vmem:[%s5801 + $0x18] sm:$0xff]
        %v5806 = vld [vmem:[%s5801 + $0x20] sm:$0xff]
        %v5807 = vld [vmem:[%s5801 + $0x28] sm:$0xff]
        %v5808 = vld [vmem:[%s5801 + $0x30] sm:$0xff]
        %v5809 = vld [vmem:[%s5801 + $0x38] sm:$0xff]
        %v5810 = vld [vmem:[%s5801 + $0x40] sm:$0xff]
        %v5811 = vld [vmem:[%s5801 + $0x48] sm:$0xff]
        %v5812 = vld [vmem:[%s5801 + $0x50] sm:$0x1f]
        %v5813 = vpack.c.bf16 %v5802, %v5802
        %v5814 = vpack.c.bf16 %v5803, %v5803
        %v5815 = vpack.c.bf16 %v5804, %v5804
        %v5816 = vpack.c.bf16 %v5805, %v5805
        %v5817 = vpack.c.bf16 %v5806, %v5806
        %v5818 = vpack.c.bf16 %v5807, %v5807
        %v5819 = vpack.c.bf16 %v5808, %v5808
        %v5820 = vpack.c.bf16 %v5809, %v5809
        %v5821 = vpack.c.bf16 %v5810, %v5810
        %v5822 = vpack.c.bf16 %v5811, %v5811
        %v5823 = vpack.c.bf16 %v5812, %v5812
        %5835 = vrot.lane.b32.xlu0 %v5813, 64
        %v5836 = vpop.permute.xlu0 %5835
        %5837 = vrot.lane.b32.xlu0 %v5814, 64
        %v5838 = vpop.permute.xlu0 %5837
        %5839 = vrot.lane.b32.xlu0 %v5815, 64
        %v5840 = vpop.permute.xlu0 %5839
        %5841 = vrot.lane.b32.xlu0 %v5816, 64
        %v5842 = vpop.permute.xlu0 %5841
        %5843 = vrot.lane.b32.xlu0 %v5817, 64
        %v5844 = vpop.permute.xlu0 %5843
        %5845 = vrot.lane.b32.xlu0 %v5818, 64
        %v5846 = vpop.permute.xlu0 %5845
        %5847 = vrot.lane.b32.xlu0 %v5819, 64
        %v5848 = vpop.permute.xlu0 %5847
        %5849 = vrot.lane.b32.xlu0 %v5820, 64
        %v5850 = vpop.permute.xlu0 %5849
        %5851 = vrot.lane.b32.xlu0 %v5821, 64
        %v5852 = vpop.permute.xlu0 %5851
        %5853 = vrot.lane.b32.xlu0 %v5822, 64
        %v5854 = vpop.permute.xlu0 %5853
        %5855 = vrot.lane.b32.xlu0 %v5823, 64
        %v5856 = vpop.permute.xlu0 %5855
        %5868 = vst.msk [vmem:[#allocation2 + $0x4] sm:$0xf] %vm5487, %v5836
        %5869 = vst.msk [vmem:[#allocation2 + $0x10] sm:$0xf] %vm5487, %v5838
        %5870 = vst.msk [vmem:[#allocation2 + $0x1c] sm:$0xf] %vm5487, %v5840
        %5871 = vst.msk [vmem:[#allocation2 + $0x28] sm:$0xf] %vm5487, %v5842
        %5872 = vst.msk [vmem:[#allocation2 + $0x34] sm:$0xf] %vm5487, %v5844
        %5873 = vst.msk [vmem:[#allocation2 + $0x40] sm:$0xf] %vm5487, %v5846
        %5874 = vst.msk [vmem:[#allocation2 + $0x4c] sm:$0xf] %vm5487, %v5848
        %5875 = vst.msk [vmem:[#allocation2 + $0x58] sm:$0xf] %vm5487, %v5850
        %5876 = vst.msk [vmem:[#allocation2 + $0x64] sm:$0xf] %vm5487, %v5852
        %5877 = vst.msk [vmem:[#allocation2 + $0x70] sm:$0xf] %vm5487, %v5854
        %v5878 = vld [vmem:[#allocation2 + $0x7c] sm:$0x3]
        %v5879 = vsel %vm5499, %v5856, %v5878
        %5880 = vst [vmem:[#allocation2 + $0x7c] sm:$0x3] %v5879
        %v5882 = vshrl.u32 %v5813, 16
        %v5884 = vrot.slane %v5882, 4
        %v5885 = vshll.u32 %v5813, 16
        %v5887 = vrot.slane %v5885, 5
        %v5888 = vor.u32 %v5884, %v5887
        %v5889 = vrot.slane %v5888, 4
        %v5891 = vshll.u32 %v5814, 16
        %v5893 = vrot.slane %v5891, 5
        %v5894 = vsel %vm5249, %v5889, %v5893
        %v5895 = vshrl.u32 %v5814, 16
        %v5897 = vrot.slane %v5895, 4
        %v5898 = vor.u32 %v5897, %v5893
        %v5899 = vrot.slane %v5898, 4
        %v5901 = vshll.u32 %v5815, 16
        %v5903 = vrot.slane %v5901, 5
        %v5904 = vsel %vm5249, %v5899, %v5903
        %v5905 = vshrl.u32 %v5815, 16
        %v5907 = vrot.slane %v5905, 4
        %v5908 = vor.u32 %v5907, %v5903
        %v5909 = vrot.slane %v5908, 4
        %v5911 = vshll.u32 %v5816, 16
        %v5913 = vrot.slane %v5911, 5
        %v5914 = vsel %vm5249, %v5909, %v5913
        %v5915 = vshrl.u32 %v5816, 16
        %v5917 = vrot.slane %v5915, 4
        %v5918 = vor.u32 %v5917, %v5913
        %v5919 = vrot.slane %v5918, 4
        %v5921 = vshll.u32 %v5817, 16
        %v5923 = vrot.slane %v5921, 5
        %v5924 = vsel %vm5249, %v5919, %v5923
        %v5925 = vshrl.u32 %v5817, 16
        %v5927 = vrot.slane %v5925, 4
        %v5928 = vor.u32 %v5927, %v5923
        %v5929 = vrot.slane %v5928, 4
        %v5931 = vshll.u32 %v5818, 16
        %v5933 = vrot.slane %v5931, 5
        %v5934 = vsel %vm5249, %v5929, %v5933
        %v5935 = vshrl.u32 %v5818, 16
        %v5937 = vrot.slane %v5935, 4
        %v5938 = vor.u32 %v5937, %v5933
        %v5939 = vrot.slane %v5938, 4
        %v5941 = vshll.u32 %v5819, 16
        %v5943 = vrot.slane %v5941, 5
        %v5944 = vsel %vm5249, %v5939, %v5943
        %v5945 = vshrl.u32 %v5819, 16
        %v5947 = vrot.slane %v5945, 4
        %v5948 = vor.u32 %v5947, %v5943
        %v5949 = vrot.slane %v5948, 4
        %v5951 = vshll.u32 %v5820, 16
        %v5953 = vrot.slane %v5951, 5
        %v5954 = vsel %vm5249, %v5949, %v5953
        %v5955 = vshrl.u32 %v5820, 16
        %v5957 = vrot.slane %v5955, 4
        %v5958 = vor.u32 %v5957, %v5953
        %v5959 = vrot.slane %v5958, 4
        %v5961 = vshll.u32 %v5821, 16
        %v5963 = vrot.slane %v5961, 5
        %v5964 = vsel %vm5249, %v5959, %v5963
        %v5965 = vshrl.u32 %v5821, 16
        %v5967 = vrot.slane %v5965, 4
        %v5968 = vor.u32 %v5967, %v5963
        %v5969 = vrot.slane %v5968, 4
        %v5971 = vshll.u32 %v5822, 16
        %v5973 = vrot.slane %v5971, 5
        %v5974 = vsel %vm5249, %v5969, %v5973
        %v5975 = vshrl.u32 %v5822, 16
        %v5977 = vrot.slane %v5975, 4
        %v5978 = vor.u32 %v5977, %v5973
        %v5979 = vrot.slane %v5978, 4
        %v5981 = vshll.u32 %v5823, 16
        %v5983 = vrot.slane %v5981, 5
        %v5984 = vsel %vm5249, %v5979, %v5983
        %v5985 = vshrl.u32 %v5823, 16
        %v5987 = vrot.slane %v5985, 4
        %v5988 = vor.u32 %v5987, %v5983
        %v5989 = vrot.slane %v5988, 4
        %5990 = vrot.lane.b32.xlu0 %v5894, 96
        %v5991 = vpop.permute.xlu0 %5990
        %5992 = vrot.lane.b32.xlu0 %v5904, 96
        %v5993 = vpop.permute.xlu0 %5992
        %5994 = vrot.lane.b32.xlu0 %v5914, 96
        %v5995 = vpop.permute.xlu0 %5994
        %5996 = vrot.lane.b32.xlu0 %v5924, 96
        %v5997 = vpop.permute.xlu0 %5996
        %5998 = vrot.lane.b32.xlu0 %v5934, 96
        %v5999 = vpop.permute.xlu0 %5998
        %6000 = vrot.lane.b32.xlu0 %v5944, 96
        %v6001 = vpop.permute.xlu0 %6000
        %6002 = vrot.lane.b32.xlu0 %v5954, 96
        %v6003 = vpop.permute.xlu0 %6002
        %6004 = vrot.lane.b32.xlu0 %v5964, 96
        %v6005 = vpop.permute.xlu0 %6004
        %6006 = vrot.lane.b32.xlu0 %v5974, 96
        %v6007 = vpop.permute.xlu0 %6006
        %6008 = vrot.lane.b32.xlu0 %v5984, 96
        %v6009 = vpop.permute.xlu0 %6008
        %6010 = vrot.lane.b32.xlu0 %v5989, 96
        %v6011 = vpop.permute.xlu0 %6010
        %6023 = vst.msk [vmem:[#allocation2 + $0x4] sm:$0xf] %vm5572, %v5991
        %6024 = vst.msk [vmem:[#allocation2 + $0x10] sm:$0xf] %vm5572, %v5993
        %6025 = vst.msk [vmem:[#allocation2 + $0x1c] sm:$0xf] %vm5572, %v5995
        %6026 = vst.msk [vmem:[#allocation2 + $0x28] sm:$0xf] %vm5572, %v5997
        %6027 = vst.msk [vmem:[#allocation2 + $0x34] sm:$0xf] %vm5572, %v5999
        %6028 = vst.msk [vmem:[#allocation2 + $0x40] sm:$0xf] %vm5572, %v6001
        %6029 = vst.msk [vmem:[#allocation2 + $0x4c] sm:$0xf] %vm5572, %v6003
        %6030 = vst.msk [vmem:[#allocation2 + $0x58] sm:$0xf] %vm5572, %v6005
        %6031 = vst.msk [vmem:[#allocation2 + $0x64] sm:$0xf] %vm5572, %v6007
        %6032 = vst.msk [vmem:[#allocation2 + $0x70] sm:$0xf] %vm5572, %v6009
        %v6033 = vld [vmem:[#allocation2 + $0x7c] sm:$0x3]
        %v6034 = vsel %vm5584, %v6011, %v6033
        %6035 = vst [vmem:[#allocation2 + $0x7c] sm:$0x3] %v6034
        %v6036 = vrot.slane %v5813, 5
        %v6037 = vrot.slane %v6036, 4
        %v6038 = vrot.slane %v5814, 5
        %v6039 = vsel %vm5421, %v6037, %v6038
        %v6040 = vrot.slane %v6038, 4
        %v6041 = vrot.slane %v5815, 5
        %v6042 = vsel %vm5421, %v6040, %v6041
        %v6043 = vrot.slane %v6041, 4
        %v6044 = vrot.slane %v5816, 5
        %v6045 = vsel %vm5421, %v6043, %v6044
        %v6046 = vrot.slane %v6044, 4
        %v6047 = vrot.slane %v5817, 5
        %v6048 = vsel %vm5421, %v6046, %v6047
        %v6049 = vrot.slane %v6047, 4
        %v6050 = vrot.slane %v5818, 5
        %v6051 = vsel %vm5421, %v6049, %v6050
        %v6052 = vrot.slane %v6050, 4
        %v6053 = vrot.slane %v5819, 5
        %v6054 = vsel %vm5421, %v6052, %v6053
        %v6055 = vrot.slane %v6053, 4
        %v6056 = vrot.slane %v5820, 5
        %v6057 = vsel %vm5421, %v6055, %v6056
        %v6058 = vrot.slane %v6056, 4
        %v6059 = vrot.slane %v5821, 5
        %v6060 = vsel %vm5421, %v6058, %v6059
        %v6061 = vrot.slane %v6059, 4
        %v6062 = vrot.slane %v5822, 5
        %v6063 = vsel %vm5421, %v6061, %v6062
        %v6064 = vrot.slane %v6062, 4
        %v6065 = vrot.slane %v5823, 5
        %v6066 = vsel %vm5421, %v6064, %v6065
        %v6067 = vrot.slane %v6065, 4
        %6079 = vst.msk [vmem:[#allocation2 + $0x8] sm:$0xf] %vm5230, %v6039
        %6080 = vst.msk [vmem:[#allocation2 + $0x14] sm:$0xf] %vm5230, %v6042
        %6081 = vst.msk [vmem:[#allocation2 + $0x20] sm:$0xf] %vm5230, %v6045
        %6082 = vst.msk [vmem:[#allocation2 + $0x2c] sm:$0xf] %vm5230, %v6048
        %6083 = vst.msk [vmem:[#allocation2 + $0x38] sm:$0xf] %vm5230, %v6051
        %6084 = vst.msk [vmem:[#allocation2 + $0x44] sm:$0xf] %vm5230, %v6054
        %6085 = vst.msk [vmem:[#allocation2 + $0x50] sm:$0xf] %vm5230, %v6057
        %6086 = vst.msk [vmem:[#allocation2 + $0x5c] sm:$0xf] %vm5230, %v6060
        %6087 = vst.msk [vmem:[#allocation2 + $0x68] sm:$0xf] %vm5230, %v6063
        %6088 = vst.msk [vmem:[#allocation2 + $0x74] sm:$0xf] %vm5230, %v6066
        %v6089 = vld [vmem:[#allocation2 + $0x80] sm:$0x3]
        %v6090 = vsel %vm5243, %v6067, %v6089
        %6091 = vst [vmem:[#allocation2 + $0x80] sm:$0x3] %v6090
        %v6092 = vld [vmem:[#allocation2] sm:$0xff]
        %v6093 = vld [vmem:[#allocation2 + $0x8] sm:$0xf]
        %v6094 = vld [vmem:[#allocation2 + $0xc] sm:$0xff]
        %v6095 = vld [vmem:[#allocation2 + $0x14] sm:$0xf]
        %v6096 = vld [vmem:[#allocation2 + $0x18] sm:$0xff]
        %v6097 = vld [vmem:[#allocation2 + $0x20] sm:$0xf]
        %v6098 = vld [vmem:[#allocation2 + $0x24] sm:$0xff]
        %v6099 = vld [vmem:[#allocation2 + $0x2c] sm:$0xf]
        %v6100 = vld [vmem:[#allocation2 + $0x30] sm:$0xff]
        %v6101 = vld [vmem:[#allocation2 + $0x38] sm:$0xf]
        %v6102 = vld [vmem:[#allocation2 + $0x3c] sm:$0xff]
        %v6103 = vld [vmem:[#allocation2 + $0x44] sm:$0xf]
        %v6104 = vld [vmem:[#allocation2 + $0x48] sm:$0xff]
        %v6105 = vld [vmem:[#allocation2 + $0x50] sm:$0xf]
        %v6106 = vld [vmem:[#allocation2 + $0x54] sm:$0xff]
        %v6107 = vld [vmem:[#allocation2 + $0x5c] sm:$0xf]
        %v6108 = vld [vmem:[#allocation2 + $0x60] sm:$0xff]
        %v6109 = vld [vmem:[#allocation2 + $0x68] sm:$0xf]
        %v6110 = vld [vmem:[#allocation2 + $0x6c] sm:$0xff]
        %v6111 = vld [vmem:[#allocation2 + $0x74] sm:$0xf]
        %v6112 = vld [vmem:[#allocation2 + $0x78] sm:$0x33]
        %v6113 = vld [vmem:[#allocation2 + $0x80] sm:$0x3]
        %v6115 = vperm.slane %v5199, 0
        %v6139 = vunpack.c.l.b16 %v6092
        %v6140 = vunpack.c.h.b16 %v6092
        %v6141 = vunpack.c.l.b16 %v6093
        %v6142 = vunpack.c.l.b16 %v6094
        %v6143 = vunpack.c.h.b16 %v6094
        %v6144 = vunpack.c.l.b16 %v6095
        %v6145 = vunpack.c.l.b16 %v6096
        %v6146 = vunpack.c.h.b16 %v6096
        %v6147 = vunpack.c.l.b16 %v6097
        %v6148 = vunpack.c.l.b16 %v6098
        %v6149 = vunpack.c.h.b16 %v6098
        %v6150 = vunpack.c.l.b16 %v6099
        %v6151 = vunpack.c.l.b16 %v6100
        %v6152 = vunpack.c.h.b16 %v6100
        %v6153 = vunpack.c.l.b16 %v6101
        %v6154 = vunpack.c.l.b16 %v6102
        %v6155 = vunpack.c.h.b16 %v6102
        %v6156 = vunpack.c.l.b16 %v6103
        %v6157 = vunpack.c.l.b16 %v6104
        %v6158 = vunpack.c.h.b16 %v6104
        %v6159 = vunpack.c.l.b16 %v6105
        %v6160 = vunpack.c.l.b16 %v6106
        %v6161 = vunpack.c.h.b16 %v6106
        %v6162 = vunpack.c.l.b16 %v6107
        %v6163 = vunpack.c.l.b16 %v6108
        %v6164 = vunpack.c.h.b16 %v6108
        %v6165 = vunpack.c.l.b16 %v6109
        %v6166 = vunpack.c.l.b16 %v6110
        %v6167 = vunpack.c.h.b16 %v6110
        %v6168 = vunpack.c.l.b16 %v6111
        %v6169 = vunpack.c.l.b16 %v6112
        %v6170 = vunpack.c.h.b16 %v6112
        %v6171 = vunpack.c.l.b16 %v6113
        %v6172 = vpack.c.b16 %v6142, %v6139
        %v6173 = vpack.c.b16 %v6143, %v6140
        %v6174 = vpack.c.b16 %v6144, %v6141
        %v6175 = vpack.c.b16 %v6148, %v6145
        %v6176 = vpack.c.b16 %v6149, %v6146
        %v6177 = vpack.c.b16 %v6150, %v6147
        %v6178 = vpack.c.b16 %v6154, %v6151
        %v6179 = vpack.c.b16 %v6155, %v6152
        %v6180 = vpack.c.b16 %v6156, %v6153
        %v6181 = vpack.c.b16 %v6160, %v6157
        %v6182 = vpack.c.b16 %v6161, %v6158
        %v6183 = vpack.c.b16 %v6162, %v6159
        %v6184 = vpack.c.b16 %v6166, %v6163
        %v6185 = vpack.c.b16 %v6167, %v6164
        %v6186 = vpack.c.b16 %v6168, %v6165
        %v6187 = vpack.c.b16 %v6169, %v6169
        %v6188 = vpack.c.b16 %v6170, %v6170
        %v6189 = vpack.c.b16 %v6171, %v6171
        %v6238 = vunpack.c.l.b16 %v5163
        %v6239 = vunpack.c.l.b16 %v5164
        %v6240 = vunpack.c.l.b16 %v5165
        %v6241 = vunpack.c.l.b16 %v5166
        %v6242 = vunpack.c.l.b16 %v5167
        %v6243 = vunpack.c.l.b16 %v5168
        %v6244 = vunpack.c.l.b16 %v5169
        %v6245 = vunpack.c.l.b16 %v5170
        %v6246 = vunpack.c.l.b16 %v5171
        %v6247 = vunpack.c.l.b16 %v5172
        %v6248 = vunpack.c.l.b16 %v5173
        %v6249 = vunpack.c.l.b16 %v5174
        %v6250 = vunpack.c.l.b16 %v5175
        %v6251 = vunpack.c.l.b16 %v5176
        %v6252 = vunpack.c.l.b16 %v5177
        %v6253 = vunpack.c.l.b16 %v5178
        %v6254 = vunpack.c.l.b16 %v5179
        %v6255 = vunpack.c.l.b16 %v5180
        %v6256 = vunpack.c.l.b16 %v5181
        %v6257 = vunpack.c.l.b16 %v5182
        %v6258 = vunpack.c.l.b16 %v5183
        %v6259 = vunpack.c.l.b16 %v5184
        %v6260 = vunpack.c.l.b16 %v5185
        %v6261 = vunpack.c.l.b16 %v5186
        %v6262 = vunpack.c.l.b16 %v5187
        %v6263 = vunpack.c.l.b16 %v5188
        %v6264 = vunpack.c.l.b16 %v5189
        %v6265 = vunpack.c.l.b16 %v5190
        %v6266 = vunpack.c.l.b16 %v5191
        %v6267 = vunpack.c.l.b16 %v5192
        %v6268 = vunpack.c.l.b16 %v5193
        %v6269 = vunpack.c.l.b16 %v5194
        %v6270 = vunpack.c.l.b16 %v5195
        %v6271 = vunpack.c.l.b16 %v5196
        %v6272 = vunpack.c.l.b16 %v5197
        %v6273 = vunpack.c.l.b16 %v5198
        %v6274 = vpack.c.b16 %v6239, %v6238
        %v6275 = vpack.c.b16 %v6241, %v6240
        %v6276 = vpack.c.b16 %v6243, %v6242
        %v6277 = vpack.c.b16 %v6245, %v6244
        %v6278 = vpack.c.b16 %v6247, %v6246
        %v6279 = vpack.c.b16 %v6249, %v6248
        %v6280 = vpack.c.b16 %v6251, %v6250
        %v6281 = vpack.c.b16 %v6253, %v6252
        %v6282 = vpack.c.b16 %v6255, %v6254
        %v6283 = vpack.c.b16 %v6257, %v6256
        %v6284 = vpack.c.b16 %v6259, %v6258
        %v6285 = vpack.c.b16 %v6261, %v6260
        %v6286 = vpack.c.b16 %v6263, %v6262
        %v6287 = vpack.c.b16 %v6265, %v6264
        %v6288 = vpack.c.b16 %v6267, %v6266
        %v6289 = vpack.c.b16 %v6269, %v6268
        %v6290 = vpack.c.b16 %v6271, %v6270
        %v6291 = vpack.c.b16 %v6273, %v6272
        %v6311 = vsel %vm388, %v6174, 0
        %v6314 = vsel %vm388, %v6177, 0
        %v6317 = vsel %vm388, %v6180, 0
        %v6320 = vsel %vm388, %v6183, 0
        %v6323 = vsel %vm388, %v6186, 0
        %v6326 = vsel %vm388, %v6189, 0
        %6328 = vmatpush.bf16.msra.mxu0 %v6281
        %6329 = vmatpush.bf16.msra.mxu0 %v6280
        %6330 = vmatpush.bf16.msra.mxu0 %v6279
        %6331 = vmatpush.bf16.msra.mxu0 %v6278
        %6332 = vmatpush.bf16.msra.mxu0 %v6277
        %6333 = vmatpush.bf16.msra.mxu0 %v6276
        %6334 = vmatpush.bf16.msra.mxu0 %v6275
        %6335 = vmatpush.bf16.msra.mxu0 %v6274
        %6336 = vmatmul.bf16.gmra.mxu0 %v6172
        %v6337 = vpop.f32.mrf.mxu0
        %v6338 = vadd.f32 %v6115, %v6337
        %v6339 = vpop.f32.mrf.mxu0
        %v6340 = vadd.f32 %v6115, %v6339
        %6341 = vmatmul.bf16.gmra.mxu0 %v6175
        %v6342 = vpop.f32.mrf.mxu0
        %v6343 = vadd.f32 %v6115, %v6342
        %v6344 = vpop.f32.mrf.mxu0
        %v6345 = vadd.f32 %v6115, %v6344
        %6346 = vmatmul.bf16.gmra.mxu0 %v6178
        %v6347 = vpop.f32.mrf.mxu0
        %v6348 = vadd.f32 %v6115, %v6347
        %v6349 = vpop.f32.mrf.mxu0
        %v6350 = vadd.f32 %v6115, %v6349
        %6351 = vmatmul.bf16.gmra.mxu0 %v6181
        %v6352 = vpop.f32.mrf.mxu0
        %v6353 = vadd.f32 %v6115, %v6352
        %v6354 = vpop.f32.mrf.mxu0
        %v6355 = vadd.f32 %v6115, %v6354
        %6356 = vmatmul.bf16.gmra.mxu0 %v6184
        %v6357 = vpop.f32.mrf.mxu0
        %v6358 = vadd.f32 %v6115, %v6357
        %v6359 = vpop.f32.mrf.mxu0
        %v6360 = vadd.f32 %v6115, %v6359
        %6361 = vmatmul.bf16.gmra.mxu0 %v6187
        %v6362 = vpop.f32.mrf.mxu0
        %v6363 = vadd.f32 %v6115, %v6362
        %v6364 = vpop.f32.mrf.mxu0
        %6365 = vdwg.mxu0
        %6366 = vmatpush.bf16.msra.mxu0 %v6289
        %6367 = vmatpush.bf16.msra.mxu0 %v6288
        %6368 = vmatpush.bf16.msra.mxu0 %v6287
        %6369 = vmatpush.bf16.msra.mxu0 %v6286
        %6370 = vmatpush.bf16.msra.mxu0 %v6285
        %6371 = vmatpush.bf16.msra.mxu0 %v6284
        %6372 = vmatpush.bf16.msra.mxu0 %v6283
        %6373 = vmatpush.bf16.msra.mxu0 %v6282
        %6374 = vmatmul.bf16.gmra.mxu0 %v6173
        %v6375 = vpop.f32.mrf.mxu0
        %v6376 = vadd.f32 %v6338, %v6375
        %v6377 = vpop.f32.mrf.mxu0
        %v6378 = vadd.f32 %v6340, %v6377
        %6379 = vmatmul.bf16.gmra.mxu0 %v6176
        %v6380 = vpop.f32.mrf.mxu0
        %v6381 = vadd.f32 %v6343, %v6380
        %v6382 = vpop.f32.mrf.mxu0
        %v6383 = vadd.f32 %v6345, %v6382
        %6384 = vmatmul.bf16.gmra.mxu0 %v6179
        %v6385 = vpop.f32.mrf.mxu0
        %v6386 = vadd.f32 %v6348, %v6385
        %v6387 = vpop.f32.mrf.mxu0
        %v6388 = vadd.f32 %v6350, %v6387
        %6389 = vmatmul.bf16.gmra.mxu0 %v6182
        %v6390 = vpop.f32.mrf.mxu0
        %v6391 = vadd.f32 %v6353, %v6390
        %v6392 = vpop.f32.mrf.mxu0
        %v6393 = vadd.f32 %v6355, %v6392
        %6394 = vmatmul.bf16.gmra.mxu0 %v6185
        %v6395 = vpop.f32.mrf.mxu0
        %v6396 = vadd.f32 %v6358, %v6395
        %v6397 = vpop.f32.mrf.mxu0
        %v6398 = vadd.f32 %v6360, %v6397
        %6399 = vmatmul.bf16.gmra.mxu0 %v6188
        %v6400 = vpop.f32.mrf.mxu0
        %v6401 = vadd.f32 %v6363, %v6400
        %v6402 = vpop.f32.mrf.mxu0
        %6403 = vdwg.mxu0
        %6404 = vmatpush.bf16.msra.mxu0 0
        %6405 = vmatpush.bf16.msra.mxu0 0
        %6406 = vmatpush.bf16.msra.mxu0 0
        %6407 = vmatpush.bf16.msra.mxu0 0
        %6408 = vmatpush.bf16.msra.mxu0 0
        %6409 = vmatpush.bf16.msra.mxu0 0
        %6410 = vmatpush.bf16.msra.mxu0 %v6291
        %6411 = vmatpush.bf16.msra.mxu0 %v6290
        %6412 = vmatmul.bf16.gmra.mxu0 %v6311
        %v6413 = vpop.f32.mrf.mxu0
        %v6414 = vadd.f32 %v6376, %v6413
        %v6415 = vpop.f32.mrf.mxu0
        %v6416 = vadd.f32 %v6378, %v6415
        %6417 = vmatmul.bf16.gmra.mxu0 %v6314
        %v6418 = vpop.f32.mrf.mxu0
        %v6419 = vadd.f32 %v6381, %v6418
        %v6420 = vpop.f32.mrf.mxu0
        %v6421 = vadd.f32 %v6383, %v6420
        %6422 = vmatmul.bf16.gmra.mxu0 %v6317
        %v6423 = vpop.f32.mrf.mxu0
        %v6424 = vadd.f32 %v6386, %v6423
        %v6425 = vpop.f32.mrf.mxu0
        %v6426 = vadd.f32 %v6388, %v6425
        %6427 = vmatmul.bf16.gmra.mxu0 %v6320
        %v6428 = vpop.f32.mrf.mxu0
        %v6429 = vadd.f32 %v6391, %v6428
        %v6430 = vpop.f32.mrf.mxu0
        %v6431 = vadd.f32 %v6393, %v6430
        %6432 = vmatmul.bf16.gmra.mxu0 %v6323
        %v6433 = vpop.f32.mrf.mxu0
        %v6434 = vadd.f32 %v6396, %v6433
        %v6435 = vpop.f32.mrf.mxu0
        %v6436 = vadd.f32 %v6398, %v6435
        %6437 = vmatmul.bf16.gmra.mxu0 %v6326
        %v6438 = vpop.f32.mrf.mxu0
        %v6439 = vadd.f32 %v6401, %v6438
        %v6440 = vpop.f32.mrf.mxu0
        %6441 = vdwg.mxu0
        %v6442 = vmax.f32 %v6414, 0.0
        %v6443 = vmax.f32 %v6416, 0.0
        %v6444 = vmax.f32 %v6419, 0.0
        %v6445 = vmax.f32 %v6421, 0.0
        %v6446 = vmax.f32 %v6424, 0.0
        %v6447 = vmax.f32 %v6426, 0.0
        %v6448 = vmax.f32 %v6429, 0.0
        %v6449 = vmax.f32 %v6431, 0.0
        %v6450 = vmax.f32 %v6434, 0.0
        %v6451 = vmax.f32 %v6436, 0.0
        %v6452 = vmax.f32 %v6439, 0.0
        %s6453 = scalar_lea.vmem [#allocation6], %s5504
        %6454 = vst.msk [vmem:[%s6453 + $0x1] sm:$0xff] %vm388, %v6442
        %6455 = vst.msk [vmem:[%s6453 + $0x9] sm:$0xff] %vm388, %v6443
        %6456 = vst.msk [vmem:[%s6453 + $0x11] sm:$0xff] %vm388, %v6444
        %6457 = vst.msk [vmem:[%s6453 + $0x19] sm:$0xff] %vm388, %v6445
        %6458 = vst.msk [vmem:[%s6453 + $0x21] sm:$0xff] %vm388, %v6446
        %6459 = vst.msk [vmem:[%s6453 + $0x29] sm:$0xff] %vm388, %v6447
        %6460 = vst.msk [vmem:[%s6453 + $0x31] sm:$0xff] %vm388, %v6448
        %6461 = vst.msk [vmem:[%s6453 + $0x39] sm:$0xff] %vm388, %v6449
        %6462 = vst.msk [vmem:[%s6453 + $0x41] sm:$0xff] %vm388, %v6450
        %6463 = vst.msk [vmem:[%s6453 + $0x49] sm:$0xff] %vm388, %v6451
        %6464 = vst.msk [vmem:[%s6453 + $0x51] sm:$0x7] %vm641, %v6452
      $region90: #{decoder_forward.1} parent=63 // loop_footer
        %s5205 = sadd.s32 1, %s5201
      $region91: #{decoder_forward.1} parent=63 // loop_footer_branch
        %5200 = sbr.rel target = $region87
      $region92: #{decoder_forward.1} parent=63 // loop_exit
        _
      %v6465 = vld [vmem:[%s9] sm:$0xf]
      %v6466 = vld [vmem:[%s9 + $0x4] sm:$0xf]
      %v6467 = vld [vmem:[%s9 + $0x8] sm:$0xf]
      %v6468 = vld [vmem:[%s9 + $0xc] sm:$0xf]
      %v6469 = vld [vmem:[%s9 + $0x10] sm:$0xf]
      %v6470 = vld [vmem:[%s9 + $0x14] sm:$0xf]
      %v6471 = vld [vmem:[%s9 + $0x18] sm:$0xf]
      %v6472 = vld [vmem:[%s9 + $0x1c] sm:$0xf]
      %v6473 = vld [vmem:[%s9 + $0x20] sm:$0xf]
      %v6474 = vld [vmem:[%s9 + $0x24] sm:$0xf]
      %v6475 = vld [vmem:[%s9 + $0x28] sm:$0xf]
      %v6476 = vld [vmem:[%s9 + $0x2c] sm:$0xf]
      %v6477 = vld [vmem:[%s9 + $0x30] sm:$0xf]
      %v6478 = vld [vmem:[%s9 + $0x34] sm:$0xf]
      %v6479 = vld [vmem:[%s9 + $0x38] sm:$0xf]
      %v6480 = vld [vmem:[%s9 + $0x3c] sm:$0xf]
      %v6481 = vld [vmem:[%s10] sm:$0x1]
      loop: start=0, step=1, limit=84
      $region93: #{decoder_forward.1} parent=63 // loop_pre_header
        _
      $region94: #{decoder_forward.1} parent=63 // loop_header
        %s6483 = sphi 0, %s6487
        %p6484 = scmp.ge.s32.totalorder %s6483, 84
      $region95: #{decoder_forward.1} parent=63 // loop_header_branch
        %6486 = sbr.rel (%p6484) target = $region99
      $region96: #{decoder_forward.1} parent=63 // loop_body
        %s6488 = smul.u32 %s6483, 88
        %s6489 = scalar_lea.vmem [#allocation6], %s6488
        %v6490 = vld [vmem:[%s6489] sm:$0xff]
        %v6491 = vld [vmem:[%s6489 + $0x8] sm:$0xff]
        %v6492 = vld [vmem:[%s6489 + $0x10] sm:$0xff]
        %v6493 = vld [vmem:[%s6489 + $0x18] sm:$0xff]
        %v6494 = vld [vmem:[%s6489 + $0x20] sm:$0xff]
        %v6495 = vld [vmem:[%s6489 + $0x28] sm:$0xff]
        %v6496 = vld [vmem:[%s6489 + $0x30] sm:$0xff]
        %v6497 = vld [vmem:[%s6489 + $0x38] sm:$0xff]
        %v6498 = vld [vmem:[%s6489 + $0x40] sm:$0xff]
        %v6499 = vld [vmem:[%s6489 + $0x48] sm:$0xff]
        %v6500 = vld [vmem:[%s6489 + $0x50] sm:$0x1f]
        %v6501 = vpack.c.bf16 %v6490, %v6490
        %v6502 = vpack.c.bf16 %v6491, %v6491
        %v6503 = vpack.c.bf16 %v6492, %v6492
        %v6504 = vpack.c.bf16 %v6493, %v6493
        %v6505 = vpack.c.bf16 %v6494, %v6494
        %v6506 = vpack.c.bf16 %v6495, %v6495
        %v6507 = vpack.c.bf16 %v6496, %v6496
        %v6508 = vpack.c.bf16 %v6497, %v6497
        %v6509 = vpack.c.bf16 %v6498, %v6498
        %v6510 = vpack.c.bf16 %v6499, %v6499
        %v6511 = vpack.c.bf16 %v6500, %v6500
        %vm6512 = vcmask 257024
        %6513 = vst.msk [vmem:[#allocation2] sm:$0xf] %vm6512, %v6501
        %6514 = vst.msk [vmem:[#allocation2 + $0xc] sm:$0xf] %vm6512, %v6502
        %6515 = vst.msk [vmem:[#allocation2 + $0x18] sm:$0xf] %vm6512, %v6503
        %6516 = vst.msk [vmem:[#allocation2 + $0x24] sm:$0xf] %vm6512, %v6504
        %6517 = vst.msk [vmem:[#allocation2 + $0x30] sm:$0xf] %vm6512, %v6505
        %6518 = vst.msk [vmem:[#allocation2 + $0x3c] sm:$0xf] %vm6512, %v6506
        %6519 = vst.msk [vmem:[#allocation2 + $0x48] sm:$0xf] %vm6512, %v6507
        %6520 = vst.msk [vmem:[#allocation2 + $0x54] sm:$0xf] %vm6512, %v6508
        %6521 = vst.msk [vmem:[#allocation2 + $0x60] sm:$0xf] %vm6512, %v6509
        %6522 = vst.msk [vmem:[#allocation2 + $0x6c] sm:$0xf] %vm6512, %v6510
        %vm6523 = vcmask 254976
        %6524 = vst.msk [vmem:[#allocation2 + $0x78] sm:$0x3] %vm6523, %v6511
        %vm6525 = vsmask.f32 3328
        %vm6526 = vsmask.f32 7440
        %vm6527 = vmor %vm6525, %vm6526
        %v6529 = vshrl.u32 %v6501, 16
        %v6531 = vrot.slane %v6529, 4
        %v6532 = vshll.u32 %v6501, 16
        %v6534 = vrot.slane %v6532, 5
        %v6535 = vor.u32 %v6531, %v6534
        %v6536 = vrot.slane %v6535, 4
        %v6538 = vshll.u32 %v6502, 16
        %v6540 = vrot.slane %v6538, 5
        %v6541 = vsel %vm6527, %v6536, %v6540
        %v6542 = vshrl.u32 %v6502, 16
        %v6544 = vrot.slane %v6542, 4
        %v6545 = vor.u32 %v6544, %v6540
        %v6546 = vrot.slane %v6545, 4
        %v6548 = vshll.u32 %v6503, 16
        %v6550 = vrot.slane %v6548, 5
        %v6551 = vsel %vm6527, %v6546, %v6550
        %v6552 = vshrl.u32 %v6503, 16
        %v6554 = vrot.slane %v6552, 4
        %v6555 = vor.u32 %v6554, %v6550
        %v6556 = vrot.slane %v6555, 4
        %v6558 = vshll.u32 %v6504, 16
        %v6560 = vrot.slane %v6558, 5
        %v6561 = vsel %vm6527, %v6556, %v6560
        %v6562 = vshrl.u32 %v6504, 16
        %v6564 = vrot.slane %v6562, 4
        %v6565 = vor.u32 %v6564, %v6560
        %v6566 = vrot.slane %v6565, 4
        %v6568 = vshll.u32 %v6505, 16
        %v6570 = vrot.slane %v6568, 5
        %v6571 = vsel %vm6527, %v6566, %v6570
        %v6572 = vshrl.u32 %v6505, 16
        %v6574 = vrot.slane %v6572, 4
        %v6575 = vor.u32 %v6574, %v6570
        %v6576 = vrot.slane %v6575, 4
        %v6578 = vshll.u32 %v6506, 16
        %v6580 = vrot.slane %v6578, 5
        %v6581 = vsel %vm6527, %v6576, %v6580
        %v6582 = vshrl.u32 %v6506, 16
        %v6584 = vrot.slane %v6582, 4
        %v6585 = vor.u32 %v6584, %v6580
        %v6586 = vrot.slane %v6585, 4
        %v6588 = vshll.u32 %v6507, 16
        %v6590 = vrot.slane %v6588, 5
        %v6591 = vsel %vm6527, %v6586, %v6590
        %v6592 = vshrl.u32 %v6507, 16
        %v6594 = vrot.slane %v6592, 4
        %v6595 = vor.u32 %v6594, %v6590
        %v6596 = vrot.slane %v6595, 4
        %v6598 = vshll.u32 %v6508, 16
        %v6600 = vrot.slane %v6598, 5
        %v6601 = vsel %vm6527, %v6596, %v6600
        %v6602 = vshrl.u32 %v6508, 16
        %v6604 = vrot.slane %v6602, 4
        %v6605 = vor.u32 %v6604, %v6600
        %v6606 = vrot.slane %v6605, 4
        %v6608 = vshll.u32 %v6509, 16
        %v6610 = vrot.slane %v6608, 5
        %v6611 = vsel %vm6527, %v6606, %v6610
        %v6612 = vshrl.u32 %v6509, 16
        %v6614 = vrot.slane %v6612, 4
        %v6615 = vor.u32 %v6614, %v6610
        %v6616 = vrot.slane %v6615, 4
        %v6618 = vshll.u32 %v6510, 16
        %v6620 = vrot.slane %v6618, 5
        %v6621 = vsel %vm6527, %v6616, %v6620
        %v6622 = vshrl.u32 %v6510, 16
        %v6624 = vrot.slane %v6622, 4
        %v6625 = vor.u32 %v6624, %v6620
        %v6626 = vrot.slane %v6625, 4
        %v6628 = vshll.u32 %v6511, 16
        %v6630 = vrot.slane %v6628, 5
        %v6631 = vsel %vm6527, %v6626, %v6630
        %v6632 = vshrl.u32 %v6511, 16
        %v6634 = vrot.slane %v6632, 4
        %v6635 = vor.u32 %v6634, %v6630
        %v6636 = vrot.slane %v6635, 4
        %6637 = vrot.lane.b32.xlu0 %v6541, 32
        %v6638 = vpop.permute.xlu0 %6637
        %6639 = vrot.lane.b32.xlu0 %v6551, 32
        %v6640 = vpop.permute.xlu0 %6639
        %6641 = vrot.lane.b32.xlu0 %v6561, 32
        %v6642 = vpop.permute.xlu0 %6641
        %6643 = vrot.lane.b32.xlu0 %v6571, 32
        %v6644 = vpop.permute.xlu0 %6643
        %6645 = vrot.lane.b32.xlu0 %v6581, 32
        %v6646 = vpop.permute.xlu0 %6645
        %6647 = vrot.lane.b32.xlu0 %v6591, 32
        %v6648 = vpop.permute.xlu0 %6647
        %6649 = vrot.lane.b32.xlu0 %v6601, 32
        %v6650 = vpop.permute.xlu0 %6649
        %6651 = vrot.lane.b32.xlu0 %v6611, 32
        %v6652 = vpop.permute.xlu0 %6651
        %6653 = vrot.lane.b32.xlu0 %v6621, 32
        %v6654 = vpop.permute.xlu0 %6653
        %6655 = vrot.lane.b32.xlu0 %v6631, 32
        %v6656 = vpop.permute.xlu0 %6655
        %6657 = vrot.lane.b32.xlu0 %v6636, 32
        %v6658 = vpop.permute.xlu0 %6657
        %vm6670 = vcmask 519424
        %6671 = vst.msk [vmem:[#allocation2] sm:$0xf] %vm6670, %v6638
        %6672 = vst.msk [vmem:[#allocation2 + $0xc] sm:$0xf] %vm6670, %v6640
        %6673 = vst.msk [vmem:[#allocation2 + $0x18] sm:$0xf] %vm6670, %v6642
        %6674 = vst.msk [vmem:[#allocation2 + $0x24] sm:$0xf] %vm6670, %v6644
        %6675 = vst.msk [vmem:[#allocation2 + $0x30] sm:$0xf] %vm6670, %v6646
        %6676 = vst.msk [vmem:[#allocation2 + $0x3c] sm:$0xf] %vm6670, %v6648
        %6677 = vst.msk [vmem:[#allocation2 + $0x48] sm:$0xf] %vm6670, %v6650
        %6678 = vst.msk [vmem:[#allocation2 + $0x54] sm:$0xf] %vm6670, %v6652
        %6679 = vst.msk [vmem:[#allocation2 + $0x60] sm:$0xf] %vm6670, %v6654
        %6680 = vst.msk [vmem:[#allocation2 + $0x6c] sm:$0xf] %vm6670, %v6656
        %vm6681 = vcmask 517376
        %6682 = vst.msk [vmem:[#allocation2 + $0x78] sm:$0x3] %vm6681, %v6658
        %s6683 = sadd.s32 %s6483, 1
        %s6684 = smul.u32 %s6683, 88
        %s6685 = scalar_lea.vmem [#allocation6], %s6684
        %v6686 = vld [vmem:[%s6685] sm:$0xff]
        %v6687 = vld [vmem:[%s6685 + $0x8] sm:$0xff]
        %v6688 = vld [vmem:[%s6685 + $0x10] sm:$0xff]
        %v6689 = vld [vmem:[%s6685 + $0x18] sm:$0xff]
        %v6690 = vld [vmem:[%s6685 + $0x20] sm:$0xff]
        %v6691 = vld [vmem:[%s6685 + $0x28] sm:$0xff]
        %v6692 = vld [vmem:[%s6685 + $0x30] sm:$0xff]
        %v6693 = vld [vmem:[%s6685 + $0x38] sm:$0xff]
        %v6694 = vld [vmem:[%s6685 + $0x40] sm:$0xff]
        %v6695 = vld [vmem:[%s6685 + $0x48] sm:$0xff]
        %v6696 = vld [vmem:[%s6685 + $0x50] sm:$0x1f]
        %v6697 = vpack.c.bf16 %v6686, %v6686
        %v6698 = vpack.c.bf16 %v6687, %v6687
        %v6699 = vpack.c.bf16 %v6688, %v6688
        %v6700 = vpack.c.bf16 %v6689, %v6689
        %v6701 = vpack.c.bf16 %v6690, %v6690
        %v6702 = vpack.c.bf16 %v6691, %v6691
        %v6703 = vpack.c.bf16 %v6692, %v6692
        %v6704 = vpack.c.bf16 %v6693, %v6693
        %v6705 = vpack.c.bf16 %v6694, %v6694
        %v6706 = vpack.c.bf16 %v6695, %v6695
        %v6707 = vpack.c.bf16 %v6696, %v6696
        %6719 = vrot.lane.b32.xlu0 %v6697, 64
        %v6720 = vpop.permute.xlu0 %6719
        %6721 = vrot.lane.b32.xlu0 %v6698, 64
        %v6722 = vpop.permute.xlu0 %6721
        %6723 = vrot.lane.b32.xlu0 %v6699, 64
        %v6724 = vpop.permute.xlu0 %6723
        %6725 = vrot.lane.b32.xlu0 %v6700, 64
        %v6726 = vpop.permute.xlu0 %6725
        %6727 = vrot.lane.b32.xlu0 %v6701, 64
        %v6728 = vpop.permute.xlu0 %6727
        %6729 = vrot.lane.b32.xlu0 %v6702, 64
        %v6730 = vpop.permute.xlu0 %6729
        %6731 = vrot.lane.b32.xlu0 %v6703, 64
        %v6732 = vpop.permute.xlu0 %6731
        %6733 = vrot.lane.b32.xlu0 %v6704, 64
        %v6734 = vpop.permute.xlu0 %6733
        %6735 = vrot.lane.b32.xlu0 %v6705, 64
        %v6736 = vpop.permute.xlu0 %6735
        %6737 = vrot.lane.b32.xlu0 %v6706, 64
        %v6738 = vpop.permute.xlu0 %6737
        %6739 = vrot.lane.b32.xlu0 %v6707, 64
        %v6740 = vpop.permute.xlu0 %6739
        %vm6752 = vcmask 781824
        %6753 = vst.msk [vmem:[#allocation2] sm:$0xf] %vm6752, %v6720
        %6754 = vst.msk [vmem:[#allocation2 + $0xc] sm:$0xf] %vm6752, %v6722
        %6755 = vst.msk [vmem:[#allocation2 + $0x18] sm:$0xf] %vm6752, %v6724
        %6756 = vst.msk [vmem:[#allocation2 + $0x24] sm:$0xf] %vm6752, %v6726
        %6757 = vst.msk [vmem:[#allocation2 + $0x30] sm:$0xf] %vm6752, %v6728
        %6758 = vst.msk [vmem:[#allocation2 + $0x3c] sm:$0xf] %vm6752, %v6730
        %6759 = vst.msk [vmem:[#allocation2 + $0x48] sm:$0xf] %vm6752, %v6732
        %6760 = vst.msk [vmem:[#allocation2 + $0x54] sm:$0xf] %vm6752, %v6734
        %6761 = vst.msk [vmem:[#allocation2 + $0x60] sm:$0xf] %vm6752, %v6736
        %6762 = vst.msk [vmem:[#allocation2 + $0x6c] sm:$0xf] %vm6752, %v6738
        %vm6763 = vcmask 779776
        %6764 = vst.msk [vmem:[#allocation2 + $0x78] sm:$0x3] %vm6763, %v6740
        %v6766 = vshrl.u32 %v6697, 16
        %v6768 = vrot.slane %v6766, 4
        %v6769 = vshll.u32 %v6697, 16
        %v6771 = vrot.slane %v6769, 5
        %v6772 = vor.u32 %v6768, %v6771
        %v6773 = vrot.slane %v6772, 4
        %v6775 = vshll.u32 %v6698, 16
        %v6777 = vrot.slane %v6775, 5
        %v6778 = vsel %vm6527, %v6773, %v6777
        %v6779 = vshrl.u32 %v6698, 16
        %v6781 = vrot.slane %v6779, 4
        %v6782 = vor.u32 %v6781, %v6777
        %v6783 = vrot.slane %v6782, 4
        %v6785 = vshll.u32 %v6699, 16
        %v6787 = vrot.slane %v6785, 5
        %v6788 = vsel %vm6527, %v6783, %v6787
        %v6789 = vshrl.u32 %v6699, 16
        %v6791 = vrot.slane %v6789, 4
        %v6792 = vor.u32 %v6791, %v6787
        %v6793 = vrot.slane %v6792, 4
        %v6795 = vshll.u32 %v6700, 16
        %v6797 = vrot.slane %v6795, 5
        %v6798 = vsel %vm6527, %v6793, %v6797
        %v6799 = vshrl.u32 %v6700, 16
        %v6801 = vrot.slane %v6799, 4
        %v6802 = vor.u32 %v6801, %v6797
        %v6803 = vrot.slane %v6802, 4
        %v6805 = vshll.u32 %v6701, 16
        %v6807 = vrot.slane %v6805, 5
        %v6808 = vsel %vm6527, %v6803, %v6807
        %v6809 = vshrl.u32 %v6701, 16
        %v6811 = vrot.slane %v6809, 4
        %v6812 = vor.u32 %v6811, %v6807
        %v6813 = vrot.slane %v6812, 4
        %v6815 = vshll.u32 %v6702, 16
        %v6817 = vrot.slane %v6815, 5
        %v6818 = vsel %vm6527, %v6813, %v6817
        %v6819 = vshrl.u32 %v6702, 16
        %v6821 = vrot.slane %v6819, 4
        %v6822 = vor.u32 %v6821, %v6817
        %v6823 = vrot.slane %v6822, 4
        %v6825 = vshll.u32 %v6703, 16
        %v6827 = vrot.slane %v6825, 5
        %v6828 = vsel %vm6527, %v6823, %v6827
        %v6829 = vshrl.u32 %v6703, 16
        %v6831 = vrot.slane %v6829, 4
        %v6832 = vor.u32 %v6831, %v6827
        %v6833 = vrot.slane %v6832, 4
        %v6835 = vshll.u32 %v6704, 16
        %v6837 = vrot.slane %v6835, 5
        %v6838 = vsel %vm6527, %v6833, %v6837
        %v6839 = vshrl.u32 %v6704, 16
        %v6841 = vrot.slane %v6839, 4
        %v6842 = vor.u32 %v6841, %v6837
        %v6843 = vrot.slane %v6842, 4
        %v6845 = vshll.u32 %v6705, 16
        %v6847 = vrot.slane %v6845, 5
        %v6848 = vsel %vm6527, %v6843, %v6847
        %v6849 = vshrl.u32 %v6705, 16
        %v6851 = vrot.slane %v6849, 4
        %v6852 = vor.u32 %v6851, %v6847
        %v6853 = vrot.slane %v6852, 4
        %v6855 = vshll.u32 %v6706, 16
        %v6857 = vrot.slane %v6855, 5
        %v6858 = vsel %vm6527, %v6853, %v6857
        %v6859 = vshrl.u32 %v6706, 16
        %v6861 = vrot.slane %v6859, 4
        %v6862 = vor.u32 %v6861, %v6857
        %v6863 = vrot.slane %v6862, 4
        %v6865 = vshll.u32 %v6707, 16
        %v6867 = vrot.slane %v6865, 5
        %v6868 = vsel %vm6527, %v6863, %v6867
        %v6869 = vshrl.u32 %v6707, 16
        %v6871 = vrot.slane %v6869, 4
        %v6872 = vor.u32 %v6871, %v6867
        %v6873 = vrot.slane %v6872, 4
        %6874 = vrot.lane.b32.xlu0 %v6778, 96
        %v6875 = vpop.permute.xlu0 %6874
        %6876 = vrot.lane.b32.xlu0 %v6788, 96
        %v6877 = vpop.permute.xlu0 %6876
        %6878 = vrot.lane.b32.xlu0 %v6798, 96
        %v6879 = vpop.permute.xlu0 %6878
        %6880 = vrot.lane.b32.xlu0 %v6808, 96
        %v6881 = vpop.permute.xlu0 %6880
        %6882 = vrot.lane.b32.xlu0 %v6818, 96
        %v6883 = vpop.permute.xlu0 %6882
        %6884 = vrot.lane.b32.xlu0 %v6828, 96
        %v6885 = vpop.permute.xlu0 %6884
        %6886 = vrot.lane.b32.xlu0 %v6838, 96
        %v6887 = vpop.permute.xlu0 %6886
        %6888 = vrot.lane.b32.xlu0 %v6848, 96
        %v6889 = vpop.permute.xlu0 %6888
        %6890 = vrot.lane.b32.xlu0 %v6858, 96
        %v6891 = vpop.permute.xlu0 %6890
        %6892 = vrot.lane.b32.xlu0 %v6868, 96
        %v6893 = vpop.permute.xlu0 %6892
        %6894 = vrot.lane.b32.xlu0 %v6873, 96
        %v6895 = vpop.permute.xlu0 %6894
        %vm6907 = vcmask 1044224
        %6908 = vst.msk [vmem:[#allocation2] sm:$0xf] %vm6907, %v6875
        %6909 = vst.msk [vmem:[#allocation2 + $0xc] sm:$0xf] %vm6907, %v6877
        %6910 = vst.msk [vmem:[#allocation2 + $0x18] sm:$0xf] %vm6907, %v6879
        %6911 = vst.msk [vmem:[#allocation2 + $0x24] sm:$0xf] %vm6907, %v6881
        %6912 = vst.msk [vmem:[#allocation2 + $0x30] sm:$0xf] %vm6907, %v6883
        %6913 = vst.msk [vmem:[#allocation2 + $0x3c] sm:$0xf] %vm6907, %v6885
        %6914 = vst.msk [vmem:[#allocation2 + $0x48] sm:$0xf] %vm6907, %v6887
        %6915 = vst.msk [vmem:[#allocation2 + $0x54] sm:$0xf] %vm6907, %v6889
        %6916 = vst.msk [vmem:[#allocation2 + $0x60] sm:$0xf] %vm6907, %v6891
        %6917 = vst.msk [vmem:[#allocation2 + $0x6c] sm:$0xf] %vm6907, %v6893
        %vm6918 = vcmask 1042176
        %6919 = vst.msk [vmem:[#allocation2 + $0x78] sm:$0x3] %vm6918, %v6895
        %v6920 = vld [vmem:[#allocation2] sm:$0xf]
        %v6921 = vld [vmem:[#allocation2 + $0xc] sm:$0xf]
        %v6922 = vld [vmem:[#allocation2 + $0x18] sm:$0xf]
        %v6923 = vld [vmem:[#allocation2 + $0x24] sm:$0xf]
        %v6924 = vld [vmem:[#allocation2 + $0x30] sm:$0xf]
        %v6925 = vld [vmem:[#allocation2 + $0x3c] sm:$0xf]
        %v6926 = vld [vmem:[#allocation2 + $0x48] sm:$0xf]
        %v6927 = vld [vmem:[#allocation2 + $0x54] sm:$0xf]
        %v6928 = vld [vmem:[#allocation2 + $0x60] sm:$0xf]
        %v6929 = vld [vmem:[#allocation2 + $0x6c] sm:$0xf]
        %v6930 = vld [vmem:[#allocation2 + $0x78] sm:$0x3]
        %v6932 = vperm.slane %v6481, 0
        %v6945 = vunpack.c.l.b16 %v6920
        %v6946 = vunpack.c.l.b16 %v6921
        %v6947 = vunpack.c.l.b16 %v6922
        %v6948 = vunpack.c.l.b16 %v6923
        %v6949 = vunpack.c.l.b16 %v6924
        %v6950 = vunpack.c.l.b16 %v6925
        %v6951 = vunpack.c.l.b16 %v6926
        %v6952 = vunpack.c.l.b16 %v6927
        %v6953 = vunpack.c.l.b16 %v6928
        %v6954 = vunpack.c.l.b16 %v6929
        %v6955 = vunpack.c.l.b16 %v6930
        %v6956 = vpack.c.b16 %v6946, %v6945
        %v6957 = vpack.c.b16 %v6948, %v6947
        %v6958 = vpack.c.b16 %v6950, %v6949
        %v6959 = vpack.c.b16 %v6952, %v6951
        %v6960 = vpack.c.b16 %v6954, %v6953
        %v6961 = vpack.c.b16 %v6955, %v6955
        %v6984 = vunpack.c.l.b16 %v6465
        %v6985 = vunpack.c.l.b16 %v6466
        %v6986 = vunpack.c.l.b16 %v6467
        %v6987 = vunpack.c.l.b16 %v6468
        %v6988 = vunpack.c.l.b16 %v6469
        %v6989 = vunpack.c.l.b16 %v6470
        %v6990 = vunpack.c.l.b16 %v6471
        %v6991 = vunpack.c.l.b16 %v6472
        %v6992 = vunpack.c.l.b16 %v6473
        %v6993 = vunpack.c.l.b16 %v6474
        %v6994 = vunpack.c.l.b16 %v6475
        %v6995 = vunpack.c.l.b16 %v6476
        %v6996 = vunpack.c.l.b16 %v6477
        %v6997 = vunpack.c.l.b16 %v6478
        %v6998 = vunpack.c.l.b16 %v6479
        %v6999 = vunpack.c.l.b16 %v6480
        %v7000 = vpack.c.b16 %v6985, %v6984
        %v7001 = vpack.c.b16 %v6987, %v6986
        %v7002 = vpack.c.b16 %v6989, %v6988
        %v7003 = vpack.c.b16 %v6991, %v6990
        %v7004 = vpack.c.b16 %v6993, %v6992
        %v7005 = vpack.c.b16 %v6995, %v6994
        %v7006 = vpack.c.b16 %v6997, %v6996
        %v7007 = vpack.c.b16 %v6999, %v6998
        %7016 = vmatpush.bf16.msra.mxu0 %v7007
        %7017 = vmatpush.bf16.msra.mxu0 %v7006
        %7018 = vmatpush.bf16.msra.mxu0 %v7005
        %7019 = vmatpush.bf16.msra.mxu0 %v7004
        %7020 = vmatpush.bf16.msra.mxu0 %v7003
        %7021 = vmatpush.bf16.msra.mxu0 %v7002
        %7022 = vmatpush.bf16.msra.mxu0 %v7001
        %7023 = vmatpush.bf16.msra.mxu0 %v7000
        %7024 = vmatmul.bf16.gmra.mxu0 %v6956
        %v7025 = vpop.f32.mrf.mxu0
        %v7026 = vadd.f32 %v6932, %v7025
        %v7027 = vpop.f32.mrf.mxu0
        %v7028 = vadd.f32 %v6932, %v7027
        %7029 = vmatmul.bf16.gmra.mxu0 %v6957
        %v7030 = vpop.f32.mrf.mxu0
        %v7031 = vadd.f32 %v6932, %v7030
        %v7032 = vpop.f32.mrf.mxu0
        %v7033 = vadd.f32 %v6932, %v7032
        %7034 = vmatmul.bf16.gmra.mxu0 %v6958
        %v7035 = vpop.f32.mrf.mxu0
        %v7036 = vadd.f32 %v6932, %v7035
        %v7037 = vpop.f32.mrf.mxu0
        %v7038 = vadd.f32 %v6932, %v7037
        %7039 = vmatmul.bf16.gmra.mxu0 %v6959
        %v7040 = vpop.f32.mrf.mxu0
        %v7041 = vadd.f32 %v6932, %v7040
        %v7042 = vpop.f32.mrf.mxu0
        %v7043 = vadd.f32 %v6932, %v7042
        %7044 = vmatmul.bf16.gmra.mxu0 %v6960
        %v7045 = vpop.f32.mrf.mxu0
        %v7046 = vadd.f32 %v6932, %v7045
        %v7047 = vpop.f32.mrf.mxu0
        %v7048 = vadd.f32 %v6932, %v7047
        %7049 = vmatmul.bf16.gmra.mxu0 %v6961
        %v7050 = vpop.f32.mrf.mxu0
        %v7051 = vadd.f32 %v6932, %v7050
        %v7052 = vpop.f32.mrf.mxu0
        %7053 = vdwg.mxu0
        %s7054 = scalar_lea.vmem %s386, %s6488
        %7055 = vst.msk [vmem:[%s7054] sm:$0xff] %vm388, %v7026
        %7056 = vst.msk [vmem:[%s7054 + $0x8] sm:$0xff] %vm388, %v7028
        %7057 = vst.msk [vmem:[%s7054 + $0x10] sm:$0xff] %vm388, %v7031
        %7058 = vst.msk [vmem:[%s7054 + $0x18] sm:$0xff] %vm388, %v7033
        %7059 = vst.msk [vmem:[%s7054 + $0x20] sm:$0xff] %vm388, %v7036
        %7060 = vst.msk [vmem:[%s7054 + $0x28] sm:$0xff] %vm388, %v7038
        %7061 = vst.msk [vmem:[%s7054 + $0x30] sm:$0xff] %vm388, %v7041
        %7062 = vst.msk [vmem:[%s7054 + $0x38] sm:$0xff] %vm388, %v7043
        %7063 = vst.msk [vmem:[%s7054 + $0x40] sm:$0xff] %vm388, %v7046
        %7064 = vst.msk [vmem:[%s7054 + $0x48] sm:$0xff] %vm388, %v7048
        %7065 = vst.msk [vmem:[%s7054 + $0x50] sm:$0xf] %vm6512, %v7051
      $region97: #{decoder_forward.1} parent=63 // loop_footer
        %s6487 = sadd.s32 1, %s6483
      $region98: #{decoder_forward.1} parent=63 // loop_footer_branch
        %6482 = sbr.rel target = $region94
      $region99: #{decoder_forward.1} parent=63 // loop_exit
        _
      %p7066 = scmp.lt.s32.totalorder %s22, 1
      %s7067 = scalar_select %p7066, %s22, 1
      %s7068 = smul.addr %s7067, 924
      %s7069 = smul.addr %s7068, 8
      %s7070 = scalar_lea.vmem %s11, %s7069
      // Predicated region
      $region100: #{decoder_forward.1} parent=63 // pred_check
        %p7071 = pneg %p276
      $region101: #{decoder_forward.1} parent=63 // pred_check_branch
        %7073 = sbr.rel (%p7071) target = $region103
      $region102: #{decoder_forward.1} parent=63 // pred_region
        _
      $region103: #{decoder_forward.1} parent=63 // pred_fallthru
        _
    $region64: #{decoder_forward.1} parent=5 // pred_fallthru
      _
    %p7074 = scmp.le.s32.totalorder 2, %s17
    // Predicated region
    $region104: #{decoder_forward.1} parent=5 // pred_check
      %p7075 = pneg %p7074
    $region105: #{decoder_forward.1} parent=5 // pred_check_branch
      %7077 = sbr.rel (%p7075) target = $region107
    $region106: #{decoder_forward.1} parent=5 // pred_region
      %s7078 = ssub.s32 %s17, 2
      // Predicated region
      $region108: #{decoder_forward.1} parent=106 // pred_check
        %p7079 = pneg %p282
      $region109: #{decoder_forward.1} parent=106 // pred_check_branch
        %7081 = sbr.rel (%p7079) target = $region111
      $region110: #{decoder_forward.1} parent=106 // pred_region
        %p7082 = scmp.lt.s32.totalorder %s23, 1
        %s7083 = scalar_select %p7082, %s23, 1
        %s7084 = smul.addr %s7083, 924
        %s7085 = smul.addr %s7084, 8
        %s7086 = scalar_lea.vmem %s11, %s7085
      $region111: #{decoder_forward.1} parent=106 // pred_fallthru
        _
    $region107: #{decoder_forward.1} parent=5 // pred_fallthru
      _
  $region6: #{decoder_forward.1} parent=0 // loop_footer
    %s21 = sadd.s32 1, %s17
  $region7: #{decoder_forward.1} parent=0 // loop_footer_branch
    %16 = sbr.rel target = $region3
  $region8: #{decoder_forward.1} parent=0 // loop_exit
    _

</llo_original>
